<compile_context>
chip_gen: v5e
topology: v5e:2x2
jax: 0.10.0
libtpu: 0.0.40
codegen_flags: <defaults>
</compile_context>

<pallas_src>
import functools
import math

import jax
import jax.numpy as jnp
from jax import lax
from jax.experimental import pallas as pl
from jax.experimental.pallas import tpu as pltpu

D_MODEL = 434
NPS_DIM = 3
LN_EPS = 1e-5
BN_EPS = 1e-5
LANE = 128

_VMEM = pl.BlockSpec(memory_space=pltpu.MemorySpace.VMEM)
_ANY = pl.BlockSpec(memory_space=pl.ANY)


def _rup(x, m=LANE):
    return (x + m - 1) // m * m


def _make_layout(num_layers, num_heads, dim_ff, fc_hidden):
    assert D_MODEL % num_heads == 0, "num_heads must divide 434"
    dp = _rup(D_MODEL)
    dh = D_MODEL // num_heads
    dh_pad = _rup(dh)
    qp = num_heads * dh_pad
    ffp = _rup(dim_ff)
    fcp = tuple(_rup(h) for h in fc_hidden)
    outp = _rup(2)
    wa = max(dp, qp)                    # lane width of the "wide" weight class
    wb = max((ffp, outp) + fcp)         # lane width of the "narrow" class
    wv = max(wa, wb)                    # lane width of the bias/gain rows
    rows_a_layer = 3 * dp + qp + ffp    # q, k, v, out-proj, ffn-2
    rows_b_layer = dp                   # ffn-1
    rows_v = 10 * num_layers + len(fc_hidden) + 1
    return dict(dp=dp, dh=dh, dh_pad=dh_pad, qp=qp, ffp=ffp, fcp=fcp,
                outp=outp, wa=wa, wb=wb, wv=wv,
                rows_a_layer=rows_a_layer, rows_b_layer=rows_b_layer,
                rows_v=rows_v)


# ------------------------------ fused kernel ------------------------------

def _fused_kernel(*refs, num_layers, num_heads, L):
    dp, qp, dh_pad, ffp = L["dp"], L["qp"], L["dh_pad"], L["ffp"]
    fcp, outp = L["fcp"], L["outp"]
    has_rest_a = num_layers > 1

    it = iter(refs)
    act_ref = next(it)
    vec_ref = next(it)
    a0_ref = next(it)
    b0_ref = next(it)
    arest_hbm = next(it) if has_rest_a else None
    brest_hbm = next(it)
    out_ref = next(it)
    arest_vmem = next(it) if has_rest_a else None
    brest_vmem = next(it)
    sem = next(it)

    # Kick off the HBM->VMEM weight streams for layers >= 1 and the FC head;
    # they land while layer-0 compute runs (latency hiding).
    if has_rest_a:
        cp_a = pltpu.make_async_copy(arest_hbm, arest_vmem, sem.at[0])
        cp_a.start()
    cp_b = pltpu.make_async_copy(brest_hbm, brest_vmem, sem.at[1])
    cp_b.start()

    inv_d = 1.0 / D_MODEL
    scale = 1.0 / math.sqrt(L["dh"])
    valid = lax.broadcasted_iota(jnp.int32, (1, dp), 1) < D_MODEL

    def matmul(a, w):
        # bf16 operands, f32 accumulation on the MXU.
        return jnp.dot(a.astype(w.dtype), w, preferred_element_type=jnp.float32)

    def vrow(r, width):
        return vec_ref[r:r + 1, :width]            # (1, width) f32

    def layernorm(z, r_gain, r_bias):
        # Statistics over the 434 valid features only (pad cols of z are 0).
        mean = jnp.sum(z, axis=-1, keepdims=True) * inv_d
        c = z - mean
        cm = jnp.where(valid, c, 0.0)
        var = jnp.sum(cm * cm, axis=-1, keepdims=True) * inv_d
        return c * lax.rsqrt(var + LN_EPS) * vrow(r_gain, dp) + vrow(r_bias, dp)

    x = act_ref[:, :dp]                            # (N, dp) residual stream

    for l in range(num_layers):
        if l == 0:
            A, a_base = a0_ref, 0
            B, b_base = b0_ref, 0
        else:
            if l == 1:                              # weights for layers >= 1
                cp_a.wait()                         # arrive here at the latest
                cp_b.wait()
            A = arest_vmem
            a_base = (l - 1) * L["rows_a_layer"]
            B = brest_vmem
            b_base = (l - 1) * L["rows_b_layer"]
        vb = 10 * l

        # ---- multi-head self-attention (dropout = eval no-op) -------------
        q = matmul(x, A[a_base:a_base + dp, :qp]) + vrow(vb + 0, qp)
        k = matmul(x, A[a_base + dp:a_base + 2 * dp, :qp]) + vrow(vb + 1, qp)
        v = matmul(x, A[a_base + 2 * dp:a_base + 3 * dp, :qp]) + vrow(vb + 2, qp)

        heads = []
        for h in range(num_heads):                  # statically unrolled
            lo, hi = h * dh_pad, (h + 1) * dh_pad
            qh = q[:, lo:hi].astype(jnp.bfloat16)
            kh = k[:, lo:hi].astype(jnp.bfloat16)
            vh = v[:, lo:hi].astype(jnp.bfloat16)
            s = lax.dot_general(qh, kh, (((1,), (1,)), ((), ())),
                                preferred_element_type=jnp.float32) * scale
            m = jnp.max(s, axis=-1, keepdims=True)
            p = jnp.exp(s - m)
            inv = pl.reciprocal(jnp.sum(p, axis=-1, keepdims=True), approx=True)
            heads.append(jnp.dot((p * inv).astype(jnp.bfloat16), vh,
                                 preferred_element_type=jnp.float32))
        oh = jnp.concatenate(heads, axis=-1)        # (N, qp), lane-aligned

        # Merged output projection: one MXU chain across all heads.
        attn = (matmul(oh, A[a_base + 3 * dp:a_base + 3 * dp + qp, :dp])
                + vrow(vb + 3, dp))
        x = layernorm(x + attn, vb + 4, vb + 5)

        # ---- feed-forward block --------------------------------------------
        ff = jnp.maximum(matmul(x, B[b_base:b_base + dp, :ffp])
                         + vrow(vb + 6, ffp), 0.0)
        ff = (matmul(ff, A[a_base + 3 * dp + qp:a_base + 3 * dp + qp + ffp, :dp])
              + vrow(vb + 7, dp))
        x = layernorm(x + ff, vb + 8, vb + 9)

    if num_layers == 1:
        cp_b.wait()                                 # FC weights still in flight

    # ---------------- FC head (BatchNorm folded, eval mode) ----------------
    # nps is injected into the guaranteed-zero pad lanes (434:437) of the
    # post-encoder activations, so ONE matmul covers concat(nps, h).
    fc_row = (num_layers - 1) * L["rows_b_layer"]
    vfc = 10 * num_layers
    x_cat = x + act_ref[:, dp:]                     # pad cols of x are exactly 0
    a = jnp.maximum(matmul(x_cat, brest_vmem[fc_row:fc_row + dp, :fcp[0]])
                    + vrow(vfc, fcp[0]), 0.0)
    fc_row += dp
    for i in range(1, len(fcp)):
        a = jnp.maximum(
            matmul(a, brest_vmem[fc_row:fc_row + fcp[i - 1], :fcp[i]])
            + vrow(vfc + i, fcp[i]), 0.0)
        fc_row += fcp[i - 1]
    out = (matmul(a, brest_vmem[fc_row:fc_row + fcp[-1], :outp])
           + vrow(vfc + len(fcp), outp))
    out_ref[...] = out.astype(out_ref.dtype)


# ------------------------- parameters & preparation ------------------------

def init_params(key, num_layers, dim_ff, fc_hidden):
    keys = iter(jax.random.split(key, 256))

    def w(shape, scale=0.05):
        return jax.random.normal(next(keys), shape, jnp.float32) * scale

    d = D_MODEL
    enc = []
    for _ in range(num_layers):
        enc.append(dict(
            in_proj_w=w((d, 3 * d)), in_proj_b=w((3 * d,)),
            out_proj_w=w((d, d)), out_proj_b=w((d,)),
            ln1_g=jnp.ones((d,), jnp.float32), ln1_b=jnp.zeros((d,), jnp.float32),
            lin1_w=w((d, dim_ff)), lin1_b=w((dim_ff,)),
            lin2_w=w((dim_ff, d)), lin2_b=w((d,)),
            ln2_g=jnp.ones((d,), jnp.float32), ln2_b=jnp.zeros((d,), jnp.float32),
        ))

    hidden = []
    prev = NPS_DIM + d
    for hsz in fc_hidden:
        hidden.append(dict(
            w=w((prev, hsz)), b=w((hsz,)),
            bn_g=jnp.ones((hsz,), jnp.float32),
            bn_b=jnp.zeros((hsz,), jnp.float32),
            bn_rm=jnp.zeros((hsz,), jnp.float32),
            bn_rv=jnp.ones((hsz,), jnp.float32),
        ))
        prev = hsz
    fc = dict(hidden=hidden, out_w=w((prev, 2)), out_b=w((2,)))
    return dict(encoder_layers=enc, fc=fc)


def prepare_params(params, num_heads, weight_dtype=jnp.bfloat16):
    """Pad / head-rearrange / BN-fold weights and pack them into 4 bf16 weight
    buffers + 1 f32 bias/gain buffer (kernel layout described above)."""
    layers = params["encoder_layers"]
    num_layers = len(layers)
    fc = params["fc"]
    fc_hidden = [int(h["w"].shape[1]) for h in fc["hidden"]]
    dim_ff = int(layers[0]["lin1_w"].shape[1])
    L = _make_layout(num_layers, num_heads, dim_ff, fc_hidden)
    dp, dh, dh_pad, qp = L["dp"], L["dh"], L["dh_pad"], L["qp"]
    ffp, fcp = L["ffp"], L["fcp"]
    wa, wb, wv = L["wa"], L["wb"], L["wv"]

    def pad2(a, rows, cols):
        out = jnp.zeros((rows, cols), jnp.float32)
        return out.at[:a.shape[0], :a.shape[1]].set(a)

    def pad_vec(a, cols):
        out = jnp.zeros((cols,), jnp.float32)
        return out.at[:a.shape[0]].set(a)

    def head_cols(a):                       # (rows, 434) -> (rows, qp)
        out = jnp.zeros((a.shape[0], qp), jnp.float32)
        for h in range(num_heads):
            out = out.at[:, h * dh_pad:h * dh_pad + dh].set(
                a[:, h * dh:(h + 1) * dh])
        return out

    def head_vec(a):                        # (434,) -> (qp,)
        out = jnp.zeros((qp,), jnp.float32)
        for h in range(num_heads):
            out = out.at[h * dh_pad:h * dh_pad + dh].set(a[h * dh:(h + 1) * dh])
        return out

    def head_rows(a):                       # (434, cols) -> (qp, cols)
        out = jnp.zeros((qp, a.shape[1]), jnp.float32)
        for h in range(num_heads):
            out = out.at[h * dh_pad:h * dh_pad + dh, :].set(
                a[h * dh:(h + 1) * dh, :])
        return out

    a_blocks, b_blocks, v_rows = [], [], []
    for lp in layers:
        wq, wk, wv_ = jnp.split(lp["in_proj_w"], 3, axis=1)
        bq, bk, bv = jnp.split(lp["in_proj_b"], 3)
        a_blocks.append(jnp.concatenate([
            pad2(head_cols(wq), dp, wa),
            pad2(head_cols(wk), dp, wa),
            pad2(head_cols(wv_), dp, wa),
            pad2(head_rows(lp["out_proj_w"]), qp, wa),
            pad2(lp["lin2_w"], ffp, wa),
        ], axis=0))
        b_blocks.append(pad2(lp["lin1_w"], dp, wb))
        v_rows += [pad_vec(head_vec(bq), wv), pad_vec(head_vec(bk), wv),
                   pad_vec(head_vec(bv), wv), pad_vec(lp["out_proj_b"], wv),
                   pad_vec(lp["ln1_g"], wv), pad_vec(lp["ln1_b"], wv),
                   pad_vec(lp["lin1_b"], wv), pad_vec(lp["lin2_b"], wv),
                   pad_vec(lp["ln2_g"], wv), pad_vec(lp["ln2_b"], wv)]

    # FC head with eval-mode BatchNorm folded into the Linear weights.
    # TODO(synk): assumes FeedForwardNN hidden blocks are Linear->BatchNorm1d->ReLU.
    fc_b_blocks = []
    for i, layer in enumerate(fc["hidden"]):
        s = layer["bn_g"] / jnp.sqrt(layer["bn_rv"] + BN_EPS)
        t = layer["bn_b"] - layer["bn_rm"] * s
        wf = layer["w"] * s[None, :]
        bf = layer["b"] * s + t
        if i == 0:
            # concat(nps, spectra): spectra rows at 0:434, nps rows at 434:437.
            comb = jnp.zeros((dp, wf.shape[1]), jnp.float32)
            comb = comb.at[:D_MODEL, :].set(wf[NPS_DIM:])
            comb = comb.at[D_MODEL:D_MODEL + NPS_DIM, :].set(wf[:NPS_DIM])
            fc_b_blocks.append(pad2(comb, dp, wb))
        else:
            fc_b_blocks.append(pad2(wf, fcp[i - 1], wb))
        v_rows.append(pad_vec(bf, wv))
    fc_b_blocks.append(pad2(fc["out_w"], fcp[-1], wb))
    v_rows.append(pad_vec(fc["out_b"], wv))

    vec = jnp.stack(v_rows, axis=0)
    pad_rows = _rup(vec.shape[0], 8) - vec.shape[0]
    if pad_rows:
        vec = jnp.concatenate([vec, jnp.zeros((pad_rows, wv), jnp.float32)], 0)

    packed = dict(
        a0=a_blocks[0].astype(weight_dtype),
        b0=b_blocks[0].astype(weight_dtype),
        brest=jnp.concatenate(b_blocks[1:] + fc_b_blocks, 0).astype(weight_dtype),
        vec=vec,
    )
    if num_layers > 1:
        packed["arest"] = jnp.concatenate(a_blocks[1:], 0).astype(weight_dtype)
    return packed


# ------------------------------ forward wrapper ----------------------------

def multimodal_transformer(x, packed, *, num_layers, num_heads, dim_ff,
                           fc_hidden):
    L = _make_layout(num_layers, num_heads, dim_ff, list(fc_hidden))
    dp, outp = L["dp"], L["outp"]
    n = x.shape[0]

    # Single fused input slab: spectra at lanes [0:434] of the first dp lanes,
    # nps at lanes [dp+434 : dp+437] (added to the zero pad lanes of the
    # post-encoder activations inside the kernel).
    slab = jnp.zeros((n, 2 * dp), jnp.float32)
    slab = slab.at[:, :D_MODEL].set(x[:, NPS_DIM:])
    slab = slab.at[:, dp + D_MODEL:dp + D_MODEL + NPS_DIM].set(x[:, :NPS_DIM])

    has_rest_a = num_layers > 1
    in_arrays = [slab, packed["vec"], packed["a0"], packed["b0"]]
    in_specs = [_VMEM, _VMEM, _VMEM, _VMEM]
    scratch = []
    if has_rest_a:
        in_arrays.append(packed["arest"])
        in_specs.append(_ANY)       # stays in HBM; copied async inside kernel
        scratch.append(pltpu.VMEM(packed["arest"].shape, packed["arest"].dtype))
    in_arrays.append(packed["brest"])
    in_specs.append(_ANY)
    scratch.append(pltpu.VMEM(packed["brest"].shape, packed["brest"].dtype))
    scratch.append(pltpu.SemaphoreType.DMA((2,)))

    kernel = functools.partial(_fused_kernel, num_layers=num_layers,
                               num_heads=num_heads, L=L)

    out = pl.pallas_call(
        kernel,
        out_shape=jax.ShapeDtypeStruct((n, outp), jnp.float32),
        in_specs=in_specs,
        out_specs=_VMEM,
        scratch_shapes=scratch,
        compiler_params=pltpu.CompilerParams(
            vmem_limit_bytes=16 * 1024 * 1024),
    )(*in_arrays)
    # Return the lane-padded (N, outp) block directly (valid logits in [:, :2])
    # to avoid an extra XLA slice fusion around the µs-scale kernel.
    return out


# --------------------------------- main ------------------------------------

if __name__ == "__main__":
    num_heads = 2              # 434 % 2 == 0 -> head_dim 217 (padded to 256)
    num_encoder_layers = 2
    dim_feedforward = 64
    fc_hidden = (32, 16)
    N = 8                      # rows == transformer sequence length

    key = jax.random.PRNGKey(0)
    kx, kp = jax.random.split(key)
    x = jax.random.normal(kx, (N, NPS_DIM + D_MODEL), jnp.float32)
    raw_params = init_params(kp, num_encoder_layers, dim_feedforward,
                             list(fc_hidden))
    packed = prepare_params(raw_params, num_heads)

    fwd = jax.jit(functools.partial(
        multimodal_transformer, num_layers=num_encoder_layers,
        num_heads=num_heads, dim_ff=dim_feedforward, fc_hidden=fc_hidden))
    out_padded = fwd(x, packed)
    jax.block_until_ready(out_padded)
    out = out_padded[:, :2]    # valid logits
    assert out.shape == (N, 2), out.shape
    assert bool(jnp.all(jnp.isfinite(out)))
    print("KERNEL_OK")
</pallas_src>

<mosaic_0001>
module attributes {stable_mosaic.version = 11 : i64} {
  func.func @_fused_kernel(%arg0: memref<8x1024xf32, #tpu.memory_space<vmem>>, %arg1: memref<24x512xf32, #tpu.memory_space<vmem>>, %arg2: memref<2176x512xbf16, #tpu.memory_space<vmem>>, %arg3: memref<512x128xbf16, #tpu.memory_space<vmem>>, %arg4: memref<2176x512xbf16, #tpu.memory_space<any>>, %arg5: memref<1280x128xbf16, #tpu.memory_space<any>>, %arg6: memref<8x128xf32, #tpu.memory_space<vmem>>, %arg7: memref<2176x512xbf16, #tpu.memory_space<vmem>>, %arg8: memref<1280x128xbf16, #tpu.memory_space<vmem>>, %arg9: memref<2x!tpu.dma_semaphore, #tpu.memory_space<semaphore_mem>>) attributes {dimension_semantics = [], scalar_prefetch = 0 : i64, scratch_operands = 3 : i64, tpu.core_type = #tpu.core_type<tc>} {
    %c0_i32 = arith.constant 0 : i32
    %0 = tpu.memref_slice %arg9[%c0_i32] : memref<2x!tpu.dma_semaphore, #tpu.memory_space<semaphore_mem>> -> memref<1x!tpu.dma_semaphore, #tpu.memory_space<semaphore_mem>>
    %1 = tpu.memref_squeeze %0 : memref<1x!tpu.dma_semaphore, #tpu.memory_space<semaphore_mem>> -> memref<!tpu.dma_semaphore, #tpu.memory_space<semaphore_mem>>
    tpu.enqueue_dma source(%arg4 : memref<2176x512xbf16, #tpu.memory_space<any>>) target(%arg7 : memref<2176x512xbf16, #tpu.memory_space<vmem>>) target_semaphore(%1 : memref<!tpu.dma_semaphore, #tpu.memory_space<semaphore_mem>>)
    %c1_i32 = arith.constant 1 : i32
    %2 = tpu.memref_slice %arg9[%c1_i32] : memref<2x!tpu.dma_semaphore, #tpu.memory_space<semaphore_mem>> -> memref<1x!tpu.dma_semaphore, #tpu.memory_space<semaphore_mem>>
    %3 = tpu.memref_squeeze %2 : memref<1x!tpu.dma_semaphore, #tpu.memory_space<semaphore_mem>> -> memref<!tpu.dma_semaphore, #tpu.memory_space<semaphore_mem>>
    tpu.enqueue_dma source(%arg5 : memref<1280x128xbf16, #tpu.memory_space<any>>) target(%arg8 : memref<1280x128xbf16, #tpu.memory_space<vmem>>) target_semaphore(%3 : memref<!tpu.dma_semaphore, #tpu.memory_space<semaphore_mem>>)
    %4 = tpu.iota {dimensions = array<i32: 1>} : vector<1x512xi32>
    %c434_i32 = arith.constant 434 : i32
    %5 = vector.broadcast %c434_i32 : i32 to vector<1x512xi32>
    %6 = arith.cmpi slt, %4, %5 : vector<1x512xi32>
    %c0 = arith.constant 0 : index
    %c0_0 = arith.constant 0 : index
    %7 = vector.load %arg0[%c0, %c0_0] : memref<8x1024xf32, #tpu.memory_space<vmem>>, vector<8x512xf32>
    %c0_1 = arith.constant 0 : index
    %c0_2 = arith.constant 0 : index
    %8 = vector.load %arg2[%c0_1, %c0_2] : memref<2176x512xbf16, #tpu.memory_space<vmem>>, vector<512x512xbf16>
    %9 = arith.truncf %7 : vector<8x512xf32> to vector<8x512xbf16>
    %cst = arith.constant dense<0.000000e+00> : vector<8x512xf32>
    %10 = tpu.matmul %9, %8, %cst {dimension_numbers = #tpu.dot_dimension_numbers<[1], [0], [0], [1], [0, 0, 1, 1], [], []>} : vector<8x512xbf16>, vector<512x512xbf16>, vector<8x512xf32> -> vector<8x512xf32>
    %c0_3 = arith.constant 0 : index
    %c0_4 = arith.constant 0 : index
    %11 = vector.load %arg1[%c0_3, %c0_4] : memref<24x512xf32, #tpu.memory_space<vmem>>, vector<1x512xf32>
    %12 = vector.broadcast %11 : vector<1x512xf32> to vector<8x512xf32>
    %13 = arith.addf %10, %12 : vector<8x512xf32>
    %c512 = arith.constant 512 : index
    %c0_5 = arith.constant 0 : index
    %14 = vector.load %arg2[%c512, %c0_5] : memref<2176x512xbf16, #tpu.memory_space<vmem>>, vector<512x512xbf16>
    %15 = arith.truncf %7 : vector<8x512xf32> to vector<8x512xbf16>
    %cst_6 = arith.constant dense<0.000000e+00> : vector<8x512xf32>
    %16 = tpu.matmul %15, %14, %cst_6 {dimension_numbers = #tpu.dot_dimension_numbers<[1], [0], [0], [1], [0, 0, 1, 1], [], []>} : vector<8x512xbf16>, vector<512x512xbf16>, vector<8x512xf32> -> vector<8x512xf32>
    %c1 = arith.constant 1 : index
    %c0_7 = arith.constant 0 : index
    %17 = vector.load %arg1[%c1, %c0_7] : memref<24x512xf32, #tpu.memory_space<vmem>>, vector<1x512xf32>
    %18 = vector.broadcast %17 : vector<1x512xf32> to vector<8x512xf32>
    %19 = arith.addf %16, %18 : vector<8x512xf32>
    %c1024 = arith.constant 1024 : index
    %c0_8 = arith.constant 0 : index
    %20 = vector.load %arg2[%c1024, %c0_8] : memref<2176x512xbf16, #tpu.memory_space<vmem>>, vector<512x512xbf16>
    %21 = arith.truncf %7 : vector<8x512xf32> to vector<8x512xbf16>
    %cst_9 = arith.constant dense<0.000000e+00> : vector<8x512xf32>
    %22 = tpu.matmul %21, %20, %cst_9 {dimension_numbers = #tpu.dot_dimension_numbers<[1], [0], [0], [1], [0, 0, 1, 1], [], []>} : vector<8x512xbf16>, vector<512x512xbf16>, vector<8x512xf32> -> vector<8x512xf32>
    %c2 = arith.constant 2 : index
    %c0_10 = arith.constant 0 : index
    %23 = vector.load %arg1[%c2, %c0_10] : memref<24x512xf32, #tpu.memory_space<vmem>>, vector<1x512xf32>
    %24 = vector.broadcast %23 : vector<1x512xf32> to vector<8x512xf32>
    %25 = arith.addf %22, %24 : vector<8x512xf32>
    %26 = vector.extract_strided_slice %13 {offsets = [0, 0], sizes = [8, 256], strides = [1, 1]} : vector<8x512xf32> to vector<8x256xf32>
    %27 = arith.truncf %26 : vector<8x256xf32> to vector<8x256xbf16>
    %28 = vector.extract_strided_slice %19 {offsets = [0, 0], sizes = [8, 256], strides = [1, 1]} : vector<8x512xf32> to vector<8x256xf32>
    %29 = arith.truncf %28 : vector<8x256xf32> to vector<8x256xbf16>
    %30 = vector.extract_strided_slice %25 {offsets = [0, 0], sizes = [8, 256], strides = [1, 1]} : vector<8x512xf32> to vector<8x256xf32>
    %31 = arith.truncf %30 : vector<8x256xf32> to vector<8x256xbf16>
    %cst_11 = arith.constant dense<0.000000e+00> : vector<8x8xf32>
    %32 = tpu.matmul %27, %29, %cst_11 {dimension_numbers = #tpu.dot_dimension_numbers<[1], [1], [0], [0], [0, 0, 1, 0], [], []>} : vector<8x256xbf16>, vector<8x256xbf16>, vector<8x8xf32> -> vector<8x8xf32>
    %cst_12 = arith.constant 0.0678844228 : f32
    %33 = vector.broadcast %cst_12 : f32 to vector<8x8xf32>
    %34 = arith.mulf %32, %33 : vector<8x8xf32>
    %cst_13 = arith.constant dense<0xFF800000> : vector<8xf32>
    %35 = vector.multi_reduction <maximumf>, %34, %cst_13 [1] : vector<8x8xf32> to vector<8xf32>
    %36 = vector.shape_cast %35 : vector<8xf32> to vector<8x1xf32>
    %37 = vector.broadcast %36 : vector<8x1xf32> to vector<8x8xf32>
    %38 = arith.subf %34, %37 : vector<8x8xf32>
    %39 = math.exp %38 : vector<8x8xf32>
    %cst_14 = arith.constant dense<0.000000e+00> : vector<8xf32>
    %40 = vector.multi_reduction <add>, %39, %cst_14 [1] : vector<8x8xf32> to vector<8xf32>
    %41 = vector.shape_cast %40 : vector<8xf32> to vector<8x1xf32>
    %42 = tpu.reciprocal %41 {approx = true} : vector<8x1xf32> -> vector<8x1xf32>
    %43 = vector.broadcast %42 : vector<8x1xf32> to vector<8x8xf32>
    %44 = arith.mulf %39, %43 : vector<8x8xf32>
    %45 = arith.truncf %44 : vector<8x8xf32> to vector<8x8xbf16>
    %cst_15 = arith.constant dense<0.000000e+00> : vector<8x256xf32>
    %46 = tpu.matmul %45, %31, %cst_15 {dimension_numbers = #tpu.dot_dimension_numbers<[1], [0], [0], [1], [0, 0, 1, 1], [], []>} : vector<8x8xbf16>, vector<8x256xbf16>, vector<8x256xf32> -> vector<8x256xf32>
    %47 = vector.extract_strided_slice %13 {offsets = [0, 256], sizes = [8, 256], strides = [1, 1]} : vector<8x512xf32> to vector<8x256xf32>
    %48 = arith.truncf %47 : vector<8x256xf32> to vector<8x256xbf16>
    %49 = vector.extract_strided_slice %19 {offsets = [0, 256], sizes = [8, 256], strides = [1, 1]} : vector<8x512xf32> to vector<8x256xf32>
    %50 = arith.truncf %49 : vector<8x256xf32> to vector<8x256xbf16>
    %51 = vector.extract_strided_slice %25 {offsets = [0, 256], sizes = [8, 256], strides = [1, 1]} : vector<8x512xf32> to vector<8x256xf32>
    %52 = arith.truncf %51 : vector<8x256xf32> to vector<8x256xbf16>
    %cst_16 = arith.constant dense<0.000000e+00> : vector<8x8xf32>
    %53 = tpu.matmul %48, %50, %cst_16 {dimension_numbers = #tpu.dot_dimension_numbers<[1], [1], [0], [0], [0, 0, 1, 0], [], []>} : vector<8x256xbf16>, vector<8x256xbf16>, vector<8x8xf32> -> vector<8x8xf32>
    %cst_17 = arith.constant 0.0678844228 : f32
    %54 = vector.broadcast %cst_17 : f32 to vector<8x8xf32>
    %55 = arith.mulf %53, %54 : vector<8x8xf32>
    %cst_18 = arith.constant dense<0xFF800000> : vector<8xf32>
    %56 = vector.multi_reduction <maximumf>, %55, %cst_18 [1] : vector<8x8xf32> to vector<8xf32>
    %57 = vector.shape_cast %56 : vector<8xf32> to vector<8x1xf32>
    %58 = vector.broadcast %57 : vector<8x1xf32> to vector<8x8xf32>
    %59 = arith.subf %55, %58 : vector<8x8xf32>
    %60 = math.exp %59 : vector<8x8xf32>
    %cst_19 = arith.constant dense<0.000000e+00> : vector<8xf32>
    %61 = vector.multi_reduction <add>, %60, %cst_19 [1] : vector<8x8xf32> to vector<8xf32>
    %62 = vector.shape_cast %61 : vector<8xf32> to vector<8x1xf32>
    %63 = tpu.reciprocal %62 {approx = true} : vector<8x1xf32> -> vector<8x1xf32>
    %64 = vector.broadcast %63 : vector<8x1xf32> to vector<8x8xf32>
    %65 = arith.mulf %60, %64 : vector<8x8xf32>
    %66 = arith.truncf %65 : vector<8x8xf32> to vector<8x8xbf16>
    %cst_20 = arith.constant dense<0.000000e+00> : vector<8x256xf32>
    %67 = tpu.matmul %66, %52, %cst_20 {dimension_numbers = #tpu.dot_dimension_numbers<[1], [0], [0], [1], [0, 0, 1, 1], [], []>} : vector<8x8xbf16>, vector<8x256xbf16>, vector<8x256xf32> -> vector<8x256xf32>
    %68 = tpu.concatenate %46, %67 in 1 : vector<8x256xf32>, vector<8x256xf32> -> vector<8x512xf32>
    %c1536 = arith.constant 1536 : index
    %c0_21 = arith.constant 0 : index
    %69 = vector.load %arg2[%c1536, %c0_21] : memref<2176x512xbf16, #tpu.memory_space<vmem>>, vector<512x512xbf16>
    %70 = arith.truncf %68 : vector<8x512xf32> to vector<8x512xbf16>
    %cst_22 = arith.constant dense<0.000000e+00> : vector<8x512xf32>
    %71 = tpu.matmul %70, %69, %cst_22 {dimension_numbers = #tpu.dot_dimension_numbers<[1], [0], [0], [1], [0, 0, 1, 1], [], []>} : vector<8x512xbf16>, vector<512x512xbf16>, vector<8x512xf32> -> vector<8x512xf32>
    %c3 = arith.constant 3 : index
    %c0_23 = arith.constant 0 : index
    %72 = vector.load %arg1[%c3, %c0_23] : memref<24x512xf32, #tpu.memory_space<vmem>>, vector<1x512xf32>
    %73 = vector.broadcast %72 : vector<1x512xf32> to vector<8x512xf32>
    %74 = arith.addf %71, %73 : vector<8x512xf32>
    %75 = arith.addf %7, %74 : vector<8x512xf32>
    %cst_24 = arith.constant dense<0.000000e+00> : vector<8xf32>
    %76 = vector.multi_reduction <add>, %75, %cst_24 [1] : vector<8x512xf32> to vector<8xf32>
    %77 = vector.shape_cast %76 : vector<8xf32> to vector<8x1xf32>
    %cst_25 = arith.constant 0.00230414746 : f32
    %78 = vector.broadcast %cst_25 : f32 to vector<8x1xf32>
    %79 = arith.mulf %77, %78 : vector<8x1xf32>
    %80 = vector.broadcast %79 : vector<8x1xf32> to vector<8x512xf32>
    %81 = arith.subf %75, %80 : vector<8x512xf32>
    %cst_26 = arith.constant 0.000000e+00 : f32
    %82 = vector.shape_cast %6 : vector<1x512xi1> to vector<1x512xi1>
    %83 = vector.broadcast %82 : vector<1x512xi1> to vector<8x512xi1>
    %84 = vector.broadcast %cst_26 : f32 to vector<8x512xf32>
    %85 = arith.select %83, %81, %84 : vector<8x512xi1>, vector<8x512xf32>
    %86 = arith.mulf %85, %85 : vector<8x512xf32>
    %cst_27 = arith.constant dense<0.000000e+00> : vector<8xf32>
    %87 = vector.multi_reduction <add>, %86, %cst_27 [1] : vector<8x512xf32> to vector<8xf32>
    %88 = vector.shape_cast %87 : vector<8xf32> to vector<8x1xf32>
    %cst_28 = arith.constant 0.00230414746 : f32
    %89 = vector.broadcast %cst_28 : f32 to vector<8x1xf32>
    %90 = arith.mulf %88, %89 : vector<8x1xf32>
    %cst_29 = arith.constant 9.99999974E-6 : f32
    %91 = vector.broadcast %cst_29 : f32 to vector<8x1xf32>
    %92 = arith.addf %90, %91 : vector<8x1xf32>
    %93 = math.rsqrt %92 : vector<8x1xf32>
    %94 = vector.broadcast %93 : vector<8x1xf32> to vector<8x512xf32>
    %95 = arith.mulf %81, %94 : vector<8x512xf32>
    %c4 = arith.constant 4 : index
    %c0_30 = arith.constant 0 : index
    %96 = vector.load %arg1[%c4, %c0_30] : memref<24x512xf32, #tpu.memory_space<vmem>>, vector<1x512xf32>
    %97 = vector.broadcast %96 : vector<1x512xf32> to vector<8x512xf32>
    %98 = arith.mulf %95, %97 : vector<8x512xf32>
    %c5 = arith.constant 5 : index
    %c0_31 = arith.constant 0 : index
    %99 = vector.load %arg1[%c5, %c0_31] : memref<24x512xf32, #tpu.memory_space<vmem>>, vector<1x512xf32>
    %100 = vector.broadcast %99 : vector<1x512xf32> to vector<8x512xf32>
    %101 = arith.addf %98, %100 : vector<8x512xf32>
    %c0_32 = arith.constant 0 : index
    %c0_33 = arith.constant 0 : index
    %102 = vector.load %arg3[%c0_32, %c0_33] : memref<512x128xbf16, #tpu.memory_space<vmem>>, vector<512x128xbf16>
    %103 = arith.truncf %101 : vector<8x512xf32> to vector<8x512xbf16>
    %cst_34 = arith.constant dense<0.000000e+00> : vector<8x128xf32>
    %104 = tpu.matmul %103, %102, %cst_34 {dimension_numbers = #tpu.dot_dimension_numbers<[1], [0], [0], [1], [0, 0, 1, 1], [], []>} : vector<8x512xbf16>, vector<512x128xbf16>, vector<8x128xf32> -> vector<8x128xf32>
    %c6 = arith.constant 6 : index
    %c0_35 = arith.constant 0 : index
    %105 = vector.load %arg1[%c6, %c0_35] : memref<24x512xf32, #tpu.memory_space<vmem>>, vector<1x128xf32>
    %106 = vector.broadcast %105 : vector<1x128xf32> to vector<8x128xf32>
    %107 = arith.addf %104, %106 : vector<8x128xf32>
    %cst_36 = arith.constant 0.000000e+00 : f32
    %108 = vector.broadcast %cst_36 : f32 to vector<8x128xf32>
    %109 = arith.maximumf %107, %108 : vector<8x128xf32>
    %c2048 = arith.constant 2048 : index
    %c0_37 = arith.constant 0 : index
    %110 = vector.load %arg2[%c2048, %c0_37] : memref<2176x512xbf16, #tpu.memory_space<vmem>>, vector<128x512xbf16>
    %111 = arith.truncf %109 : vector<8x128xf32> to vector<8x128xbf16>
    %cst_38 = arith.constant dense<0.000000e+00> : vector<8x512xf32>
    %112 = tpu.matmul %111, %110, %cst_38 {dimension_numbers = #tpu.dot_dimension_numbers<[1], [0], [0], [1], [0, 0, 1, 1], [], []>} : vector<8x128xbf16>, vector<128x512xbf16>, vector<8x512xf32> -> vector<8x512xf32>
    %c7 = arith.constant 7 : index
    %c0_39 = arith.constant 0 : index
    %113 = vector.load %arg1[%c7, %c0_39] : memref<24x512xf32, #tpu.memory_space<vmem>>, vector<1x512xf32>
    %114 = vector.broadcast %113 : vector<1x512xf32> to vector<8x512xf32>
    %115 = arith.addf %112, %114 : vector<8x512xf32>
    %116 = arith.addf %101, %115 : vector<8x512xf32>
    %cst_40 = arith.constant dense<0.000000e+00> : vector<8xf32>
    %117 = vector.multi_reduction <add>, %116, %cst_40 [1] : vector<8x512xf32> to vector<8xf32>
    %118 = vector.shape_cast %117 : vector<8xf32> to vector<8x1xf32>
    %cst_41 = arith.constant 0.00230414746 : f32
    %119 = vector.broadcast %cst_41 : f32 to vector<8x1xf32>
    %120 = arith.mulf %118, %119 : vector<8x1xf32>
    %121 = vector.broadcast %120 : vector<8x1xf32> to vector<8x512xf32>
    %122 = arith.subf %116, %121 : vector<8x512xf32>
    %cst_42 = arith.constant 0.000000e+00 : f32
    %123 = vector.shape_cast %6 : vector<1x512xi1> to vector<1x512xi1>
    %124 = vector.broadcast %123 : vector<1x512xi1> to vector<8x512xi1>
    %125 = vector.broadcast %cst_42 : f32 to vector<8x512xf32>
    %126 = arith.select %124, %122, %125 : vector<8x512xi1>, vector<8x512xf32>
    %127 = arith.mulf %126, %126 : vector<8x512xf32>
    %cst_43 = arith.constant dense<0.000000e+00> : vector<8xf32>
    %128 = vector.multi_reduction <add>, %127, %cst_43 [1] : vector<8x512xf32> to vector<8xf32>
    %129 = vector.shape_cast %128 : vector<8xf32> to vector<8x1xf32>
    %cst_44 = arith.constant 0.00230414746 : f32
    %130 = vector.broadcast %cst_44 : f32 to vector<8x1xf32>
    %131 = arith.mulf %129, %130 : vector<8x1xf32>
    %cst_45 = arith.constant 9.99999974E-6 : f32
    %132 = vector.broadcast %cst_45 : f32 to vector<8x1xf32>
    %133 = arith.addf %131, %132 : vector<8x1xf32>
    %134 = math.rsqrt %133 : vector<8x1xf32>
    %135 = vector.broadcast %134 : vector<8x1xf32> to vector<8x512xf32>
    %136 = arith.mulf %122, %135 : vector<8x512xf32>
    %c8 = arith.constant 8 : index
    %c0_46 = arith.constant 0 : index
    %137 = vector.load %arg1[%c8, %c0_46] : memref<24x512xf32, #tpu.memory_space<vmem>>, vector<1x512xf32>
    %138 = vector.broadcast %137 : vector<1x512xf32> to vector<8x512xf32>
    %139 = arith.mulf %136, %138 : vector<8x512xf32>
    %c9 = arith.constant 9 : index
    %c0_47 = arith.constant 0 : index
    %140 = vector.load %arg1[%c9, %c0_47] : memref<24x512xf32, #tpu.memory_space<vmem>>, vector<1x512xf32>
    %141 = vector.broadcast %140 : vector<1x512xf32> to vector<8x512xf32>
    %142 = arith.addf %139, %141 : vector<8x512xf32>
    %c0_i32_48 = arith.constant 0 : i32
    %143 = tpu.memref_slice %arg9[%c0_i32_48] : memref<2x!tpu.dma_semaphore, #tpu.memory_space<semaphore_mem>> -> memref<1x!tpu.dma_semaphore, #tpu.memory_space<semaphore_mem>>
    %144 = tpu.memref_squeeze %143 : memref<1x!tpu.dma_semaphore, #tpu.memory_space<semaphore_mem>> -> memref<!tpu.dma_semaphore, #tpu.memory_space<semaphore_mem>>
    tpu.wait_dma2 semaphore(%144 : memref<!tpu.dma_semaphore, #tpu.memory_space<semaphore_mem>>) src(%arg4 : memref<2176x512xbf16, #tpu.memory_space<any>>) dst(%arg7 : memref<2176x512xbf16, #tpu.memory_space<vmem>>)
    %c1_i32_49 = arith.constant 1 : i32
    %145 = tpu.memref_slice %arg9[%c1_i32_49] : memref<2x!tpu.dma_semaphore, #tpu.memory_space<semaphore_mem>> -> memref<1x!tpu.dma_semaphore, #tpu.memory_space<semaphore_mem>>
    %146 = tpu.memref_squeeze %145 : memref<1x!tpu.dma_semaphore, #tpu.memory_space<semaphore_mem>> -> memref<!tpu.dma_semaphore, #tpu.memory_space<semaphore_mem>>
    tpu.wait_dma2 semaphore(%146 : memref<!tpu.dma_semaphore, #tpu.memory_space<semaphore_mem>>) src(%arg5 : memref<1280x128xbf16, #tpu.memory_space<any>>) dst(%arg8 : memref<1280x128xbf16, #tpu.memory_space<vmem>>)
    %c0_50 = arith.constant 0 : index
    %c0_51 = arith.constant 0 : index
    %147 = vector.load %arg7[%c0_50, %c0_51] : memref<2176x512xbf16, #tpu.memory_space<vmem>>, vector<512x512xbf16>
    %148 = arith.truncf %142 : vector<8x512xf32> to vector<8x512xbf16>
    %cst_52 = arith.constant dense<0.000000e+00> : vector<8x512xf32>
    %149 = tpu.matmul %148, %147, %cst_52 {dimension_numbers = #tpu.dot_dimension_numbers<[1], [0], [0], [1], [0, 0, 1, 1], [], []>} : vector<8x512xbf16>, vector<512x512xbf16>, vector<8x512xf32> -> vector<8x512xf32>
    %c10 = arith.constant 10 : index
    %c0_53 = arith.constant 0 : index
    %150 = vector.load %arg1[%c10, %c0_53] : memref<24x512xf32, #tpu.memory_space<vmem>>, vector<1x512xf32>
    %151 = vector.broadcast %150 : vector<1x512xf32> to vector<8x512xf32>
    %152 = arith.addf %149, %151 : vector<8x512xf32>
    %c512_54 = arith.constant 512 : index
    %c0_55 = arith.constant 0 : index
    %153 = vector.load %arg7[%c512_54, %c0_55] : memref<2176x512xbf16, #tpu.memory_space<vmem>>, vector<512x512xbf16>
    %154 = arith.truncf %142 : vector<8x512xf32> to vector<8x512xbf16>
    %cst_56 = arith.constant dense<0.000000e+00> : vector<8x512xf32>
    %155 = tpu.matmul %154, %153, %cst_56 {dimension_numbers = #tpu.dot_dimension_numbers<[1], [0], [0], [1], [0, 0, 1, 1], [], []>} : vector<8x512xbf16>, vector<512x512xbf16>, vector<8x512xf32> -> vector<8x512xf32>
    %c11 = arith.constant 11 : index
    %c0_57 = arith.constant 0 : index
    %156 = vector.load %arg1[%c11, %c0_57] : memref<24x512xf32, #tpu.memory_space<vmem>>, vector<1x512xf32>
    %157 = vector.broadcast %156 : vector<1x512xf32> to vector<8x512xf32>
    %158 = arith.addf %155, %157 : vector<8x512xf32>
    %c1024_58 = arith.constant 1024 : index
    %c0_59 = arith.constant 0 : index
    %159 = vector.load %arg7[%c1024_58, %c0_59] : memref<2176x512xbf16, #tpu.memory_space<vmem>>, vector<512x512xbf16>
    %160 = arith.truncf %142 : vector<8x512xf32> to vector<8x512xbf16>
    %cst_60 = arith.constant dense<0.000000e+00> : vector<8x512xf32>
    %161 = tpu.matmul %160, %159, %cst_60 {dimension_numbers = #tpu.dot_dimension_numbers<[1], [0], [0], [1], [0, 0, 1, 1], [], []>} : vector<8x512xbf16>, vector<512x512xbf16>, vector<8x512xf32> -> vector<8x512xf32>
    %c12 = arith.constant 12 : index
    %c0_61 = arith.constant 0 : index
    %162 = vector.load %arg1[%c12, %c0_61] : memref<24x512xf32, #tpu.memory_space<vmem>>, vector<1x512xf32>
    %163 = vector.broadcast %162 : vector<1x512xf32> to vector<8x512xf32>
    %164 = arith.addf %161, %163 : vector<8x512xf32>
    %165 = vector.extract_strided_slice %152 {offsets = [0, 0], sizes = [8, 256], strides = [1, 1]} : vector<8x512xf32> to vector<8x256xf32>
    %166 = arith.truncf %165 : vector<8x256xf32> to vector<8x256xbf16>
    %167 = vector.extract_strided_slice %158 {offsets = [0, 0], sizes = [8, 256], strides = [1, 1]} : vector<8x512xf32> to vector<8x256xf32>
    %168 = arith.truncf %167 : vector<8x256xf32> to vector<8x256xbf16>
    %169 = vector.extract_strided_slice %164 {offsets = [0, 0], sizes = [8, 256], strides = [1, 1]} : vector<8x512xf32> to vector<8x256xf32>
    %170 = arith.truncf %169 : vector<8x256xf32> to vector<8x256xbf16>
    %cst_62 = arith.constant dense<0.000000e+00> : vector<8x8xf32>
    %171 = tpu.matmul %166, %168, %cst_62 {dimension_numbers = #tpu.dot_dimension_numbers<[1], [1], [0], [0], [0, 0, 1, 0], [], []>} : vector<8x256xbf16>, vector<8x256xbf16>, vector<8x8xf32> -> vector<8x8xf32>
    %cst_63 = arith.constant 0.0678844228 : f32
    %172 = vector.broadcast %cst_63 : f32 to vector<8x8xf32>
    %173 = arith.mulf %171, %172 : vector<8x8xf32>
    %cst_64 = arith.constant dense<0xFF800000> : vector<8xf32>
    %174 = vector.multi_reduction <maximumf>, %173, %cst_64 [1] : vector<8x8xf32> to vector<8xf32>
    %175 = vector.shape_cast %174 : vector<8xf32> to vector<8x1xf32>
    %176 = vector.broadcast %175 : vector<8x1xf32> to vector<8x8xf32>
    %177 = arith.subf %173, %176 : vector<8x8xf32>
    %178 = math.exp %177 : vector<8x8xf32>
    %cst_65 = arith.constant dense<0.000000e+00> : vector<8xf32>
    %179 = vector.multi_reduction <add>, %178, %cst_65 [1] : vector<8x8xf32> to vector<8xf32>
    %180 = vector.shape_cast %179 : vector<8xf32> to vector<8x1xf32>
    %181 = tpu.reciprocal %180 {approx = true} : vector<8x1xf32> -> vector<8x1xf32>
    %182 = vector.broadcast %181 : vector<8x1xf32> to vector<8x8xf32>
    %183 = arith.mulf %178, %182 : vector<8x8xf32>
    %184 = arith.truncf %183 : vector<8x8xf32> to vector<8x8xbf16>
    %cst_66 = arith.constant dense<0.000000e+00> : vector<8x256xf32>
    %185 = tpu.matmul %184, %170, %cst_66 {dimension_numbers = #tpu.dot_dimension_numbers<[1], [0], [0], [1], [0, 0, 1, 1], [], []>} : vector<8x8xbf16>, vector<8x256xbf16>, vector<8x256xf32> -> vector<8x256xf32>
    %186 = vector.extract_strided_slice %152 {offsets = [0, 256], sizes = [8, 256], strides = [1, 1]} : vector<8x512xf32> to vector<8x256xf32>
    %187 = arith.truncf %186 : vector<8x256xf32> to vector<8x256xbf16>
    %188 = vector.extract_strided_slice %158 {offsets = [0, 256], sizes = [8, 256], strides = [1, 1]} : vector<8x512xf32> to vector<8x256xf32>
    %189 = arith.truncf %188 : vector<8x256xf32> to vector<8x256xbf16>
    %190 = vector.extract_strided_slice %164 {offsets = [0, 256], sizes = [8, 256], strides = [1, 1]} : vector<8x512xf32> to vector<8x256xf32>
    %191 = arith.truncf %190 : vector<8x256xf32> to vector<8x256xbf16>
    %cst_67 = arith.constant dense<0.000000e+00> : vector<8x8xf32>
    %192 = tpu.matmul %187, %189, %cst_67 {dimension_numbers = #tpu.dot_dimension_numbers<[1], [1], [0], [0], [0, 0, 1, 0], [], []>} : vector<8x256xbf16>, vector<8x256xbf16>, vector<8x8xf32> -> vector<8x8xf32>
    %cst_68 = arith.constant 0.0678844228 : f32
    %193 = vector.broadcast %cst_68 : f32 to vector<8x8xf32>
    %194 = arith.mulf %192, %193 : vector<8x8xf32>
    %cst_69 = arith.constant dense<0xFF800000> : vector<8xf32>
    %195 = vector.multi_reduction <maximumf>, %194, %cst_69 [1] : vector<8x8xf32> to vector<8xf32>
    %196 = vector.shape_cast %195 : vector<8xf32> to vector<8x1xf32>
    %197 = vector.broadcast %196 : vector<8x1xf32> to vector<8x8xf32>
    %198 = arith.subf %194, %197 : vector<8x8xf32>
    %199 = math.exp %198 : vector<8x8xf32>
    %cst_70 = arith.constant dense<0.000000e+00> : vector<8xf32>
    %200 = vector.multi_reduction <add>, %199, %cst_70 [1] : vector<8x8xf32> to vector<8xf32>
    %201 = vector.shape_cast %200 : vector<8xf32> to vector<8x1xf32>
    %202 = tpu.reciprocal %201 {approx = true} : vector<8x1xf32> -> vector<8x1xf32>
    %203 = vector.broadcast %202 : vector<8x1xf32> to vector<8x8xf32>
    %204 = arith.mulf %199, %203 : vector<8x8xf32>
    %205 = arith.truncf %204 : vector<8x8xf32> to vector<8x8xbf16>
    %cst_71 = arith.constant dense<0.000000e+00> : vector<8x256xf32>
    %206 = tpu.matmul %205, %191, %cst_71 {dimension_numbers = #tpu.dot_dimension_numbers<[1], [0], [0], [1], [0, 0, 1, 1], [], []>} : vector<8x8xbf16>, vector<8x256xbf16>, vector<8x256xf32> -> vector<8x256xf32>
    %207 = tpu.concatenate %185, %206 in 1 : vector<8x256xf32>, vector<8x256xf32> -> vector<8x512xf32>
    %c1536_72 = arith.constant 1536 : index
    %c0_73 = arith.constant 0 : index
    %208 = vector.load %arg7[%c1536_72, %c0_73] : memref<2176x512xbf16, #tpu.memory_space<vmem>>, vector<512x512xbf16>
    %209 = arith.truncf %207 : vector<8x512xf32> to vector<8x512xbf16>
    %cst_74 = arith.constant dense<0.000000e+00> : vector<8x512xf32>
    %210 = tpu.matmul %209, %208, %cst_74 {dimension_numbers = #tpu.dot_dimension_numbers<[1], [0], [0], [1], [0, 0, 1, 1], [], []>} : vector<8x512xbf16>, vector<512x512xbf16>, vector<8x512xf32> -> vector<8x512xf32>
    %c13 = arith.constant 13 : index
    %c0_75 = arith.constant 0 : index
    %211 = vector.load %arg1[%c13, %c0_75] : memref<24x512xf32, #tpu.memory_space<vmem>>, vector<1x512xf32>
    %212 = vector.broadcast %211 : vector<1x512xf32> to vector<8x512xf32>
    %213 = arith.addf %210, %212 : vector<8x512xf32>
    %214 = arith.addf %142, %213 : vector<8x512xf32>
    %cst_76 = arith.constant dense<0.000000e+00> : vector<8xf32>
    %215 = vector.multi_reduction <add>, %214, %cst_76 [1] : vector<8x512xf32> to vector<8xf32>
    %216 = vector.shape_cast %215 : vector<8xf32> to vector<8x1xf32>
    %cst_77 = arith.constant 0.00230414746 : f32
    %217 = vector.broadcast %cst_77 : f32 to vector<8x1xf32>
    %218 = arith.mulf %216, %217 : vector<8x1xf32>
    %219 = vector.broadcast %218 : vector<8x1xf32> to vector<8x512xf32>
    %220 = arith.subf %214, %219 : vector<8x512xf32>
    %cst_78 = arith.constant 0.000000e+00 : f32
    %221 = vector.shape_cast %6 : vector<1x512xi1> to vector<1x512xi1>
    %222 = vector.broadcast %221 : vector<1x512xi1> to vector<8x512xi1>
    %223 = vector.broadcast %cst_78 : f32 to vector<8x512xf32>
    %224 = arith.select %222, %220, %223 : vector<8x512xi1>, vector<8x512xf32>
    %225 = arith.mulf %224, %224 : vector<8x512xf32>
    %cst_79 = arith.constant dense<0.000000e+00> : vector<8xf32>
    %226 = vector.multi_reduction <add>, %225, %cst_79 [1] : vector<8x512xf32> to vector<8xf32>
    %227 = vector.shape_cast %226 : vector<8xf32> to vector<8x1xf32>
    %cst_80 = arith.constant 0.00230414746 : f32
    %228 = vector.broadcast %cst_80 : f32 to vector<8x1xf32>
    %229 = arith.mulf %227, %228 : vector<8x1xf32>
    %cst_81 = arith.constant 9.99999974E-6 : f32
    %230 = vector.broadcast %cst_81 : f32 to vector<8x1xf32>
    %231 = arith.addf %229, %230 : vector<8x1xf32>
    %232 = math.rsqrt %231 : vector<8x1xf32>
    %233 = vector.broadcast %232 : vector<8x1xf32> to vector<8x512xf32>
    %234 = arith.mulf %220, %233 : vector<8x512xf32>
    %c14 = arith.constant 14 : index
    %c0_82 = arith.constant 0 : index
    %235 = vector.load %arg1[%c14, %c0_82] : memref<24x512xf32, #tpu.memory_space<vmem>>, vector<1x512xf32>
    %236 = vector.broadcast %235 : vector<1x512xf32> to vector<8x512xf32>
    %237 = arith.mulf %234, %236 : vector<8x512xf32>
    %c15 = arith.constant 15 : index
    %c0_83 = arith.constant 0 : index
    %238 = vector.load %arg1[%c15, %c0_83] : memref<24x512xf32, #tpu.memory_space<vmem>>, vector<1x512xf32>
    %239 = vector.broadcast %238 : vector<1x512xf32> to vector<8x512xf32>
    %240 = arith.addf %237, %239 : vector<8x512xf32>
    %c0_84 = arith.constant 0 : index
    %c0_85 = arith.constant 0 : index
    %241 = vector.load %arg8[%c0_84, %c0_85] : memref<1280x128xbf16, #tpu.memory_space<vmem>>, vector<512x128xbf16>
    %242 = arith.truncf %240 : vector<8x512xf32> to vector<8x512xbf16>
    %cst_86 = arith.constant dense<0.000000e+00> : vector<8x128xf32>
    %243 = tpu.matmul %242, %241, %cst_86 {dimension_numbers = #tpu.dot_dimension_numbers<[1], [0], [0], [1], [0, 0, 1, 1], [], []>} : vector<8x512xbf16>, vector<512x128xbf16>, vector<8x128xf32> -> vector<8x128xf32>
    %c16 = arith.constant 16 : index
    %c0_87 = arith.constant 0 : index
    %244 = vector.load %arg1[%c16, %c0_87] : memref<24x512xf32, #tpu.memory_space<vmem>>, vector<1x128xf32>
    %245 = vector.broadcast %244 : vector<1x128xf32> to vector<8x128xf32>
    %246 = arith.addf %243, %245 : vector<8x128xf32>
    %cst_88 = arith.constant 0.000000e+00 : f32
    %247 = vector.broadcast %cst_88 : f32 to vector<8x128xf32>
    %248 = arith.maximumf %246, %247 : vector<8x128xf32>
    %c2048_89 = arith.constant 2048 : index
    %c0_90 = arith.constant 0 : index
    %249 = vector.load %arg7[%c2048_89, %c0_90] : memref<2176x512xbf16, #tpu.memory_space<vmem>>, vector<128x512xbf16>
    %250 = arith.truncf %248 : vector<8x128xf32> to vector<8x128xbf16>
    %cst_91 = arith.constant dense<0.000000e+00> : vector<8x512xf32>
    %251 = tpu.matmul %250, %249, %cst_91 {dimension_numbers = #tpu.dot_dimension_numbers<[1], [0], [0], [1], [0, 0, 1, 1], [], []>} : vector<8x128xbf16>, vector<128x512xbf16>, vector<8x512xf32> -> vector<8x512xf32>
    %c17 = arith.constant 17 : index
    %c0_92 = arith.constant 0 : index
    %252 = vector.load %arg1[%c17, %c0_92] : memref<24x512xf32, #tpu.memory_space<vmem>>, vector<1x512xf32>
    %253 = vector.broadcast %252 : vector<1x512xf32> to vector<8x512xf32>
    %254 = arith.addf %251, %253 : vector<8x512xf32>
    %255 = arith.addf %240, %254 : vector<8x512xf32>
    %cst_93 = arith.constant dense<0.000000e+00> : vector<8xf32>
    %256 = vector.multi_reduction <add>, %255, %cst_93 [1] : vector<8x512xf32> to vector<8xf32>
    %257 = vector.shape_cast %256 : vector<8xf32> to vector<8x1xf32>
    %cst_94 = arith.constant 0.00230414746 : f32
    %258 = vector.broadcast %cst_94 : f32 to vector<8x1xf32>
    %259 = arith.mulf %257, %258 : vector<8x1xf32>
    %260 = vector.broadcast %259 : vector<8x1xf32> to vector<8x512xf32>
    %261 = arith.subf %255, %260 : vector<8x512xf32>
    %cst_95 = arith.constant 0.000000e+00 : f32
    %262 = vector.shape_cast %6 : vector<1x512xi1> to vector<1x512xi1>
    %263 = vector.broadcast %262 : vector<1x512xi1> to vector<8x512xi1>
    %264 = vector.broadcast %cst_95 : f32 to vector<8x512xf32>
    %265 = arith.select %263, %261, %264 : vector<8x512xi1>, vector<8x512xf32>
    %266 = arith.mulf %265, %265 : vector<8x512xf32>
    %cst_96 = arith.constant dense<0.000000e+00> : vector<8xf32>
    %267 = vector.multi_reduction <add>, %266, %cst_96 [1] : vector<8x512xf32> to vector<8xf32>
    %268 = vector.shape_cast %267 : vector<8xf32> to vector<8x1xf32>
    %cst_97 = arith.constant 0.00230414746 : f32
    %269 = vector.broadcast %cst_97 : f32 to vector<8x1xf32>
    %270 = arith.mulf %268, %269 : vector<8x1xf32>
    %cst_98 = arith.constant 9.99999974E-6 : f32
    %271 = vector.broadcast %cst_98 : f32 to vector<8x1xf32>
    %272 = arith.addf %270, %271 : vector<8x1xf32>
    %273 = math.rsqrt %272 : vector<8x1xf32>
    %274 = vector.broadcast %273 : vector<8x1xf32> to vector<8x512xf32>
    %275 = arith.mulf %261, %274 : vector<8x512xf32>
    %c18 = arith.constant 18 : index
    %c0_99 = arith.constant 0 : index
    %276 = vector.load %arg1[%c18, %c0_99] : memref<24x512xf32, #tpu.memory_space<vmem>>, vector<1x512xf32>
    %277 = vector.broadcast %276 : vector<1x512xf32> to vector<8x512xf32>
    %278 = arith.mulf %275, %277 : vector<8x512xf32>
    %c19 = arith.constant 19 : index
    %c0_100 = arith.constant 0 : index
    %279 = vector.load %arg1[%c19, %c0_100] : memref<24x512xf32, #tpu.memory_space<vmem>>, vector<1x512xf32>
    %280 = vector.broadcast %279 : vector<1x512xf32> to vector<8x512xf32>
    %281 = arith.addf %278, %280 : vector<8x512xf32>
    %c0_101 = arith.constant 0 : index
    %c512_102 = arith.constant 512 : index
    %282 = vector.load %arg0[%c0_101, %c512_102] : memref<8x1024xf32, #tpu.memory_space<vmem>>, vector<8x512xf32>
    %283 = arith.addf %281, %282 : vector<8x512xf32>
    %c512_103 = arith.constant 512 : index
    %c0_104 = arith.constant 0 : index
    %284 = vector.load %arg8[%c512_103, %c0_104] : memref<1280x128xbf16, #tpu.memory_space<vmem>>, vector<512x128xbf16>
    %285 = arith.truncf %283 : vector<8x512xf32> to vector<8x512xbf16>
    %cst_105 = arith.constant dense<0.000000e+00> : vector<8x128xf32>
    %286 = tpu.matmul %285, %284, %cst_105 {dimension_numbers = #tpu.dot_dimension_numbers<[1], [0], [0], [1], [0, 0, 1, 1], [], []>} : vector<8x512xbf16>, vector<512x128xbf16>, vector<8x128xf32> -> vector<8x128xf32>
    %c20 = arith.constant 20 : index
    %c0_106 = arith.constant 0 : index
    %287 = vector.load %arg1[%c20, %c0_106] : memref<24x512xf32, #tpu.memory_space<vmem>>, vector<1x128xf32>
    %288 = vector.broadcast %287 : vector<1x128xf32> to vector<8x128xf32>
    %289 = arith.addf %286, %288 : vector<8x128xf32>
    %cst_107 = arith.constant 0.000000e+00 : f32
    %290 = vector.broadcast %cst_107 : f32 to vector<8x128xf32>
    %291 = arith.maximumf %289, %290 : vector<8x128xf32>
    %c1024_108 = arith.constant 1024 : index
    %c0_109 = arith.constant 0 : index
    %292 = vector.load %arg8[%c1024_108, %c0_109] : memref<1280x128xbf16, #tpu.memory_space<vmem>>, vector<128x128xbf16>
    %293 = arith.truncf %291 : vector<8x128xf32> to vector<8x128xbf16>
    %cst_110 = arith.constant dense<0.000000e+00> : vector<8x128xf32>
    %294 = tpu.matmul %293, %292, %cst_110 {dimension_numbers = #tpu.dot_dimension_numbers<[1], [0], [0], [1], [0, 0, 1, 1], [], []>} : vector<8x128xbf16>, vector<128x128xbf16>, vector<8x128xf32> -> vector<8x128xf32>
    %c21 = arith.constant 21 : index
    %c0_111 = arith.constant 0 : index
    %295 = vector.load %arg1[%c21, %c0_111] : memref<24x512xf32, #tpu.memory_space<vmem>>, vector<1x128xf32>
    %296 = vector.broadcast %295 : vector<1x128xf32> to vector<8x128xf32>
    %297 = arith.addf %294, %296 : vector<8x128xf32>
    %cst_112 = arith.constant 0.000000e+00 : f32
    %298 = vector.broadcast %cst_112 : f32 to vector<8x128xf32>
    %299 = arith.maximumf %297, %298 : vector<8x128xf32>
    %c1152 = arith.constant 1152 : index
    %c0_113 = arith.constant 0 : index
    %300 = vector.load %arg8[%c1152, %c0_113] : memref<1280x128xbf16, #tpu.memory_space<vmem>>, vector<128x128xbf16>
    %301 = arith.truncf %299 : vector<8x128xf32> to vector<8x128xbf16>
    %cst_114 = arith.constant dense<0.000000e+00> : vector<8x128xf32>
    %302 = tpu.matmul %301, %300, %cst_114 {dimension_numbers = #tpu.dot_dimension_numbers<[1], [0], [0], [1], [0, 0, 1, 1], [], []>} : vector<8x128xbf16>, vector<128x128xbf16>, vector<8x128xf32> -> vector<8x128xf32>
    %c22 = arith.constant 22 : index
    %c0_115 = arith.constant 0 : index
    %303 = vector.load %arg1[%c22, %c0_115] : memref<24x512xf32, #tpu.memory_space<vmem>>, vector<1x128xf32>
    %304 = vector.broadcast %303 : vector<1x128xf32> to vector<8x128xf32>
    %305 = arith.addf %302, %304 : vector<8x128xf32>
    %c0_116 = arith.constant 0 : index
    %c0_117 = arith.constant 0 : index
    %306 = vector.load %arg6[%c0_116, %c0_117] : memref<8x128xf32, #tpu.memory_space<vmem>>, vector<8x128xf32>
    tpu.vector_store %arg6[%c0_116, %c0_117], %305 {strides = array<i32>} : memref<8x128xf32, #tpu.memory_space<vmem>>, vector<8x128xf32>,
    return
  }
}

</mosaic_0001>

<llo_original>
// kernel: multimodal_transformer.1
$region0: #{multimodal_transformer.1}
  #allocation0 [shape = 'u32[]', space=smem, size = 0x4, offset = 0x4, fixed_abs, tag = 'smem constant byte address 0x4 - core index']
  #allocation1 [shape = 'u32[72,128]{1,0:T(1,128)}', space=vmem, size = 0x9000, scoped, tag = 'internal scratch']
  #allocation2 [shape = 'bf16[2176,512]{1,0:T(8,128)(2,1)}', space=vmem, size = 0x220000, scoped, tag = 'scratch operand']
  #allocation3 [shape = 'bf16[1280,128]{1,0:T(8,128)(2,1)}', space=vmem, size = 0x50000, scoped, tag = 'scratch operand']
  #allocation4 [shape = 's32[2]{0}', space=sflag, size = 0x8, scoped, tag = 'scratch operand']
  #allocation12 [shape = 's32[]', space=sflag, size = 0x4, offset = 0, fixed_abs, tag = 'sflag constant byte address 0x0 - dummy sync flag']
  #allocation13 [shape = 's32[]', space=sflag, size = 0x4, offset = 0, fixed_abs, tag = 'sflag constant byte address 0x0 - dummy sync flag']
  #allocation14 [shape = 'u32[]', space=smem, size = 0x4, offset = 0x44, fixed_abs, tag = 'smem constant byte address 0x44 - assertion arg 0']
  #allocation15 [shape = 'u32[]', space=smem, size = 0x4, offset = 0x48, fixed_abs, tag = 'smem constant byte address 0x48 - assertion arg 1']
  #allocation16 [shape = 's32[]', space=sflag, size = 0x4, offset = 0, fixed_abs, tag = 'sflag constant byte address 0x0 - dummy sync flag']
  #allocation17 [shape = 's32[]', space=sflag, size = 0x4, offset = 0, fixed_abs, tag = 'sflag constant byte address 0x0 - dummy sync flag']
  %s0 = inlined_call_operand.vmem [shape: f32[8,1024], index: 0, kind: input, shape index: {}]
  %s1 = inlined_call_operand.hbm [shape: f32[24,512], index: 1, kind: input, shape index: {}]
  %s2 = inlined_call_operand.hbm [shape: bf16[2176,512], index: 2, kind: input, shape index: {}]
  %s3 = inlined_call_operand.hbm [shape: bf16[512,128], index: 3, kind: input, shape index: {}]
  %s4 = inlined_call_operand.hbm [shape: bf16[2176,512], index: 4, kind: input, shape index: {}]
  %s5 = inlined_call_operand.hbm [shape: bf16[1280,128], index: 5, kind: input, shape index: {}]
  %s6 = inlined_call_operand.hbm [shape: f32[8,128], index: 6, kind: output, shape index: {}]
  %s7 = sld [smem:[#allocation0]]
  $region46: #{multimodal_transformer.1} parent=0
    _
  %s9 = ssub.s32 1, %s7
  %s10 = scalar_select 0, %s9, %s7
  $region1: #{multimodal_transformer.1} parent=0
    #allocation5 [shape = 'u8[49152]{0}', space=vmem, size = 0xc000, scoped, tag = 'input window, operand 1, single buffered']
    #allocation6 [shape = 's32[1]{0}', space=sflag, size = 0x4, scoped, tag = 'scoped memory for multimodal_transformer.1']
    #allocation7 [shape = 's32[1]{0}', space=sflag, size = 0x4, scoped, tag = 'scoped memory for multimodal_transformer.1']
    #allocation8 [shape = 'u8[2228224]{0}', space=vmem, size = 0x220000, scoped, tag = 'input window, operand 2, single buffered']
    #allocation9 [shape = 's32[1]{0}', space=sflag, size = 0x4, scoped, tag = 'scoped memory for multimodal_transformer.1']
    #allocation10 [shape = 'u8[131072]{0}', space=vmem, size = 0x20000, scoped, tag = 'input window, operand 3, single buffered']
    #allocation11 [shape = 'u8[4096]{0}', space=vmem, size = 0x1000, scoped, tag = 'output window, operand 0, single buffered']
    %11 = vsyncpa [#allocation6], 0
    %12 = vsyncpa [#allocation9], 0
    %13 = vsyncpa [#allocation7], 0
    // Predicated region
    $region2: #{multimodal_transformer.1} parent=1 // pred_check
      _
    $region3: #{multimodal_transformer.1} parent=1 // pred_check_branch
      %15 = sbr.rel (0) target = $region5
    $region4: #{multimodal_transformer.1} parent=1 // pred_region
      _
    $region5: #{multimodal_transformer.1} parent=1 // pred_fallthru
      _
    // Predicated region
    $region6: #{multimodal_transformer.1} parent=1 // pred_check
      _
    $region7: #{multimodal_transformer.1} parent=1 // pred_check_branch
      %17 = sbr.rel (0) target = $region9
    $region8: #{multimodal_transformer.1} parent=1 // pred_region
      %19 = vsyncadd [#allocation6], 0
      %s20 = sshll.u32 %s1, 4
      %s21 = int_to_ptr.hbm [resolvable:$true] %s20
      %s22 = sshll.u32 [#allocation5], 4
      %s23 = int_to_ptr.vmem [resolvable:$true] %s22
      %28 = dma.hbm_to_vmem [thread:$0]  %s21, 1536, %s23, [#allocation6], 512, 512, 32
    $region9: #{multimodal_transformer.1} parent=1 // pred_fallthru
      _
    // Predicated region
    $region10: #{multimodal_transformer.1} parent=1 // pred_check
      _
    $region11: #{multimodal_transformer.1} parent=1 // pred_check_branch
      %30 = sbr.rel (0) target = $region13
    $region12: #{multimodal_transformer.1} parent=1 // pred_region
      %32 = vsyncadd [#allocation9], 0
      %s33 = sshll.u32 %s2, 4
      %s34 = int_to_ptr.hbm [resolvable:$true] %s33
      %s35 = sshll.u32 [#allocation8], 4
      %s36 = int_to_ptr.vmem [resolvable:$true] %s35
      %41 = dma.hbm_to_vmem [thread:$0]  %s34, 69632, %s36, [#allocation9], 256, 256, 16
    $region13: #{multimodal_transformer.1} parent=1 // pred_fallthru
      _
    // Predicated region
    $region14: #{multimodal_transformer.1} parent=1 // pred_check
      _
    $region15: #{multimodal_transformer.1} parent=1 // pred_check_branch
      %43 = sbr.rel (0) target = $region17
    $region16: #{multimodal_transformer.1} parent=1 // pred_region
      %45 = vsyncadd [#allocation9], 0
      %s46 = sshll.u32 %s3, 4
      %s47 = int_to_ptr.hbm [resolvable:$true] %s46
      %s48 = sshll.u32 [#allocation10], 4
      %s49 = int_to_ptr.vmem [resolvable:$true] %s48
      %54 = dma.hbm_to_vmem [thread:$0]  %s47, 4096, %s49, [#allocation9], 64, 64, 4
    $region17: #{multimodal_transformer.1} parent=1 // pred_fallthru
      _
    // Predicated region
    $region18: #{multimodal_transformer.1} parent=1 // pred_check
      _
    $region19: #{multimodal_transformer.1} parent=1 // pred_check_branch
      %56 = sbr.rel (0) target = $region21
    $region20: #{multimodal_transformer.1} parent=1 // pred_region
      %58 = dma.done [#allocation6], 1536
    $region21: #{multimodal_transformer.1} parent=1 // pred_fallthru
      _
    // Predicated region
    $region22: #{multimodal_transformer.1} parent=1 // pred_check
      _
    $region23: #{multimodal_transformer.1} parent=1 // pred_check_branch
      %60 = sbr.rel (0) target = $region25
    $region24: #{multimodal_transformer.1} parent=1 // pred_region
      %62 = dma.done [#allocation9], 69632
    $region25: #{multimodal_transformer.1} parent=1 // pred_fallthru
      _
    // Predicated region
    $region26: #{multimodal_transformer.1} parent=1 // pred_check
      _
    $region27: #{multimodal_transformer.1} parent=1 // pred_check_branch
      %64 = sbr.rel (0) target = $region29
    $region28: #{multimodal_transformer.1} parent=1 // pred_region
      %66 = dma.done [#allocation9], 4096
    $region29: #{multimodal_transformer.1} parent=1 // pred_fallthru
      _
    // Predicated region
    $region30: #{multimodal_transformer.1} parent=1 // pred_check
      _
    $region31: #{multimodal_transformer.1} parent=1 // pred_check_branch
      %69 = sbr.rel target = $region33
    $region32: #{multimodal_transformer.1} parent=1 // pred_region
      %70 = sst [smem:[#allocation14]] [#allocation13]
      %71 = sst [smem:[#allocation15]] [#allocation12]
    $region33: #{multimodal_transformer.1} parent=1 // pred_fallthru
      _
    %73 = shalt.err (0)
    %s75 = sshll.u32 %s4, 4
    %s76 = int_to_ptr.hbm [resolvable:$true] %s75
    %s77 = sshll.u32 [#allocation2], 4
    %s78 = int_to_ptr.vmem [resolvable:$true] %s77
    %80 = dma.hbm_to_vmem [thread:$0]  %s76, 69632, %s78, [#allocation4]
    %s81 = scalar_lea.sflag [#allocation4], 1
    // Predicated region
    $region34: #{multimodal_transformer.1} parent=1 // pred_check
      _
    $region35: #{multimodal_transformer.1} parent=1 // pred_check_branch
      %83 = sbr.rel target = $region37
    $region36: #{multimodal_transformer.1} parent=1 // pred_region
      %84 = sst [smem:[#allocation14]] [#allocation17]
      %85 = sst [smem:[#allocation15]] [#allocation16]
    $region37: #{multimodal_transformer.1} parent=1 // pred_fallthru
      _
    %87 = shalt.err (0)
    %s89 = sshll.u32 %s5, 4
    %s90 = int_to_ptr.hbm [resolvable:$true] %s89
    %s91 = sshll.u32 [#allocation3], 4
    %s92 = int_to_ptr.vmem [resolvable:$true] %s91
    %94 = dma.hbm_to_vmem [thread:$0]  %s90, 10240, %s92, %s81
    %v95 = vlaneseq
    %v96 = vand.u32 %v95, 127
    %v97 = vadd.s32 %v96, 128
    %v98 = vadd.s32 %v96, 256
    %v99 = vadd.s32 %v96, 384
    %vm100 = vcmp.lt.s32.totalorder %v96, 434
    %vm101 = vcmp.lt.s32.totalorder %v97, 434
    %vm102 = vcmp.lt.s32.totalorder %v98, 434
    %vm103 = vcmp.lt.s32.totalorder %v99, 434
    %v104 = vld [vmem:[%s0] sm:$0xff]
    %v105 = vld [vmem:[%s0 + $0x8] sm:$0xff]
    %v106 = vld [vmem:[%s0 + $0x10] sm:$0xff]
    %v107 = vld [vmem:[%s0 + $0x18] sm:$0xff]
    %v108 = vld [vmem:[#allocation8] sm:$0xff]
    %v109 = vld [vmem:[#allocation8 + $0x8] sm:$0xff]
    %v110 = vld [vmem:[#allocation8 + $0x10] sm:$0xff]
    %v111 = vld [vmem:[#allocation8 + $0x18] sm:$0xff]
    %v112 = vld [vmem:[#allocation8 + $0x20] sm:$0xff]
    %v113 = vld [vmem:[#allocation8 + $0x28] sm:$0xff]
    %v114 = vld [vmem:[#allocation8 + $0x30] sm:$0xff]
    %v115 = vld [vmem:[#allocation8 + $0x38] sm:$0xff]
    %v116 = vld [vmem:[#allocation8 + $0x40] sm:$0xff]
    %v117 = vld [vmem:[#allocation8 + $0x48] sm:$0xff]
    %v118 = vld [vmem:[#allocation8 + $0x50] sm:$0xff]
    %v119 = vld [vmem:[#allocation8 + $0x58] sm:$0xff]
    %v120 = vld [vmem:[#allocation8 + $0x60] sm:$0xff]
    %v121 = vld [vmem:[#allocation8 + $0x68] sm:$0xff]
    %v122 = vld [vmem:[#allocation8 + $0x70] sm:$0xff]
    %v123 = vld [vmem:[#allocation8 + $0x78] sm:$0xff]
    %v124 = vld [vmem:[#allocation8 + $0x80] sm:$0xff]
    %v125 = vld [vmem:[#allocation8 + $0x88] sm:$0xff]
    %v126 = vld [vmem:[#allocation8 + $0x90] sm:$0xff]
    %v127 = vld [vmem:[#allocation8 + $0x98] sm:$0xff]
    %v128 = vld [vmem:[#allocation8 + $0xa0] sm:$0xff]
    %v129 = vld [vmem:[#allocation8 + $0xa8] sm:$0xff]
    %v130 = vld [vmem:[#allocation8 + $0xb0] sm:$0xff]
    %v131 = vld [vmem:[#allocation8 + $0xb8] sm:$0xff]
    %v132 = vld [vmem:[#allocation8 + $0xc0] sm:$0xff]
    %v133 = vld [vmem:[#allocation8 + $0xc8] sm:$0xff]
    %v134 = vld [vmem:[#allocation8 + $0xd0] sm:$0xff]
    %v135 = vld [vmem:[#allocation8 + $0xd8] sm:$0xff]
    %v136 = vld [vmem:[#allocation8 + $0xe0] sm:$0xff]
    %v137 = vld [vmem:[#allocation8 + $0xe8] sm:$0xff]
    %v138 = vld [vmem:[#allocation8 + $0xf0] sm:$0xff]
    %v139 = vld [vmem:[#allocation8 + $0xf8] sm:$0xff]
    %v140 = vld [vmem:[#allocation8 + $0x100] sm:$0xff]
    %v141 = vld [vmem:[#allocation8 + $0x108] sm:$0xff]
    %v142 = vld [vmem:[#allocation8 + $0x110] sm:$0xff]
    %v143 = vld [vmem:[#allocation8 + $0x118] sm:$0xff]
    %v144 = vld [vmem:[#allocation8 + $0x120] sm:$0xff]
    %v145 = vld [vmem:[#allocation8 + $0x128] sm:$0xff]
    %v146 = vld [vmem:[#allocation8 + $0x130] sm:$0xff]
    %v147 = vld [vmem:[#allocation8 + $0x138] sm:$0xff]
    %v148 = vld [vmem:[#allocation8 + $0x140] sm:$0xff]
    %v149 = vld [vmem:[#allocation8 + $0x148] sm:$0xff]
    %v150 = vld [vmem:[#allocation8 + $0x150] sm:$0xff]
    %v151 = vld [vmem:[#allocation8 + $0x158] sm:$0xff]
    %v152 = vld [vmem:[#allocation8 + $0x160] sm:$0xff]
    %v153 = vld [vmem:[#allocation8 + $0x168] sm:$0xff]
    %v154 = vld [vmem:[#allocation8 + $0x170] sm:$0xff]
    %v155 = vld [vmem:[#allocation8 + $0x178] sm:$0xff]
    %v156 = vld [vmem:[#allocation8 + $0x180] sm:$0xff]
    %v157 = vld [vmem:[#allocation8 + $0x188] sm:$0xff]
    %v158 = vld [vmem:[#allocation8 + $0x190] sm:$0xff]
    %v159 = vld [vmem:[#allocation8 + $0x198] sm:$0xff]
    %v160 = vld [vmem:[#allocation8 + $0x1a0] sm:$0xff]
    %v161 = vld [vmem:[#allocation8 + $0x1a8] sm:$0xff]
    %v162 = vld [vmem:[#allocation8 + $0x1b0] sm:$0xff]
    %v163 = vld [vmem:[#allocation8 + $0x1b8] sm:$0xff]
    %v164 = vld [vmem:[#allocation8 + $0x1c0] sm:$0xff]
    %v165 = vld [vmem:[#allocation8 + $0x1c8] sm:$0xff]
    %v166 = vld [vmem:[#allocation8 + $0x1d0] sm:$0xff]
    %v167 = vld [vmem:[#allocation8 + $0x1d8] sm:$0xff]
    %v168 = vld [vmem:[#allocation8 + $0x1e0] sm:$0xff]
    %v169 = vld [vmem:[#allocation8 + $0x1e8] sm:$0xff]
    %v170 = vld [vmem:[#allocation8 + $0x1f0] sm:$0xff]
    %v171 = vld [vmem:[#allocation8 + $0x1f8] sm:$0xff]
    %v172 = vld [vmem:[#allocation8 + $0x200] sm:$0xff]
    %v173 = vld [vmem:[#allocation8 + $0x208] sm:$0xff]
    %v174 = vld [vmem:[#allocation8 + $0x210] sm:$0xff]
    %v175 = vld [vmem:[#allocation8 + $0x218] sm:$0xff]
    %v176 = vld [vmem:[#allocation8 + $0x220] sm:$0xff]
    %v177 = vld [vmem:[#allocation8 + $0x228] sm:$0xff]
    %v178 = vld [vmem:[#allocation8 + $0x230] sm:$0xff]
    %v179 = vld [vmem:[#allocation8 + $0x238] sm:$0xff]
    %v180 = vld [vmem:[#allocation8 + $0x240] sm:$0xff]
    %v181 = vld [vmem:[#allocation8 + $0x248] sm:$0xff]
    %v182 = vld [vmem:[#allocation8 + $0x250] sm:$0xff]
    %v183 = vld [vmem:[#allocation8 + $0x258] sm:$0xff]
    %v184 = vld [vmem:[#allocation8 + $0x260] sm:$0xff]
    %v185 = vld [vmem:[#allocation8 + $0x268] sm:$0xff]
    %v186 = vld [vmem:[#allocation8 + $0x270] sm:$0xff]
    %v187 = vld [vmem:[#allocation8 + $0x278] sm:$0xff]
    %v188 = vld [vmem:[#allocation8 + $0x280] sm:$0xff]
    %v189 = vld [vmem:[#allocation8 + $0x288] sm:$0xff]
    %v190 = vld [vmem:[#allocation8 + $0x290] sm:$0xff]
    %v191 = vld [vmem:[#allocation8 + $0x298] sm:$0xff]
    %v192 = vld [vmem:[#allocation8 + $0x2a0] sm:$0xff]
    %v193 = vld [vmem:[#allocation8 + $0x2a8] sm:$0xff]
    %v194 = vld [vmem:[#allocation8 + $0x2b0] sm:$0xff]
    %v195 = vld [vmem:[#allocation8 + $0x2b8] sm:$0xff]
    %v196 = vld [vmem:[#allocation8 + $0x2c0] sm:$0xff]
    %v197 = vld [vmem:[#allocation8 + $0x2c8] sm:$0xff]
    %v198 = vld [vmem:[#allocation8 + $0x2d0] sm:$0xff]
    %v199 = vld [vmem:[#allocation8 + $0x2d8] sm:$0xff]
    %v200 = vld [vmem:[#allocation8 + $0x2e0] sm:$0xff]
    %v201 = vld [vmem:[#allocation8 + $0x2e8] sm:$0xff]
    %v202 = vld [vmem:[#allocation8 + $0x2f0] sm:$0xff]
    %v203 = vld [vmem:[#allocation8 + $0x2f8] sm:$0xff]
    %v204 = vld [vmem:[#allocation8 + $0x300] sm:$0xff]
    %v205 = vld [vmem:[#allocation8 + $0x308] sm:$0xff]
    %v206 = vld [vmem:[#allocation8 + $0x310] sm:$0xff]
    %v207 = vld [vmem:[#allocation8 + $0x318] sm:$0xff]
    %v208 = vld [vmem:[#allocation8 + $0x320] sm:$0xff]
    %v209 = vld [vmem:[#allocation8 + $0x328] sm:$0xff]
    %v210 = vld [vmem:[#allocation8 + $0x330] sm:$0xff]
    %v211 = vld [vmem:[#allocation8 + $0x338] sm:$0xff]
    %v212 = vld [vmem:[#allocation8 + $0x340] sm:$0xff]
    %v213 = vld [vmem:[#allocation8 + $0x348] sm:$0xff]
    %v214 = vld [vmem:[#allocation8 + $0x350] sm:$0xff]
    %v215 = vld [vmem:[#allocation8 + $0x358] sm:$0xff]
    %v216 = vld [vmem:[#allocation8 + $0x360] sm:$0xff]
    %v217 = vld [vmem:[#allocation8 + $0x368] sm:$0xff]
    %v218 = vld [vmem:[#allocation8 + $0x370] sm:$0xff]
    %v219 = vld [vmem:[#allocation8 + $0x378] sm:$0xff]
    %v220 = vld [vmem:[#allocation8 + $0x380] sm:$0xff]
    %v221 = vld [vmem:[#allocation8 + $0x388] sm:$0xff]
    %v222 = vld [vmem:[#allocation8 + $0x390] sm:$0xff]
    %v223 = vld [vmem:[#allocation8 + $0x398] sm:$0xff]
    %v224 = vld [vmem:[#allocation8 + $0x3a0] sm:$0xff]
    %v225 = vld [vmem:[#allocation8 + $0x3a8] sm:$0xff]
    %v226 = vld [vmem:[#allocation8 + $0x3b0] sm:$0xff]
    %v227 = vld [vmem:[#allocation8 + $0x3b8] sm:$0xff]
    %v228 = vld [vmem:[#allocation8 + $0x3c0] sm:$0xff]
    %v229 = vld [vmem:[#allocation8 + $0x3c8] sm:$0xff]
    %v230 = vld [vmem:[#allocation8 + $0x3d0] sm:$0xff]
    %v231 = vld [vmem:[#allocation8 + $0x3d8] sm:$0xff]
    %v232 = vld [vmem:[#allocation8 + $0x3e0] sm:$0xff]
    %v233 = vld [vmem:[#allocation8 + $0x3e8] sm:$0xff]
    %v234 = vld [vmem:[#allocation8 + $0x3f0] sm:$0xff]
    %v235 = vld [vmem:[#allocation8 + $0x3f8] sm:$0xff]
    %v236 = vpack.c.bf16 %v104, %v104
    %v237 = vpack.c.bf16 %v105, %v105
    %v238 = vpack.c.bf16 %v106, %v106
    %v239 = vpack.c.bf16 %v107, %v107
    %v240 = vld [vmem:[#allocation5] ss:$8 sm:$0xf]
    %v242 = vperm.slane %v240, 0
    %v243 = vperm.slane %v240, 1
    %v244 = vperm.slane %v240, 2
    %v245 = vperm.slane %v240, 3
    %v378 = vunpack.c.l.b16 %v108
    %v379 = vunpack.c.h.b16 %v108
    %v380 = vunpack.c.l.b16 %v109
    %v381 = vunpack.c.h.b16 %v109
    %v382 = vunpack.c.l.b16 %v110
    %v383 = vunpack.c.h.b16 %v110
    %v384 = vunpack.c.l.b16 %v111
    %v385 = vunpack.c.h.b16 %v111
    %v386 = vunpack.c.l.b16 %v112
    %v387 = vunpack.c.h.b16 %v112
    %v388 = vunpack.c.l.b16 %v113
    %v389 = vunpack.c.h.b16 %v113
    %v390 = vunpack.c.l.b16 %v114
    %v391 = vunpack.c.h.b16 %v114
    %v392 = vunpack.c.l.b16 %v115
    %v393 = vunpack.c.h.b16 %v115
    %v394 = vunpack.c.l.b16 %v116
    %v395 = vunpack.c.h.b16 %v116
    %v396 = vunpack.c.l.b16 %v117
    %v397 = vunpack.c.h.b16 %v117
    %v398 = vunpack.c.l.b16 %v118
    %v399 = vunpack.c.h.b16 %v118
    %v400 = vunpack.c.l.b16 %v119
    %v401 = vunpack.c.h.b16 %v119
    %v402 = vunpack.c.l.b16 %v120
    %v403 = vunpack.c.h.b16 %v120
    %v404 = vunpack.c.l.b16 %v121
    %v405 = vunpack.c.h.b16 %v121
    %v406 = vunpack.c.l.b16 %v122
    %v407 = vunpack.c.h.b16 %v122
    %v408 = vunpack.c.l.b16 %v123
    %v409 = vunpack.c.h.b16 %v123
    %v410 = vunpack.c.l.b16 %v124
    %v411 = vunpack.c.h.b16 %v124
    %v412 = vunpack.c.l.b16 %v125
    %v413 = vunpack.c.h.b16 %v125
    %v414 = vunpack.c.l.b16 %v126
    %v415 = vunpack.c.h.b16 %v126
    %v416 = vunpack.c.l.b16 %v127
    %v417 = vunpack.c.h.b16 %v127
    %v418 = vunpack.c.l.b16 %v128
    %v419 = vunpack.c.h.b16 %v128
    %v420 = vunpack.c.l.b16 %v129
    %v421 = vunpack.c.h.b16 %v129
    %v422 = vunpack.c.l.b16 %v130
    %v423 = vunpack.c.h.b16 %v130
    %v424 = vunpack.c.l.b16 %v131
    %v425 = vunpack.c.h.b16 %v131
    %v426 = vunpack.c.l.b16 %v132
    %v427 = vunpack.c.h.b16 %v132
    %v428 = vunpack.c.l.b16 %v133
    %v429 = vunpack.c.h.b16 %v133
    %v430 = vunpack.c.l.b16 %v134
    %v431 = vunpack.c.h.b16 %v134
    %v432 = vunpack.c.l.b16 %v135
    %v433 = vunpack.c.h.b16 %v135
    %v434 = vunpack.c.l.b16 %v136
    %v435 = vunpack.c.h.b16 %v136
    %v436 = vunpack.c.l.b16 %v137
    %v437 = vunpack.c.h.b16 %v137
    %v438 = vunpack.c.l.b16 %v138
    %v439 = vunpack.c.h.b16 %v138
    %v440 = vunpack.c.l.b16 %v139
    %v441 = vunpack.c.h.b16 %v139
    %v442 = vunpack.c.l.b16 %v140
    %v443 = vunpack.c.h.b16 %v140
    %v444 = vunpack.c.l.b16 %v141
    %v445 = vunpack.c.h.b16 %v141
    %v446 = vunpack.c.l.b16 %v142
    %v447 = vunpack.c.h.b16 %v142
    %v448 = vunpack.c.l.b16 %v143
    %v449 = vunpack.c.h.b16 %v143
    %v450 = vunpack.c.l.b16 %v144
    %v451 = vunpack.c.h.b16 %v144
    %v452 = vunpack.c.l.b16 %v145
    %v453 = vunpack.c.h.b16 %v145
    %v454 = vunpack.c.l.b16 %v146
    %v455 = vunpack.c.h.b16 %v146
    %v456 = vunpack.c.l.b16 %v147
    %v457 = vunpack.c.h.b16 %v147
    %v458 = vunpack.c.l.b16 %v148
    %v459 = vunpack.c.h.b16 %v148
    %v460 = vunpack.c.l.b16 %v149
    %v461 = vunpack.c.h.b16 %v149
    %v462 = vunpack.c.l.b16 %v150
    %v463 = vunpack.c.h.b16 %v150
    %v464 = vunpack.c.l.b16 %v151
    %v465 = vunpack.c.h.b16 %v151
    %v466 = vunpack.c.l.b16 %v152
    %v467 = vunpack.c.h.b16 %v152
    %v468 = vunpack.c.l.b16 %v153
    %v469 = vunpack.c.h.b16 %v153
    %v470 = vunpack.c.l.b16 %v154
    %v471 = vunpack.c.h.b16 %v154
    %v472 = vunpack.c.l.b16 %v155
    %v473 = vunpack.c.h.b16 %v155
    %v474 = vunpack.c.l.b16 %v156
    %v475 = vunpack.c.h.b16 %v156
    %v476 = vunpack.c.l.b16 %v157
    %v477 = vunpack.c.h.b16 %v157
    %v478 = vunpack.c.l.b16 %v158
    %v479 = vunpack.c.h.b16 %v158
    %v480 = vunpack.c.l.b16 %v159
    %v481 = vunpack.c.h.b16 %v159
    %v482 = vunpack.c.l.b16 %v160
    %v483 = vunpack.c.h.b16 %v160
    %v484 = vunpack.c.l.b16 %v161
    %v485 = vunpack.c.h.b16 %v161
    %v486 = vunpack.c.l.b16 %v162
    %v487 = vunpack.c.h.b16 %v162
    %v488 = vunpack.c.l.b16 %v163
    %v489 = vunpack.c.h.b16 %v163
    %v490 = vunpack.c.l.b16 %v164
    %v491 = vunpack.c.h.b16 %v164
    %v492 = vunpack.c.l.b16 %v165
    %v493 = vunpack.c.h.b16 %v165
    %v494 = vunpack.c.l.b16 %v166
    %v495 = vunpack.c.h.b16 %v166
    %v496 = vunpack.c.l.b16 %v167
    %v497 = vunpack.c.h.b16 %v167
    %v498 = vunpack.c.l.b16 %v168
    %v499 = vunpack.c.h.b16 %v168
    %v500 = vunpack.c.l.b16 %v169
    %v501 = vunpack.c.h.b16 %v169
    %v502 = vunpack.c.l.b16 %v170
    %v503 = vunpack.c.h.b16 %v170
    %v504 = vunpack.c.l.b16 %v171
    %v505 = vunpack.c.h.b16 %v171
    %v506 = vunpack.c.l.b16 %v172
    %v507 = vunpack.c.h.b16 %v172
    %v508 = vunpack.c.l.b16 %v173
    %v509 = vunpack.c.h.b16 %v173
    %v510 = vunpack.c.l.b16 %v174
    %v511 = vunpack.c.h.b16 %v174
    %v512 = vunpack.c.l.b16 %v175
    %v513 = vunpack.c.h.b16 %v175
    %v514 = vunpack.c.l.b16 %v176
    %v515 = vunpack.c.h.b16 %v176
    %v516 = vunpack.c.l.b16 %v177
    %v517 = vunpack.c.h.b16 %v177
    %v518 = vunpack.c.l.b16 %v178
    %v519 = vunpack.c.h.b16 %v178
    %v520 = vunpack.c.l.b16 %v179
    %v521 = vunpack.c.h.b16 %v179
    %v522 = vunpack.c.l.b16 %v180
    %v523 = vunpack.c.h.b16 %v180
    %v524 = vunpack.c.l.b16 %v181
    %v525 = vunpack.c.h.b16 %v181
    %v526 = vunpack.c.l.b16 %v182
    %v527 = vunpack.c.h.b16 %v182
    %v528 = vunpack.c.l.b16 %v183
    %v529 = vunpack.c.h.b16 %v183
    %v530 = vunpack.c.l.b16 %v184
    %v531 = vunpack.c.h.b16 %v184
    %v532 = vunpack.c.l.b16 %v185
    %v533 = vunpack.c.h.b16 %v185
    %v534 = vunpack.c.l.b16 %v186
    %v535 = vunpack.c.h.b16 %v186
    %v536 = vunpack.c.l.b16 %v187
    %v537 = vunpack.c.h.b16 %v187
    %v538 = vunpack.c.l.b16 %v188
    %v539 = vunpack.c.h.b16 %v188
    %v540 = vunpack.c.l.b16 %v189
    %v541 = vunpack.c.h.b16 %v189
    %v542 = vunpack.c.l.b16 %v190
    %v543 = vunpack.c.h.b16 %v190
    %v544 = vunpack.c.l.b16 %v191
    %v545 = vunpack.c.h.b16 %v191
    %v546 = vunpack.c.l.b16 %v192
    %v547 = vunpack.c.h.b16 %v192
    %v548 = vunpack.c.l.b16 %v193
    %v549 = vunpack.c.h.b16 %v193
    %v550 = vunpack.c.l.b16 %v194
    %v551 = vunpack.c.h.b16 %v194
    %v552 = vunpack.c.l.b16 %v195
    %v553 = vunpack.c.h.b16 %v195
    %v554 = vunpack.c.l.b16 %v196
    %v555 = vunpack.c.h.b16 %v196
    %v556 = vunpack.c.l.b16 %v197
    %v557 = vunpack.c.h.b16 %v197
    %v558 = vunpack.c.l.b16 %v198
    %v559 = vunpack.c.h.b16 %v198
    %v560 = vunpack.c.l.b16 %v199
    %v561 = vunpack.c.h.b16 %v199
    %v562 = vunpack.c.l.b16 %v200
    %v563 = vunpack.c.h.b16 %v200
    %v564 = vunpack.c.l.b16 %v201
    %v565 = vunpack.c.h.b16 %v201
    %v566 = vunpack.c.l.b16 %v202
    %v567 = vunpack.c.h.b16 %v202
    %v568 = vunpack.c.l.b16 %v203
    %v569 = vunpack.c.h.b16 %v203
    %v570 = vunpack.c.l.b16 %v204
    %v571 = vunpack.c.h.b16 %v204
    %v572 = vunpack.c.l.b16 %v205
    %v573 = vunpack.c.h.b16 %v205
    %v574 = vunpack.c.l.b16 %v206
    %v575 = vunpack.c.h.b16 %v206
    %v576 = vunpack.c.l.b16 %v207
    %v577 = vunpack.c.h.b16 %v207
    %v578 = vunpack.c.l.b16 %v208
    %v579 = vunpack.c.h.b16 %v208
    %v580 = vunpack.c.l.b16 %v209
    %v581 = vunpack.c.h.b16 %v209
    %v582 = vunpack.c.l.b16 %v210
    %v583 = vunpack.c.h.b16 %v210
    %v584 = vunpack.c.l.b16 %v211
    %v585 = vunpack.c.h.b16 %v211
    %v586 = vunpack.c.l.b16 %v212
    %v587 = vunpack.c.h.b16 %v212
    %v588 = vunpack.c.l.b16 %v213
    %v589 = vunpack.c.h.b16 %v213
    %v590 = vunpack.c.l.b16 %v214
    %v591 = vunpack.c.h.b16 %v214
    %v592 = vunpack.c.l.b16 %v215
    %v593 = vunpack.c.h.b16 %v215
    %v594 = vunpack.c.l.b16 %v216
    %v595 = vunpack.c.h.b16 %v216
    %v596 = vunpack.c.l.b16 %v217
    %v597 = vunpack.c.h.b16 %v217
    %v598 = vunpack.c.l.b16 %v218
    %v599 = vunpack.c.h.b16 %v218
    %v600 = vunpack.c.l.b16 %v219
    %v601 = vunpack.c.h.b16 %v219
    %v602 = vunpack.c.l.b16 %v220
    %v603 = vunpack.c.h.b16 %v220
    %v604 = vunpack.c.l.b16 %v221
    %v605 = vunpack.c.h.b16 %v221
    %v606 = vunpack.c.l.b16 %v222
    %v607 = vunpack.c.h.b16 %v222
    %v608 = vunpack.c.l.b16 %v223
    %v609 = vunpack.c.h.b16 %v223
    %v610 = vunpack.c.l.b16 %v224
    %v611 = vunpack.c.h.b16 %v224
    %v612 = vunpack.c.l.b16 %v225
    %v613 = vunpack.c.h.b16 %v225
    %v614 = vunpack.c.l.b16 %v226
    %v615 = vunpack.c.h.b16 %v226
    %v616 = vunpack.c.l.b16 %v227
    %v617 = vunpack.c.h.b16 %v227
    %v618 = vunpack.c.l.b16 %v228
    %v619 = vunpack.c.h.b16 %v228
    %v620 = vunpack.c.l.b16 %v229
    %v621 = vunpack.c.h.b16 %v229
    %v622 = vunpack.c.l.b16 %v230
    %v623 = vunpack.c.h.b16 %v230
    %v624 = vunpack.c.l.b16 %v231
    %v625 = vunpack.c.h.b16 %v231
    %v626 = vunpack.c.l.b16 %v232
    %v627 = vunpack.c.h.b16 %v232
    %v628 = vunpack.c.l.b16 %v233
    %v629 = vunpack.c.h.b16 %v233
    %v630 = vunpack.c.l.b16 %v234
    %v631 = vunpack.c.h.b16 %v234
    %v632 = vunpack.c.l.b16 %v235
    %v633 = vunpack.c.h.b16 %v235
    %v634 = vpack.c.b16 %v382, %v378
    %v635 = vpack.c.b16 %v383, %v379
    %v636 = vpack.c.b16 %v384, %v380
    %v637 = vpack.c.b16 %v385, %v381
    %v638 = vpack.c.b16 %v390, %v386
    %v639 = vpack.c.b16 %v391, %v387
    %v640 = vpack.c.b16 %v392, %v388
    %v641 = vpack.c.b16 %v393, %v389
    %v642 = vpack.c.b16 %v398, %v394
    %v643 = vpack.c.b16 %v399, %v395
    %v644 = vpack.c.b16 %v400, %v396
    %v645 = vpack.c.b16 %v401, %v397
    %v646 = vpack.c.b16 %v406, %v402
    %v647 = vpack.c.b16 %v407, %v403
    %v648 = vpack.c.b16 %v408, %v404
    %v649 = vpack.c.b16 %v409, %v405
    %v650 = vpack.c.b16 %v414, %v410
    %v651 = vpack.c.b16 %v415, %v411
    %v652 = vpack.c.b16 %v416, %v412
    %v653 = vpack.c.b16 %v417, %v413
    %v654 = vpack.c.b16 %v422, %v418
    %v655 = vpack.c.b16 %v423, %v419
    %v656 = vpack.c.b16 %v424, %v420
    %v657 = vpack.c.b16 %v425, %v421
    %v658 = vpack.c.b16 %v430, %v426
    %v659 = vpack.c.b16 %v431, %v427
    %v660 = vpack.c.b16 %v432, %v428
    %v661 = vpack.c.b16 %v433, %v429
    %v662 = vpack.c.b16 %v438, %v434
    %v663 = vpack.c.b16 %v439, %v435
    %v664 = vpack.c.b16 %v440, %v436
    %v665 = vpack.c.b16 %v441, %v437
    %v666 = vpack.c.b16 %v446, %v442
    %v667 = vpack.c.b16 %v447, %v443
    %v668 = vpack.c.b16 %v448, %v444
    %v669 = vpack.c.b16 %v449, %v445
    %v670 = vpack.c.b16 %v454, %v450
    %v671 = vpack.c.b16 %v455, %v451
    %v672 = vpack.c.b16 %v456, %v452
    %v673 = vpack.c.b16 %v457, %v453
    %v674 = vpack.c.b16 %v462, %v458
    %v675 = vpack.c.b16 %v463, %v459
    %v676 = vpack.c.b16 %v464, %v460
    %v677 = vpack.c.b16 %v465, %v461
    %v678 = vpack.c.b16 %v470, %v466
    %v679 = vpack.c.b16 %v471, %v467
    %v680 = vpack.c.b16 %v472, %v468
    %v681 = vpack.c.b16 %v473, %v469
    %v682 = vpack.c.b16 %v478, %v474
    %v683 = vpack.c.b16 %v479, %v475
    %v684 = vpack.c.b16 %v480, %v476
    %v685 = vpack.c.b16 %v481, %v477
    %v686 = vpack.c.b16 %v486, %v482
    %v687 = vpack.c.b16 %v487, %v483
    %v688 = vpack.c.b16 %v488, %v484
    %v689 = vpack.c.b16 %v489, %v485
    %v690 = vpack.c.b16 %v494, %v490
    %v691 = vpack.c.b16 %v495, %v491
    %v692 = vpack.c.b16 %v496, %v492
    %v693 = vpack.c.b16 %v497, %v493
    %v694 = vpack.c.b16 %v502, %v498
    %v695 = vpack.c.b16 %v503, %v499
    %v696 = vpack.c.b16 %v504, %v500
    %v697 = vpack.c.b16 %v505, %v501
    %v698 = vpack.c.b16 %v510, %v506
    %v699 = vpack.c.b16 %v511, %v507
    %v700 = vpack.c.b16 %v512, %v508
    %v701 = vpack.c.b16 %v513, %v509
    %v702 = vpack.c.b16 %v518, %v514
    %v703 = vpack.c.b16 %v519, %v515
    %v704 = vpack.c.b16 %v520, %v516
    %v705 = vpack.c.b16 %v521, %v517
    %v706 = vpack.c.b16 %v526, %v522
    %v707 = vpack.c.b16 %v527, %v523
    %v708 = vpack.c.b16 %v528, %v524
    %v709 = vpack.c.b16 %v529, %v525
    %v710 = vpack.c.b16 %v534, %v530
    %v711 = vpack.c.b16 %v535, %v531
    %v712 = vpack.c.b16 %v536, %v532
    %v713 = vpack.c.b16 %v537, %v533
    %v714 = vpack.c.b16 %v542, %v538
    %v715 = vpack.c.b16 %v543, %v539
    %v716 = vpack.c.b16 %v544, %v540
    %v717 = vpack.c.b16 %v545, %v541
    %v718 = vpack.c.b16 %v550, %v546
    %v719 = vpack.c.b16 %v551, %v547
    %v720 = vpack.c.b16 %v552, %v548
    %v721 = vpack.c.b16 %v553, %v549
    %v722 = vpack.c.b16 %v558, %v554
    %v723 = vpack.c.b16 %v559, %v555
    %v724 = vpack.c.b16 %v560, %v556
    %v725 = vpack.c.b16 %v561, %v557
    %v726 = vpack.c.b16 %v566, %v562
    %v727 = vpack.c.b16 %v567, %v563
    %v728 = vpack.c.b16 %v568, %v564
    %v729 = vpack.c.b16 %v569, %v565
    %v730 = vpack.c.b16 %v574, %v570
    %v731 = vpack.c.b16 %v575, %v571
    %v732 = vpack.c.b16 %v576, %v572
    %v733 = vpack.c.b16 %v577, %v573
    %v734 = vpack.c.b16 %v582, %v578
    %v735 = vpack.c.b16 %v583, %v579
    %v736 = vpack.c.b16 %v584, %v580
    %v737 = vpack.c.b16 %v585, %v581
    %v738 = vpack.c.b16 %v590, %v586
    %v739 = vpack.c.b16 %v591, %v587
    %v740 = vpack.c.b16 %v592, %v588
    %v741 = vpack.c.b16 %v593, %v589
    %v742 = vpack.c.b16 %v598, %v594
    %v743 = vpack.c.b16 %v599, %v595
    %v744 = vpack.c.b16 %v600, %v596
    %v745 = vpack.c.b16 %v601, %v597
    %v746 = vpack.c.b16 %v606, %v602
    %v747 = vpack.c.b16 %v607, %v603
    %v748 = vpack.c.b16 %v608, %v604
    %v749 = vpack.c.b16 %v609, %v605
    %v750 = vpack.c.b16 %v614, %v610
    %v751 = vpack.c.b16 %v615, %v611
    %v752 = vpack.c.b16 %v616, %v612
    %v753 = vpack.c.b16 %v617, %v613
    %v754 = vpack.c.b16 %v622, %v618
    %v755 = vpack.c.b16 %v623, %v619
    %v756 = vpack.c.b16 %v624, %v620
    %v757 = vpack.c.b16 %v625, %v621
    %v758 = vpack.c.b16 %v630, %v626
    %v759 = vpack.c.b16 %v631, %v627
    %v760 = vpack.c.b16 %v632, %v628
    %v761 = vpack.c.b16 %v633, %v629
    %890 = vmatpush.bf16.msra.mxu0 %v662
    %891 = vmatpush.bf16.msra.mxu0 %v658
    %892 = vmatpush.bf16.msra.mxu0 %v654
    %893 = vmatpush.bf16.msra.mxu0 %v650
    %894 = vmatpush.bf16.msra.mxu0 %v646
    %895 = vmatpush.bf16.msra.mxu0 %v642
    %896 = vmatpush.bf16.msra.mxu0 %v638
    %897 = vmatpush.bf16.msra.mxu0 %v634
    %898 = vmatmul.bf16.gmra.mxu0 %v236
    %v899 = vpop.f32.mrf.mxu0
    %v900 = vadd.f32 %v242, %v899
    %v901 = vpop.f32.mrf.mxu0
    %902 = vdwg.mxu0
    %903 = vmatpush.bf16.msra.mxu0 %v694
    %904 = vmatpush.bf16.msra.mxu0 %v690
    %905 = vmatpush.bf16.msra.mxu0 %v686
    %906 = vmatpush.bf16.msra.mxu0 %v682
    %907 = vmatpush.bf16.msra.mxu0 %v678
    %908 = vmatpush.bf16.msra.mxu0 %v674
    %909 = vmatpush.bf16.msra.mxu0 %v670
    %910 = vmatpush.bf16.msra.mxu0 %v666
    %911 = vmatmul.bf16.gmra.mxu0 %v237
    %v912 = vpop.f32.mrf.mxu0
    %v913 = vadd.f32 %v900, %v912
    %v914 = vpop.f32.mrf.mxu0
    %915 = vdwg.mxu0
    %916 = vmatpush.bf16.msra.mxu0 %v726
    %917 = vmatpush.bf16.msra.mxu0 %v722
    %918 = vmatpush.bf16.msra.mxu0 %v718
    %919 = vmatpush.bf16.msra.mxu0 %v714
    %920 = vmatpush.bf16.msra.mxu0 %v710
    %921 = vmatpush.bf16.msra.mxu0 %v706
    %922 = vmatpush.bf16.msra.mxu0 %v702
    %923 = vmatpush.bf16.msra.mxu0 %v698
    %924 = vmatmul.bf16.gmra.mxu0 %v238
    %v925 = vpop.f32.mrf.mxu0
    %v926 = vadd.f32 %v913, %v925
    %v927 = vpop.f32.mrf.mxu0
    %928 = vdwg.mxu0
    %929 = vmatpush.bf16.msra.mxu0 %v758
    %930 = vmatpush.bf16.msra.mxu0 %v754
    %931 = vmatpush.bf16.msra.mxu0 %v750
    %932 = vmatpush.bf16.msra.mxu0 %v746
    %933 = vmatpush.bf16.msra.mxu0 %v742
    %934 = vmatpush.bf16.msra.mxu0 %v738
    %935 = vmatpush.bf16.msra.mxu0 %v734
    %936 = vmatpush.bf16.msra.mxu0 %v730
    %937 = vmatmul.bf16.gmra.mxu0 %v239
    %v938 = vpop.f32.mrf.mxu0
    %v939 = vadd.f32 %v926, %v938
    %v940 = vpop.f32.mrf.mxu0
    %941 = vdwg.mxu0
    %942 = vmatpush.bf16.msra.mxu0 %v663
    %943 = vmatpush.bf16.msra.mxu0 %v659
    %944 = vmatpush.bf16.msra.mxu0 %v655
    %945 = vmatpush.bf16.msra.mxu0 %v651
    %946 = vmatpush.bf16.msra.mxu0 %v647
    %947 = vmatpush.bf16.msra.mxu0 %v643
    %948 = vmatpush.bf16.msra.mxu0 %v639
    %949 = vmatpush.bf16.msra.mxu0 %v635
    %950 = vmatmul.bf16.gmra.mxu0 %v236
    %v951 = vpop.f32.mrf.mxu0
    %v952 = vadd.f32 %v243, %v951
    %v953 = vpop.f32.mrf.mxu0
    %954 = vdwg.mxu0
    %955 = vmatpush.bf16.msra.mxu0 %v695
    %956 = vmatpush.bf16.msra.mxu0 %v691
    %957 = vmatpush.bf16.msra.mxu0 %v687
    %958 = vmatpush.bf16.msra.mxu0 %v683
    %959 = vmatpush.bf16.msra.mxu0 %v679
    %960 = vmatpush.bf16.msra.mxu0 %v675
    %961 = vmatpush.bf16.msra.mxu0 %v671
    %962 = vmatpush.bf16.msra.mxu0 %v667
    %963 = vmatmul.bf16.gmra.mxu0 %v237
    %v964 = vpop.f32.mrf.mxu0
    %v965 = vadd.f32 %v952, %v964
    %v966 = vpop.f32.mrf.mxu0
    %967 = vdwg.mxu0
    %968 = vmatpush.bf16.msra.mxu0 %v727
    %969 = vmatpush.bf16.msra.mxu0 %v723
    %970 = vmatpush.bf16.msra.mxu0 %v719
    %971 = vmatpush.bf16.msra.mxu0 %v715
    %972 = vmatpush.bf16.msra.mxu0 %v711
    %973 = vmatpush.bf16.msra.mxu0 %v707
    %974 = vmatpush.bf16.msra.mxu0 %v703
    %975 = vmatpush.bf16.msra.mxu0 %v699
    %976 = vmatmul.bf16.gmra.mxu0 %v238
    %v977 = vpop.f32.mrf.mxu0
    %v978 = vadd.f32 %v965, %v977
    %v979 = vpop.f32.mrf.mxu0
    %980 = vdwg.mxu0
    %981 = vmatpush.bf16.msra.mxu0 %v759
    %982 = vmatpush.bf16.msra.mxu0 %v755
    %983 = vmatpush.bf16.msra.mxu0 %v751
    %984 = vmatpush.bf16.msra.mxu0 %v747
    %985 = vmatpush.bf16.msra.mxu0 %v743
    %986 = vmatpush.bf16.msra.mxu0 %v739
    %987 = vmatpush.bf16.msra.mxu0 %v735
    %988 = vmatpush.bf16.msra.mxu0 %v731
    %989 = vmatmul.bf16.gmra.mxu0 %v239
    %v990 = vpop.f32.mrf.mxu0
    %v991 = vadd.f32 %v978, %v990
    %v992 = vpop.f32.mrf.mxu0
    %993 = vdwg.mxu0
    %994 = vmatpush.bf16.msra.mxu0 %v664
    %995 = vmatpush.bf16.msra.mxu0 %v660
    %996 = vmatpush.bf16.msra.mxu0 %v656
    %997 = vmatpush.bf16.msra.mxu0 %v652
    %998 = vmatpush.bf16.msra.mxu0 %v648
    %999 = vmatpush.bf16.msra.mxu0 %v644
    %1000 = vmatpush.bf16.msra.mxu0 %v640
    %1001 = vmatpush.bf16.msra.mxu0 %v636
    %1002 = vmatmul.bf16.gmra.mxu0 %v236
    %v1003 = vpop.f32.mrf.mxu0
    %v1004 = vadd.f32 %v244, %v1003
    %v1005 = vpop.f32.mrf.mxu0
    %1006 = vdwg.mxu0
    %1007 = vmatpush.bf16.msra.mxu0 %v696
    %1008 = vmatpush.bf16.msra.mxu0 %v692
    %1009 = vmatpush.bf16.msra.mxu0 %v688
    %1010 = vmatpush.bf16.msra.mxu0 %v684
    %1011 = vmatpush.bf16.msra.mxu0 %v680
    %1012 = vmatpush.bf16.msra.mxu0 %v676
    %1013 = vmatpush.bf16.msra.mxu0 %v672
    %1014 = vmatpush.bf16.msra.mxu0 %v668
    %1015 = vmatmul.bf16.gmra.mxu0 %v237
    %v1016 = vpop.f32.mrf.mxu0
    %v1017 = vadd.f32 %v1004, %v1016
    %v1018 = vpop.f32.mrf.mxu0
    %1019 = vdwg.mxu0
    %1020 = vmatpush.bf16.msra.mxu0 %v728
    %1021 = vmatpush.bf16.msra.mxu0 %v724
    %1022 = vmatpush.bf16.msra.mxu0 %v720
    %1023 = vmatpush.bf16.msra.mxu0 %v716
    %1024 = vmatpush.bf16.msra.mxu0 %v712
    %1025 = vmatpush.bf16.msra.mxu0 %v708
    %1026 = vmatpush.bf16.msra.mxu0 %v704
    %1027 = vmatpush.bf16.msra.mxu0 %v700
    %1028 = vmatmul.bf16.gmra.mxu0 %v238
    %v1029 = vpop.f32.mrf.mxu0
    %v1030 = vadd.f32 %v1017, %v1029
    %v1031 = vpop.f32.mrf.mxu0
    %1032 = vdwg.mxu0
    %1033 = vmatpush.bf16.msra.mxu0 %v760
    %1034 = vmatpush.bf16.msra.mxu0 %v756
    %1035 = vmatpush.bf16.msra.mxu0 %v752
    %1036 = vmatpush.bf16.msra.mxu0 %v748
    %1037 = vmatpush.bf16.msra.mxu0 %v744
    %1038 = vmatpush.bf16.msra.mxu0 %v740
    %1039 = vmatpush.bf16.msra.mxu0 %v736
    %1040 = vmatpush.bf16.msra.mxu0 %v732
    %1041 = vmatmul.bf16.gmra.mxu0 %v239
    %v1042 = vpop.f32.mrf.mxu0
    %v1043 = vadd.f32 %v1030, %v1042
    %v1044 = vpop.f32.mrf.mxu0
    %1045 = vdwg.mxu0
    %1046 = vmatpush.bf16.msra.mxu0 %v665
    %1047 = vmatpush.bf16.msra.mxu0 %v661
    %1048 = vmatpush.bf16.msra.mxu0 %v657
    %1049 = vmatpush.bf16.msra.mxu0 %v653
    %1050 = vmatpush.bf16.msra.mxu0 %v649
    %1051 = vmatpush.bf16.msra.mxu0 %v645
    %1052 = vmatpush.bf16.msra.mxu0 %v641
    %1053 = vmatpush.bf16.msra.mxu0 %v637
    %1054 = vmatmul.bf16.gmra.mxu0 %v236
    %v1055 = vpop.f32.mrf.mxu0
    %v1056 = vadd.f32 %v245, %v1055
    %v1057 = vpop.f32.mrf.mxu0
    %1058 = vdwg.mxu0
    %1059 = vmatpush.bf16.msra.mxu0 %v697
    %1060 = vmatpush.bf16.msra.mxu0 %v693
    %1061 = vmatpush.bf16.msra.mxu0 %v689
    %1062 = vmatpush.bf16.msra.mxu0 %v685
    %1063 = vmatpush.bf16.msra.mxu0 %v681
    %1064 = vmatpush.bf16.msra.mxu0 %v677
    %1065 = vmatpush.bf16.msra.mxu0 %v673
    %1066 = vmatpush.bf16.msra.mxu0 %v669
    %1067 = vmatmul.bf16.gmra.mxu0 %v237
    %v1068 = vpop.f32.mrf.mxu0
    %v1069 = vadd.f32 %v1056, %v1068
    %v1070 = vpop.f32.mrf.mxu0
    %1071 = vdwg.mxu0
    %1072 = vmatpush.bf16.msra.mxu0 %v729
    %1073 = vmatpush.bf16.msra.mxu0 %v725
    %1074 = vmatpush.bf16.msra.mxu0 %v721
    %1075 = vmatpush.bf16.msra.mxu0 %v717
    %1076 = vmatpush.bf16.msra.mxu0 %v713
    %1077 = vmatpush.bf16.msra.mxu0 %v709
    %1078 = vmatpush.bf16.msra.mxu0 %v705
    %1079 = vmatpush.bf16.msra.mxu0 %v701
    %1080 = vmatmul.bf16.gmra.mxu0 %v238
    %v1081 = vpop.f32.mrf.mxu0
    %v1082 = vadd.f32 %v1069, %v1081
    %v1083 = vpop.f32.mrf.mxu0
    %1084 = vdwg.mxu0
    %1085 = vmatpush.bf16.msra.mxu0 %v761
    %1086 = vmatpush.bf16.msra.mxu0 %v757
    %1087 = vmatpush.bf16.msra.mxu0 %v753
    %1088 = vmatpush.bf16.msra.mxu0 %v749
    %1089 = vmatpush.bf16.msra.mxu0 %v745
    %1090 = vmatpush.bf16.msra.mxu0 %v741
    %1091 = vmatpush.bf16.msra.mxu0 %v737
    %1092 = vmatpush.bf16.msra.mxu0 %v733
    %1093 = vmatmul.bf16.gmra.mxu0 %v239
    %v1094 = vpop.f32.mrf.mxu0
    %v1095 = vadd.f32 %v1082, %v1094
    %v1096 = vpop.f32.mrf.mxu0
    %1097 = vdwg.mxu0
    %v1098 = vld [vmem:[#allocation8 + $0x400] sm:$0xff]
    %v1099 = vld [vmem:[#allocation8 + $0x408] sm:$0xff]
    %v1100 = vld [vmem:[#allocation8 + $0x410] sm:$0xff]
    %v1101 = vld [vmem:[#allocation8 + $0x418] sm:$0xff]
    %v1102 = vld [vmem:[#allocation8 + $0x420] sm:$0xff]
    %v1103 = vld [vmem:[#allocation8 + $0x428] sm:$0xff]
    %v1104 = vld [vmem:[#allocation8 + $0x430] sm:$0xff]
    %v1105 = vld [vmem:[#allocation8 + $0x438] sm:$0xff]
    %v1106 = vld [vmem:[#allocation8 + $0x440] sm:$0xff]
    %v1107 = vld [vmem:[#allocation8 + $0x448] sm:$0xff]
    %v1108 = vld [vmem:[#allocation8 + $0x450] sm:$0xff]
    %v1109 = vld [vmem:[#allocation8 + $0x458] sm:$0xff]
    %v1110 = vld [vmem:[#allocation8 + $0x460] sm:$0xff]
    %v1111 = vld [vmem:[#allocation8 + $0x468] sm:$0xff]
    %v1112 = vld [vmem:[#allocation8 + $0x470] sm:$0xff]
    %v1113 = vld [vmem:[#allocation8 + $0x478] sm:$0xff]
    %v1114 = vld [vmem:[#allocation8 + $0x480] sm:$0xff]
    %v1115 = vld [vmem:[#allocation8 + $0x488] sm:$0xff]
    %v1116 = vld [vmem:[#allocation8 + $0x490] sm:$0xff]
    %v1117 = vld [vmem:[#allocation8 + $0x498] sm:$0xff]
    %v1118 = vld [vmem:[#allocation8 + $0x4a0] sm:$0xff]
    %v1119 = vld [vmem:[#allocation8 + $0x4a8] sm:$0xff]
    %v1120 = vld [vmem:[#allocation8 + $0x4b0] sm:$0xff]
    %v1121 = vld [vmem:[#allocation8 + $0x4b8] sm:$0xff]
    %v1122 = vld [vmem:[#allocation8 + $0x4c0] sm:$0xff]
    %v1123 = vld [vmem:[#allocation8 + $0x4c8] sm:$0xff]
    %v1124 = vld [vmem:[#allocation8 + $0x4d0] sm:$0xff]
    %v1125 = vld [vmem:[#allocation8 + $0x4d8] sm:$0xff]
    %v1126 = vld [vmem:[#allocation8 + $0x4e0] sm:$0xff]
    %v1127 = vld [vmem:[#allocation8 + $0x4e8] sm:$0xff]
    %v1128 = vld [vmem:[#allocation8 + $0x4f0] sm:$0xff]
    %v1129 = vld [vmem:[#allocation8 + $0x4f8] sm:$0xff]
    %v1130 = vld [vmem:[#allocation8 + $0x500] sm:$0xff]
    %v1131 = vld [vmem:[#allocation8 + $0x508] sm:$0xff]
    %v1132 = vld [vmem:[#allocation8 + $0x510] sm:$0xff]
    %v1133 = vld [vmem:[#allocation8 + $0x518] sm:$0xff]
    %v1134 = vld [vmem:[#allocation8 + $0x520] sm:$0xff]
    %v1135 = vld [vmem:[#allocation8 + $0x528] sm:$0xff]
    %v1136 = vld [vmem:[#allocation8 + $0x530] sm:$0xff]
    %v1137 = vld [vmem:[#allocation8 + $0x538] sm:$0xff]
    %v1138 = vld [vmem:[#allocation8 + $0x540] sm:$0xff]
    %v1139 = vld [vmem:[#allocation8 + $0x548] sm:$0xff]
    %v1140 = vld [vmem:[#allocation8 + $0x550] sm:$0xff]
    %v1141 = vld [vmem:[#allocation8 + $0x558] sm:$0xff]
    %v1142 = vld [vmem:[#allocation8 + $0x560] sm:$0xff]
    %v1143 = vld [vmem:[#allocation8 + $0x568] sm:$0xff]
    %v1144 = vld [vmem:[#allocation8 + $0x570] sm:$0xff]
    %v1145 = vld [vmem:[#allocation8 + $0x578] sm:$0xff]
    %v1146 = vld [vmem:[#allocation8 + $0x580] sm:$0xff]
    %v1147 = vld [vmem:[#allocation8 + $0x588] sm:$0xff]
    %v1148 = vld [vmem:[#allocation8 + $0x590] sm:$0xff]
    %v1149 = vld [vmem:[#allocation8 + $0x598] sm:$0xff]
    %v1150 = vld [vmem:[#allocation8 + $0x5a0] sm:$0xff]
    %v1151 = vld [vmem:[#allocation8 + $0x5a8] sm:$0xff]
    %v1152 = vld [vmem:[#allocation8 + $0x5b0] sm:$0xff]
    %v1153 = vld [vmem:[#allocation8 + $0x5b8] sm:$0xff]
    %v1154 = vld [vmem:[#allocation8 + $0x5c0] sm:$0xff]
    %v1155 = vld [vmem:[#allocation8 + $0x5c8] sm:$0xff]
    %v1156 = vld [vmem:[#allocation8 + $0x5d0] sm:$0xff]
    %v1157 = vld [vmem:[#allocation8 + $0x5d8] sm:$0xff]
    %v1158 = vld [vmem:[#allocation8 + $0x5e0] sm:$0xff]
    %v1159 = vld [vmem:[#allocation8 + $0x5e8] sm:$0xff]
    %v1160 = vld [vmem:[#allocation8 + $0x5f0] sm:$0xff]
    %v1161 = vld [vmem:[#allocation8 + $0x5f8] sm:$0xff]
    %v1162 = vld [vmem:[#allocation8 + $0x600] sm:$0xff]
    %v1163 = vld [vmem:[#allocation8 + $0x608] sm:$0xff]
    %v1164 = vld [vmem:[#allocation8 + $0x610] sm:$0xff]
    %v1165 = vld [vmem:[#allocation8 + $0x618] sm:$0xff]
    %v1166 = vld [vmem:[#allocation8 + $0x620] sm:$0xff]
    %v1167 = vld [vmem:[#allocation8 + $0x628] sm:$0xff]
    %v1168 = vld [vmem:[#allocation8 + $0x630] sm:$0xff]
    %v1169 = vld [vmem:[#allocation8 + $0x638] sm:$0xff]
    %v1170 = vld [vmem:[#allocation8 + $0x640] sm:$0xff]
    %v1171 = vld [vmem:[#allocation8 + $0x648] sm:$0xff]
    %v1172 = vld [vmem:[#allocation8 + $0x650] sm:$0xff]
    %v1173 = vld [vmem:[#allocation8 + $0x658] sm:$0xff]
    %v1174 = vld [vmem:[#allocation8 + $0x660] sm:$0xff]
    %v1175 = vld [vmem:[#allocation8 + $0x668] sm:$0xff]
    %v1176 = vld [vmem:[#allocation8 + $0x670] sm:$0xff]
    %v1177 = vld [vmem:[#allocation8 + $0x678] sm:$0xff]
    %v1178 = vld [vmem:[#allocation8 + $0x680] sm:$0xff]
    %v1179 = vld [vmem:[#allocation8 + $0x688] sm:$0xff]
    %v1180 = vld [vmem:[#allocation8 + $0x690] sm:$0xff]
    %v1181 = vld [vmem:[#allocation8 + $0x698] sm:$0xff]
    %v1182 = vld [vmem:[#allocation8 + $0x6a0] sm:$0xff]
    %v1183 = vld [vmem:[#allocation8 + $0x6a8] sm:$0xff]
    %v1184 = vld [vmem:[#allocation8 + $0x6b0] sm:$0xff]
    %v1185 = vld [vmem:[#allocation8 + $0x6b8] sm:$0xff]
    %v1186 = vld [vmem:[#allocation8 + $0x6c0] sm:$0xff]
    %v1187 = vld [vmem:[#allocation8 + $0x6c8] sm:$0xff]
    %v1188 = vld [vmem:[#allocation8 + $0x6d0] sm:$0xff]
    %v1189 = vld [vmem:[#allocation8 + $0x6d8] sm:$0xff]
    %v1190 = vld [vmem:[#allocation8 + $0x6e0] sm:$0xff]
    %v1191 = vld [vmem:[#allocation8 + $0x6e8] sm:$0xff]
    %v1192 = vld [vmem:[#allocation8 + $0x6f0] sm:$0xff]
    %v1193 = vld [vmem:[#allocation8 + $0x6f8] sm:$0xff]
    %v1194 = vld [vmem:[#allocation8 + $0x700] sm:$0xff]
    %v1195 = vld [vmem:[#allocation8 + $0x708] sm:$0xff]
    %v1196 = vld [vmem:[#allocation8 + $0x710] sm:$0xff]
    %v1197 = vld [vmem:[#allocation8 + $0x718] sm:$0xff]
    %v1198 = vld [vmem:[#allocation8 + $0x720] sm:$0xff]
    %v1199 = vld [vmem:[#allocation8 + $0x728] sm:$0xff]
    %v1200 = vld [vmem:[#allocation8 + $0x730] sm:$0xff]
    %v1201 = vld [vmem:[#allocation8 + $0x738] sm:$0xff]
    %v1202 = vld [vmem:[#allocation8 + $0x740] sm:$0xff]
    %v1203 = vld [vmem:[#allocation8 + $0x748] sm:$0xff]
    %v1204 = vld [vmem:[#allocation8 + $0x750] sm:$0xff]
    %v1205 = vld [vmem:[#allocation8 + $0x758] sm:$0xff]
    %v1206 = vld [vmem:[#allocation8 + $0x760] sm:$0xff]
    %v1207 = vld [vmem:[#allocation8 + $0x768] sm:$0xff]
    %v1208 = vld [vmem:[#allocation8 + $0x770] sm:$0xff]
    %v1209 = vld [vmem:[#allocation8 + $0x778] sm:$0xff]
    %v1210 = vld [vmem:[#allocation8 + $0x780] sm:$0xff]
    %v1211 = vld [vmem:[#allocation8 + $0x788] sm:$0xff]
    %v1212 = vld [vmem:[#allocation8 + $0x790] sm:$0xff]
    %v1213 = vld [vmem:[#allocation8 + $0x798] sm:$0xff]
    %v1214 = vld [vmem:[#allocation8 + $0x7a0] sm:$0xff]
    %v1215 = vld [vmem:[#allocation8 + $0x7a8] sm:$0xff]
    %v1216 = vld [vmem:[#allocation8 + $0x7b0] sm:$0xff]
    %v1217 = vld [vmem:[#allocation8 + $0x7b8] sm:$0xff]
    %v1218 = vld [vmem:[#allocation8 + $0x7c0] sm:$0xff]
    %v1219 = vld [vmem:[#allocation8 + $0x7c8] sm:$0xff]
    %v1220 = vld [vmem:[#allocation8 + $0x7d0] sm:$0xff]
    %v1221 = vld [vmem:[#allocation8 + $0x7d8] sm:$0xff]
    %v1222 = vld [vmem:[#allocation8 + $0x7e0] sm:$0xff]
    %v1223 = vld [vmem:[#allocation8 + $0x7e8] sm:$0xff]
    %v1224 = vld [vmem:[#allocation8 + $0x7f0] sm:$0xff]
    %v1225 = vld [vmem:[#allocation8 + $0x7f8] sm:$0xff]
    %s1226 = scalar_lea.vmem [#allocation5], 1
    %v1227 = vld [vmem:[%s1226] ss:$8 sm:$0xf]
    %v1229 = vperm.slane %v1227, 0
    %v1230 = vperm.slane %v1227, 1
    %v1231 = vperm.slane %v1227, 2
    %v1232 = vperm.slane %v1227, 3
    %v1365 = vunpack.c.l.b16 %v1098
    %v1366 = vunpack.c.h.b16 %v1098
    %v1367 = vunpack.c.l.b16 %v1099
    %v1368 = vunpack.c.h.b16 %v1099
    %v1369 = vunpack.c.l.b16 %v1100
    %v1370 = vunpack.c.h.b16 %v1100
    %v1371 = vunpack.c.l.b16 %v1101
    %v1372 = vunpack.c.h.b16 %v1101
    %v1373 = vunpack.c.l.b16 %v1102
    %v1374 = vunpack.c.h.b16 %v1102
    %v1375 = vunpack.c.l.b16 %v1103
    %v1376 = vunpack.c.h.b16 %v1103
    %v1377 = vunpack.c.l.b16 %v1104
    %v1378 = vunpack.c.h.b16 %v1104
    %v1379 = vunpack.c.l.b16 %v1105
    %v1380 = vunpack.c.h.b16 %v1105
    %v1381 = vunpack.c.l.b16 %v1106
    %v1382 = vunpack.c.h.b16 %v1106
    %v1383 = vunpack.c.l.b16 %v1107
    %v1384 = vunpack.c.h.b16 %v1107
    %v1385 = vunpack.c.l.b16 %v1108
    %v1386 = vunpack.c.h.b16 %v1108
    %v1387 = vunpack.c.l.b16 %v1109
    %v1388 = vunpack.c.h.b16 %v1109
    %v1389 = vunpack.c.l.b16 %v1110
    %v1390 = vunpack.c.h.b16 %v1110
    %v1391 = vunpack.c.l.b16 %v1111
    %v1392 = vunpack.c.h.b16 %v1111
    %v1393 = vunpack.c.l.b16 %v1112
    %v1394 = vunpack.c.h.b16 %v1112
    %v1395 = vunpack.c.l.b16 %v1113
    %v1396 = vunpack.c.h.b16 %v1113
    %v1397 = vunpack.c.l.b16 %v1114
    %v1398 = vunpack.c.h.b16 %v1114
    %v1399 = vunpack.c.l.b16 %v1115
    %v1400 = vunpack.c.h.b16 %v1115
    %v1401 = vunpack.c.l.b16 %v1116
    %v1402 = vunpack.c.h.b16 %v1116
    %v1403 = vunpack.c.l.b16 %v1117
    %v1404 = vunpack.c.h.b16 %v1117
    %v1405 = vunpack.c.l.b16 %v1118
    %v1406 = vunpack.c.h.b16 %v1118
    %v1407 = vunpack.c.l.b16 %v1119
    %v1408 = vunpack.c.h.b16 %v1119
    %v1409 = vunpack.c.l.b16 %v1120
    %v1410 = vunpack.c.h.b16 %v1120
    %v1411 = vunpack.c.l.b16 %v1121
    %v1412 = vunpack.c.h.b16 %v1121
    %v1413 = vunpack.c.l.b16 %v1122
    %v1414 = vunpack.c.h.b16 %v1122
    %v1415 = vunpack.c.l.b16 %v1123
    %v1416 = vunpack.c.h.b16 %v1123
    %v1417 = vunpack.c.l.b16 %v1124
    %v1418 = vunpack.c.h.b16 %v1124
    %v1419 = vunpack.c.l.b16 %v1125
    %v1420 = vunpack.c.h.b16 %v1125
    %v1421 = vunpack.c.l.b16 %v1126
    %v1422 = vunpack.c.h.b16 %v1126
    %v1423 = vunpack.c.l.b16 %v1127
    %v1424 = vunpack.c.h.b16 %v1127
    %v1425 = vunpack.c.l.b16 %v1128
    %v1426 = vunpack.c.h.b16 %v1128
    %v1427 = vunpack.c.l.b16 %v1129
    %v1428 = vunpack.c.h.b16 %v1129
    %v1429 = vunpack.c.l.b16 %v1130
    %v1430 = vunpack.c.h.b16 %v1130
    %v1431 = vunpack.c.l.b16 %v1131
    %v1432 = vunpack.c.h.b16 %v1131
    %v1433 = vunpack.c.l.b16 %v1132
    %v1434 = vunpack.c.h.b16 %v1132
    %v1435 = vunpack.c.l.b16 %v1133
    %v1436 = vunpack.c.h.b16 %v1133
    %v1437 = vunpack.c.l.b16 %v1134
    %v1438 = vunpack.c.h.b16 %v1134
    %v1439 = vunpack.c.l.b16 %v1135
    %v1440 = vunpack.c.h.b16 %v1135
    %v1441 = vunpack.c.l.b16 %v1136
    %v1442 = vunpack.c.h.b16 %v1136
    %v1443 = vunpack.c.l.b16 %v1137
    %v1444 = vunpack.c.h.b16 %v1137
    %v1445 = vunpack.c.l.b16 %v1138
    %v1446 = vunpack.c.h.b16 %v1138
    %v1447 = vunpack.c.l.b16 %v1139
    %v1448 = vunpack.c.h.b16 %v1139
    %v1449 = vunpack.c.l.b16 %v1140
    %v1450 = vunpack.c.h.b16 %v1140
    %v1451 = vunpack.c.l.b16 %v1141
    %v1452 = vunpack.c.h.b16 %v1141
    %v1453 = vunpack.c.l.b16 %v1142
    %v1454 = vunpack.c.h.b16 %v1142
    %v1455 = vunpack.c.l.b16 %v1143
    %v1456 = vunpack.c.h.b16 %v1143
    %v1457 = vunpack.c.l.b16 %v1144
    %v1458 = vunpack.c.h.b16 %v1144
    %v1459 = vunpack.c.l.b16 %v1145
    %v1460 = vunpack.c.h.b16 %v1145
    %v1461 = vunpack.c.l.b16 %v1146
    %v1462 = vunpack.c.h.b16 %v1146
    %v1463 = vunpack.c.l.b16 %v1147
    %v1464 = vunpack.c.h.b16 %v1147
    %v1465 = vunpack.c.l.b16 %v1148
    %v1466 = vunpack.c.h.b16 %v1148
    %v1467 = vunpack.c.l.b16 %v1149
    %v1468 = vunpack.c.h.b16 %v1149
    %v1469 = vunpack.c.l.b16 %v1150
    %v1470 = vunpack.c.h.b16 %v1150
    %v1471 = vunpack.c.l.b16 %v1151
    %v1472 = vunpack.c.h.b16 %v1151
    %v1473 = vunpack.c.l.b16 %v1152
    %v1474 = vunpack.c.h.b16 %v1152
    %v1475 = vunpack.c.l.b16 %v1153
    %v1476 = vunpack.c.h.b16 %v1153
    %v1477 = vunpack.c.l.b16 %v1154
    %v1478 = vunpack.c.h.b16 %v1154
    %v1479 = vunpack.c.l.b16 %v1155
    %v1480 = vunpack.c.h.b16 %v1155
    %v1481 = vunpack.c.l.b16 %v1156
    %v1482 = vunpack.c.h.b16 %v1156
    %v1483 = vunpack.c.l.b16 %v1157
    %v1484 = vunpack.c.h.b16 %v1157
    %v1485 = vunpack.c.l.b16 %v1158
    %v1486 = vunpack.c.h.b16 %v1158
    %v1487 = vunpack.c.l.b16 %v1159
    %v1488 = vunpack.c.h.b16 %v1159
    %v1489 = vunpack.c.l.b16 %v1160
    %v1490 = vunpack.c.h.b16 %v1160
    %v1491 = vunpack.c.l.b16 %v1161
    %v1492 = vunpack.c.h.b16 %v1161
    %v1493 = vunpack.c.l.b16 %v1162
    %v1494 = vunpack.c.h.b16 %v1162
    %v1495 = vunpack.c.l.b16 %v1163
    %v1496 = vunpack.c.h.b16 %v1163
    %v1497 = vunpack.c.l.b16 %v1164
    %v1498 = vunpack.c.h.b16 %v1164
    %v1499 = vunpack.c.l.b16 %v1165
    %v1500 = vunpack.c.h.b16 %v1165
    %v1501 = vunpack.c.l.b16 %v1166
    %v1502 = vunpack.c.h.b16 %v1166
    %v1503 = vunpack.c.l.b16 %v1167
    %v1504 = vunpack.c.h.b16 %v1167
    %v1505 = vunpack.c.l.b16 %v1168
    %v1506 = vunpack.c.h.b16 %v1168
    %v1507 = vunpack.c.l.b16 %v1169
    %v1508 = vunpack.c.h.b16 %v1169
    %v1509 = vunpack.c.l.b16 %v1170
    %v1510 = vunpack.c.h.b16 %v1170
    %v1511 = vunpack.c.l.b16 %v1171
    %v1512 = vunpack.c.h.b16 %v1171
    %v1513 = vunpack.c.l.b16 %v1172
    %v1514 = vunpack.c.h.b16 %v1172
    %v1515 = vunpack.c.l.b16 %v1173
    %v1516 = vunpack.c.h.b16 %v1173
    %v1517 = vunpack.c.l.b16 %v1174
    %v1518 = vunpack.c.h.b16 %v1174
    %v1519 = vunpack.c.l.b16 %v1175
    %v1520 = vunpack.c.h.b16 %v1175
    %v1521 = vunpack.c.l.b16 %v1176
    %v1522 = vunpack.c.h.b16 %v1176
    %v1523 = vunpack.c.l.b16 %v1177
    %v1524 = vunpack.c.h.b16 %v1177
    %v1525 = vunpack.c.l.b16 %v1178
    %v1526 = vunpack.c.h.b16 %v1178
    %v1527 = vunpack.c.l.b16 %v1179
    %v1528 = vunpack.c.h.b16 %v1179
    %v1529 = vunpack.c.l.b16 %v1180
    %v1530 = vunpack.c.h.b16 %v1180
    %v1531 = vunpack.c.l.b16 %v1181
    %v1532 = vunpack.c.h.b16 %v1181
    %v1533 = vunpack.c.l.b16 %v1182
    %v1534 = vunpack.c.h.b16 %v1182
    %v1535 = vunpack.c.l.b16 %v1183
    %v1536 = vunpack.c.h.b16 %v1183
    %v1537 = vunpack.c.l.b16 %v1184
    %v1538 = vunpack.c.h.b16 %v1184
    %v1539 = vunpack.c.l.b16 %v1185
    %v1540 = vunpack.c.h.b16 %v1185
    %v1541 = vunpack.c.l.b16 %v1186
    %v1542 = vunpack.c.h.b16 %v1186
    %v1543 = vunpack.c.l.b16 %v1187
    %v1544 = vunpack.c.h.b16 %v1187
    %v1545 = vunpack.c.l.b16 %v1188
    %v1546 = vunpack.c.h.b16 %v1188
    %v1547 = vunpack.c.l.b16 %v1189
    %v1548 = vunpack.c.h.b16 %v1189
    %v1549 = vunpack.c.l.b16 %v1190
    %v1550 = vunpack.c.h.b16 %v1190
    %v1551 = vunpack.c.l.b16 %v1191
    %v1552 = vunpack.c.h.b16 %v1191
    %v1553 = vunpack.c.l.b16 %v1192
    %v1554 = vunpack.c.h.b16 %v1192
    %v1555 = vunpack.c.l.b16 %v1193
    %v1556 = vunpack.c.h.b16 %v1193
    %v1557 = vunpack.c.l.b16 %v1194
    %v1558 = vunpack.c.h.b16 %v1194
    %v1559 = vunpack.c.l.b16 %v1195
    %v1560 = vunpack.c.h.b16 %v1195
    %v1561 = vunpack.c.l.b16 %v1196
    %v1562 = vunpack.c.h.b16 %v1196
    %v1563 = vunpack.c.l.b16 %v1197
    %v1564 = vunpack.c.h.b16 %v1197
    %v1565 = vunpack.c.l.b16 %v1198
    %v1566 = vunpack.c.h.b16 %v1198
    %v1567 = vunpack.c.l.b16 %v1199
    %v1568 = vunpack.c.h.b16 %v1199
    %v1569 = vunpack.c.l.b16 %v1200
    %v1570 = vunpack.c.h.b16 %v1200
    %v1571 = vunpack.c.l.b16 %v1201
    %v1572 = vunpack.c.h.b16 %v1201
    %v1573 = vunpack.c.l.b16 %v1202
    %v1574 = vunpack.c.h.b16 %v1202
    %v1575 = vunpack.c.l.b16 %v1203
    %v1576 = vunpack.c.h.b16 %v1203
    %v1577 = vunpack.c.l.b16 %v1204
    %v1578 = vunpack.c.h.b16 %v1204
    %v1579 = vunpack.c.l.b16 %v1205
    %v1580 = vunpack.c.h.b16 %v1205
    %v1581 = vunpack.c.l.b16 %v1206
    %v1582 = vunpack.c.h.b16 %v1206
    %v1583 = vunpack.c.l.b16 %v1207
    %v1584 = vunpack.c.h.b16 %v1207
    %v1585 = vunpack.c.l.b16 %v1208
    %v1586 = vunpack.c.h.b16 %v1208
    %v1587 = vunpack.c.l.b16 %v1209
    %v1588 = vunpack.c.h.b16 %v1209
    %v1589 = vunpack.c.l.b16 %v1210
    %v1590 = vunpack.c.h.b16 %v1210
    %v1591 = vunpack.c.l.b16 %v1211
    %v1592 = vunpack.c.h.b16 %v1211
    %v1593 = vunpack.c.l.b16 %v1212
    %v1594 = vunpack.c.h.b16 %v1212
    %v1595 = vunpack.c.l.b16 %v1213
    %v1596 = vunpack.c.h.b16 %v1213
    %v1597 = vunpack.c.l.b16 %v1214
    %v1598 = vunpack.c.h.b16 %v1214
    %v1599 = vunpack.c.l.b16 %v1215
    %v1600 = vunpack.c.h.b16 %v1215
    %v1601 = vunpack.c.l.b16 %v1216
    %v1602 = vunpack.c.h.b16 %v1216
    %v1603 = vunpack.c.l.b16 %v1217
    %v1604 = vunpack.c.h.b16 %v1217
    %v1605 = vunpack.c.l.b16 %v1218
    %v1606 = vunpack.c.h.b16 %v1218
    %v1607 = vunpack.c.l.b16 %v1219
    %v1608 = vunpack.c.h.b16 %v1219
    %v1609 = vunpack.c.l.b16 %v1220
    %v1610 = vunpack.c.h.b16 %v1220
    %v1611 = vunpack.c.l.b16 %v1221
    %v1612 = vunpack.c.h.b16 %v1221
    %v1613 = vunpack.c.l.b16 %v1222
    %v1614 = vunpack.c.h.b16 %v1222
    %v1615 = vunpack.c.l.b16 %v1223
    %v1616 = vunpack.c.h.b16 %v1223
    %v1617 = vunpack.c.l.b16 %v1224
    %v1618 = vunpack.c.h.b16 %v1224
    %v1619 = vunpack.c.l.b16 %v1225
    %v1620 = vunpack.c.h.b16 %v1225
    %v1621 = vpack.c.b16 %v1369, %v1365
    %v1622 = vpack.c.b16 %v1370, %v1366
    %v1623 = vpack.c.b16 %v1371, %v1367
    %v1624 = vpack.c.b16 %v1372, %v1368
    %v1625 = vpack.c.b16 %v1377, %v1373
    %v1626 = vpack.c.b16 %v1378, %v1374
    %v1627 = vpack.c.b16 %v1379, %v1375
    %v1628 = vpack.c.b16 %v1380, %v1376
    %v1629 = vpack.c.b16 %v1385, %v1381
    %v1630 = vpack.c.b16 %v1386, %v1382
    %v1631 = vpack.c.b16 %v1387, %v1383
    %v1632 = vpack.c.b16 %v1388, %v1384
    %v1633 = vpack.c.b16 %v1393, %v1389
    %v1634 = vpack.c.b16 %v1394, %v1390
    %v1635 = vpack.c.b16 %v1395, %v1391
    %v1636 = vpack.c.b16 %v1396, %v1392
    %v1637 = vpack.c.b16 %v1401, %v1397
    %v1638 = vpack.c.b16 %v1402, %v1398
    %v1639 = vpack.c.b16 %v1403, %v1399
    %v1640 = vpack.c.b16 %v1404, %v1400
    %v1641 = vpack.c.b16 %v1409, %v1405
    %v1642 = vpack.c.b16 %v1410, %v1406
    %v1643 = vpack.c.b16 %v1411, %v1407
    %v1644 = vpack.c.b16 %v1412, %v1408
    %v1645 = vpack.c.b16 %v1417, %v1413
    %v1646 = vpack.c.b16 %v1418, %v1414
    %v1647 = vpack.c.b16 %v1419, %v1415
    %v1648 = vpack.c.b16 %v1420, %v1416
    %v1649 = vpack.c.b16 %v1425, %v1421
    %v1650 = vpack.c.b16 %v1426, %v1422
    %v1651 = vpack.c.b16 %v1427, %v1423
    %v1652 = vpack.c.b16 %v1428, %v1424
    %v1653 = vpack.c.b16 %v1433, %v1429
    %v1654 = vpack.c.b16 %v1434, %v1430
    %v1655 = vpack.c.b16 %v1435, %v1431
    %v1656 = vpack.c.b16 %v1436, %v1432
    %v1657 = vpack.c.b16 %v1441, %v1437
    %v1658 = vpack.c.b16 %v1442, %v1438
    %v1659 = vpack.c.b16 %v1443, %v1439
    %v1660 = vpack.c.b16 %v1444, %v1440
    %v1661 = vpack.c.b16 %v1449, %v1445
    %v1662 = vpack.c.b16 %v1450, %v1446
    %v1663 = vpack.c.b16 %v1451, %v1447
    %v1664 = vpack.c.b16 %v1452, %v1448
    %v1665 = vpack.c.b16 %v1457, %v1453
    %v1666 = vpack.c.b16 %v1458, %v1454
    %v1667 = vpack.c.b16 %v1459, %v1455
    %v1668 = vpack.c.b16 %v1460, %v1456
    %v1669 = vpack.c.b16 %v1465, %v1461
    %v1670 = vpack.c.b16 %v1466, %v1462
    %v1671 = vpack.c.b16 %v1467, %v1463
    %v1672 = vpack.c.b16 %v1468, %v1464
    %v1673 = vpack.c.b16 %v1473, %v1469
    %v1674 = vpack.c.b16 %v1474, %v1470
    %v1675 = vpack.c.b16 %v1475, %v1471
    %v1676 = vpack.c.b16 %v1476, %v1472
    %v1677 = vpack.c.b16 %v1481, %v1477
    %v1678 = vpack.c.b16 %v1482, %v1478
    %v1679 = vpack.c.b16 %v1483, %v1479
    %v1680 = vpack.c.b16 %v1484, %v1480
    %v1681 = vpack.c.b16 %v1489, %v1485
    %v1682 = vpack.c.b16 %v1490, %v1486
    %v1683 = vpack.c.b16 %v1491, %v1487
    %v1684 = vpack.c.b16 %v1492, %v1488
    %v1685 = vpack.c.b16 %v1497, %v1493
    %v1686 = vpack.c.b16 %v1498, %v1494
    %v1687 = vpack.c.b16 %v1499, %v1495
    %v1688 = vpack.c.b16 %v1500, %v1496
    %v1689 = vpack.c.b16 %v1505, %v1501
    %v1690 = vpack.c.b16 %v1506, %v1502
    %v1691 = vpack.c.b16 %v1507, %v1503
    %v1692 = vpack.c.b16 %v1508, %v1504
    %v1693 = vpack.c.b16 %v1513, %v1509
    %v1694 = vpack.c.b16 %v1514, %v1510
    %v1695 = vpack.c.b16 %v1515, %v1511
    %v1696 = vpack.c.b16 %v1516, %v1512
    %v1697 = vpack.c.b16 %v1521, %v1517
    %v1698 = vpack.c.b16 %v1522, %v1518
    %v1699 = vpack.c.b16 %v1523, %v1519
    %v1700 = vpack.c.b16 %v1524, %v1520
    %v1701 = vpack.c.b16 %v1529, %v1525
    %v1702 = vpack.c.b16 %v1530, %v1526
    %v1703 = vpack.c.b16 %v1531, %v1527
    %v1704 = vpack.c.b16 %v1532, %v1528
    %v1705 = vpack.c.b16 %v1537, %v1533
    %v1706 = vpack.c.b16 %v1538, %v1534
    %v1707 = vpack.c.b16 %v1539, %v1535
    %v1708 = vpack.c.b16 %v1540, %v1536
    %v1709 = vpack.c.b16 %v1545, %v1541
    %v1710 = vpack.c.b16 %v1546, %v1542
    %v1711 = vpack.c.b16 %v1547, %v1543
    %v1712 = vpack.c.b16 %v1548, %v1544
    %v1713 = vpack.c.b16 %v1553, %v1549
    %v1714 = vpack.c.b16 %v1554, %v1550
    %v1715 = vpack.c.b16 %v1555, %v1551
    %v1716 = vpack.c.b16 %v1556, %v1552
    %v1717 = vpack.c.b16 %v1561, %v1557
    %v1718 = vpack.c.b16 %v1562, %v1558
    %v1719 = vpack.c.b16 %v1563, %v1559
    %v1720 = vpack.c.b16 %v1564, %v1560
    %v1721 = vpack.c.b16 %v1569, %v1565
    %v1722 = vpack.c.b16 %v1570, %v1566
    %v1723 = vpack.c.b16 %v1571, %v1567
    %v1724 = vpack.c.b16 %v1572, %v1568
    %v1725 = vpack.c.b16 %v1577, %v1573
    %v1726 = vpack.c.b16 %v1578, %v1574
    %v1727 = vpack.c.b16 %v1579, %v1575
    %v1728 = vpack.c.b16 %v1580, %v1576
    %v1729 = vpack.c.b16 %v1585, %v1581
    %v1730 = vpack.c.b16 %v1586, %v1582
    %v1731 = vpack.c.b16 %v1587, %v1583
    %v1732 = vpack.c.b16 %v1588, %v1584
    %v1733 = vpack.c.b16 %v1593, %v1589
    %v1734 = vpack.c.b16 %v1594, %v1590
    %v1735 = vpack.c.b16 %v1595, %v1591
    %v1736 = vpack.c.b16 %v1596, %v1592
    %v1737 = vpack.c.b16 %v1601, %v1597
    %v1738 = vpack.c.b16 %v1602, %v1598
    %v1739 = vpack.c.b16 %v1603, %v1599
    %v1740 = vpack.c.b16 %v1604, %v1600
    %v1741 = vpack.c.b16 %v1609, %v1605
    %v1742 = vpack.c.b16 %v1610, %v1606
    %v1743 = vpack.c.b16 %v1611, %v1607
    %v1744 = vpack.c.b16 %v1612, %v1608
    %v1745 = vpack.c.b16 %v1617, %v1613
    %v1746 = vpack.c.b16 %v1618, %v1614
    %v1747 = vpack.c.b16 %v1619, %v1615
    %v1748 = vpack.c.b16 %v1620, %v1616
    %1877 = vmatpush.bf16.msra.mxu0 %v1649
    %1878 = vmatpush.bf16.msra.mxu0 %v1645
    %1879 = vmatpush.bf16.msra.mxu0 %v1641
    %1880 = vmatpush.bf16.msra.mxu0 %v1637
    %1881 = vmatpush.bf16.msra.mxu0 %v1633
    %1882 = vmatpush.bf16.msra.mxu0 %v1629
    %1883 = vmatpush.bf16.msra.mxu0 %v1625
    %1884 = vmatpush.bf16.msra.mxu0 %v1621
    %1885 = vmatmul.bf16.gmra.mxu0 %v236
    %v1886 = vpop.f32.mrf.mxu0
    %v1887 = vadd.f32 %v1229, %v1886
    %v1888 = vpop.f32.mrf.mxu0
    %1889 = vdwg.mxu0
    %1890 = vmatpush.bf16.msra.mxu0 %v1681
    %1891 = vmatpush.bf16.msra.mxu0 %v1677
    %1892 = vmatpush.bf16.msra.mxu0 %v1673
    %1893 = vmatpush.bf16.msra.mxu0 %v1669
    %1894 = vmatpush.bf16.msra.mxu0 %v1665
    %1895 = vmatpush.bf16.msra.mxu0 %v1661
    %1896 = vmatpush.bf16.msra.mxu0 %v1657
    %1897 = vmatpush.bf16.msra.mxu0 %v1653
    %1898 = vmatmul.bf16.gmra.mxu0 %v237
    %v1899 = vpop.f32.mrf.mxu0
    %v1900 = vadd.f32 %v1887, %v1899
    %v1901 = vpop.f32.mrf.mxu0
    %1902 = vdwg.mxu0
    %1903 = vmatpush.bf16.msra.mxu0 %v1713
    %1904 = vmatpush.bf16.msra.mxu0 %v1709
    %1905 = vmatpush.bf16.msra.mxu0 %v1705
    %1906 = vmatpush.bf16.msra.mxu0 %v1701
    %1907 = vmatpush.bf16.msra.mxu0 %v1697
    %1908 = vmatpush.bf16.msra.mxu0 %v1693
    %1909 = vmatpush.bf16.msra.mxu0 %v1689
    %1910 = vmatpush.bf16.msra.mxu0 %v1685
    %1911 = vmatmul.bf16.gmra.mxu0 %v238
    %v1912 = vpop.f32.mrf.mxu0
    %v1913 = vadd.f32 %v1900, %v1912
    %v1914 = vpop.f32.mrf.mxu0
    %1915 = vdwg.mxu0
    %1916 = vmatpush.bf16.msra.mxu0 %v1745
    %1917 = vmatpush.bf16.msra.mxu0 %v1741
    %1918 = vmatpush.bf16.msra.mxu0 %v1737
    %1919 = vmatpush.bf16.msra.mxu0 %v1733
    %1920 = vmatpush.bf16.msra.mxu0 %v1729
    %1921 = vmatpush.bf16.msra.mxu0 %v1725
    %1922 = vmatpush.bf16.msra.mxu0 %v1721
    %1923 = vmatpush.bf16.msra.mxu0 %v1717
    %1924 = vmatmul.bf16.gmra.mxu0 %v239
    %v1925 = vpop.f32.mrf.mxu0
    %v1926 = vadd.f32 %v1913, %v1925
    %v1927 = vpop.f32.mrf.mxu0
    %1928 = vdwg.mxu0
    %1929 = vmatpush.bf16.msra.mxu0 %v1650
    %1930 = vmatpush.bf16.msra.mxu0 %v1646
    %1931 = vmatpush.bf16.msra.mxu0 %v1642
    %1932 = vmatpush.bf16.msra.mxu0 %v1638
    %1933 = vmatpush.bf16.msra.mxu0 %v1634
    %1934 = vmatpush.bf16.msra.mxu0 %v1630
    %1935 = vmatpush.bf16.msra.mxu0 %v1626
    %1936 = vmatpush.bf16.msra.mxu0 %v1622
    %1937 = vmatmul.bf16.gmra.mxu0 %v236
    %v1938 = vpop.f32.mrf.mxu0
    %v1939 = vadd.f32 %v1230, %v1938
    %v1940 = vpop.f32.mrf.mxu0
    %1941 = vdwg.mxu0
    %1942 = vmatpush.bf16.msra.mxu0 %v1682
    %1943 = vmatpush.bf16.msra.mxu0 %v1678
    %1944 = vmatpush.bf16.msra.mxu0 %v1674
    %1945 = vmatpush.bf16.msra.mxu0 %v1670
    %1946 = vmatpush.bf16.msra.mxu0 %v1666
    %1947 = vmatpush.bf16.msra.mxu0 %v1662
    %1948 = vmatpush.bf16.msra.mxu0 %v1658
    %1949 = vmatpush.bf16.msra.mxu0 %v1654
    %1950 = vmatmul.bf16.gmra.mxu0 %v237
    %v1951 = vpop.f32.mrf.mxu0
    %v1952 = vadd.f32 %v1939, %v1951
    %v1953 = vpop.f32.mrf.mxu0
    %1954 = vdwg.mxu0
    %1955 = vmatpush.bf16.msra.mxu0 %v1714
    %1956 = vmatpush.bf16.msra.mxu0 %v1710
    %1957 = vmatpush.bf16.msra.mxu0 %v1706
    %1958 = vmatpush.bf16.msra.mxu0 %v1702
    %1959 = vmatpush.bf16.msra.mxu0 %v1698
    %1960 = vmatpush.bf16.msra.mxu0 %v1694
    %1961 = vmatpush.bf16.msra.mxu0 %v1690
    %1962 = vmatpush.bf16.msra.mxu0 %v1686
    %1963 = vmatmul.bf16.gmra.mxu0 %v238
    %v1964 = vpop.f32.mrf.mxu0
    %v1965 = vadd.f32 %v1952, %v1964
    %v1966 = vpop.f32.mrf.mxu0
    %1967 = vdwg.mxu0
    %1968 = vmatpush.bf16.msra.mxu0 %v1746
    %1969 = vmatpush.bf16.msra.mxu0 %v1742
    %1970 = vmatpush.bf16.msra.mxu0 %v1738
    %1971 = vmatpush.bf16.msra.mxu0 %v1734
    %1972 = vmatpush.bf16.msra.mxu0 %v1730
    %1973 = vmatpush.bf16.msra.mxu0 %v1726
    %1974 = vmatpush.bf16.msra.mxu0 %v1722
    %1975 = vmatpush.bf16.msra.mxu0 %v1718
    %1976 = vmatmul.bf16.gmra.mxu0 %v239
    %v1977 = vpop.f32.mrf.mxu0
    %v1978 = vadd.f32 %v1965, %v1977
    %v1979 = vpop.f32.mrf.mxu0
    %1980 = vdwg.mxu0
    %1981 = vmatpush.bf16.msra.mxu0 %v1651
    %1982 = vmatpush.bf16.msra.mxu0 %v1647
    %1983 = vmatpush.bf16.msra.mxu0 %v1643
    %1984 = vmatpush.bf16.msra.mxu0 %v1639
    %1985 = vmatpush.bf16.msra.mxu0 %v1635
    %1986 = vmatpush.bf16.msra.mxu0 %v1631
    %1987 = vmatpush.bf16.msra.mxu0 %v1627
    %1988 = vmatpush.bf16.msra.mxu0 %v1623
    %1989 = vmatmul.bf16.gmra.mxu0 %v236
    %v1990 = vpop.f32.mrf.mxu0
    %v1991 = vadd.f32 %v1231, %v1990
    %v1992 = vpop.f32.mrf.mxu0
    %1993 = vdwg.mxu0
    %1994 = vmatpush.bf16.msra.mxu0 %v1683
    %1995 = vmatpush.bf16.msra.mxu0 %v1679
    %1996 = vmatpush.bf16.msra.mxu0 %v1675
    %1997 = vmatpush.bf16.msra.mxu0 %v1671
    %1998 = vmatpush.bf16.msra.mxu0 %v1667
    %1999 = vmatpush.bf16.msra.mxu0 %v1663
    %2000 = vmatpush.bf16.msra.mxu0 %v1659
    %2001 = vmatpush.bf16.msra.mxu0 %v1655
    %2002 = vmatmul.bf16.gmra.mxu0 %v237
    %v2003 = vpop.f32.mrf.mxu0
    %v2004 = vadd.f32 %v1991, %v2003
    %v2005 = vpop.f32.mrf.mxu0
    %2006 = vdwg.mxu0
    %2007 = vmatpush.bf16.msra.mxu0 %v1715
    %2008 = vmatpush.bf16.msra.mxu0 %v1711
    %2009 = vmatpush.bf16.msra.mxu0 %v1707
    %2010 = vmatpush.bf16.msra.mxu0 %v1703
    %2011 = vmatpush.bf16.msra.mxu0 %v1699
    %2012 = vmatpush.bf16.msra.mxu0 %v1695
    %2013 = vmatpush.bf16.msra.mxu0 %v1691
    %2014 = vmatpush.bf16.msra.mxu0 %v1687
    %2015 = vmatmul.bf16.gmra.mxu0 %v238
    %v2016 = vpop.f32.mrf.mxu0
    %v2017 = vadd.f32 %v2004, %v2016
    %v2018 = vpop.f32.mrf.mxu0
    %2019 = vdwg.mxu0
    %2020 = vmatpush.bf16.msra.mxu0 %v1747
    %2021 = vmatpush.bf16.msra.mxu0 %v1743
    %2022 = vmatpush.bf16.msra.mxu0 %v1739
    %2023 = vmatpush.bf16.msra.mxu0 %v1735
    %2024 = vmatpush.bf16.msra.mxu0 %v1731
    %2025 = vmatpush.bf16.msra.mxu0 %v1727
    %2026 = vmatpush.bf16.msra.mxu0 %v1723
    %2027 = vmatpush.bf16.msra.mxu0 %v1719
    %2028 = vmatmul.bf16.gmra.mxu0 %v239
    %v2029 = vpop.f32.mrf.mxu0
    %v2030 = vadd.f32 %v2017, %v2029
    %v2031 = vpop.f32.mrf.mxu0
    %2032 = vdwg.mxu0
    %2033 = vmatpush.bf16.msra.mxu0 %v1652
    %2034 = vmatpush.bf16.msra.mxu0 %v1648
    %2035 = vmatpush.bf16.msra.mxu0 %v1644
    %2036 = vmatpush.bf16.msra.mxu0 %v1640
    %2037 = vmatpush.bf16.msra.mxu0 %v1636
    %2038 = vmatpush.bf16.msra.mxu0 %v1632
    %2039 = vmatpush.bf16.msra.mxu0 %v1628
    %2040 = vmatpush.bf16.msra.mxu0 %v1624
    %2041 = vmatmul.bf16.gmra.mxu0 %v236
    %v2042 = vpop.f32.mrf.mxu0
    %v2043 = vadd.f32 %v1232, %v2042
    %v2044 = vpop.f32.mrf.mxu0
    %2045 = vdwg.mxu0
    %2046 = vmatpush.bf16.msra.mxu0 %v1684
    %2047 = vmatpush.bf16.msra.mxu0 %v1680
    %2048 = vmatpush.bf16.msra.mxu0 %v1676
    %2049 = vmatpush.bf16.msra.mxu0 %v1672
    %2050 = vmatpush.bf16.msra.mxu0 %v1668
    %2051 = vmatpush.bf16.msra.mxu0 %v1664
    %2052 = vmatpush.bf16.msra.mxu0 %v1660
    %2053 = vmatpush.bf16.msra.mxu0 %v1656
    %2054 = vmatmul.bf16.gmra.mxu0 %v237
    %v2055 = vpop.f32.mrf.mxu0
    %v2056 = vadd.f32 %v2043, %v2055
    %v2057 = vpop.f32.mrf.mxu0
    %2058 = vdwg.mxu0
    %2059 = vmatpush.bf16.msra.mxu0 %v1716
    %2060 = vmatpush.bf16.msra.mxu0 %v1712
    %2061 = vmatpush.bf16.msra.mxu0 %v1708
    %2062 = vmatpush.bf16.msra.mxu0 %v1704
    %2063 = vmatpush.bf16.msra.mxu0 %v1700
    %2064 = vmatpush.bf16.msra.mxu0 %v1696
    %2065 = vmatpush.bf16.msra.mxu0 %v1692
    %2066 = vmatpush.bf16.msra.mxu0 %v1688
    %2067 = vmatmul.bf16.gmra.mxu0 %v238
    %v2068 = vpop.f32.mrf.mxu0
    %v2069 = vadd.f32 %v2056, %v2068
    %v2070 = vpop.f32.mrf.mxu0
    %2071 = vdwg.mxu0
    %2072 = vmatpush.bf16.msra.mxu0 %v1748
    %2073 = vmatpush.bf16.msra.mxu0 %v1744
    %2074 = vmatpush.bf16.msra.mxu0 %v1740
    %2075 = vmatpush.bf16.msra.mxu0 %v1736
    %2076 = vmatpush.bf16.msra.mxu0 %v1732
    %2077 = vmatpush.bf16.msra.mxu0 %v1728
    %2078 = vmatpush.bf16.msra.mxu0 %v1724
    %2079 = vmatpush.bf16.msra.mxu0 %v1720
    %2080 = vmatmul.bf16.gmra.mxu0 %v239
    %v2081 = vpop.f32.mrf.mxu0
    %v2082 = vadd.f32 %v2069, %v2081
    %v2083 = vpop.f32.mrf.mxu0
    %2084 = vdwg.mxu0
    %v2085 = vld [vmem:[#allocation8 + $0x800] sm:$0xff]
    %v2086 = vld [vmem:[#allocation8 + $0x808] sm:$0xff]
    %v2087 = vld [vmem:[#allocation8 + $0x810] sm:$0xff]
    %v2088 = vld [vmem:[#allocation8 + $0x818] sm:$0xff]
    %v2089 = vld [vmem:[#allocation8 + $0x820] sm:$0xff]
    %v2090 = vld [vmem:[#allocation8 + $0x828] sm:$0xff]
    %v2091 = vld [vmem:[#allocation8 + $0x830] sm:$0xff]
    %v2092 = vld [vmem:[#allocation8 + $0x838] sm:$0xff]
    %v2093 = vld [vmem:[#allocation8 + $0x840] sm:$0xff]
    %v2094 = vld [vmem:[#allocation8 + $0x848] sm:$0xff]
    %v2095 = vld [vmem:[#allocation8 + $0x850] sm:$0xff]
    %v2096 = vld [vmem:[#allocation8 + $0x858] sm:$0xff]
    %v2097 = vld [vmem:[#allocation8 + $0x860] sm:$0xff]
    %v2098 = vld [vmem:[#allocation8 + $0x868] sm:$0xff]
    %v2099 = vld [vmem:[#allocation8 + $0x870] sm:$0xff]
    %v2100 = vld [vmem:[#allocation8 + $0x878] sm:$0xff]
    %v2101 = vld [vmem:[#allocation8 + $0x880] sm:$0xff]
    %v2102 = vld [vmem:[#allocation8 + $0x888] sm:$0xff]
    %v2103 = vld [vmem:[#allocation8 + $0x890] sm:$0xff]
    %v2104 = vld [vmem:[#allocation8 + $0x898] sm:$0xff]
    %v2105 = vld [vmem:[#allocation8 + $0x8a0] sm:$0xff]
    %v2106 = vld [vmem:[#allocation8 + $0x8a8] sm:$0xff]
    %v2107 = vld [vmem:[#allocation8 + $0x8b0] sm:$0xff]
    %v2108 = vld [vmem:[#allocation8 + $0x8b8] sm:$0xff]
    %v2109 = vld [vmem:[#allocation8 + $0x8c0] sm:$0xff]
    %v2110 = vld [vmem:[#allocation8 + $0x8c8] sm:$0xff]
    %v2111 = vld [vmem:[#allocation8 + $0x8d0] sm:$0xff]
    %v2112 = vld [vmem:[#allocation8 + $0x8d8] sm:$0xff]
    %v2113 = vld [vmem:[#allocation8 + $0x8e0] sm:$0xff]
    %v2114 = vld [vmem:[#allocation8 + $0x8e8] sm:$0xff]
    %v2115 = vld [vmem:[#allocation8 + $0x8f0] sm:$0xff]
    %v2116 = vld [vmem:[#allocation8 + $0x8f8] sm:$0xff]
    %v2117 = vld [vmem:[#allocation8 + $0x900] sm:$0xff]
    %v2118 = vld [vmem:[#allocation8 + $0x908] sm:$0xff]
    %v2119 = vld [vmem:[#allocation8 + $0x910] sm:$0xff]
    %v2120 = vld [vmem:[#allocation8 + $0x918] sm:$0xff]
    %v2121 = vld [vmem:[#allocation8 + $0x920] sm:$0xff]
    %v2122 = vld [vmem:[#allocation8 + $0x928] sm:$0xff]
    %v2123 = vld [vmem:[#allocation8 + $0x930] sm:$0xff]
    %v2124 = vld [vmem:[#allocation8 + $0x938] sm:$0xff]
    %v2125 = vld [vmem:[#allocation8 + $0x940] sm:$0xff]
    %v2126 = vld [vmem:[#allocation8 + $0x948] sm:$0xff]
    %v2127 = vld [vmem:[#allocation8 + $0x950] sm:$0xff]
    %v2128 = vld [vmem:[#allocation8 + $0x958] sm:$0xff]
    %v2129 = vld [vmem:[#allocation8 + $0x960] sm:$0xff]
    %v2130 = vld [vmem:[#allocation8 + $0x968] sm:$0xff]
    %v2131 = vld [vmem:[#allocation8 + $0x970] sm:$0xff]
    %v2132 = vld [vmem:[#allocation8 + $0x978] sm:$0xff]
    %v2133 = vld [vmem:[#allocation8 + $0x980] sm:$0xff]
    %v2134 = vld [vmem:[#allocation8 + $0x988] sm:$0xff]
    %v2135 = vld [vmem:[#allocation8 + $0x990] sm:$0xff]
    %v2136 = vld [vmem:[#allocation8 + $0x998] sm:$0xff]
    %v2137 = vld [vmem:[#allocation8 + $0x9a0] sm:$0xff]
    %v2138 = vld [vmem:[#allocation8 + $0x9a8] sm:$0xff]
    %v2139 = vld [vmem:[#allocation8 + $0x9b0] sm:$0xff]
    %v2140 = vld [vmem:[#allocation8 + $0x9b8] sm:$0xff]
    %v2141 = vld [vmem:[#allocation8 + $0x9c0] sm:$0xff]
    %v2142 = vld [vmem:[#allocation8 + $0x9c8] sm:$0xff]
    %v2143 = vld [vmem:[#allocation8 + $0x9d0] sm:$0xff]
    %v2144 = vld [vmem:[#allocation8 + $0x9d8] sm:$0xff]
    %v2145 = vld [vmem:[#allocation8 + $0x9e0] sm:$0xff]
    %v2146 = vld [vmem:[#allocation8 + $0x9e8] sm:$0xff]
    %v2147 = vld [vmem:[#allocation8 + $0x9f0] sm:$0xff]
    %v2148 = vld [vmem:[#allocation8 + $0x9f8] sm:$0xff]
    %v2149 = vld [vmem:[#allocation8 + $0xa00] sm:$0xff]
    %v2150 = vld [vmem:[#allocation8 + $0xa08] sm:$0xff]
    %v2151 = vld [vmem:[#allocation8 + $0xa10] sm:$0xff]
    %v2152 = vld [vmem:[#allocation8 + $0xa18] sm:$0xff]
    %v2153 = vld [vmem:[#allocation8 + $0xa20] sm:$0xff]
    %v2154 = vld [vmem:[#allocation8 + $0xa28] sm:$0xff]
    %v2155 = vld [vmem:[#allocation8 + $0xa30] sm:$0xff]
    %v2156 = vld [vmem:[#allocation8 + $0xa38] sm:$0xff]
    %v2157 = vld [vmem:[#allocation8 + $0xa40] sm:$0xff]
    %v2158 = vld [vmem:[#allocation8 + $0xa48] sm:$0xff]
    %v2159 = vld [vmem:[#allocation8 + $0xa50] sm:$0xff]
    %v2160 = vld [vmem:[#allocation8 + $0xa58] sm:$0xff]
    %v2161 = vld [vmem:[#allocation8 + $0xa60] sm:$0xff]
    %v2162 = vld [vmem:[#allocation8 + $0xa68] sm:$0xff]
    %v2163 = vld [vmem:[#allocation8 + $0xa70] sm:$0xff]
    %v2164 = vld [vmem:[#allocation8 + $0xa78] sm:$0xff]
    %v2165 = vld [vmem:[#allocation8 + $0xa80] sm:$0xff]
    %v2166 = vld [vmem:[#allocation8 + $0xa88] sm:$0xff]
    %v2167 = vld [vmem:[#allocation8 + $0xa90] sm:$0xff]
    %v2168 = vld [vmem:[#allocation8 + $0xa98] sm:$0xff]
    %v2169 = vld [vmem:[#allocation8 + $0xaa0] sm:$0xff]
    %v2170 = vld [vmem:[#allocation8 + $0xaa8] sm:$0xff]
    %v2171 = vld [vmem:[#allocation8 + $0xab0] sm:$0xff]
    %v2172 = vld [vmem:[#allocation8 + $0xab8] sm:$0xff]
    %v2173 = vld [vmem:[#allocation8 + $0xac0] sm:$0xff]
    %v2174 = vld [vmem:[#allocation8 + $0xac8] sm:$0xff]
    %v2175 = vld [vmem:[#allocation8 + $0xad0] sm:$0xff]
    %v2176 = vld [vmem:[#allocation8 + $0xad8] sm:$0xff]
    %v2177 = vld [vmem:[#allocation8 + $0xae0] sm:$0xff]
    %v2178 = vld [vmem:[#allocation8 + $0xae8] sm:$0xff]
    %v2179 = vld [vmem:[#allocation8 + $0xaf0] sm:$0xff]
    %v2180 = vld [vmem:[#allocation8 + $0xaf8] sm:$0xff]
    %v2181 = vld [vmem:[#allocation8 + $0xb00] sm:$0xff]
    %v2182 = vld [vmem:[#allocation8 + $0xb08] sm:$0xff]
    %v2183 = vld [vmem:[#allocation8 + $0xb10] sm:$0xff]
    %v2184 = vld [vmem:[#allocation8 + $0xb18] sm:$0xff]
    %v2185 = vld [vmem:[#allocation8 + $0xb20] sm:$0xff]
    %v2186 = vld [vmem:[#allocation8 + $0xb28] sm:$0xff]
    %v2187 = vld [vmem:[#allocation8 + $0xb30] sm:$0xff]
    %v2188 = vld [vmem:[#allocation8 + $0xb38] sm:$0xff]
    %v2189 = vld [vmem:[#allocation8 + $0xb40] sm:$0xff]
    %v2190 = vld [vmem:[#allocation8 + $0xb48] sm:$0xff]
    %v2191 = vld [vmem:[#allocation8 + $0xb50] sm:$0xff]
    %v2192 = vld [vmem:[#allocation8 + $0xb58] sm:$0xff]
    %v2193 = vld [vmem:[#allocation8 + $0xb60] sm:$0xff]
    %v2194 = vld [vmem:[#allocation8 + $0xb68] sm:$0xff]
    %v2195 = vld [vmem:[#allocation8 + $0xb70] sm:$0xff]
    %v2196 = vld [vmem:[#allocation8 + $0xb78] sm:$0xff]
    %v2197 = vld [vmem:[#allocation8 + $0xb80] sm:$0xff]
    %v2198 = vld [vmem:[#allocation8 + $0xb88] sm:$0xff]
    %v2199 = vld [vmem:[#allocation8 + $0xb90] sm:$0xff]
    %v2200 = vld [vmem:[#allocation8 + $0xb98] sm:$0xff]
    %v2201 = vld [vmem:[#allocation8 + $0xba0] sm:$0xff]
    %v2202 = vld [vmem:[#allocation8 + $0xba8] sm:$0xff]
    %v2203 = vld [vmem:[#allocation8 + $0xbb0] sm:$0xff]
    %v2204 = vld [vmem:[#allocation8 + $0xbb8] sm:$0xff]
    %v2205 = vld [vmem:[#allocation8 + $0xbc0] sm:$0xff]
    %v2206 = vld [vmem:[#allocation8 + $0xbc8] sm:$0xff]
    %v2207 = vld [vmem:[#allocation8 + $0xbd0] sm:$0xff]
    %v2208 = vld [vmem:[#allocation8 + $0xbd8] sm:$0xff]
    %v2209 = vld [vmem:[#allocation8 + $0xbe0] sm:$0xff]
    %v2210 = vld [vmem:[#allocation8 + $0xbe8] sm:$0xff]
    %v2211 = vld [vmem:[#allocation8 + $0xbf0] sm:$0xff]
    %v2212 = vld [vmem:[#allocation8 + $0xbf8] sm:$0xff]
    %s2213 = scalar_lea.vmem [#allocation5], 2
    %v2214 = vld [vmem:[%s2213] ss:$8 sm:$0xf]
    %v2216 = vperm.slane %v2214, 0
    %v2217 = vperm.slane %v2214, 1
    %v2218 = vperm.slane %v2214, 2
    %v2219 = vperm.slane %v2214, 3
    %v2352 = vunpack.c.l.b16 %v2085
    %v2353 = vunpack.c.h.b16 %v2085
    %v2354 = vunpack.c.l.b16 %v2086
    %v2355 = vunpack.c.h.b16 %v2086
    %v2356 = vunpack.c.l.b16 %v2087
    %v2357 = vunpack.c.h.b16 %v2087
    %v2358 = vunpack.c.l.b16 %v2088
    %v2359 = vunpack.c.h.b16 %v2088
    %v2360 = vunpack.c.l.b16 %v2089
    %v2361 = vunpack.c.h.b16 %v2089
    %v2362 = vunpack.c.l.b16 %v2090
    %v2363 = vunpack.c.h.b16 %v2090
    %v2364 = vunpack.c.l.b16 %v2091
    %v2365 = vunpack.c.h.b16 %v2091
    %v2366 = vunpack.c.l.b16 %v2092
    %v2367 = vunpack.c.h.b16 %v2092
    %v2368 = vunpack.c.l.b16 %v2093
    %v2369 = vunpack.c.h.b16 %v2093
    %v2370 = vunpack.c.l.b16 %v2094
    %v2371 = vunpack.c.h.b16 %v2094
    %v2372 = vunpack.c.l.b16 %v2095
    %v2373 = vunpack.c.h.b16 %v2095
    %v2374 = vunpack.c.l.b16 %v2096
    %v2375 = vunpack.c.h.b16 %v2096
    %v2376 = vunpack.c.l.b16 %v2097
    %v2377 = vunpack.c.h.b16 %v2097
    %v2378 = vunpack.c.l.b16 %v2098
    %v2379 = vunpack.c.h.b16 %v2098
    %v2380 = vunpack.c.l.b16 %v2099
    %v2381 = vunpack.c.h.b16 %v2099
    %v2382 = vunpack.c.l.b16 %v2100
    %v2383 = vunpack.c.h.b16 %v2100
    %v2384 = vunpack.c.l.b16 %v2101
    %v2385 = vunpack.c.h.b16 %v2101
    %v2386 = vunpack.c.l.b16 %v2102
    %v2387 = vunpack.c.h.b16 %v2102
    %v2388 = vunpack.c.l.b16 %v2103
    %v2389 = vunpack.c.h.b16 %v2103
    %v2390 = vunpack.c.l.b16 %v2104
    %v2391 = vunpack.c.h.b16 %v2104
    %v2392 = vunpack.c.l.b16 %v2105
    %v2393 = vunpack.c.h.b16 %v2105
    %v2394 = vunpack.c.l.b16 %v2106
    %v2395 = vunpack.c.h.b16 %v2106
    %v2396 = vunpack.c.l.b16 %v2107
    %v2397 = vunpack.c.h.b16 %v2107
    %v2398 = vunpack.c.l.b16 %v2108
    %v2399 = vunpack.c.h.b16 %v2108
    %v2400 = vunpack.c.l.b16 %v2109
    %v2401 = vunpack.c.h.b16 %v2109
    %v2402 = vunpack.c.l.b16 %v2110
    %v2403 = vunpack.c.h.b16 %v2110
    %v2404 = vunpack.c.l.b16 %v2111
    %v2405 = vunpack.c.h.b16 %v2111
    %v2406 = vunpack.c.l.b16 %v2112
    %v2407 = vunpack.c.h.b16 %v2112
    %v2408 = vunpack.c.l.b16 %v2113
    %v2409 = vunpack.c.h.b16 %v2113
    %v2410 = vunpack.c.l.b16 %v2114
    %v2411 = vunpack.c.h.b16 %v2114
    %v2412 = vunpack.c.l.b16 %v2115
    %v2413 = vunpack.c.h.b16 %v2115
    %v2414 = vunpack.c.l.b16 %v2116
    %v2415 = vunpack.c.h.b16 %v2116
    %v2416 = vunpack.c.l.b16 %v2117
    %v2417 = vunpack.c.h.b16 %v2117
    %v2418 = vunpack.c.l.b16 %v2118
    %v2419 = vunpack.c.h.b16 %v2118
    %v2420 = vunpack.c.l.b16 %v2119
    %v2421 = vunpack.c.h.b16 %v2119
    %v2422 = vunpack.c.l.b16 %v2120
    %v2423 = vunpack.c.h.b16 %v2120
    %v2424 = vunpack.c.l.b16 %v2121
    %v2425 = vunpack.c.h.b16 %v2121
    %v2426 = vunpack.c.l.b16 %v2122
    %v2427 = vunpack.c.h.b16 %v2122
    %v2428 = vunpack.c.l.b16 %v2123
    %v2429 = vunpack.c.h.b16 %v2123
    %v2430 = vunpack.c.l.b16 %v2124
    %v2431 = vunpack.c.h.b16 %v2124
    %v2432 = vunpack.c.l.b16 %v2125
    %v2433 = vunpack.c.h.b16 %v2125
    %v2434 = vunpack.c.l.b16 %v2126
    %v2435 = vunpack.c.h.b16 %v2126
    %v2436 = vunpack.c.l.b16 %v2127
    %v2437 = vunpack.c.h.b16 %v2127
    %v2438 = vunpack.c.l.b16 %v2128
    %v2439 = vunpack.c.h.b16 %v2128
    %v2440 = vunpack.c.l.b16 %v2129
    %v2441 = vunpack.c.h.b16 %v2129
    %v2442 = vunpack.c.l.b16 %v2130
    %v2443 = vunpack.c.h.b16 %v2130
    %v2444 = vunpack.c.l.b16 %v2131
    %v2445 = vunpack.c.h.b16 %v2131
    %v2446 = vunpack.c.l.b16 %v2132
    %v2447 = vunpack.c.h.b16 %v2132
    %v2448 = vunpack.c.l.b16 %v2133
    %v2449 = vunpack.c.h.b16 %v2133
    %v2450 = vunpack.c.l.b16 %v2134
    %v2451 = vunpack.c.h.b16 %v2134
    %v2452 = vunpack.c.l.b16 %v2135
    %v2453 = vunpack.c.h.b16 %v2135
    %v2454 = vunpack.c.l.b16 %v2136
    %v2455 = vunpack.c.h.b16 %v2136
    %v2456 = vunpack.c.l.b16 %v2137
    %v2457 = vunpack.c.h.b16 %v2137
    %v2458 = vunpack.c.l.b16 %v2138
    %v2459 = vunpack.c.h.b16 %v2138
    %v2460 = vunpack.c.l.b16 %v2139
    %v2461 = vunpack.c.h.b16 %v2139
    %v2462 = vunpack.c.l.b16 %v2140
    %v2463 = vunpack.c.h.b16 %v2140
    %v2464 = vunpack.c.l.b16 %v2141
    %v2465 = vunpack.c.h.b16 %v2141
    %v2466 = vunpack.c.l.b16 %v2142
    %v2467 = vunpack.c.h.b16 %v2142
    %v2468 = vunpack.c.l.b16 %v2143
    %v2469 = vunpack.c.h.b16 %v2143
    %v2470 = vunpack.c.l.b16 %v2144
    %v2471 = vunpack.c.h.b16 %v2144
    %v2472 = vunpack.c.l.b16 %v2145
    %v2473 = vunpack.c.h.b16 %v2145
    %v2474 = vunpack.c.l.b16 %v2146
    %v2475 = vunpack.c.h.b16 %v2146
    %v2476 = vunpack.c.l.b16 %v2147
    %v2477 = vunpack.c.h.b16 %v2147
    %v2478 = vunpack.c.l.b16 %v2148
    %v2479 = vunpack.c.h.b16 %v2148
    %v2480 = vunpack.c.l.b16 %v2149
    %v2481 = vunpack.c.h.b16 %v2149
    %v2482 = vunpack.c.l.b16 %v2150
    %v2483 = vunpack.c.h.b16 %v2150
    %v2484 = vunpack.c.l.b16 %v2151
    %v2485 = vunpack.c.h.b16 %v2151
    %v2486 = vunpack.c.l.b16 %v2152
    %v2487 = vunpack.c.h.b16 %v2152
    %v2488 = vunpack.c.l.b16 %v2153
    %v2489 = vunpack.c.h.b16 %v2153
    %v2490 = vunpack.c.l.b16 %v2154
    %v2491 = vunpack.c.h.b16 %v2154
    %v2492 = vunpack.c.l.b16 %v2155
    %v2493 = vunpack.c.h.b16 %v2155
    %v2494 = vunpack.c.l.b16 %v2156
    %v2495 = vunpack.c.h.b16 %v2156
    %v2496 = vunpack.c.l.b16 %v2157
    %v2497 = vunpack.c.h.b16 %v2157
    %v2498 = vunpack.c.l.b16 %v2158
    %v2499 = vunpack.c.h.b16 %v2158
    %v2500 = vunpack.c.l.b16 %v2159
    %v2501 = vunpack.c.h.b16 %v2159
    %v2502 = vunpack.c.l.b16 %v2160
    %v2503 = vunpack.c.h.b16 %v2160
    %v2504 = vunpack.c.l.b16 %v2161
    %v2505 = vunpack.c.h.b16 %v2161
    %v2506 = vunpack.c.l.b16 %v2162
    %v2507 = vunpack.c.h.b16 %v2162
    %v2508 = vunpack.c.l.b16 %v2163
    %v2509 = vunpack.c.h.b16 %v2163
    %v2510 = vunpack.c.l.b16 %v2164
    %v2511 = vunpack.c.h.b16 %v2164
    %v2512 = vunpack.c.l.b16 %v2165
    %v2513 = vunpack.c.h.b16 %v2165
    %v2514 = vunpack.c.l.b16 %v2166
    %v2515 = vunpack.c.h.b16 %v2166
    %v2516 = vunpack.c.l.b16 %v2167
    %v2517 = vunpack.c.h.b16 %v2167
    %v2518 = vunpack.c.l.b16 %v2168
    %v2519 = vunpack.c.h.b16 %v2168
    %v2520 = vunpack.c.l.b16 %v2169
    %v2521 = vunpack.c.h.b16 %v2169
    %v2522 = vunpack.c.l.b16 %v2170
    %v2523 = vunpack.c.h.b16 %v2170
    %v2524 = vunpack.c.l.b16 %v2171
    %v2525 = vunpack.c.h.b16 %v2171
    %v2526 = vunpack.c.l.b16 %v2172
    %v2527 = vunpack.c.h.b16 %v2172
    %v2528 = vunpack.c.l.b16 %v2173
    %v2529 = vunpack.c.h.b16 %v2173
    %v2530 = vunpack.c.l.b16 %v2174
    %v2531 = vunpack.c.h.b16 %v2174
    %v2532 = vunpack.c.l.b16 %v2175
    %v2533 = vunpack.c.h.b16 %v2175
    %v2534 = vunpack.c.l.b16 %v2176
    %v2535 = vunpack.c.h.b16 %v2176
    %v2536 = vunpack.c.l.b16 %v2177
    %v2537 = vunpack.c.h.b16 %v2177
    %v2538 = vunpack.c.l.b16 %v2178
    %v2539 = vunpack.c.h.b16 %v2178
    %v2540 = vunpack.c.l.b16 %v2179
    %v2541 = vunpack.c.h.b16 %v2179
    %v2542 = vunpack.c.l.b16 %v2180
    %v2543 = vunpack.c.h.b16 %v2180
    %v2544 = vunpack.c.l.b16 %v2181
    %v2545 = vunpack.c.h.b16 %v2181
    %v2546 = vunpack.c.l.b16 %v2182
    %v2547 = vunpack.c.h.b16 %v2182
    %v2548 = vunpack.c.l.b16 %v2183
    %v2549 = vunpack.c.h.b16 %v2183
    %v2550 = vunpack.c.l.b16 %v2184
    %v2551 = vunpack.c.h.b16 %v2184
    %v2552 = vunpack.c.l.b16 %v2185
    %v2553 = vunpack.c.h.b16 %v2185
    %v2554 = vunpack.c.l.b16 %v2186
    %v2555 = vunpack.c.h.b16 %v2186
    %v2556 = vunpack.c.l.b16 %v2187
    %v2557 = vunpack.c.h.b16 %v2187
    %v2558 = vunpack.c.l.b16 %v2188
    %v2559 = vunpack.c.h.b16 %v2188
    %v2560 = vunpack.c.l.b16 %v2189
    %v2561 = vunpack.c.h.b16 %v2189
    %v2562 = vunpack.c.l.b16 %v2190
    %v2563 = vunpack.c.h.b16 %v2190
    %v2564 = vunpack.c.l.b16 %v2191
    %v2565 = vunpack.c.h.b16 %v2191
    %v2566 = vunpack.c.l.b16 %v2192
    %v2567 = vunpack.c.h.b16 %v2192
    %v2568 = vunpack.c.l.b16 %v2193
    %v2569 = vunpack.c.h.b16 %v2193
    %v2570 = vunpack.c.l.b16 %v2194
    %v2571 = vunpack.c.h.b16 %v2194
    %v2572 = vunpack.c.l.b16 %v2195
    %v2573 = vunpack.c.h.b16 %v2195
    %v2574 = vunpack.c.l.b16 %v2196
    %v2575 = vunpack.c.h.b16 %v2196
    %v2576 = vunpack.c.l.b16 %v2197
    %v2577 = vunpack.c.h.b16 %v2197
    %v2578 = vunpack.c.l.b16 %v2198
    %v2579 = vunpack.c.h.b16 %v2198
    %v2580 = vunpack.c.l.b16 %v2199
    %v2581 = vunpack.c.h.b16 %v2199
    %v2582 = vunpack.c.l.b16 %v2200
    %v2583 = vunpack.c.h.b16 %v2200
    %v2584 = vunpack.c.l.b16 %v2201
    %v2585 = vunpack.c.h.b16 %v2201
    %v2586 = vunpack.c.l.b16 %v2202
    %v2587 = vunpack.c.h.b16 %v2202
    %v2588 = vunpack.c.l.b16 %v2203
    %v2589 = vunpack.c.h.b16 %v2203
    %v2590 = vunpack.c.l.b16 %v2204
    %v2591 = vunpack.c.h.b16 %v2204
    %v2592 = vunpack.c.l.b16 %v2205
    %v2593 = vunpack.c.h.b16 %v2205
    %v2594 = vunpack.c.l.b16 %v2206
    %v2595 = vunpack.c.h.b16 %v2206
    %v2596 = vunpack.c.l.b16 %v2207
    %v2597 = vunpack.c.h.b16 %v2207
    %v2598 = vunpack.c.l.b16 %v2208
    %v2599 = vunpack.c.h.b16 %v2208
    %v2600 = vunpack.c.l.b16 %v2209
    %v2601 = vunpack.c.h.b16 %v2209
    %v2602 = vunpack.c.l.b16 %v2210
    %v2603 = vunpack.c.h.b16 %v2210
    %v2604 = vunpack.c.l.b16 %v2211
    %v2605 = vunpack.c.h.b16 %v2211
    %v2606 = vunpack.c.l.b16 %v2212
    %v2607 = vunpack.c.h.b16 %v2212
    %v2608 = vpack.c.b16 %v2356, %v2352
    %v2609 = vpack.c.b16 %v2357, %v2353
    %v2610 = vpack.c.b16 %v2358, %v2354
    %v2611 = vpack.c.b16 %v2359, %v2355
    %v2612 = vpack.c.b16 %v2364, %v2360
    %v2613 = vpack.c.b16 %v2365, %v2361
    %v2614 = vpack.c.b16 %v2366, %v2362
    %v2615 = vpack.c.b16 %v2367, %v2363
    %v2616 = vpack.c.b16 %v2372, %v2368
    %v2617 = vpack.c.b16 %v2373, %v2369
    %v2618 = vpack.c.b16 %v2374, %v2370
    %v2619 = vpack.c.b16 %v2375, %v2371
    %v2620 = vpack.c.b16 %v2380, %v2376
    %v2621 = vpack.c.b16 %v2381, %v2377
    %v2622 = vpack.c.b16 %v2382, %v2378
    %v2623 = vpack.c.b16 %v2383, %v2379
    %v2624 = vpack.c.b16 %v2388, %v2384
    %v2625 = vpack.c.b16 %v2389, %v2385
    %v2626 = vpack.c.b16 %v2390, %v2386
    %v2627 = vpack.c.b16 %v2391, %v2387
    %v2628 = vpack.c.b16 %v2396, %v2392
    %v2629 = vpack.c.b16 %v2397, %v2393
    %v2630 = vpack.c.b16 %v2398, %v2394
    %v2631 = vpack.c.b16 %v2399, %v2395
    %v2632 = vpack.c.b16 %v2404, %v2400
    %v2633 = vpack.c.b16 %v2405, %v2401
    %v2634 = vpack.c.b16 %v2406, %v2402
    %v2635 = vpack.c.b16 %v2407, %v2403
    %v2636 = vpack.c.b16 %v2412, %v2408
    %v2637 = vpack.c.b16 %v2413, %v2409
    %v2638 = vpack.c.b16 %v2414, %v2410
    %v2639 = vpack.c.b16 %v2415, %v2411
    %v2640 = vpack.c.b16 %v2420, %v2416
    %v2641 = vpack.c.b16 %v2421, %v2417
    %v2642 = vpack.c.b16 %v2422, %v2418
    %v2643 = vpack.c.b16 %v2423, %v2419
    %v2644 = vpack.c.b16 %v2428, %v2424
    %v2645 = vpack.c.b16 %v2429, %v2425
    %v2646 = vpack.c.b16 %v2430, %v2426
    %v2647 = vpack.c.b16 %v2431, %v2427
    %v2648 = vpack.c.b16 %v2436, %v2432
    %v2649 = vpack.c.b16 %v2437, %v2433
    %v2650 = vpack.c.b16 %v2438, %v2434
    %v2651 = vpack.c.b16 %v2439, %v2435
    %v2652 = vpack.c.b16 %v2444, %v2440
    %v2653 = vpack.c.b16 %v2445, %v2441
    %v2654 = vpack.c.b16 %v2446, %v2442
    %v2655 = vpack.c.b16 %v2447, %v2443
    %v2656 = vpack.c.b16 %v2452, %v2448
    %v2657 = vpack.c.b16 %v2453, %v2449
    %v2658 = vpack.c.b16 %v2454, %v2450
    %v2659 = vpack.c.b16 %v2455, %v2451
    %v2660 = vpack.c.b16 %v2460, %v2456
    %v2661 = vpack.c.b16 %v2461, %v2457
    %v2662 = vpack.c.b16 %v2462, %v2458
    %v2663 = vpack.c.b16 %v2463, %v2459
    %v2664 = vpack.c.b16 %v2468, %v2464
    %v2665 = vpack.c.b16 %v2469, %v2465
    %v2666 = vpack.c.b16 %v2470, %v2466
    %v2667 = vpack.c.b16 %v2471, %v2467
    %v2668 = vpack.c.b16 %v2476, %v2472
    %v2669 = vpack.c.b16 %v2477, %v2473
    %v2670 = vpack.c.b16 %v2478, %v2474
    %v2671 = vpack.c.b16 %v2479, %v2475
    %v2672 = vpack.c.b16 %v2484, %v2480
    %v2673 = vpack.c.b16 %v2485, %v2481
    %v2674 = vpack.c.b16 %v2486, %v2482
    %v2675 = vpack.c.b16 %v2487, %v2483
    %v2676 = vpack.c.b16 %v2492, %v2488
    %v2677 = vpack.c.b16 %v2493, %v2489
    %v2678 = vpack.c.b16 %v2494, %v2490
    %v2679 = vpack.c.b16 %v2495, %v2491
    %v2680 = vpack.c.b16 %v2500, %v2496
    %v2681 = vpack.c.b16 %v2501, %v2497
    %v2682 = vpack.c.b16 %v2502, %v2498
    %v2683 = vpack.c.b16 %v2503, %v2499
    %v2684 = vpack.c.b16 %v2508, %v2504
    %v2685 = vpack.c.b16 %v2509, %v2505
    %v2686 = vpack.c.b16 %v2510, %v2506
    %v2687 = vpack.c.b16 %v2511, %v2507
    %v2688 = vpack.c.b16 %v2516, %v2512
    %v2689 = vpack.c.b16 %v2517, %v2513
    %v2690 = vpack.c.b16 %v2518, %v2514
    %v2691 = vpack.c.b16 %v2519, %v2515
    %v2692 = vpack.c.b16 %v2524, %v2520
    %v2693 = vpack.c.b16 %v2525, %v2521
    %v2694 = vpack.c.b16 %v2526, %v2522
    %v2695 = vpack.c.b16 %v2527, %v2523
    %v2696 = vpack.c.b16 %v2532, %v2528
    %v2697 = vpack.c.b16 %v2533, %v2529
    %v2698 = vpack.c.b16 %v2534, %v2530
    %v2699 = vpack.c.b16 %v2535, %v2531
    %v2700 = vpack.c.b16 %v2540, %v2536
    %v2701 = vpack.c.b16 %v2541, %v2537
    %v2702 = vpack.c.b16 %v2542, %v2538
    %v2703 = vpack.c.b16 %v2543, %v2539
    %v2704 = vpack.c.b16 %v2548, %v2544
    %v2705 = vpack.c.b16 %v2549, %v2545
    %v2706 = vpack.c.b16 %v2550, %v2546
    %v2707 = vpack.c.b16 %v2551, %v2547
    %v2708 = vpack.c.b16 %v2556, %v2552
    %v2709 = vpack.c.b16 %v2557, %v2553
    %v2710 = vpack.c.b16 %v2558, %v2554
    %v2711 = vpack.c.b16 %v2559, %v2555
    %v2712 = vpack.c.b16 %v2564, %v2560
    %v2713 = vpack.c.b16 %v2565, %v2561
    %v2714 = vpack.c.b16 %v2566, %v2562
    %v2715 = vpack.c.b16 %v2567, %v2563
    %v2716 = vpack.c.b16 %v2572, %v2568
    %v2717 = vpack.c.b16 %v2573, %v2569
    %v2718 = vpack.c.b16 %v2574, %v2570
    %v2719 = vpack.c.b16 %v2575, %v2571
    %v2720 = vpack.c.b16 %v2580, %v2576
    %v2721 = vpack.c.b16 %v2581, %v2577
    %v2722 = vpack.c.b16 %v2582, %v2578
    %v2723 = vpack.c.b16 %v2583, %v2579
    %v2724 = vpack.c.b16 %v2588, %v2584
    %v2725 = vpack.c.b16 %v2589, %v2585
    %v2726 = vpack.c.b16 %v2590, %v2586
    %v2727 = vpack.c.b16 %v2591, %v2587
    %v2728 = vpack.c.b16 %v2596, %v2592
    %v2729 = vpack.c.b16 %v2597, %v2593
    %v2730 = vpack.c.b16 %v2598, %v2594
    %v2731 = vpack.c.b16 %v2599, %v2595
    %v2732 = vpack.c.b16 %v2604, %v2600
    %v2733 = vpack.c.b16 %v2605, %v2601
    %v2734 = vpack.c.b16 %v2606, %v2602
    %v2735 = vpack.c.b16 %v2607, %v2603
    %2864 = vmatpush.bf16.msra.mxu0 %v2636
    %2865 = vmatpush.bf16.msra.mxu0 %v2632
    %2866 = vmatpush.bf16.msra.mxu0 %v2628
    %2867 = vmatpush.bf16.msra.mxu0 %v2624
    %2868 = vmatpush.bf16.msra.mxu0 %v2620
    %2869 = vmatpush.bf16.msra.mxu0 %v2616
    %2870 = vmatpush.bf16.msra.mxu0 %v2612
    %2871 = vmatpush.bf16.msra.mxu0 %v2608
    %2872 = vmatmul.bf16.gmra.mxu0 %v236
    %v2873 = vpop.f32.mrf.mxu0
    %v2874 = vadd.f32 %v2216, %v2873
    %v2875 = vpop.f32.mrf.mxu0
    %2876 = vdwg.mxu0
    %2877 = vmatpush.bf16.msra.mxu0 %v2668
    %2878 = vmatpush.bf16.msra.mxu0 %v2664
    %2879 = vmatpush.bf16.msra.mxu0 %v2660
    %2880 = vmatpush.bf16.msra.mxu0 %v2656
    %2881 = vmatpush.bf16.msra.mxu0 %v2652
    %2882 = vmatpush.bf16.msra.mxu0 %v2648
    %2883 = vmatpush.bf16.msra.mxu0 %v2644
    %2884 = vmatpush.bf16.msra.mxu0 %v2640
    %2885 = vmatmul.bf16.gmra.mxu0 %v237
    %v2886 = vpop.f32.mrf.mxu0
    %v2887 = vadd.f32 %v2874, %v2886
    %v2888 = vpop.f32.mrf.mxu0
    %2889 = vdwg.mxu0
    %2890 = vmatpush.bf16.msra.mxu0 %v2700
    %2891 = vmatpush.bf16.msra.mxu0 %v2696
    %2892 = vmatpush.bf16.msra.mxu0 %v2692
    %2893 = vmatpush.bf16.msra.mxu0 %v2688
    %2894 = vmatpush.bf16.msra.mxu0 %v2684
    %2895 = vmatpush.bf16.msra.mxu0 %v2680
    %2896 = vmatpush.bf16.msra.mxu0 %v2676
    %2897 = vmatpush.bf16.msra.mxu0 %v2672
    %2898 = vmatmul.bf16.gmra.mxu0 %v238
    %v2899 = vpop.f32.mrf.mxu0
    %v2900 = vadd.f32 %v2887, %v2899
    %v2901 = vpop.f32.mrf.mxu0
    %2902 = vdwg.mxu0
    %2903 = vmatpush.bf16.msra.mxu0 %v2732
    %2904 = vmatpush.bf16.msra.mxu0 %v2728
    %2905 = vmatpush.bf16.msra.mxu0 %v2724
    %2906 = vmatpush.bf16.msra.mxu0 %v2720
    %2907 = vmatpush.bf16.msra.mxu0 %v2716
    %2908 = vmatpush.bf16.msra.mxu0 %v2712
    %2909 = vmatpush.bf16.msra.mxu0 %v2708
    %2910 = vmatpush.bf16.msra.mxu0 %v2704
    %2911 = vmatmul.bf16.gmra.mxu0 %v239
    %v2912 = vpop.f32.mrf.mxu0
    %v2913 = vadd.f32 %v2900, %v2912
    %v2914 = vpop.f32.mrf.mxu0
    %2915 = vdwg.mxu0
    %2916 = vmatpush.bf16.msra.mxu0 %v2637
    %2917 = vmatpush.bf16.msra.mxu0 %v2633
    %2918 = vmatpush.bf16.msra.mxu0 %v2629
    %2919 = vmatpush.bf16.msra.mxu0 %v2625
    %2920 = vmatpush.bf16.msra.mxu0 %v2621
    %2921 = vmatpush.bf16.msra.mxu0 %v2617
    %2922 = vmatpush.bf16.msra.mxu0 %v2613
    %2923 = vmatpush.bf16.msra.mxu0 %v2609
    %2924 = vmatmul.bf16.gmra.mxu0 %v236
    %v2925 = vpop.f32.mrf.mxu0
    %v2926 = vadd.f32 %v2217, %v2925
    %v2927 = vpop.f32.mrf.mxu0
    %2928 = vdwg.mxu0
    %2929 = vmatpush.bf16.msra.mxu0 %v2669
    %2930 = vmatpush.bf16.msra.mxu0 %v2665
    %2931 = vmatpush.bf16.msra.mxu0 %v2661
    %2932 = vmatpush.bf16.msra.mxu0 %v2657
    %2933 = vmatpush.bf16.msra.mxu0 %v2653
    %2934 = vmatpush.bf16.msra.mxu0 %v2649
    %2935 = vmatpush.bf16.msra.mxu0 %v2645
    %2936 = vmatpush.bf16.msra.mxu0 %v2641
    %2937 = vmatmul.bf16.gmra.mxu0 %v237
    %v2938 = vpop.f32.mrf.mxu0
    %v2939 = vadd.f32 %v2926, %v2938
    %v2940 = vpop.f32.mrf.mxu0
    %2941 = vdwg.mxu0
    %2942 = vmatpush.bf16.msra.mxu0 %v2701
    %2943 = vmatpush.bf16.msra.mxu0 %v2697
    %2944 = vmatpush.bf16.msra.mxu0 %v2693
    %2945 = vmatpush.bf16.msra.mxu0 %v2689
    %2946 = vmatpush.bf16.msra.mxu0 %v2685
    %2947 = vmatpush.bf16.msra.mxu0 %v2681
    %2948 = vmatpush.bf16.msra.mxu0 %v2677
    %2949 = vmatpush.bf16.msra.mxu0 %v2673
    %2950 = vmatmul.bf16.gmra.mxu0 %v238
    %v2951 = vpop.f32.mrf.mxu0
    %v2952 = vadd.f32 %v2939, %v2951
    %v2953 = vpop.f32.mrf.mxu0
    %2954 = vdwg.mxu0
    %2955 = vmatpush.bf16.msra.mxu0 %v2733
    %2956 = vmatpush.bf16.msra.mxu0 %v2729
    %2957 = vmatpush.bf16.msra.mxu0 %v2725
    %2958 = vmatpush.bf16.msra.mxu0 %v2721
    %2959 = vmatpush.bf16.msra.mxu0 %v2717
    %2960 = vmatpush.bf16.msra.mxu0 %v2713
    %2961 = vmatpush.bf16.msra.mxu0 %v2709
    %2962 = vmatpush.bf16.msra.mxu0 %v2705
    %2963 = vmatmul.bf16.gmra.mxu0 %v239
    %v2964 = vpop.f32.mrf.mxu0
    %v2965 = vadd.f32 %v2952, %v2964
    %v2966 = vpop.f32.mrf.mxu0
    %2967 = vdwg.mxu0
    %2968 = vmatpush.bf16.msra.mxu0 %v2638
    %2969 = vmatpush.bf16.msra.mxu0 %v2634
    %2970 = vmatpush.bf16.msra.mxu0 %v2630
    %2971 = vmatpush.bf16.msra.mxu0 %v2626
    %2972 = vmatpush.bf16.msra.mxu0 %v2622
    %2973 = vmatpush.bf16.msra.mxu0 %v2618
    %2974 = vmatpush.bf16.msra.mxu0 %v2614
    %2975 = vmatpush.bf16.msra.mxu0 %v2610
    %2976 = vmatmul.bf16.gmra.mxu0 %v236
    %v2977 = vpop.f32.mrf.mxu0
    %v2978 = vadd.f32 %v2218, %v2977
    %v2979 = vpop.f32.mrf.mxu0
    %2980 = vdwg.mxu0
    %2981 = vmatpush.bf16.msra.mxu0 %v2670
    %2982 = vmatpush.bf16.msra.mxu0 %v2666
    %2983 = vmatpush.bf16.msra.mxu0 %v2662
    %2984 = vmatpush.bf16.msra.mxu0 %v2658
    %2985 = vmatpush.bf16.msra.mxu0 %v2654
    %2986 = vmatpush.bf16.msra.mxu0 %v2650
    %2987 = vmatpush.bf16.msra.mxu0 %v2646
    %2988 = vmatpush.bf16.msra.mxu0 %v2642
    %2989 = vmatmul.bf16.gmra.mxu0 %v237
    %v2990 = vpop.f32.mrf.mxu0
    %v2991 = vadd.f32 %v2978, %v2990
    %v2992 = vpop.f32.mrf.mxu0
    %2993 = vdwg.mxu0
    %2994 = vmatpush.bf16.msra.mxu0 %v2702
    %2995 = vmatpush.bf16.msra.mxu0 %v2698
    %2996 = vmatpush.bf16.msra.mxu0 %v2694
    %2997 = vmatpush.bf16.msra.mxu0 %v2690
    %2998 = vmatpush.bf16.msra.mxu0 %v2686
    %2999 = vmatpush.bf16.msra.mxu0 %v2682
    %3000 = vmatpush.bf16.msra.mxu0 %v2678
    %3001 = vmatpush.bf16.msra.mxu0 %v2674
    %3002 = vmatmul.bf16.gmra.mxu0 %v238
    %v3003 = vpop.f32.mrf.mxu0
    %v3004 = vadd.f32 %v2991, %v3003
    %v3005 = vpop.f32.mrf.mxu0
    %3006 = vdwg.mxu0
    %3007 = vmatpush.bf16.msra.mxu0 %v2734
    %3008 = vmatpush.bf16.msra.mxu0 %v2730
    %3009 = vmatpush.bf16.msra.mxu0 %v2726
    %3010 = vmatpush.bf16.msra.mxu0 %v2722
    %3011 = vmatpush.bf16.msra.mxu0 %v2718
    %3012 = vmatpush.bf16.msra.mxu0 %v2714
    %3013 = vmatpush.bf16.msra.mxu0 %v2710
    %3014 = vmatpush.bf16.msra.mxu0 %v2706
    %3015 = vmatmul.bf16.gmra.mxu0 %v239
    %v3016 = vpop.f32.mrf.mxu0
    %v3017 = vadd.f32 %v3004, %v3016
    %v3018 = vpop.f32.mrf.mxu0
    %3019 = vdwg.mxu0
    %3020 = vmatpush.bf16.msra.mxu0 %v2639
    %3021 = vmatpush.bf16.msra.mxu0 %v2635
    %3022 = vmatpush.bf16.msra.mxu0 %v2631
    %3023 = vmatpush.bf16.msra.mxu0 %v2627
    %3024 = vmatpush.bf16.msra.mxu0 %v2623
    %3025 = vmatpush.bf16.msra.mxu0 %v2619
    %3026 = vmatpush.bf16.msra.mxu0 %v2615
    %3027 = vmatpush.bf16.msra.mxu0 %v2611
    %3028 = vmatmul.bf16.gmra.mxu0 %v236
    %v3029 = vpop.f32.mrf.mxu0
    %v3030 = vadd.f32 %v2219, %v3029
    %v3031 = vpop.f32.mrf.mxu0
    %3032 = vdwg.mxu0
    %3033 = vmatpush.bf16.msra.mxu0 %v2671
    %3034 = vmatpush.bf16.msra.mxu0 %v2667
    %3035 = vmatpush.bf16.msra.mxu0 %v2663
    %3036 = vmatpush.bf16.msra.mxu0 %v2659
    %3037 = vmatpush.bf16.msra.mxu0 %v2655
    %3038 = vmatpush.bf16.msra.mxu0 %v2651
    %3039 = vmatpush.bf16.msra.mxu0 %v2647
    %3040 = vmatpush.bf16.msra.mxu0 %v2643
    %3041 = vmatmul.bf16.gmra.mxu0 %v237
    %v3042 = vpop.f32.mrf.mxu0
    %v3043 = vadd.f32 %v3030, %v3042
    %v3044 = vpop.f32.mrf.mxu0
    %3045 = vdwg.mxu0
    %3046 = vmatpush.bf16.msra.mxu0 %v2703
    %3047 = vmatpush.bf16.msra.mxu0 %v2699
    %3048 = vmatpush.bf16.msra.mxu0 %v2695
    %3049 = vmatpush.bf16.msra.mxu0 %v2691
    %3050 = vmatpush.bf16.msra.mxu0 %v2687
    %3051 = vmatpush.bf16.msra.mxu0 %v2683
    %3052 = vmatpush.bf16.msra.mxu0 %v2679
    %3053 = vmatpush.bf16.msra.mxu0 %v2675
    %3054 = vmatmul.bf16.gmra.mxu0 %v238
    %v3055 = vpop.f32.mrf.mxu0
    %v3056 = vadd.f32 %v3043, %v3055
    %v3057 = vpop.f32.mrf.mxu0
    %3058 = vdwg.mxu0
    %3059 = vmatpush.bf16.msra.mxu0 %v2735
    %3060 = vmatpush.bf16.msra.mxu0 %v2731
    %3061 = vmatpush.bf16.msra.mxu0 %v2727
    %3062 = vmatpush.bf16.msra.mxu0 %v2723
    %3063 = vmatpush.bf16.msra.mxu0 %v2719
    %3064 = vmatpush.bf16.msra.mxu0 %v2715
    %3065 = vmatpush.bf16.msra.mxu0 %v2711
    %3066 = vmatpush.bf16.msra.mxu0 %v2707
    %3067 = vmatmul.bf16.gmra.mxu0 %v239
    %v3068 = vpop.f32.mrf.mxu0
    %v3069 = vadd.f32 %v3056, %v3068
    %v3070 = vpop.f32.mrf.mxu0
    %3071 = vdwg.mxu0
    %v3072 = vpack.c.bf16 %v939, %v939
    %v3073 = vpack.c.bf16 %v991, %v991
    %v3074 = vpack.c.bf16 %v1926, %v1926
    %v3075 = vpack.c.bf16 %v1978, %v1978
    %v3076 = vpack.c.bf16 %v2913, %v2913
    %v3077 = vpack.c.bf16 %v2965, %v2965
    %3078 = vmatpush.bf16.xpose.msra.mxu0 0
    %3079 = vmatpush.bf16.xpose.msra.mxu0 0
    %3080 = vmatpush.bf16.xpose.msra.mxu0 0
    %3081 = vmatpush.bf16.xpose.msra.mxu0 0
    %3082 = vmatpush.bf16.xpose.msra.mxu0 0
    %3083 = vmatpush.bf16.xpose.msra.mxu0 0
    %3084 = vmatpush.bf16.xpose.msra.mxu0 0
    %3085 = vmatpush.bf16.xpose.msra.mxu0 %v3074
    %3086 = vmatmul.bf16.gmra.mxu0 %v3072
    %v3087 = vpop.f32.mrf.mxu0
    %v3088 = vadd.f32 0.0, %v3087
    %v3089 = vpop.f32.mrf.mxu0
    %3090 = vdwg.mxu0
    %3091 = vmatpush.bf16.xpose.msra.mxu0 0
    %3092 = vmatpush.bf16.xpose.msra.mxu0 0
    %3093 = vmatpush.bf16.xpose.msra.mxu0 0
    %3094 = vmatpush.bf16.xpose.msra.mxu0 0
    %3095 = vmatpush.bf16.xpose.msra.mxu0 0
    %3096 = vmatpush.bf16.xpose.msra.mxu0 0
    %3097 = vmatpush.bf16.xpose.msra.mxu0 0
    %3098 = vmatpush.bf16.xpose.msra.mxu0 %v3075
    %3099 = vmatmul.bf16.gmra.mxu0 %v3073
    %v3100 = vpop.f32.mrf.mxu0
    %v3101 = vadd.f32 %v3088, %v3100
    %v3102 = vpop.f32.mrf.mxu0
    %3103 = vdwg.mxu0
    %v3104 = vmul.f32 %v3101, 0.06788442
    %vm3105 = vcmask 64512
    %v3106 = vsel %vm3105, %v3104, -inf
    %3107 = vmax.xlane.f32.xlu0 %v3106
    %v3108 = vpop.xlane.xlu0 %3107
    %v3109 = vsub.f32 %v3104, %v3108
    %v3110 = vmul.f32 %v3109, 1.442695
    %v3111 = vpow.pop %v3110
    %v3112 = vsel %vm3105, %v3111, 0.0
    %3113 = vadd.xlane.f32.xlu0 %v3112
    %v3114 = vpop.xlane.xlu0 %3113
    %v3115 = vrcp.pop %v3114
    %v3116 = vmul.f32 %v3111, %v3115
    %v3117 = vpack.c.bf16 %v3116, %v3116
    %v3119 = vsel %vm3105, %v3117, 0
    %vm3121 = vcmask 1043456
    %v3123 = vsel %vm3121, %v3076, 0
    %v3126 = vsel %vm3121, %v3077, 0
    %3128 = vmatpush.bf16.msra.mxu0 0
    %3129 = vmatpush.bf16.msra.mxu0 0
    %3130 = vmatpush.bf16.msra.mxu0 0
    %3131 = vmatpush.bf16.msra.mxu0 0
    %3132 = vmatpush.bf16.msra.mxu0 0
    %3133 = vmatpush.bf16.msra.mxu0 0
    %3134 = vmatpush.bf16.msra.mxu0 0
    %3135 = vmatpush.bf16.msra.mxu0 %v3123
    %3136 = vmatmul.bf16.gmra.mxu0 %v3119
    %v3137 = vpop.f32.mrf.mxu0
    %v3138 = vadd.f32 0.0, %v3137
    %v3139 = vpop.f32.mrf.mxu0
    %3140 = vdwg.mxu0
    %3141 = vmatpush.bf16.msra.mxu0 0
    %3142 = vmatpush.bf16.msra.mxu0 0
    %3143 = vmatpush.bf16.msra.mxu0 0
    %3144 = vmatpush.bf16.msra.mxu0 0
    %3145 = vmatpush.bf16.msra.mxu0 0
    %3146 = vmatpush.bf16.msra.mxu0 0
    %3147 = vmatpush.bf16.msra.mxu0 0
    %3148 = vmatpush.bf16.msra.mxu0 %v3126
    %3149 = vmatmul.bf16.gmra.mxu0 %v3119
    %v3150 = vpop.f32.mrf.mxu0
    %v3151 = vadd.f32 0.0, %v3150
    %v3152 = vpop.f32.mrf.mxu0
    %3153 = vdwg.mxu0
    %v3154 = vpack.c.bf16 %v1043, %v1043
    %v3155 = vpack.c.bf16 %v1095, %v1095
    %v3156 = vpack.c.bf16 %v2030, %v2030
    %v3157 = vpack.c.bf16 %v2082, %v2082
    %v3158 = vpack.c.bf16 %v3017, %v3017
    %v3159 = vpack.c.bf16 %v3069, %v3069
    %3160 = vmatpush.bf16.xpose.msra.mxu0 0
    %3161 = vmatpush.bf16.xpose.msra.mxu0 0
    %3162 = vmatpush.bf16.xpose.msra.mxu0 0
    %3163 = vmatpush.bf16.xpose.msra.mxu0 0
    %3164 = vmatpush.bf16.xpose.msra.mxu0 0
    %3165 = vmatpush.bf16.xpose.msra.mxu0 0
    %3166 = vmatpush.bf16.xpose.msra.mxu0 0
    %3167 = vmatpush.bf16.xpose.msra.mxu0 %v3156
    %3168 = vmatmul.bf16.gmra.mxu0 %v3154
    %v3169 = vpop.f32.mrf.mxu0
    %v3170 = vadd.f32 0.0, %v3169
    %v3171 = vpop.f32.mrf.mxu0
    %3172 = vdwg.mxu0
    %3173 = vmatpush.bf16.xpose.msra.mxu0 0
    %3174 = vmatpush.bf16.xpose.msra.mxu0 0
    %3175 = vmatpush.bf16.xpose.msra.mxu0 0
    %3176 = vmatpush.bf16.xpose.msra.mxu0 0
    %3177 = vmatpush.bf16.xpose.msra.mxu0 0
    %3178 = vmatpush.bf16.xpose.msra.mxu0 0
    %3179 = vmatpush.bf16.xpose.msra.mxu0 0
    %3180 = vmatpush.bf16.xpose.msra.mxu0 %v3157
    %3181 = vmatmul.bf16.gmra.mxu0 %v3155
    %v3182 = vpop.f32.mrf.mxu0
    %v3183 = vadd.f32 %v3170, %v3182
    %v3184 = vpop.f32.mrf.mxu0
    %3185 = vdwg.mxu0
    %v3186 = vmul.f32 %v3183, 0.06788442
    %v3187 = vsel %vm3105, %v3186, -inf
    %3188 = vmax.xlane.f32.xlu0 %v3187
    %v3189 = vpop.xlane.xlu0 %3188
    %v3190 = vsub.f32 %v3186, %v3189
    %v3191 = vmul.f32 %v3190, 1.442695
    %v3192 = vpow.pop %v3191
    %v3193 = vsel %vm3105, %v3192, 0.0
    %3194 = vadd.xlane.f32.xlu0 %v3193
    %v3195 = vpop.xlane.xlu0 %3194
    %v3196 = vrcp.pop %v3195
    %v3197 = vmul.f32 %v3192, %v3196
    %v3198 = vpack.c.bf16 %v3197, %v3197
    %v3200 = vsel %vm3105, %v3198, 0
    %v3203 = vsel %vm3121, %v3158, 0
    %v3206 = vsel %vm3121, %v3159, 0
    %3208 = vmatpush.bf16.msra.mxu0 0
    %3209 = vmatpush.bf16.msra.mxu0 0
    %3210 = vmatpush.bf16.msra.mxu0 0
    %3211 = vmatpush.bf16.msra.mxu0 0
    %3212 = vmatpush.bf16.msra.mxu0 0
    %3213 = vmatpush.bf16.msra.mxu0 0
    %3214 = vmatpush.bf16.msra.mxu0 0
    %3215 = vmatpush.bf16.msra.mxu0 %v3203
    %3216 = vmatmul.bf16.gmra.mxu0 %v3200
    %v3217 = vpop.f32.mrf.mxu0
    %v3218 = vadd.f32 0.0, %v3217
    %v3219 = vpop.f32.mrf.mxu0
    %3220 = vdwg.mxu0
    %3221 = vmatpush.bf16.msra.mxu0 0
    %3222 = vmatpush.bf16.msra.mxu0 0
    %3223 = vmatpush.bf16.msra.mxu0 0
    %3224 = vmatpush.bf16.msra.mxu0 0
    %3225 = vmatpush.bf16.msra.mxu0 0
    %3226 = vmatpush.bf16.msra.mxu0 0
    %3227 = vmatpush.bf16.msra.mxu0 0
    %3228 = vmatpush.bf16.msra.mxu0 %v3206
    %3229 = vmatmul.bf16.gmra.mxu0 %v3200
    %v3230 = vpop.f32.mrf.mxu0
    %v3231 = vadd.f32 0.0, %v3230
    %v3232 = vpop.f32.mrf.mxu0
    %3233 = vdwg.mxu0
    %v3234 = vld [vmem:[#allocation8 + $0xc00] sm:$0xff]
    %v3235 = vld [vmem:[#allocation8 + $0xc08] sm:$0xff]
    %v3236 = vld [vmem:[#allocation8 + $0xc10] sm:$0xff]
    %v3237 = vld [vmem:[#allocation8 + $0xc18] sm:$0xff]
    %v3238 = vld [vmem:[#allocation8 + $0xc20] sm:$0xff]
    %v3239 = vld [vmem:[#allocation8 + $0xc28] sm:$0xff]
    %v3240 = vld [vmem:[#allocation8 + $0xc30] sm:$0xff]
    %v3241 = vld [vmem:[#allocation8 + $0xc38] sm:$0xff]
    %v3242 = vld [vmem:[#allocation8 + $0xc40] sm:$0xff]
    %v3243 = vld [vmem:[#allocation8 + $0xc48] sm:$0xff]
    %v3244 = vld [vmem:[#allocation8 + $0xc50] sm:$0xff]
    %v3245 = vld [vmem:[#allocation8 + $0xc58] sm:$0xff]
    %v3246 = vld [vmem:[#allocation8 + $0xc60] sm:$0xff]
    %v3247 = vld [vmem:[#allocation8 + $0xc68] sm:$0xff]
    %v3248 = vld [vmem:[#allocation8 + $0xc70] sm:$0xff]
    %v3249 = vld [vmem:[#allocation8 + $0xc78] sm:$0xff]
    %v3250 = vld [vmem:[#allocation8 + $0xc80] sm:$0xff]
    %v3251 = vld [vmem:[#allocation8 + $0xc88] sm:$0xff]
    %v3252 = vld [vmem:[#allocation8 + $0xc90] sm:$0xff]
    %v3253 = vld [vmem:[#allocation8 + $0xc98] sm:$0xff]
    %v3254 = vld [vmem:[#allocation8 + $0xca0] sm:$0xff]
    %v3255 = vld [vmem:[#allocation8 + $0xca8] sm:$0xff]
    %v3256 = vld [vmem:[#allocation8 + $0xcb0] sm:$0xff]
    %v3257 = vld [vmem:[#allocation8 + $0xcb8] sm:$0xff]
    %v3258 = vld [vmem:[#allocation8 + $0xcc0] sm:$0xff]
    %v3259 = vld [vmem:[#allocation8 + $0xcc8] sm:$0xff]
    %v3260 = vld [vmem:[#allocation8 + $0xcd0] sm:$0xff]
    %v3261 = vld [vmem:[#allocation8 + $0xcd8] sm:$0xff]
    %v3262 = vld [vmem:[#allocation8 + $0xce0] sm:$0xff]
    %v3263 = vld [vmem:[#allocation8 + $0xce8] sm:$0xff]
    %v3264 = vld [vmem:[#allocation8 + $0xcf0] sm:$0xff]
    %v3265 = vld [vmem:[#allocation8 + $0xcf8] sm:$0xff]
    %v3266 = vld [vmem:[#allocation8 + $0xd00] sm:$0xff]
    %v3267 = vld [vmem:[#allocation8 + $0xd08] sm:$0xff]
    %v3268 = vld [vmem:[#allocation8 + $0xd10] sm:$0xff]
    %v3269 = vld [vmem:[#allocation8 + $0xd18] sm:$0xff]
    %v3270 = vld [vmem:[#allocation8 + $0xd20] sm:$0xff]
    %v3271 = vld [vmem:[#allocation8 + $0xd28] sm:$0xff]
    %v3272 = vld [vmem:[#allocation8 + $0xd30] sm:$0xff]
    %v3273 = vld [vmem:[#allocation8 + $0xd38] sm:$0xff]
    %v3274 = vld [vmem:[#allocation8 + $0xd40] sm:$0xff]
    %v3275 = vld [vmem:[#allocation8 + $0xd48] sm:$0xff]
    %v3276 = vld [vmem:[#allocation8 + $0xd50] sm:$0xff]
    %v3277 = vld [vmem:[#allocation8 + $0xd58] sm:$0xff]
    %v3278 = vld [vmem:[#allocation8 + $0xd60] sm:$0xff]
    %v3279 = vld [vmem:[#allocation8 + $0xd68] sm:$0xff]
    %v3280 = vld [vmem:[#allocation8 + $0xd70] sm:$0xff]
    %v3281 = vld [vmem:[#allocation8 + $0xd78] sm:$0xff]
    %v3282 = vld [vmem:[#allocation8 + $0xd80] sm:$0xff]
    %v3283 = vld [vmem:[#allocation8 + $0xd88] sm:$0xff]
    %v3284 = vld [vmem:[#allocation8 + $0xd90] sm:$0xff]
    %v3285 = vld [vmem:[#allocation8 + $0xd98] sm:$0xff]
    %v3286 = vld [vmem:[#allocation8 + $0xda0] sm:$0xff]
    %v3287 = vld [vmem:[#allocation8 + $0xda8] sm:$0xff]
    %v3288 = vld [vmem:[#allocation8 + $0xdb0] sm:$0xff]
    %v3289 = vld [vmem:[#allocation8 + $0xdb8] sm:$0xff]
    %v3290 = vld [vmem:[#allocation8 + $0xdc0] sm:$0xff]
    %v3291 = vld [vmem:[#allocation8 + $0xdc8] sm:$0xff]
    %v3292 = vld [vmem:[#allocation8 + $0xdd0] sm:$0xff]
    %v3293 = vld [vmem:[#allocation8 + $0xdd8] sm:$0xff]
    %v3294 = vld [vmem:[#allocation8 + $0xde0] sm:$0xff]
    %v3295 = vld [vmem:[#allocation8 + $0xde8] sm:$0xff]
    %v3296 = vld [vmem:[#allocation8 + $0xdf0] sm:$0xff]
    %v3297 = vld [vmem:[#allocation8 + $0xdf8] sm:$0xff]
    %v3298 = vld [vmem:[#allocation8 + $0xe00] sm:$0xff]
    %v3299 = vld [vmem:[#allocation8 + $0xe08] sm:$0xff]
    %v3300 = vld [vmem:[#allocation8 + $0xe10] sm:$0xff]
    %v3301 = vld [vmem:[#allocation8 + $0xe18] sm:$0xff]
    %v3302 = vld [vmem:[#allocation8 + $0xe20] sm:$0xff]
    %v3303 = vld [vmem:[#allocation8 + $0xe28] sm:$0xff]
    %v3304 = vld [vmem:[#allocation8 + $0xe30] sm:$0xff]
    %v3305 = vld [vmem:[#allocation8 + $0xe38] sm:$0xff]
    %v3306 = vld [vmem:[#allocation8 + $0xe40] sm:$0xff]
    %v3307 = vld [vmem:[#allocation8 + $0xe48] sm:$0xff]
    %v3308 = vld [vmem:[#allocation8 + $0xe50] sm:$0xff]
    %v3309 = vld [vmem:[#allocation8 + $0xe58] sm:$0xff]
    %v3310 = vld [vmem:[#allocation8 + $0xe60] sm:$0xff]
    %v3311 = vld [vmem:[#allocation8 + $0xe68] sm:$0xff]
    %v3312 = vld [vmem:[#allocation8 + $0xe70] sm:$0xff]
    %v3313 = vld [vmem:[#allocation8 + $0xe78] sm:$0xff]
    %v3314 = vld [vmem:[#allocation8 + $0xe80] sm:$0xff]
    %v3315 = vld [vmem:[#allocation8 + $0xe88] sm:$0xff]
    %v3316 = vld [vmem:[#allocation8 + $0xe90] sm:$0xff]
    %v3317 = vld [vmem:[#allocation8 + $0xe98] sm:$0xff]
    %v3318 = vld [vmem:[#allocation8 + $0xea0] sm:$0xff]
    %v3319 = vld [vmem:[#allocation8 + $0xea8] sm:$0xff]
    %v3320 = vld [vmem:[#allocation8 + $0xeb0] sm:$0xff]
    %v3321 = vld [vmem:[#allocation8 + $0xeb8] sm:$0xff]
    %v3322 = vld [vmem:[#allocation8 + $0xec0] sm:$0xff]
    %v3323 = vld [vmem:[#allocation8 + $0xec8] sm:$0xff]
    %v3324 = vld [vmem:[#allocation8 + $0xed0] sm:$0xff]
    %v3325 = vld [vmem:[#allocation8 + $0xed8] sm:$0xff]
    %v3326 = vld [vmem:[#allocation8 + $0xee0] sm:$0xff]
    %v3327 = vld [vmem:[#allocation8 + $0xee8] sm:$0xff]
    %v3328 = vld [vmem:[#allocation8 + $0xef0] sm:$0xff]
    %v3329 = vld [vmem:[#allocation8 + $0xef8] sm:$0xff]
    %v3330 = vld [vmem:[#allocation8 + $0xf00] sm:$0xff]
    %v3331 = vld [vmem:[#allocation8 + $0xf08] sm:$0xff]
    %v3332 = vld [vmem:[#allocation8 + $0xf10] sm:$0xff]
    %v3333 = vld [vmem:[#allocation8 + $0xf18] sm:$0xff]
    %v3334 = vld [vmem:[#allocation8 + $0xf20] sm:$0xff]
    %v3335 = vld [vmem:[#allocation8 + $0xf28] sm:$0xff]
    %v3336 = vld [vmem:[#allocation8 + $0xf30] sm:$0xff]
    %v3337 = vld [vmem:[#allocation8 + $0xf38] sm:$0xff]
    %v3338 = vld [vmem:[#allocation8 + $0xf40] sm:$0xff]
    %v3339 = vld [vmem:[#allocation8 + $0xf48] sm:$0xff]
    %v3340 = vld [vmem:[#allocation8 + $0xf50] sm:$0xff]
    %v3341 = vld [vmem:[#allocation8 + $0xf58] sm:$0xff]
    %v3342 = vld [vmem:[#allocation8 + $0xf60] sm:$0xff]
    %v3343 = vld [vmem:[#allocation8 + $0xf68] sm:$0xff]
    %v3344 = vld [vmem:[#allocation8 + $0xf70] sm:$0xff]
    %v3345 = vld [vmem:[#allocation8 + $0xf78] sm:$0xff]
    %v3346 = vld [vmem:[#allocation8 + $0xf80] sm:$0xff]
    %v3347 = vld [vmem:[#allocation8 + $0xf88] sm:$0xff]
    %v3348 = vld [vmem:[#allocation8 + $0xf90] sm:$0xff]
    %v3349 = vld [vmem:[#allocation8 + $0xf98] sm:$0xff]
    %v3350 = vld [vmem:[#allocation8 + $0xfa0] sm:$0xff]
    %v3351 = vld [vmem:[#allocation8 + $0xfa8] sm:$0xff]
    %v3352 = vld [vmem:[#allocation8 + $0xfb0] sm:$0xff]
    %v3353 = vld [vmem:[#allocation8 + $0xfb8] sm:$0xff]
    %v3354 = vld [vmem:[#allocation8 + $0xfc0] sm:$0xff]
    %v3355 = vld [vmem:[#allocation8 + $0xfc8] sm:$0xff]
    %v3356 = vld [vmem:[#allocation8 + $0xfd0] sm:$0xff]
    %v3357 = vld [vmem:[#allocation8 + $0xfd8] sm:$0xff]
    %v3358 = vld [vmem:[#allocation8 + $0xfe0] sm:$0xff]
    %v3359 = vld [vmem:[#allocation8 + $0xfe8] sm:$0xff]
    %v3360 = vld [vmem:[#allocation8 + $0xff0] sm:$0xff]
    %v3361 = vld [vmem:[#allocation8 + $0xff8] sm:$0xff]
    %v3362 = vpack.c.bf16 %v3138, %v3138
    %v3363 = vpack.c.bf16 %v3151, %v3151
    %v3364 = vpack.c.bf16 %v3218, %v3218
    %v3365 = vpack.c.bf16 %v3231, %v3231
    %s3366 = scalar_lea.vmem [#allocation5], 3
    %v3367 = vld [vmem:[%s3366] ss:$8 sm:$0xf]
    %v3369 = vperm.slane %v3367, 0
    %v3370 = vperm.slane %v3367, 1
    %v3371 = vperm.slane %v3367, 2
    %v3372 = vperm.slane %v3367, 3
    %v3505 = vunpack.c.l.b16 %v3234
    %v3506 = vunpack.c.h.b16 %v3234
    %v3507 = vunpack.c.l.b16 %v3235
    %v3508 = vunpack.c.h.b16 %v3235
    %v3509 = vunpack.c.l.b16 %v3236
    %v3510 = vunpack.c.h.b16 %v3236
    %v3511 = vunpack.c.l.b16 %v3237
    %v3512 = vunpack.c.h.b16 %v3237
    %v3513 = vunpack.c.l.b16 %v3238
    %v3514 = vunpack.c.h.b16 %v3238
    %v3515 = vunpack.c.l.b16 %v3239
    %v3516 = vunpack.c.h.b16 %v3239
    %v3517 = vunpack.c.l.b16 %v3240
    %v3518 = vunpack.c.h.b16 %v3240
    %v3519 = vunpack.c.l.b16 %v3241
    %v3520 = vunpack.c.h.b16 %v3241
    %v3521 = vunpack.c.l.b16 %v3242
    %v3522 = vunpack.c.h.b16 %v3242
    %v3523 = vunpack.c.l.b16 %v3243
    %v3524 = vunpack.c.h.b16 %v3243
    %v3525 = vunpack.c.l.b16 %v3244
    %v3526 = vunpack.c.h.b16 %v3244
    %v3527 = vunpack.c.l.b16 %v3245
    %v3528 = vunpack.c.h.b16 %v3245
    %v3529 = vunpack.c.l.b16 %v3246
    %v3530 = vunpack.c.h.b16 %v3246
    %v3531 = vunpack.c.l.b16 %v3247
    %v3532 = vunpack.c.h.b16 %v3247
    %v3533 = vunpack.c.l.b16 %v3248
    %v3534 = vunpack.c.h.b16 %v3248
    %v3535 = vunpack.c.l.b16 %v3249
    %v3536 = vunpack.c.h.b16 %v3249
    %v3537 = vunpack.c.l.b16 %v3250
    %v3538 = vunpack.c.h.b16 %v3250
    %v3539 = vunpack.c.l.b16 %v3251
    %v3540 = vunpack.c.h.b16 %v3251
    %v3541 = vunpack.c.l.b16 %v3252
    %v3542 = vunpack.c.h.b16 %v3252
    %v3543 = vunpack.c.l.b16 %v3253
    %v3544 = vunpack.c.h.b16 %v3253
    %v3545 = vunpack.c.l.b16 %v3254
    %v3546 = vunpack.c.h.b16 %v3254
    %v3547 = vunpack.c.l.b16 %v3255
    %v3548 = vunpack.c.h.b16 %v3255
    %v3549 = vunpack.c.l.b16 %v3256
    %v3550 = vunpack.c.h.b16 %v3256
    %v3551 = vunpack.c.l.b16 %v3257
    %v3552 = vunpack.c.h.b16 %v3257
    %v3553 = vunpack.c.l.b16 %v3258
    %v3554 = vunpack.c.h.b16 %v3258
    %v3555 = vunpack.c.l.b16 %v3259
    %v3556 = vunpack.c.h.b16 %v3259
    %v3557 = vunpack.c.l.b16 %v3260
    %v3558 = vunpack.c.h.b16 %v3260
    %v3559 = vunpack.c.l.b16 %v3261
    %v3560 = vunpack.c.h.b16 %v3261
    %v3561 = vunpack.c.l.b16 %v3262
    %v3562 = vunpack.c.h.b16 %v3262
    %v3563 = vunpack.c.l.b16 %v3263
    %v3564 = vunpack.c.h.b16 %v3263
    %v3565 = vunpack.c.l.b16 %v3264
    %v3566 = vunpack.c.h.b16 %v3264
    %v3567 = vunpack.c.l.b16 %v3265
    %v3568 = vunpack.c.h.b16 %v3265
    %v3569 = vunpack.c.l.b16 %v3266
    %v3570 = vunpack.c.h.b16 %v3266
    %v3571 = vunpack.c.l.b16 %v3267
    %v3572 = vunpack.c.h.b16 %v3267
    %v3573 = vunpack.c.l.b16 %v3268
    %v3574 = vunpack.c.h.b16 %v3268
    %v3575 = vunpack.c.l.b16 %v3269
    %v3576 = vunpack.c.h.b16 %v3269
    %v3577 = vunpack.c.l.b16 %v3270
    %v3578 = vunpack.c.h.b16 %v3270
    %v3579 = vunpack.c.l.b16 %v3271
    %v3580 = vunpack.c.h.b16 %v3271
    %v3581 = vunpack.c.l.b16 %v3272
    %v3582 = vunpack.c.h.b16 %v3272
    %v3583 = vunpack.c.l.b16 %v3273
    %v3584 = vunpack.c.h.b16 %v3273
    %v3585 = vunpack.c.l.b16 %v3274
    %v3586 = vunpack.c.h.b16 %v3274
    %v3587 = vunpack.c.l.b16 %v3275
    %v3588 = vunpack.c.h.b16 %v3275
    %v3589 = vunpack.c.l.b16 %v3276
    %v3590 = vunpack.c.h.b16 %v3276
    %v3591 = vunpack.c.l.b16 %v3277
    %v3592 = vunpack.c.h.b16 %v3277
    %v3593 = vunpack.c.l.b16 %v3278
    %v3594 = vunpack.c.h.b16 %v3278
    %v3595 = vunpack.c.l.b16 %v3279
    %v3596 = vunpack.c.h.b16 %v3279
    %v3597 = vunpack.c.l.b16 %v3280
    %v3598 = vunpack.c.h.b16 %v3280
    %v3599 = vunpack.c.l.b16 %v3281
    %v3600 = vunpack.c.h.b16 %v3281
    %v3601 = vunpack.c.l.b16 %v3282
    %v3602 = vunpack.c.h.b16 %v3282
    %v3603 = vunpack.c.l.b16 %v3283
    %v3604 = vunpack.c.h.b16 %v3283
    %v3605 = vunpack.c.l.b16 %v3284
    %v3606 = vunpack.c.h.b16 %v3284
    %v3607 = vunpack.c.l.b16 %v3285
    %v3608 = vunpack.c.h.b16 %v3285
    %v3609 = vunpack.c.l.b16 %v3286
    %v3610 = vunpack.c.h.b16 %v3286
    %v3611 = vunpack.c.l.b16 %v3287
    %v3612 = vunpack.c.h.b16 %v3287
    %v3613 = vunpack.c.l.b16 %v3288
    %v3614 = vunpack.c.h.b16 %v3288
    %v3615 = vunpack.c.l.b16 %v3289
    %v3616 = vunpack.c.h.b16 %v3289
    %v3617 = vunpack.c.l.b16 %v3290
    %v3618 = vunpack.c.h.b16 %v3290
    %v3619 = vunpack.c.l.b16 %v3291
    %v3620 = vunpack.c.h.b16 %v3291
    %v3621 = vunpack.c.l.b16 %v3292
    %v3622 = vunpack.c.h.b16 %v3292
    %v3623 = vunpack.c.l.b16 %v3293
    %v3624 = vunpack.c.h.b16 %v3293
    %v3625 = vunpack.c.l.b16 %v3294
    %v3626 = vunpack.c.h.b16 %v3294
    %v3627 = vunpack.c.l.b16 %v3295
    %v3628 = vunpack.c.h.b16 %v3295
    %v3629 = vunpack.c.l.b16 %v3296
    %v3630 = vunpack.c.h.b16 %v3296
    %v3631 = vunpack.c.l.b16 %v3297
    %v3632 = vunpack.c.h.b16 %v3297
    %v3633 = vunpack.c.l.b16 %v3298
    %v3634 = vunpack.c.h.b16 %v3298
    %v3635 = vunpack.c.l.b16 %v3299
    %v3636 = vunpack.c.h.b16 %v3299
    %v3637 = vunpack.c.l.b16 %v3300
    %v3638 = vunpack.c.h.b16 %v3300
    %v3639 = vunpack.c.l.b16 %v3301
    %v3640 = vunpack.c.h.b16 %v3301
    %v3641 = vunpack.c.l.b16 %v3302
    %v3642 = vunpack.c.h.b16 %v3302
    %v3643 = vunpack.c.l.b16 %v3303
    %v3644 = vunpack.c.h.b16 %v3303
    %v3645 = vunpack.c.l.b16 %v3304
    %v3646 = vunpack.c.h.b16 %v3304
    %v3647 = vunpack.c.l.b16 %v3305
    %v3648 = vunpack.c.h.b16 %v3305
    %v3649 = vunpack.c.l.b16 %v3306
    %v3650 = vunpack.c.h.b16 %v3306
    %v3651 = vunpack.c.l.b16 %v3307
    %v3652 = vunpack.c.h.b16 %v3307
    %v3653 = vunpack.c.l.b16 %v3308
    %v3654 = vunpack.c.h.b16 %v3308
    %v3655 = vunpack.c.l.b16 %v3309
    %v3656 = vunpack.c.h.b16 %v3309
    %v3657 = vunpack.c.l.b16 %v3310
    %v3658 = vunpack.c.h.b16 %v3310
    %v3659 = vunpack.c.l.b16 %v3311
    %v3660 = vunpack.c.h.b16 %v3311
    %v3661 = vunpack.c.l.b16 %v3312
    %v3662 = vunpack.c.h.b16 %v3312
    %v3663 = vunpack.c.l.b16 %v3313
    %v3664 = vunpack.c.h.b16 %v3313
    %v3665 = vunpack.c.l.b16 %v3314
    %v3666 = vunpack.c.h.b16 %v3314
    %v3667 = vunpack.c.l.b16 %v3315
    %v3668 = vunpack.c.h.b16 %v3315
    %v3669 = vunpack.c.l.b16 %v3316
    %v3670 = vunpack.c.h.b16 %v3316
    %v3671 = vunpack.c.l.b16 %v3317
    %v3672 = vunpack.c.h.b16 %v3317
    %v3673 = vunpack.c.l.b16 %v3318
    %v3674 = vunpack.c.h.b16 %v3318
    %v3675 = vunpack.c.l.b16 %v3319
    %v3676 = vunpack.c.h.b16 %v3319
    %v3677 = vunpack.c.l.b16 %v3320
    %v3678 = vunpack.c.h.b16 %v3320
    %v3679 = vunpack.c.l.b16 %v3321
    %v3680 = vunpack.c.h.b16 %v3321
    %v3681 = vunpack.c.l.b16 %v3322
    %v3682 = vunpack.c.h.b16 %v3322
    %v3683 = vunpack.c.l.b16 %v3323
    %v3684 = vunpack.c.h.b16 %v3323
    %v3685 = vunpack.c.l.b16 %v3324
    %v3686 = vunpack.c.h.b16 %v3324
    %v3687 = vunpack.c.l.b16 %v3325
    %v3688 = vunpack.c.h.b16 %v3325
    %v3689 = vunpack.c.l.b16 %v3326
    %v3690 = vunpack.c.h.b16 %v3326
    %v3691 = vunpack.c.l.b16 %v3327
    %v3692 = vunpack.c.h.b16 %v3327
    %v3693 = vunpack.c.l.b16 %v3328
    %v3694 = vunpack.c.h.b16 %v3328
    %v3695 = vunpack.c.l.b16 %v3329
    %v3696 = vunpack.c.h.b16 %v3329
    %v3697 = vunpack.c.l.b16 %v3330
    %v3698 = vunpack.c.h.b16 %v3330
    %v3699 = vunpack.c.l.b16 %v3331
    %v3700 = vunpack.c.h.b16 %v3331
    %v3701 = vunpack.c.l.b16 %v3332
    %v3702 = vunpack.c.h.b16 %v3332
    %v3703 = vunpack.c.l.b16 %v3333
    %v3704 = vunpack.c.h.b16 %v3333
    %v3705 = vunpack.c.l.b16 %v3334
    %v3706 = vunpack.c.h.b16 %v3334
    %v3707 = vunpack.c.l.b16 %v3335
    %v3708 = vunpack.c.h.b16 %v3335
    %v3709 = vunpack.c.l.b16 %v3336
    %v3710 = vunpack.c.h.b16 %v3336
    %v3711 = vunpack.c.l.b16 %v3337
    %v3712 = vunpack.c.h.b16 %v3337
    %v3713 = vunpack.c.l.b16 %v3338
    %v3714 = vunpack.c.h.b16 %v3338
    %v3715 = vunpack.c.l.b16 %v3339
    %v3716 = vunpack.c.h.b16 %v3339
    %v3717 = vunpack.c.l.b16 %v3340
    %v3718 = vunpack.c.h.b16 %v3340
    %v3719 = vunpack.c.l.b16 %v3341
    %v3720 = vunpack.c.h.b16 %v3341
    %v3721 = vunpack.c.l.b16 %v3342
    %v3722 = vunpack.c.h.b16 %v3342
    %v3723 = vunpack.c.l.b16 %v3343
    %v3724 = vunpack.c.h.b16 %v3343
    %v3725 = vunpack.c.l.b16 %v3344
    %v3726 = vunpack.c.h.b16 %v3344
    %v3727 = vunpack.c.l.b16 %v3345
    %v3728 = vunpack.c.h.b16 %v3345
    %v3729 = vunpack.c.l.b16 %v3346
    %v3730 = vunpack.c.h.b16 %v3346
    %v3731 = vunpack.c.l.b16 %v3347
    %v3732 = vunpack.c.h.b16 %v3347
    %v3733 = vunpack.c.l.b16 %v3348
    %v3734 = vunpack.c.h.b16 %v3348
    %v3735 = vunpack.c.l.b16 %v3349
    %v3736 = vunpack.c.h.b16 %v3349
    %v3737 = vunpack.c.l.b16 %v3350
    %v3738 = vunpack.c.h.b16 %v3350
    %v3739 = vunpack.c.l.b16 %v3351
    %v3740 = vunpack.c.h.b16 %v3351
    %v3741 = vunpack.c.l.b16 %v3352
    %v3742 = vunpack.c.h.b16 %v3352
    %v3743 = vunpack.c.l.b16 %v3353
    %v3744 = vunpack.c.h.b16 %v3353
    %v3745 = vunpack.c.l.b16 %v3354
    %v3746 = vunpack.c.h.b16 %v3354
    %v3747 = vunpack.c.l.b16 %v3355
    %v3748 = vunpack.c.h.b16 %v3355
    %v3749 = vunpack.c.l.b16 %v3356
    %v3750 = vunpack.c.h.b16 %v3356
    %v3751 = vunpack.c.l.b16 %v3357
    %v3752 = vunpack.c.h.b16 %v3357
    %v3753 = vunpack.c.l.b16 %v3358
    %v3754 = vunpack.c.h.b16 %v3358
    %v3755 = vunpack.c.l.b16 %v3359
    %v3756 = vunpack.c.h.b16 %v3359
    %v3757 = vunpack.c.l.b16 %v3360
    %v3758 = vunpack.c.h.b16 %v3360
    %v3759 = vunpack.c.l.b16 %v3361
    %v3760 = vunpack.c.h.b16 %v3361
    %v3761 = vpack.c.b16 %v3509, %v3505
    %v3762 = vpack.c.b16 %v3510, %v3506
    %v3763 = vpack.c.b16 %v3511, %v3507
    %v3764 = vpack.c.b16 %v3512, %v3508
    %v3765 = vpack.c.b16 %v3517, %v3513
    %v3766 = vpack.c.b16 %v3518, %v3514
    %v3767 = vpack.c.b16 %v3519, %v3515
    %v3768 = vpack.c.b16 %v3520, %v3516
    %v3769 = vpack.c.b16 %v3525, %v3521
    %v3770 = vpack.c.b16 %v3526, %v3522
    %v3771 = vpack.c.b16 %v3527, %v3523
    %v3772 = vpack.c.b16 %v3528, %v3524
    %v3773 = vpack.c.b16 %v3533, %v3529
    %v3774 = vpack.c.b16 %v3534, %v3530
    %v3775 = vpack.c.b16 %v3535, %v3531
    %v3776 = vpack.c.b16 %v3536, %v3532
    %v3777 = vpack.c.b16 %v3541, %v3537
    %v3778 = vpack.c.b16 %v3542, %v3538
    %v3779 = vpack.c.b16 %v3543, %v3539
    %v3780 = vpack.c.b16 %v3544, %v3540
    %v3781 = vpack.c.b16 %v3549, %v3545
    %v3782 = vpack.c.b16 %v3550, %v3546
    %v3783 = vpack.c.b16 %v3551, %v3547
    %v3784 = vpack.c.b16 %v3552, %v3548
    %v3785 = vpack.c.b16 %v3557, %v3553
    %v3786 = vpack.c.b16 %v3558, %v3554
    %v3787 = vpack.c.b16 %v3559, %v3555
    %v3788 = vpack.c.b16 %v3560, %v3556
    %v3789 = vpack.c.b16 %v3565, %v3561
    %v3790 = vpack.c.b16 %v3566, %v3562
    %v3791 = vpack.c.b16 %v3567, %v3563
    %v3792 = vpack.c.b16 %v3568, %v3564
    %v3793 = vpack.c.b16 %v3573, %v3569
    %v3794 = vpack.c.b16 %v3574, %v3570
    %v3795 = vpack.c.b16 %v3575, %v3571
    %v3796 = vpack.c.b16 %v3576, %v3572
    %v3797 = vpack.c.b16 %v3581, %v3577
    %v3798 = vpack.c.b16 %v3582, %v3578
    %v3799 = vpack.c.b16 %v3583, %v3579
    %v3800 = vpack.c.b16 %v3584, %v3580
    %v3801 = vpack.c.b16 %v3589, %v3585
    %v3802 = vpack.c.b16 %v3590, %v3586
    %v3803 = vpack.c.b16 %v3591, %v3587
    %v3804 = vpack.c.b16 %v3592, %v3588
    %v3805 = vpack.c.b16 %v3597, %v3593
    %v3806 = vpack.c.b16 %v3598, %v3594
    %v3807 = vpack.c.b16 %v3599, %v3595
    %v3808 = vpack.c.b16 %v3600, %v3596
    %v3809 = vpack.c.b16 %v3605, %v3601
    %v3810 = vpack.c.b16 %v3606, %v3602
    %v3811 = vpack.c.b16 %v3607, %v3603
    %v3812 = vpack.c.b16 %v3608, %v3604
    %v3813 = vpack.c.b16 %v3613, %v3609
    %v3814 = vpack.c.b16 %v3614, %v3610
    %v3815 = vpack.c.b16 %v3615, %v3611
    %v3816 = vpack.c.b16 %v3616, %v3612
    %v3817 = vpack.c.b16 %v3621, %v3617
    %v3818 = vpack.c.b16 %v3622, %v3618
    %v3819 = vpack.c.b16 %v3623, %v3619
    %v3820 = vpack.c.b16 %v3624, %v3620
    %v3821 = vpack.c.b16 %v3629, %v3625
    %v3822 = vpack.c.b16 %v3630, %v3626
    %v3823 = vpack.c.b16 %v3631, %v3627
    %v3824 = vpack.c.b16 %v3632, %v3628
    %v3825 = vpack.c.b16 %v3637, %v3633
    %v3826 = vpack.c.b16 %v3638, %v3634
    %v3827 = vpack.c.b16 %v3639, %v3635
    %v3828 = vpack.c.b16 %v3640, %v3636
    %v3829 = vpack.c.b16 %v3645, %v3641
    %v3830 = vpack.c.b16 %v3646, %v3642
    %v3831 = vpack.c.b16 %v3647, %v3643
    %v3832 = vpack.c.b16 %v3648, %v3644
    %v3833 = vpack.c.b16 %v3653, %v3649
    %v3834 = vpack.c.b16 %v3654, %v3650
    %v3835 = vpack.c.b16 %v3655, %v3651
    %v3836 = vpack.c.b16 %v3656, %v3652
    %v3837 = vpack.c.b16 %v3661, %v3657
    %v3838 = vpack.c.b16 %v3662, %v3658
    %v3839 = vpack.c.b16 %v3663, %v3659
    %v3840 = vpack.c.b16 %v3664, %v3660
    %v3841 = vpack.c.b16 %v3669, %v3665
    %v3842 = vpack.c.b16 %v3670, %v3666
    %v3843 = vpack.c.b16 %v3671, %v3667
    %v3844 = vpack.c.b16 %v3672, %v3668
    %v3845 = vpack.c.b16 %v3677, %v3673
    %v3846 = vpack.c.b16 %v3678, %v3674
    %v3847 = vpack.c.b16 %v3679, %v3675
    %v3848 = vpack.c.b16 %v3680, %v3676
    %v3849 = vpack.c.b16 %v3685, %v3681
    %v3850 = vpack.c.b16 %v3686, %v3682
    %v3851 = vpack.c.b16 %v3687, %v3683
    %v3852 = vpack.c.b16 %v3688, %v3684
    %v3853 = vpack.c.b16 %v3693, %v3689
    %v3854 = vpack.c.b16 %v3694, %v3690
    %v3855 = vpack.c.b16 %v3695, %v3691
    %v3856 = vpack.c.b16 %v3696, %v3692
    %v3857 = vpack.c.b16 %v3701, %v3697
    %v3858 = vpack.c.b16 %v3702, %v3698
    %v3859 = vpack.c.b16 %v3703, %v3699
    %v3860 = vpack.c.b16 %v3704, %v3700
    %v3861 = vpack.c.b16 %v3709, %v3705
    %v3862 = vpack.c.b16 %v3710, %v3706
    %v3863 = vpack.c.b16 %v3711, %v3707
    %v3864 = vpack.c.b16 %v3712, %v3708
    %v3865 = vpack.c.b16 %v3717, %v3713
    %v3866 = vpack.c.b16 %v3718, %v3714
    %v3867 = vpack.c.b16 %v3719, %v3715
    %v3868 = vpack.c.b16 %v3720, %v3716
    %v3869 = vpack.c.b16 %v3725, %v3721
    %v3870 = vpack.c.b16 %v3726, %v3722
    %v3871 = vpack.c.b16 %v3727, %v3723
    %v3872 = vpack.c.b16 %v3728, %v3724
    %v3873 = vpack.c.b16 %v3733, %v3729
    %v3874 = vpack.c.b16 %v3734, %v3730
    %v3875 = vpack.c.b16 %v3735, %v3731
    %v3876 = vpack.c.b16 %v3736, %v3732
    %v3877 = vpack.c.b16 %v3741, %v3737
    %v3878 = vpack.c.b16 %v3742, %v3738
    %v3879 = vpack.c.b16 %v3743, %v3739
    %v3880 = vpack.c.b16 %v3744, %v3740
    %v3881 = vpack.c.b16 %v3749, %v3745
    %v3882 = vpack.c.b16 %v3750, %v3746
    %v3883 = vpack.c.b16 %v3751, %v3747
    %v3884 = vpack.c.b16 %v3752, %v3748
    %v3885 = vpack.c.b16 %v3757, %v3753
    %v3886 = vpack.c.b16 %v3758, %v3754
    %v3887 = vpack.c.b16 %v3759, %v3755
    %v3888 = vpack.c.b16 %v3760, %v3756
    %4017 = vmatpush.bf16.msra.mxu0 %v3789
    %4018 = vmatpush.bf16.msra.mxu0 %v3785
    %4019 = vmatpush.bf16.msra.mxu0 %v3781
    %4020 = vmatpush.bf16.msra.mxu0 %v3777
    %4021 = vmatpush.bf16.msra.mxu0 %v3773
    %4022 = vmatpush.bf16.msra.mxu0 %v3769
    %4023 = vmatpush.bf16.msra.mxu0 %v3765
    %4024 = vmatpush.bf16.msra.mxu0 %v3761
    %4025 = vmatmul.bf16.gmra.mxu0 %v3362
    %v4026 = vpop.f32.mrf.mxu0
    %v4027 = vadd.f32 %v3369, %v4026
    %v4028 = vpop.f32.mrf.mxu0
    %4029 = vdwg.mxu0
    %4030 = vmatpush.bf16.msra.mxu0 %v3821
    %4031 = vmatpush.bf16.msra.mxu0 %v3817
    %4032 = vmatpush.bf16.msra.mxu0 %v3813
    %4033 = vmatpush.bf16.msra.mxu0 %v3809
    %4034 = vmatpush.bf16.msra.mxu0 %v3805
    %4035 = vmatpush.bf16.msra.mxu0 %v3801
    %4036 = vmatpush.bf16.msra.mxu0 %v3797
    %4037 = vmatpush.bf16.msra.mxu0 %v3793
    %4038 = vmatmul.bf16.gmra.mxu0 %v3363
    %v4039 = vpop.f32.mrf.mxu0
    %v4040 = vadd.f32 %v4027, %v4039
    %v4041 = vpop.f32.mrf.mxu0
    %4042 = vdwg.mxu0
    %4043 = vmatpush.bf16.msra.mxu0 %v3853
    %4044 = vmatpush.bf16.msra.mxu0 %v3849
    %4045 = vmatpush.bf16.msra.mxu0 %v3845
    %4046 = vmatpush.bf16.msra.mxu0 %v3841
    %4047 = vmatpush.bf16.msra.mxu0 %v3837
    %4048 = vmatpush.bf16.msra.mxu0 %v3833
    %4049 = vmatpush.bf16.msra.mxu0 %v3829
    %4050 = vmatpush.bf16.msra.mxu0 %v3825
    %4051 = vmatmul.bf16.gmra.mxu0 %v3364
    %v4052 = vpop.f32.mrf.mxu0
    %v4053 = vadd.f32 %v4040, %v4052
    %v4054 = vpop.f32.mrf.mxu0
    %4055 = vdwg.mxu0
    %4056 = vmatpush.bf16.msra.mxu0 %v3885
    %4057 = vmatpush.bf16.msra.mxu0 %v3881
    %4058 = vmatpush.bf16.msra.mxu0 %v3877
    %4059 = vmatpush.bf16.msra.mxu0 %v3873
    %4060 = vmatpush.bf16.msra.mxu0 %v3869
    %4061 = vmatpush.bf16.msra.mxu0 %v3865
    %4062 = vmatpush.bf16.msra.mxu0 %v3861
    %4063 = vmatpush.bf16.msra.mxu0 %v3857
    %4064 = vmatmul.bf16.gmra.mxu0 %v3365
    %v4065 = vpop.f32.mrf.mxu0
    %v4066 = vadd.f32 %v4053, %v4065
    %v4067 = vpop.f32.mrf.mxu0
    %4068 = vdwg.mxu0
    %4069 = vmatpush.bf16.msra.mxu0 %v3790
    %4070 = vmatpush.bf16.msra.mxu0 %v3786
    %4071 = vmatpush.bf16.msra.mxu0 %v3782
    %4072 = vmatpush.bf16.msra.mxu0 %v3778
    %4073 = vmatpush.bf16.msra.mxu0 %v3774
    %4074 = vmatpush.bf16.msra.mxu0 %v3770
    %4075 = vmatpush.bf16.msra.mxu0 %v3766
    %4076 = vmatpush.bf16.msra.mxu0 %v3762
    %4077 = vmatmul.bf16.gmra.mxu0 %v3362
    %v4078 = vpop.f32.mrf.mxu0
    %v4079 = vadd.f32 %v3370, %v4078
    %v4080 = vpop.f32.mrf.mxu0
    %4081 = vdwg.mxu0
    %4082 = vmatpush.bf16.msra.mxu0 %v3822
    %4083 = vmatpush.bf16.msra.mxu0 %v3818
    %4084 = vmatpush.bf16.msra.mxu0 %v3814
    %4085 = vmatpush.bf16.msra.mxu0 %v3810
    %4086 = vmatpush.bf16.msra.mxu0 %v3806
    %4087 = vmatpush.bf16.msra.mxu0 %v3802
    %4088 = vmatpush.bf16.msra.mxu0 %v3798
    %4089 = vmatpush.bf16.msra.mxu0 %v3794
    %4090 = vmatmul.bf16.gmra.mxu0 %v3363
    %v4091 = vpop.f32.mrf.mxu0
    %v4092 = vadd.f32 %v4079, %v4091
    %v4093 = vpop.f32.mrf.mxu0
    %4094 = vdwg.mxu0
    %4095 = vmatpush.bf16.msra.mxu0 %v3854
    %4096 = vmatpush.bf16.msra.mxu0 %v3850
    %4097 = vmatpush.bf16.msra.mxu0 %v3846
    %4098 = vmatpush.bf16.msra.mxu0 %v3842
    %4099 = vmatpush.bf16.msra.mxu0 %v3838
    %4100 = vmatpush.bf16.msra.mxu0 %v3834
    %4101 = vmatpush.bf16.msra.mxu0 %v3830
    %4102 = vmatpush.bf16.msra.mxu0 %v3826
    %4103 = vmatmul.bf16.gmra.mxu0 %v3364
    %v4104 = vpop.f32.mrf.mxu0
    %v4105 = vadd.f32 %v4092, %v4104
    %v4106 = vpop.f32.mrf.mxu0
    %4107 = vdwg.mxu0
    %4108 = vmatpush.bf16.msra.mxu0 %v3886
    %4109 = vmatpush.bf16.msra.mxu0 %v3882
    %4110 = vmatpush.bf16.msra.mxu0 %v3878
    %4111 = vmatpush.bf16.msra.mxu0 %v3874
    %4112 = vmatpush.bf16.msra.mxu0 %v3870
    %4113 = vmatpush.bf16.msra.mxu0 %v3866
    %4114 = vmatpush.bf16.msra.mxu0 %v3862
    %4115 = vmatpush.bf16.msra.mxu0 %v3858
    %4116 = vmatmul.bf16.gmra.mxu0 %v3365
    %v4117 = vpop.f32.mrf.mxu0
    %v4118 = vadd.f32 %v4105, %v4117
    %v4119 = vpop.f32.mrf.mxu0
    %4120 = vdwg.mxu0
    %4121 = vmatpush.bf16.msra.mxu0 %v3791
    %4122 = vmatpush.bf16.msra.mxu0 %v3787
    %4123 = vmatpush.bf16.msra.mxu0 %v3783
    %4124 = vmatpush.bf16.msra.mxu0 %v3779
    %4125 = vmatpush.bf16.msra.mxu0 %v3775
    %4126 = vmatpush.bf16.msra.mxu0 %v3771
    %4127 = vmatpush.bf16.msra.mxu0 %v3767
    %4128 = vmatpush.bf16.msra.mxu0 %v3763
    %4129 = vmatmul.bf16.gmra.mxu0 %v3362
    %v4130 = vpop.f32.mrf.mxu0
    %v4131 = vadd.f32 %v3371, %v4130
    %v4132 = vpop.f32.mrf.mxu0
    %4133 = vdwg.mxu0
    %4134 = vmatpush.bf16.msra.mxu0 %v3823
    %4135 = vmatpush.bf16.msra.mxu0 %v3819
    %4136 = vmatpush.bf16.msra.mxu0 %v3815
    %4137 = vmatpush.bf16.msra.mxu0 %v3811
    %4138 = vmatpush.bf16.msra.mxu0 %v3807
    %4139 = vmatpush.bf16.msra.mxu0 %v3803
    %4140 = vmatpush.bf16.msra.mxu0 %v3799
    %4141 = vmatpush.bf16.msra.mxu0 %v3795
    %4142 = vmatmul.bf16.gmra.mxu0 %v3363
    %v4143 = vpop.f32.mrf.mxu0
    %v4144 = vadd.f32 %v4131, %v4143
    %v4145 = vpop.f32.mrf.mxu0
    %4146 = vdwg.mxu0
    %4147 = vmatpush.bf16.msra.mxu0 %v3855
    %4148 = vmatpush.bf16.msra.mxu0 %v3851
    %4149 = vmatpush.bf16.msra.mxu0 %v3847
    %4150 = vmatpush.bf16.msra.mxu0 %v3843
    %4151 = vmatpush.bf16.msra.mxu0 %v3839
    %4152 = vmatpush.bf16.msra.mxu0 %v3835
    %4153 = vmatpush.bf16.msra.mxu0 %v3831
    %4154 = vmatpush.bf16.msra.mxu0 %v3827
    %4155 = vmatmul.bf16.gmra.mxu0 %v3364
    %v4156 = vpop.f32.mrf.mxu0
    %v4157 = vadd.f32 %v4144, %v4156
    %v4158 = vpop.f32.mrf.mxu0
    %4159 = vdwg.mxu0
    %4160 = vmatpush.bf16.msra.mxu0 %v3887
    %4161 = vmatpush.bf16.msra.mxu0 %v3883
    %4162 = vmatpush.bf16.msra.mxu0 %v3879
    %4163 = vmatpush.bf16.msra.mxu0 %v3875
    %4164 = vmatpush.bf16.msra.mxu0 %v3871
    %4165 = vmatpush.bf16.msra.mxu0 %v3867
    %4166 = vmatpush.bf16.msra.mxu0 %v3863
    %4167 = vmatpush.bf16.msra.mxu0 %v3859
    %4168 = vmatmul.bf16.gmra.mxu0 %v3365
    %v4169 = vpop.f32.mrf.mxu0
    %v4170 = vadd.f32 %v4157, %v4169
    %v4171 = vpop.f32.mrf.mxu0
    %4172 = vdwg.mxu0
    %4173 = vmatpush.bf16.msra.mxu0 %v3792
    %4174 = vmatpush.bf16.msra.mxu0 %v3788
    %4175 = vmatpush.bf16.msra.mxu0 %v3784
    %4176 = vmatpush.bf16.msra.mxu0 %v3780
    %4177 = vmatpush.bf16.msra.mxu0 %v3776
    %4178 = vmatpush.bf16.msra.mxu0 %v3772
    %4179 = vmatpush.bf16.msra.mxu0 %v3768
    %4180 = vmatpush.bf16.msra.mxu0 %v3764
    %4181 = vmatmul.bf16.gmra.mxu0 %v3362
    %v4182 = vpop.f32.mrf.mxu0
    %v4183 = vadd.f32 %v3372, %v4182
    %v4184 = vpop.f32.mrf.mxu0
    %4185 = vdwg.mxu0
    %4186 = vmatpush.bf16.msra.mxu0 %v3824
    %4187 = vmatpush.bf16.msra.mxu0 %v3820
    %4188 = vmatpush.bf16.msra.mxu0 %v3816
    %4189 = vmatpush.bf16.msra.mxu0 %v3812
    %4190 = vmatpush.bf16.msra.mxu0 %v3808
    %4191 = vmatpush.bf16.msra.mxu0 %v3804
    %4192 = vmatpush.bf16.msra.mxu0 %v3800
    %4193 = vmatpush.bf16.msra.mxu0 %v3796
    %4194 = vmatmul.bf16.gmra.mxu0 %v3363
    %v4195 = vpop.f32.mrf.mxu0
    %v4196 = vadd.f32 %v4183, %v4195
    %v4197 = vpop.f32.mrf.mxu0
    %4198 = vdwg.mxu0
    %4199 = vmatpush.bf16.msra.mxu0 %v3856
    %4200 = vmatpush.bf16.msra.mxu0 %v3852
    %4201 = vmatpush.bf16.msra.mxu0 %v3848
    %4202 = vmatpush.bf16.msra.mxu0 %v3844
    %4203 = vmatpush.bf16.msra.mxu0 %v3840
    %4204 = vmatpush.bf16.msra.mxu0 %v3836
    %4205 = vmatpush.bf16.msra.mxu0 %v3832
    %4206 = vmatpush.bf16.msra.mxu0 %v3828
    %4207 = vmatmul.bf16.gmra.mxu0 %v3364
    %v4208 = vpop.f32.mrf.mxu0
    %v4209 = vadd.f32 %v4196, %v4208
    %v4210 = vpop.f32.mrf.mxu0
    %4211 = vdwg.mxu0
    %4212 = vmatpush.bf16.msra.mxu0 %v3888
    %4213 = vmatpush.bf16.msra.mxu0 %v3884
    %4214 = vmatpush.bf16.msra.mxu0 %v3880
    %4215 = vmatpush.bf16.msra.mxu0 %v3876
    %4216 = vmatpush.bf16.msra.mxu0 %v3872
    %4217 = vmatpush.bf16.msra.mxu0 %v3868
    %4218 = vmatpush.bf16.msra.mxu0 %v3864
    %4219 = vmatpush.bf16.msra.mxu0 %v3860
    %4220 = vmatmul.bf16.gmra.mxu0 %v3365
    %v4221 = vpop.f32.mrf.mxu0
    %v4222 = vadd.f32 %v4209, %v4221
    %v4223 = vpop.f32.mrf.mxu0
    %4224 = vdwg.mxu0
    %v4225 = vadd.f32 %v104, %v4066
    %v4226 = vadd.f32 %v105, %v4118
    %v4227 = vadd.f32 %v106, %v4170
    %v4228 = vadd.f32 %v107, %v4222
    %v4229 = vadd.f32 %v4225, %v4226
    %v4230 = vadd.f32 %v4229, %v4227
    %v4231 = vadd.f32 %v4230, %v4228
    %4232 = vadd.xlane.f32.xlu0 %v4231
    %v4233 = vpop.xlane.xlu0 %4232
    %v4234 = vmul.f32 %v4233, 0.0023041475
    %v4235 = vsub.f32 %v4225, %v4234
    %v4236 = vsub.f32 %v4226, %v4234
    %v4237 = vsub.f32 %v4227, %v4234
    %v4238 = vsub.f32 %v4228, %v4234
    %v4239 = vsel %vm100, 1, 0
    %v4240 = vsel %vm101, 1, 0
    %v4241 = vsel %vm102, 1, 0
    %v4242 = vsel %vm103, 1, 0
    %vm4243 = vcmp.eq.s32.totalorder %v4239, 1
    %vm4244 = vcmp.eq.s32.totalorder %v4240, 1
    %vm4245 = vcmp.eq.s32.totalorder %v4241, 1
    %vm4246 = vcmp.eq.s32.totalorder %v4242, 1
    %v4247 = vsel %vm4243, %v4235, 0.0
    %v4248 = vsel %vm4244, %v4236, 0.0
    %v4249 = vsel %vm4245, %v4237, 0.0
    %v4250 = vsel %vm4246, %v4238, 0.0
    %v4251 = vmul.f32 %v4247, %v4247
    %v4252 = vmul.f32 %v4248, %v4248
    %v4253 = vmul.f32 %v4249, %v4249
    %v4254 = vmul.f32 %v4250, %v4250
    %v4255 = vadd.f32 %v4251, %v4252
    %v4256 = vadd.f32 %v4255, %v4253
    %v4257 = vadd.f32 %v4256, %v4254
    %4258 = vadd.xlane.f32.xlu0 %v4257
    %v4259 = vpop.xlane.xlu0 %4258
    %v4260 = vmul.f32 %v4259, 0.0023041475
    %v4261 = vadd.f32 %v4260, 1e-05
    %v4262 = vrsqrt.pop %v4261
    %v4263 = vmul.f32 %v4262, %v4261
    %v4264 = vmul.f32 %v4263, %v4262
    %v4265 = vmul.f32 0.5, %v4264
    %v4266 = vsub.f32 1.5, %v4265
    %v4267 = vmul.f32 %v4262, %v4266
    %vm4268 = vweird.f32 %v4261
    %vm4269 = vweird.f32 %v4262
    %vm4270 = vmor %vm4268, %vm4269
    %v4271 = vsel %vm4270, %v4262, %v4267
    %v4272 = vmul.f32 %v4235, %v4271
    %v4273 = vmul.f32 %v4236, %v4271
    %v4274 = vmul.f32 %v4237, %v4271
    %v4275 = vmul.f32 %v4238, %v4271
    %s4276 = scalar_lea.vmem [#allocation5], 4
    %v4277 = vld [vmem:[%s4276] ss:$8 sm:$0xf]
    %v4279 = vperm.slane %v4277, 0
    %v4280 = vperm.slane %v4277, 1
    %v4281 = vperm.slane %v4277, 2
    %v4282 = vperm.slane %v4277, 3
    %v4287 = vmul.f32 %v4272, %v4279
    %v4288 = vmul.f32 %v4273, %v4280
    %v4289 = vmul.f32 %v4274, %v4281
    %v4290 = vmul.f32 %v4275, %v4282
    %s4291 = scalar_lea.vmem [#allocation5], 5
    %v4292 = vld [vmem:[%s4291] ss:$8 sm:$0xf]
    %v4294 = vperm.slane %v4292, 0
    %v4295 = vperm.slane %v4292, 1
    %v4296 = vperm.slane %v4292, 2
    %v4297 = vperm.slane %v4292, 3
    %v4302 = vadd.f32 %v4287, %v4294
    %v4303 = vadd.f32 %v4288, %v4295
    %v4304 = vadd.f32 %v4289, %v4296
    %v4305 = vadd.f32 %v4290, %v4297
    %v4306 = vld [vmem:[#allocation10] sm:$0xf]
    %v4307 = vld [vmem:[#allocation10 + $0x4] sm:$0xf]
    %v4308 = vld [vmem:[#allocation10 + $0x8] sm:$0xf]
    %v4309 = vld [vmem:[#allocation10 + $0xc] sm:$0xf]
    %v4310 = vld [vmem:[#allocation10 + $0x10] sm:$0xf]
    %v4311 = vld [vmem:[#allocation10 + $0x14] sm:$0xf]
    %v4312 = vld [vmem:[#allocation10 + $0x18] sm:$0xf]
    %v4313 = vld [vmem:[#allocation10 + $0x1c] sm:$0xf]
    %v4314 = vld [vmem:[#allocation10 + $0x20] sm:$0xf]
    %v4315 = vld [vmem:[#allocation10 + $0x24] sm:$0xf]
    %v4316 = vld [vmem:[#allocation10 + $0x28] sm:$0xf]
    %v4317 = vld [vmem:[#allocation10 + $0x2c] sm:$0xf]
    %v4318 = vld [vmem:[#allocation10 + $0x30] sm:$0xf]
    %v4319 = vld [vmem:[#allocation10 + $0x34] sm:$0xf]
    %v4320 = vld [vmem:[#allocation10 + $0x38] sm:$0xf]
    %v4321 = vld [vmem:[#allocation10 + $0x3c] sm:$0xf]
    %v4322 = vld [vmem:[#allocation10 + $0x40] sm:$0xf]
    %v4323 = vld [vmem:[#allocation10 + $0x44] sm:$0xf]
    %v4324 = vld [vmem:[#allocation10 + $0x48] sm:$0xf]
    %v4325 = vld [vmem:[#allocation10 + $0x4c] sm:$0xf]
    %v4326 = vld [vmem:[#allocation10 + $0x50] sm:$0xf]
    %v4327 = vld [vmem:[#allocation10 + $0x54] sm:$0xf]
    %v4328 = vld [vmem:[#allocation10 + $0x58] sm:$0xf]
    %v4329 = vld [vmem:[#allocation10 + $0x5c] sm:$0xf]
    %v4330 = vld [vmem:[#allocation10 + $0x60] sm:$0xf]
    %v4331 = vld [vmem:[#allocation10 + $0x64] sm:$0xf]
    %v4332 = vld [vmem:[#allocation10 + $0x68] sm:$0xf]
    %v4333 = vld [vmem:[#allocation10 + $0x6c] sm:$0xf]
    %v4334 = vld [vmem:[#allocation10 + $0x70] sm:$0xf]
    %v4335 = vld [vmem:[#allocation10 + $0x74] sm:$0xf]
    %v4336 = vld [vmem:[#allocation10 + $0x78] sm:$0xf]
    %v4337 = vld [vmem:[#allocation10 + $0x7c] sm:$0xf]
    %v4338 = vld [vmem:[#allocation10 + $0x80] sm:$0xf]
    %v4339 = vld [vmem:[#allocation10 + $0x84] sm:$0xf]
    %v4340 = vld [vmem:[#allocation10 + $0x88] sm:$0xf]
    %v4341 = vld [vmem:[#allocation10 + $0x8c] sm:$0xf]
    %v4342 = vld [vmem:[#allocation10 + $0x90] sm:$0xf]
    %v4343 = vld [vmem:[#allocation10 + $0x94] sm:$0xf]
    %v4344 = vld [vmem:[#allocation10 + $0x98] sm:$0xf]
    %v4345 = vld [vmem:[#allocation10 + $0x9c] sm:$0xf]
    %v4346 = vld [vmem:[#allocation10 + $0xa0] sm:$0xf]
    %v4347 = vld [vmem:[#allocation10 + $0xa4] sm:$0xf]
    %v4348 = vld [vmem:[#allocation10 + $0xa8] sm:$0xf]
    %v4349 = vld [vmem:[#allocation10 + $0xac] sm:$0xf]
    %v4350 = vld [vmem:[#allocation10 + $0xb0] sm:$0xf]
    %v4351 = vld [vmem:[#allocation10 + $0xb4] sm:$0xf]
    %v4352 = vld [vmem:[#allocation10 + $0xb8] sm:$0xf]
    %v4353 = vld [vmem:[#allocation10 + $0xbc] sm:$0xf]
    %v4354 = vld [vmem:[#allocation10 + $0xc0] sm:$0xf]
    %v4355 = vld [vmem:[#allocation10 + $0xc4] sm:$0xf]
    %v4356 = vld [vmem:[#allocation10 + $0xc8] sm:$0xf]
    %v4357 = vld [vmem:[#allocation10 + $0xcc] sm:$0xf]
    %v4358 = vld [vmem:[#allocation10 + $0xd0] sm:$0xf]
    %v4359 = vld [vmem:[#allocation10 + $0xd4] sm:$0xf]
    %v4360 = vld [vmem:[#allocation10 + $0xd8] sm:$0xf]
    %v4361 = vld [vmem:[#allocation10 + $0xdc] sm:$0xf]
    %v4362 = vld [vmem:[#allocation10 + $0xe0] sm:$0xf]
    %v4363 = vld [vmem:[#allocation10 + $0xe4] sm:$0xf]
    %v4364 = vld [vmem:[#allocation10 + $0xe8] sm:$0xf]
    %v4365 = vld [vmem:[#allocation10 + $0xec] sm:$0xf]
    %v4366 = vld [vmem:[#allocation10 + $0xf0] sm:$0xf]
    %v4367 = vld [vmem:[#allocation10 + $0xf4] sm:$0xf]
    %v4368 = vld [vmem:[#allocation10 + $0xf8] sm:$0xf]
    %v4369 = vld [vmem:[#allocation10 + $0xfc] sm:$0xf]
    %v4370 = vpack.c.bf16 %v4302, %v4302
    %v4371 = vpack.c.bf16 %v4303, %v4303
    %v4372 = vpack.c.bf16 %v4304, %v4304
    %v4373 = vpack.c.bf16 %v4305, %v4305
    %v4374 = vld [vmem:[#allocation5 + $0x6] ss:$0 sm:$0xff]
    %v4439 = vunpack.c.l.b16 %v4306
    %v4440 = vunpack.c.l.b16 %v4307
    %v4441 = vunpack.c.l.b16 %v4308
    %v4442 = vunpack.c.l.b16 %v4309
    %v4443 = vunpack.c.l.b16 %v4310
    %v4444 = vunpack.c.l.b16 %v4311
    %v4445 = vunpack.c.l.b16 %v4312
    %v4446 = vunpack.c.l.b16 %v4313
    %v4447 = vunpack.c.l.b16 %v4314
    %v4448 = vunpack.c.l.b16 %v4315
    %v4449 = vunpack.c.l.b16 %v4316
    %v4450 = vunpack.c.l.b16 %v4317
    %v4451 = vunpack.c.l.b16 %v4318
    %v4452 = vunpack.c.l.b16 %v4319
    %v4453 = vunpack.c.l.b16 %v4320
    %v4454 = vunpack.c.l.b16 %v4321
    %v4455 = vunpack.c.l.b16 %v4322
    %v4456 = vunpack.c.l.b16 %v4323
    %v4457 = vunpack.c.l.b16 %v4324
    %v4458 = vunpack.c.l.b16 %v4325
    %v4459 = vunpack.c.l.b16 %v4326
    %v4460 = vunpack.c.l.b16 %v4327
    %v4461 = vunpack.c.l.b16 %v4328
    %v4462 = vunpack.c.l.b16 %v4329
    %v4463 = vunpack.c.l.b16 %v4330
    %v4464 = vunpack.c.l.b16 %v4331
    %v4465 = vunpack.c.l.b16 %v4332
    %v4466 = vunpack.c.l.b16 %v4333
    %v4467 = vunpack.c.l.b16 %v4334
    %v4468 = vunpack.c.l.b16 %v4335
    %v4469 = vunpack.c.l.b16 %v4336
    %v4470 = vunpack.c.l.b16 %v4337
    %v4471 = vunpack.c.l.b16 %v4338
    %v4472 = vunpack.c.l.b16 %v4339
    %v4473 = vunpack.c.l.b16 %v4340
    %v4474 = vunpack.c.l.b16 %v4341
    %v4475 = vunpack.c.l.b16 %v4342
    %v4476 = vunpack.c.l.b16 %v4343
    %v4477 = vunpack.c.l.b16 %v4344
    %v4478 = vunpack.c.l.b16 %v4345
    %v4479 = vunpack.c.l.b16 %v4346
    %v4480 = vunpack.c.l.b16 %v4347
    %v4481 = vunpack.c.l.b16 %v4348
    %v4482 = vunpack.c.l.b16 %v4349
    %v4483 = vunpack.c.l.b16 %v4350
    %v4484 = vunpack.c.l.b16 %v4351
    %v4485 = vunpack.c.l.b16 %v4352
    %v4486 = vunpack.c.l.b16 %v4353
    %v4487 = vunpack.c.l.b16 %v4354
    %v4488 = vunpack.c.l.b16 %v4355
    %v4489 = vunpack.c.l.b16 %v4356
    %v4490 = vunpack.c.l.b16 %v4357
    %v4491 = vunpack.c.l.b16 %v4358
    %v4492 = vunpack.c.l.b16 %v4359
    %v4493 = vunpack.c.l.b16 %v4360
    %v4494 = vunpack.c.l.b16 %v4361
    %v4495 = vunpack.c.l.b16 %v4362
    %v4496 = vunpack.c.l.b16 %v4363
    %v4497 = vunpack.c.l.b16 %v4364
    %v4498 = vunpack.c.l.b16 %v4365
    %v4499 = vunpack.c.l.b16 %v4366
    %v4500 = vunpack.c.l.b16 %v4367
    %v4501 = vunpack.c.l.b16 %v4368
    %v4502 = vunpack.c.l.b16 %v4369
    %v4503 = vpack.c.b16 %v4440, %v4439
    %v4504 = vpack.c.b16 %v4442, %v4441
    %v4505 = vpack.c.b16 %v4444, %v4443
    %v4506 = vpack.c.b16 %v4446, %v4445
    %v4507 = vpack.c.b16 %v4448, %v4447
    %v4508 = vpack.c.b16 %v4450, %v4449
    %v4509 = vpack.c.b16 %v4452, %v4451
    %v4510 = vpack.c.b16 %v4454, %v4453
    %v4511 = vpack.c.b16 %v4456, %v4455
    %v4512 = vpack.c.b16 %v4458, %v4457
    %v4513 = vpack.c.b16 %v4460, %v4459
    %v4514 = vpack.c.b16 %v4462, %v4461
    %v4515 = vpack.c.b16 %v4464, %v4463
    %v4516 = vpack.c.b16 %v4466, %v4465
    %v4517 = vpack.c.b16 %v4468, %v4467
    %v4518 = vpack.c.b16 %v4470, %v4469
    %v4519 = vpack.c.b16 %v4472, %v4471
    %v4520 = vpack.c.b16 %v4474, %v4473
    %v4521 = vpack.c.b16 %v4476, %v4475
    %v4522 = vpack.c.b16 %v4478, %v4477
    %v4523 = vpack.c.b16 %v4480, %v4479
    %v4524 = vpack.c.b16 %v4482, %v4481
    %v4525 = vpack.c.b16 %v4484, %v4483
    %v4526 = vpack.c.b16 %v4486, %v4485
    %v4527 = vpack.c.b16 %v4488, %v4487
    %v4528 = vpack.c.b16 %v4490, %v4489
    %v4529 = vpack.c.b16 %v4492, %v4491
    %v4530 = vpack.c.b16 %v4494, %v4493
    %v4531 = vpack.c.b16 %v4496, %v4495
    %v4532 = vpack.c.b16 %v4498, %v4497
    %v4533 = vpack.c.b16 %v4500, %v4499
    %v4534 = vpack.c.b16 %v4502, %v4501
    %4567 = vmatpush.bf16.msra.mxu0 %v4510
    %4568 = vmatpush.bf16.msra.mxu0 %v4509
    %4569 = vmatpush.bf16.msra.mxu0 %v4508
    %4570 = vmatpush.bf16.msra.mxu0 %v4507
    %4571 = vmatpush.bf16.msra.mxu0 %v4506
    %4572 = vmatpush.bf16.msra.mxu0 %v4505
    %4573 = vmatpush.bf16.msra.mxu0 %v4504
    %4574 = vmatpush.bf16.msra.mxu0 %v4503
    %4575 = vmatmul.bf16.gmra.mxu0 %v4370
    %v4576 = vpop.f32.mrf.mxu0
    %v4577 = vadd.f32 %v4374, %v4576
    %v4578 = vpop.f32.mrf.mxu0
    %4579 = vdwg.mxu0
    %4580 = vmatpush.bf16.msra.mxu0 %v4518
    %4581 = vmatpush.bf16.msra.mxu0 %v4517
    %4582 = vmatpush.bf16.msra.mxu0 %v4516
    %4583 = vmatpush.bf16.msra.mxu0 %v4515
    %4584 = vmatpush.bf16.msra.mxu0 %v4514
    %4585 = vmatpush.bf16.msra.mxu0 %v4513
    %4586 = vmatpush.bf16.msra.mxu0 %v4512
    %4587 = vmatpush.bf16.msra.mxu0 %v4511
    %4588 = vmatmul.bf16.gmra.mxu0 %v4371
    %v4589 = vpop.f32.mrf.mxu0
    %v4590 = vadd.f32 %v4577, %v4589
    %v4591 = vpop.f32.mrf.mxu0
    %4592 = vdwg.mxu0
    %4593 = vmatpush.bf16.msra.mxu0 %v4526
    %4594 = vmatpush.bf16.msra.mxu0 %v4525
    %4595 = vmatpush.bf16.msra.mxu0 %v4524
    %4596 = vmatpush.bf16.msra.mxu0 %v4523
    %4597 = vmatpush.bf16.msra.mxu0 %v4522
    %4598 = vmatpush.bf16.msra.mxu0 %v4521
    %4599 = vmatpush.bf16.msra.mxu0 %v4520
    %4600 = vmatpush.bf16.msra.mxu0 %v4519
    %4601 = vmatmul.bf16.gmra.mxu0 %v4372
    %v4602 = vpop.f32.mrf.mxu0
    %v4603 = vadd.f32 %v4590, %v4602
    %v4604 = vpop.f32.mrf.mxu0
    %4605 = vdwg.mxu0
    %4606 = vmatpush.bf16.msra.mxu0 %v4534
    %4607 = vmatpush.bf16.msra.mxu0 %v4533
    %4608 = vmatpush.bf16.msra.mxu0 %v4532
    %4609 = vmatpush.bf16.msra.mxu0 %v4531
    %4610 = vmatpush.bf16.msra.mxu0 %v4530
    %4611 = vmatpush.bf16.msra.mxu0 %v4529
    %4612 = vmatpush.bf16.msra.mxu0 %v4528
    %4613 = vmatpush.bf16.msra.mxu0 %v4527
    %4614 = vmatmul.bf16.gmra.mxu0 %v4373
    %v4615 = vpop.f32.mrf.mxu0
    %v4616 = vadd.f32 %v4603, %v4615
    %v4617 = vpop.f32.mrf.mxu0
    %4618 = vdwg.mxu0
    %v4619 = vmax.f32 %v4616, 0.0
    %v4620 = vld [vmem:[#allocation8 + $0x1000] sm:$0xff]
    %v4621 = vld [vmem:[#allocation8 + $0x1008] sm:$0xff]
    %v4622 = vld [vmem:[#allocation8 + $0x1010] sm:$0xff]
    %v4623 = vld [vmem:[#allocation8 + $0x1018] sm:$0xff]
    %v4624 = vld [vmem:[#allocation8 + $0x1020] sm:$0xff]
    %v4625 = vld [vmem:[#allocation8 + $0x1028] sm:$0xff]
    %v4626 = vld [vmem:[#allocation8 + $0x1030] sm:$0xff]
    %v4627 = vld [vmem:[#allocation8 + $0x1038] sm:$0xff]
    %v4628 = vld [vmem:[#allocation8 + $0x1040] sm:$0xff]
    %v4629 = vld [vmem:[#allocation8 + $0x1048] sm:$0xff]
    %v4630 = vld [vmem:[#allocation8 + $0x1050] sm:$0xff]
    %v4631 = vld [vmem:[#allocation8 + $0x1058] sm:$0xff]
    %v4632 = vld [vmem:[#allocation8 + $0x1060] sm:$0xff]
    %v4633 = vld [vmem:[#allocation8 + $0x1068] sm:$0xff]
    %v4634 = vld [vmem:[#allocation8 + $0x1070] sm:$0xff]
    %v4635 = vld [vmem:[#allocation8 + $0x1078] sm:$0xff]
    %v4636 = vld [vmem:[#allocation8 + $0x1080] sm:$0xff]
    %v4637 = vld [vmem:[#allocation8 + $0x1088] sm:$0xff]
    %v4638 = vld [vmem:[#allocation8 + $0x1090] sm:$0xff]
    %v4639 = vld [vmem:[#allocation8 + $0x1098] sm:$0xff]
    %v4640 = vld [vmem:[#allocation8 + $0x10a0] sm:$0xff]
    %v4641 = vld [vmem:[#allocation8 + $0x10a8] sm:$0xff]
    %v4642 = vld [vmem:[#allocation8 + $0x10b0] sm:$0xff]
    %v4643 = vld [vmem:[#allocation8 + $0x10b8] sm:$0xff]
    %v4644 = vld [vmem:[#allocation8 + $0x10c0] sm:$0xff]
    %v4645 = vld [vmem:[#allocation8 + $0x10c8] sm:$0xff]
    %v4646 = vld [vmem:[#allocation8 + $0x10d0] sm:$0xff]
    %v4647 = vld [vmem:[#allocation8 + $0x10d8] sm:$0xff]
    %v4648 = vld [vmem:[#allocation8 + $0x10e0] sm:$0xff]
    %v4649 = vld [vmem:[#allocation8 + $0x10e8] sm:$0xff]
    %v4650 = vld [vmem:[#allocation8 + $0x10f0] sm:$0xff]
    %v4651 = vld [vmem:[#allocation8 + $0x10f8] sm:$0xff]
    %v4652 = vpack.c.bf16 %v4619, %v4619
    %s4653 = scalar_lea.vmem [#allocation5], 7
    %v4654 = vld [vmem:[%s4653] ss:$8 sm:$0xf]
    %v4656 = vperm.slane %v4654, 0
    %v4657 = vperm.slane %v4654, 1
    %v4658 = vperm.slane %v4654, 2
    %v4659 = vperm.slane %v4654, 3
    %v4696 = vunpack.c.l.b16 %v4620
    %v4697 = vunpack.c.h.b16 %v4620
    %v4698 = vunpack.c.l.b16 %v4621
    %v4699 = vunpack.c.h.b16 %v4621
    %v4700 = vunpack.c.l.b16 %v4622
    %v4701 = vunpack.c.h.b16 %v4622
    %v4702 = vunpack.c.l.b16 %v4623
    %v4703 = vunpack.c.h.b16 %v4623
    %v4704 = vunpack.c.l.b16 %v4624
    %v4705 = vunpack.c.h.b16 %v4624
    %v4706 = vunpack.c.l.b16 %v4625
    %v4707 = vunpack.c.h.b16 %v4625
    %v4708 = vunpack.c.l.b16 %v4626
    %v4709 = vunpack.c.h.b16 %v4626
    %v4710 = vunpack.c.l.b16 %v4627
    %v4711 = vunpack.c.h.b16 %v4627
    %v4712 = vunpack.c.l.b16 %v4628
    %v4713 = vunpack.c.h.b16 %v4628
    %v4714 = vunpack.c.l.b16 %v4629
    %v4715 = vunpack.c.h.b16 %v4629
    %v4716 = vunpack.c.l.b16 %v4630
    %v4717 = vunpack.c.h.b16 %v4630
    %v4718 = vunpack.c.l.b16 %v4631
    %v4719 = vunpack.c.h.b16 %v4631
    %v4720 = vunpack.c.l.b16 %v4632
    %v4721 = vunpack.c.h.b16 %v4632
    %v4722 = vunpack.c.l.b16 %v4633
    %v4723 = vunpack.c.h.b16 %v4633
    %v4724 = vunpack.c.l.b16 %v4634
    %v4725 = vunpack.c.h.b16 %v4634
    %v4726 = vunpack.c.l.b16 %v4635
    %v4727 = vunpack.c.h.b16 %v4635
    %v4728 = vunpack.c.l.b16 %v4636
    %v4729 = vunpack.c.h.b16 %v4636
    %v4730 = vunpack.c.l.b16 %v4637
    %v4731 = vunpack.c.h.b16 %v4637
    %v4732 = vunpack.c.l.b16 %v4638
    %v4733 = vunpack.c.h.b16 %v4638
    %v4734 = vunpack.c.l.b16 %v4639
    %v4735 = vunpack.c.h.b16 %v4639
    %v4736 = vunpack.c.l.b16 %v4640
    %v4737 = vunpack.c.h.b16 %v4640
    %v4738 = vunpack.c.l.b16 %v4641
    %v4739 = vunpack.c.h.b16 %v4641
    %v4740 = vunpack.c.l.b16 %v4642
    %v4741 = vunpack.c.h.b16 %v4642
    %v4742 = vunpack.c.l.b16 %v4643
    %v4743 = vunpack.c.h.b16 %v4643
    %v4744 = vunpack.c.l.b16 %v4644
    %v4745 = vunpack.c.h.b16 %v4644
    %v4746 = vunpack.c.l.b16 %v4645
    %v4747 = vunpack.c.h.b16 %v4645
    %v4748 = vunpack.c.l.b16 %v4646
    %v4749 = vunpack.c.h.b16 %v4646
    %v4750 = vunpack.c.l.b16 %v4647
    %v4751 = vunpack.c.h.b16 %v4647
    %v4752 = vunpack.c.l.b16 %v4648
    %v4753 = vunpack.c.h.b16 %v4648
    %v4754 = vunpack.c.l.b16 %v4649
    %v4755 = vunpack.c.h.b16 %v4649
    %v4756 = vunpack.c.l.b16 %v4650
    %v4757 = vunpack.c.h.b16 %v4650
    %v4758 = vunpack.c.l.b16 %v4651
    %v4759 = vunpack.c.h.b16 %v4651
    %v4760 = vpack.c.b16 %v4700, %v4696
    %v4761 = vpack.c.b16 %v4701, %v4697
    %v4762 = vpack.c.b16 %v4702, %v4698
    %v4763 = vpack.c.b16 %v4703, %v4699
    %v4764 = vpack.c.b16 %v4708, %v4704
    %v4765 = vpack.c.b16 %v4709, %v4705
    %v4766 = vpack.c.b16 %v4710, %v4706
    %v4767 = vpack.c.b16 %v4711, %v4707
    %v4768 = vpack.c.b16 %v4716, %v4712
    %v4769 = vpack.c.b16 %v4717, %v4713
    %v4770 = vpack.c.b16 %v4718, %v4714
    %v4771 = vpack.c.b16 %v4719, %v4715
    %v4772 = vpack.c.b16 %v4724, %v4720
    %v4773 = vpack.c.b16 %v4725, %v4721
    %v4774 = vpack.c.b16 %v4726, %v4722
    %v4775 = vpack.c.b16 %v4727, %v4723
    %v4776 = vpack.c.b16 %v4732, %v4728
    %v4777 = vpack.c.b16 %v4733, %v4729
    %v4778 = vpack.c.b16 %v4734, %v4730
    %v4779 = vpack.c.b16 %v4735, %v4731
    %v4780 = vpack.c.b16 %v4740, %v4736
    %v4781 = vpack.c.b16 %v4741, %v4737
    %v4782 = vpack.c.b16 %v4742, %v4738
    %v4783 = vpack.c.b16 %v4743, %v4739
    %v4784 = vpack.c.b16 %v4748, %v4744
    %v4785 = vpack.c.b16 %v4749, %v4745
    %v4786 = vpack.c.b16 %v4750, %v4746
    %v4787 = vpack.c.b16 %v4751, %v4747
    %v4788 = vpack.c.b16 %v4756, %v4752
    %v4789 = vpack.c.b16 %v4757, %v4753
    %v4790 = vpack.c.b16 %v4758, %v4754
    %v4791 = vpack.c.b16 %v4759, %v4755
    %4824 = vmatpush.bf16.msra.mxu0 %v4788
    %4825 = vmatpush.bf16.msra.mxu0 %v4784
    %4826 = vmatpush.bf16.msra.mxu0 %v4780
    %4827 = vmatpush.bf16.msra.mxu0 %v4776
    %4828 = vmatpush.bf16.msra.mxu0 %v4772
    %4829 = vmatpush.bf16.msra.mxu0 %v4768
    %4830 = vmatpush.bf16.msra.mxu0 %v4764
    %4831 = vmatpush.bf16.msra.mxu0 %v4760
    %4832 = vmatmul.bf16.gmra.mxu0 %v4652
    %v4833 = vpop.f32.mrf.mxu0
    %v4834 = vadd.f32 %v4656, %v4833
    %v4835 = vpop.f32.mrf.mxu0
    %4836 = vdwg.mxu0
    %4837 = vmatpush.bf16.msra.mxu0 %v4789
    %4838 = vmatpush.bf16.msra.mxu0 %v4785
    %4839 = vmatpush.bf16.msra.mxu0 %v4781
    %4840 = vmatpush.bf16.msra.mxu0 %v4777
    %4841 = vmatpush.bf16.msra.mxu0 %v4773
    %4842 = vmatpush.bf16.msra.mxu0 %v4769
    %4843 = vmatpush.bf16.msra.mxu0 %v4765
    %4844 = vmatpush.bf16.msra.mxu0 %v4761
    %4845 = vmatmul.bf16.gmra.mxu0 %v4652
    %v4846 = vpop.f32.mrf.mxu0
    %v4847 = vadd.f32 %v4657, %v4846
    %v4848 = vpop.f32.mrf.mxu0
    %4849 = vdwg.mxu0
    %4850 = vmatpush.bf16.msra.mxu0 %v4790
    %4851 = vmatpush.bf16.msra.mxu0 %v4786
    %4852 = vmatpush.bf16.msra.mxu0 %v4782
    %4853 = vmatpush.bf16.msra.mxu0 %v4778
    %4854 = vmatpush.bf16.msra.mxu0 %v4774
    %4855 = vmatpush.bf16.msra.mxu0 %v4770
    %4856 = vmatpush.bf16.msra.mxu0 %v4766
    %4857 = vmatpush.bf16.msra.mxu0 %v4762
    %4858 = vmatmul.bf16.gmra.mxu0 %v4652
    %v4859 = vpop.f32.mrf.mxu0
    %v4860 = vadd.f32 %v4658, %v4859
    %v4861 = vpop.f32.mrf.mxu0
    %4862 = vdwg.mxu0
    %4863 = vmatpush.bf16.msra.mxu0 %v4791
    %4864 = vmatpush.bf16.msra.mxu0 %v4787
    %4865 = vmatpush.bf16.msra.mxu0 %v4783
    %4866 = vmatpush.bf16.msra.mxu0 %v4779
    %4867 = vmatpush.bf16.msra.mxu0 %v4775
    %4868 = vmatpush.bf16.msra.mxu0 %v4771
    %4869 = vmatpush.bf16.msra.mxu0 %v4767
    %4870 = vmatpush.bf16.msra.mxu0 %v4763
    %4871 = vmatmul.bf16.gmra.mxu0 %v4652
    %v4872 = vpop.f32.mrf.mxu0
    %v4873 = vadd.f32 %v4659, %v4872
    %v4874 = vpop.f32.mrf.mxu0
    %4875 = vdwg.mxu0
    %v4876 = vadd.f32 %v4302, %v4834
    %v4877 = vadd.f32 %v4303, %v4847
    %v4878 = vadd.f32 %v4304, %v4860
    %v4879 = vadd.f32 %v4305, %v4873
    %v4880 = vadd.f32 %v4876, %v4877
    %v4881 = vadd.f32 %v4880, %v4878
    %v4882 = vadd.f32 %v4881, %v4879
    %4883 = vadd.xlane.f32.xlu0 %v4882
    %v4884 = vpop.xlane.xlu0 %4883
    %v4885 = vmul.f32 %v4884, 0.0023041475
    %v4886 = vsub.f32 %v4876, %v4885
    %v4887 = vsub.f32 %v4877, %v4885
    %v4888 = vsub.f32 %v4878, %v4885
    %v4889 = vsub.f32 %v4879, %v4885
    %v4890 = vsel %vm4243, %v4886, 0.0
    %v4891 = vsel %vm4244, %v4887, 0.0
    %v4892 = vsel %vm4245, %v4888, 0.0
    %v4893 = vsel %vm4246, %v4889, 0.0
    %v4894 = vmul.f32 %v4890, %v4890
    %v4895 = vmul.f32 %v4891, %v4891
    %v4896 = vmul.f32 %v4892, %v4892
    %v4897 = vmul.f32 %v4893, %v4893
    %v4898 = vadd.f32 %v4894, %v4895
    %v4899 = vadd.f32 %v4898, %v4896
    %v4900 = vadd.f32 %v4899, %v4897
    %4901 = vadd.xlane.f32.xlu0 %v4900
    %v4902 = vpop.xlane.xlu0 %4901
    %v4903 = vmul.f32 %v4902, 0.0023041475
    %v4904 = vadd.f32 %v4903, 1e-05
    %v4905 = vrsqrt.pop %v4904
    %v4906 = vmul.f32 %v4905, %v4904
    %v4907 = vmul.f32 %v4906, %v4905
    %v4908 = vmul.f32 0.5, %v4907
    %v4909 = vsub.f32 1.5, %v4908
    %v4910 = vmul.f32 %v4905, %v4909
    %vm4911 = vweird.f32 %v4904
    %vm4912 = vweird.f32 %v4905
    %vm4913 = vmor %vm4911, %vm4912
    %v4914 = vsel %vm4913, %v4905, %v4910
    %v4915 = vmul.f32 %v4886, %v4914
    %v4916 = vmul.f32 %v4887, %v4914
    %v4917 = vmul.f32 %v4888, %v4914
    %v4918 = vmul.f32 %v4889, %v4914
    %s4919 = scalar_lea.vmem [#allocation5], 32
    %v4920 = vld [vmem:[%s4919] ss:$8 sm:$0xf]
    %v4922 = vperm.slane %v4920, 0
    %v4923 = vperm.slane %v4920, 1
    %v4924 = vperm.slane %v4920, 2
    %v4925 = vperm.slane %v4920, 3
    %v4930 = vmul.f32 %v4915, %v4922
    %v4931 = vmul.f32 %v4916, %v4923
    %v4932 = vmul.f32 %v4917, %v4924
    %v4933 = vmul.f32 %v4918, %v4925
    %s4934 = scalar_lea.vmem [#allocation5], 33
    %v4935 = vld [vmem:[%s4934] ss:$8 sm:$0xf]
    %v4937 = vperm.slane %v4935, 0
    %v4938 = vperm.slane %v4935, 1
    %v4939 = vperm.slane %v4935, 2
    %v4940 = vperm.slane %v4935, 3
    %v4945 = vadd.f32 %v4930, %v4937
    %v4946 = vadd.f32 %v4931, %v4938
    %v4947 = vadd.f32 %v4932, %v4939
    %v4948 = vadd.f32 %v4933, %v4940
    %s4949 = smul.u32 4, 272
    %s4950 = smul.u32 %s4949, 4
    %s4951 = sshll.u32 %s4950, 4
    %4952 = dma.done [#allocation4], %s4951
    %s4953 = smul.u32 4, 160
    %s4954 = smul.u32 %s4953, 1
    %s4955 = sshll.u32 %s4954, 4
    %4956 = dma.done %s81, %s4955
    %v4957 = vld [vmem:[#allocation2] sm:$0xff]
    %v4958 = vld [vmem:[#allocation2 + $0x8] sm:$0xff]
    %v4959 = vld [vmem:[#allocation2 + $0x10] sm:$0xff]
    %v4960 = vld [vmem:[#allocation2 + $0x18] sm:$0xff]
    %v4961 = vld [vmem:[#allocation2 + $0x20] sm:$0xff]
    %v4962 = vld [vmem:[#allocation2 + $0x28] sm:$0xff]
    %v4963 = vld [vmem:[#allocation2 + $0x30] sm:$0xff]
    %v4964 = vld [vmem:[#allocation2 + $0x38] sm:$0xff]
    %v4965 = vld [vmem:[#allocation2 + $0x40] sm:$0xff]
    %v4966 = vld [vmem:[#allocation2 + $0x48] sm:$0xff]
    %v4967 = vld [vmem:[#allocation2 + $0x50] sm:$0xff]
    %v4968 = vld [vmem:[#allocation2 + $0x58] sm:$0xff]
    %v4969 = vld [vmem:[#allocation2 + $0x60] sm:$0xff]
    %v4970 = vld [vmem:[#allocation2 + $0x68] sm:$0xff]
    %v4971 = vld [vmem:[#allocation2 + $0x70] sm:$0xff]
    %v4972 = vld [vmem:[#allocation2 + $0x78] sm:$0xff]
    %v4973 = vld [vmem:[#allocation2 + $0x80] sm:$0xff]
    %v4974 = vld [vmem:[#allocation2 + $0x88] sm:$0xff]
    %v4975 = vld [vmem:[#allocation2 + $0x90] sm:$0xff]
    %v4976 = vld [vmem:[#allocation2 + $0x98] sm:$0xff]
    %v4977 = vld [vmem:[#allocation2 + $0xa0] sm:$0xff]
    %v4978 = vld [vmem:[#allocation2 + $0xa8] sm:$0xff]
    %v4979 = vld [vmem:[#allocation2 + $0xb0] sm:$0xff]
    %v4980 = vld [vmem:[#allocation2 + $0xb8] sm:$0xff]
    %v4981 = vld [vmem:[#allocation2 + $0xc0] sm:$0xff]
    %v4982 = vld [vmem:[#allocation2 + $0xc8] sm:$0xff]
    %v4983 = vld [vmem:[#allocation2 + $0xd0] sm:$0xff]
    %v4984 = vld [vmem:[#allocation2 + $0xd8] sm:$0xff]
    %v4985 = vld [vmem:[#allocation2 + $0xe0] sm:$0xff]
    %v4986 = vld [vmem:[#allocation2 + $0xe8] sm:$0xff]
    %v4987 = vld [vmem:[#allocation2 + $0xf0] sm:$0xff]
    %v4988 = vld [vmem:[#allocation2 + $0xf8] sm:$0xff]
    %v4989 = vld [vmem:[#allocation2 + $0x100] sm:$0xff]
    %v4990 = vld [vmem:[#allocation2 + $0x108] sm:$0xff]
    %v4991 = vld [vmem:[#allocation2 + $0x110] sm:$0xff]
    %v4992 = vld [vmem:[#allocation2 + $0x118] sm:$0xff]
    %v4993 = vld [vmem:[#allocation2 + $0x120] sm:$0xff]
    %v4994 = vld [vmem:[#allocation2 + $0x128] sm:$0xff]
    %v4995 = vld [vmem:[#allocation2 + $0x130] sm:$0xff]
    %v4996 = vld [vmem:[#allocation2 + $0x138] sm:$0xff]
    %v4997 = vld [vmem:[#allocation2 + $0x140] sm:$0xff]
    %v4998 = vld [vmem:[#allocation2 + $0x148] sm:$0xff]
    %v4999 = vld [vmem:[#allocation2 + $0x150] sm:$0xff]
    %v5000 = vld [vmem:[#allocation2 + $0x158] sm:$0xff]
    %v5001 = vld [vmem:[#allocation2 + $0x160] sm:$0xff]
    %v5002 = vld [vmem:[#allocation2 + $0x168] sm:$0xff]
    %v5003 = vld [vmem:[#allocation2 + $0x170] sm:$0xff]
    %v5004 = vld [vmem:[#allocation2 + $0x178] sm:$0xff]
    %v5005 = vld [vmem:[#allocation2 + $0x180] sm:$0xff]
    %v5006 = vld [vmem:[#allocation2 + $0x188] sm:$0xff]
    %v5007 = vld [vmem:[#allocation2 + $0x190] sm:$0xff]
    %v5008 = vld [vmem:[#allocation2 + $0x198] sm:$0xff]
    %v5009 = vld [vmem:[#allocation2 + $0x1a0] sm:$0xff]
    %v5010 = vld [vmem:[#allocation2 + $0x1a8] sm:$0xff]
    %v5011 = vld [vmem:[#allocation2 + $0x1b0] sm:$0xff]
    %v5012 = vld [vmem:[#allocation2 + $0x1b8] sm:$0xff]
    %v5013 = vld [vmem:[#allocation2 + $0x1c0] sm:$0xff]
    %v5014 = vld [vmem:[#allocation2 + $0x1c8] sm:$0xff]
    %v5015 = vld [vmem:[#allocation2 + $0x1d0] sm:$0xff]
    %v5016 = vld [vmem:[#allocation2 + $0x1d8] sm:$0xff]
    %v5017 = vld [vmem:[#allocation2 + $0x1e0] sm:$0xff]
    %v5018 = vld [vmem:[#allocation2 + $0x1e8] sm:$0xff]
    %v5019 = vld [vmem:[#allocation2 + $0x1f0] sm:$0xff]
    %v5020 = vld [vmem:[#allocation2 + $0x1f8] sm:$0xff]
    %v5021 = vld [vmem:[#allocation2 + $0x200] sm:$0xff]
    %v5022 = vld [vmem:[#allocation2 + $0x208] sm:$0xff]
    %v5023 = vld [vmem:[#allocation2 + $0x210] sm:$0xff]
    %v5024 = vld [vmem:[#allocation2 + $0x218] sm:$0xff]
    %v5025 = vld [vmem:[#allocation2 + $0x220] sm:$0xff]
    %v5026 = vld [vmem:[#allocation2 + $0x228] sm:$0xff]
    %v5027 = vld [vmem:[#allocation2 + $0x230] sm:$0xff]
    %v5028 = vld [vmem:[#allocation2 + $0x238] sm:$0xff]
    %v5029 = vld [vmem:[#allocation2 + $0x240] sm:$0xff]
    %v5030 = vld [vmem:[#allocation2 + $0x248] sm:$0xff]
    %v5031 = vld [vmem:[#allocation2 + $0x250] sm:$0xff]
    %v5032 = vld [vmem:[#allocation2 + $0x258] sm:$0xff]
    %v5033 = vld [vmem:[#allocation2 + $0x260] sm:$0xff]
    %v5034 = vld [vmem:[#allocation2 + $0x268] sm:$0xff]
    %v5035 = vld [vmem:[#allocation2 + $0x270] sm:$0xff]
    %v5036 = vld [vmem:[#allocation2 + $0x278] sm:$0xff]
    %v5037 = vld [vmem:[#allocation2 + $0x280] sm:$0xff]
    %v5038 = vld [vmem:[#allocation2 + $0x288] sm:$0xff]
    %v5039 = vld [vmem:[#allocation2 + $0x290] sm:$0xff]
    %v5040 = vld [vmem:[#allocation2 + $0x298] sm:$0xff]
    %v5041 = vld [vmem:[#allocation2 + $0x2a0] sm:$0xff]
    %v5042 = vld [vmem:[#allocation2 + $0x2a8] sm:$0xff]
    %v5043 = vld [vmem:[#allocation2 + $0x2b0] sm:$0xff]
    %v5044 = vld [vmem:[#allocation2 + $0x2b8] sm:$0xff]
    %v5045 = vld [vmem:[#allocation2 + $0x2c0] sm:$0xff]
    %v5046 = vld [vmem:[#allocation2 + $0x2c8] sm:$0xff]
    %v5047 = vld [vmem:[#allocation2 + $0x2d0] sm:$0xff]
    %v5048 = vld [vmem:[#allocation2 + $0x2d8] sm:$0xff]
    %v5049 = vld [vmem:[#allocation2 + $0x2e0] sm:$0xff]
    %v5050 = vld [vmem:[#allocation2 + $0x2e8] sm:$0xff]
    %v5051 = vld [vmem:[#allocation2 + $0x2f0] sm:$0xff]
    %v5052 = vld [vmem:[#allocation2 + $0x2f8] sm:$0xff]
    %v5053 = vld [vmem:[#allocation2 + $0x300] sm:$0xff]
    %v5054 = vld [vmem:[#allocation2 + $0x308] sm:$0xff]
    %v5055 = vld [vmem:[#allocation2 + $0x310] sm:$0xff]
    %v5056 = vld [vmem:[#allocation2 + $0x318] sm:$0xff]
    %v5057 = vld [vmem:[#allocation2 + $0x320] sm:$0xff]
    %v5058 = vld [vmem:[#allocation2 + $0x328] sm:$0xff]
    %v5059 = vld [vmem:[#allocation2 + $0x330] sm:$0xff]
    %v5060 = vld [vmem:[#allocation2 + $0x338] sm:$0xff]
    %v5061 = vld [vmem:[#allocation2 + $0x340] sm:$0xff]
    %v5062 = vld [vmem:[#allocation2 + $0x348] sm:$0xff]
    %v5063 = vld [vmem:[#allocation2 + $0x350] sm:$0xff]
    %v5064 = vld [vmem:[#allocation2 + $0x358] sm:$0xff]
    %v5065 = vld [vmem:[#allocation2 + $0x360] sm:$0xff]
    %v5066 = vld [vmem:[#allocation2 + $0x368] sm:$0xff]
    %v5067 = vld [vmem:[#allocation2 + $0x370] sm:$0xff]
    %v5068 = vld [vmem:[#allocation2 + $0x378] sm:$0xff]
    %v5069 = vld [vmem:[#allocation2 + $0x380] sm:$0xff]
    %v5070 = vld [vmem:[#allocation2 + $0x388] sm:$0xff]
    %v5071 = vld [vmem:[#allocation2 + $0x390] sm:$0xff]
    %v5072 = vld [vmem:[#allocation2 + $0x398] sm:$0xff]
    %v5073 = vld [vmem:[#allocation2 + $0x3a0] sm:$0xff]
    %v5074 = vld [vmem:[#allocation2 + $0x3a8] sm:$0xff]
    %v5075 = vld [vmem:[#allocation2 + $0x3b0] sm:$0xff]
    %v5076 = vld [vmem:[#allocation2 + $0x3b8] sm:$0xff]
    %v5077 = vld [vmem:[#allocation2 + $0x3c0] sm:$0xff]
    %v5078 = vld [vmem:[#allocation2 + $0x3c8] sm:$0xff]
    %v5079 = vld [vmem:[#allocation2 + $0x3d0] sm:$0xff]
    %v5080 = vld [vmem:[#allocation2 + $0x3d8] sm:$0xff]
    %v5081 = vld [vmem:[#allocation2 + $0x3e0] sm:$0xff]
    %v5082 = vld [vmem:[#allocation2 + $0x3e8] sm:$0xff]
    %v5083 = vld [vmem:[#allocation2 + $0x3f0] sm:$0xff]
    %v5084 = vld [vmem:[#allocation2 + $0x3f8] sm:$0xff]
    %v5085 = vpack.c.bf16 %v4945, %v4945
    %v5086 = vpack.c.bf16 %v4946, %v4946
    %v5087 = vpack.c.bf16 %v4947, %v4947
    %v5088 = vpack.c.bf16 %v4948, %v4948
    %s5089 = scalar_lea.vmem [#allocation5], 34
    %v5090 = vld [vmem:[%s5089] ss:$8 sm:$0xf]
    %v5092 = vperm.slane %v5090, 0
    %v5093 = vperm.slane %v5090, 1
    %v5094 = vperm.slane %v5090, 2
    %v5095 = vperm.slane %v5090, 3
    %v5228 = vunpack.c.l.b16 %v4957
    %v5229 = vunpack.c.h.b16 %v4957
    %v5230 = vunpack.c.l.b16 %v4958
    %v5231 = vunpack.c.h.b16 %v4958
    %v5232 = vunpack.c.l.b16 %v4959
    %v5233 = vunpack.c.h.b16 %v4959
    %v5234 = vunpack.c.l.b16 %v4960
    %v5235 = vunpack.c.h.b16 %v4960
    %v5236 = vunpack.c.l.b16 %v4961
    %v5237 = vunpack.c.h.b16 %v4961
    %v5238 = vunpack.c.l.b16 %v4962
    %v5239 = vunpack.c.h.b16 %v4962
    %v5240 = vunpack.c.l.b16 %v4963
    %v5241 = vunpack.c.h.b16 %v4963
    %v5242 = vunpack.c.l.b16 %v4964
    %v5243 = vunpack.c.h.b16 %v4964
    %v5244 = vunpack.c.l.b16 %v4965
    %v5245 = vunpack.c.h.b16 %v4965
    %v5246 = vunpack.c.l.b16 %v4966
    %v5247 = vunpack.c.h.b16 %v4966
    %v5248 = vunpack.c.l.b16 %v4967
    %v5249 = vunpack.c.h.b16 %v4967
    %v5250 = vunpack.c.l.b16 %v4968
    %v5251 = vunpack.c.h.b16 %v4968
    %v5252 = vunpack.c.l.b16 %v4969
    %v5253 = vunpack.c.h.b16 %v4969
    %v5254 = vunpack.c.l.b16 %v4970
    %v5255 = vunpack.c.h.b16 %v4970
    %v5256 = vunpack.c.l.b16 %v4971
    %v5257 = vunpack.c.h.b16 %v4971
    %v5258 = vunpack.c.l.b16 %v4972
    %v5259 = vunpack.c.h.b16 %v4972
    %v5260 = vunpack.c.l.b16 %v4973
    %v5261 = vunpack.c.h.b16 %v4973
    %v5262 = vunpack.c.l.b16 %v4974
    %v5263 = vunpack.c.h.b16 %v4974
    %v5264 = vunpack.c.l.b16 %v4975
    %v5265 = vunpack.c.h.b16 %v4975
    %v5266 = vunpack.c.l.b16 %v4976
    %v5267 = vunpack.c.h.b16 %v4976
    %v5268 = vunpack.c.l.b16 %v4977
    %v5269 = vunpack.c.h.b16 %v4977
    %v5270 = vunpack.c.l.b16 %v4978
    %v5271 = vunpack.c.h.b16 %v4978
    %v5272 = vunpack.c.l.b16 %v4979
    %v5273 = vunpack.c.h.b16 %v4979
    %v5274 = vunpack.c.l.b16 %v4980
    %v5275 = vunpack.c.h.b16 %v4980
    %v5276 = vunpack.c.l.b16 %v4981
    %v5277 = vunpack.c.h.b16 %v4981
    %v5278 = vunpack.c.l.b16 %v4982
    %v5279 = vunpack.c.h.b16 %v4982
    %v5280 = vunpack.c.l.b16 %v4983
    %v5281 = vunpack.c.h.b16 %v4983
    %v5282 = vunpack.c.l.b16 %v4984
    %v5283 = vunpack.c.h.b16 %v4984
    %v5284 = vunpack.c.l.b16 %v4985
    %v5285 = vunpack.c.h.b16 %v4985
    %v5286 = vunpack.c.l.b16 %v4986
    %v5287 = vunpack.c.h.b16 %v4986
    %v5288 = vunpack.c.l.b16 %v4987
    %v5289 = vunpack.c.h.b16 %v4987
    %v5290 = vunpack.c.l.b16 %v4988
    %v5291 = vunpack.c.h.b16 %v4988
    %v5292 = vunpack.c.l.b16 %v4989
    %v5293 = vunpack.c.h.b16 %v4989
    %v5294 = vunpack.c.l.b16 %v4990
    %v5295 = vunpack.c.h.b16 %v4990
    %v5296 = vunpack.c.l.b16 %v4991
    %v5297 = vunpack.c.h.b16 %v4991
    %v5298 = vunpack.c.l.b16 %v4992
    %v5299 = vunpack.c.h.b16 %v4992
    %v5300 = vunpack.c.l.b16 %v4993
    %v5301 = vunpack.c.h.b16 %v4993
    %v5302 = vunpack.c.l.b16 %v4994
    %v5303 = vunpack.c.h.b16 %v4994
    %v5304 = vunpack.c.l.b16 %v4995
    %v5305 = vunpack.c.h.b16 %v4995
    %v5306 = vunpack.c.l.b16 %v4996
    %v5307 = vunpack.c.h.b16 %v4996
    %v5308 = vunpack.c.l.b16 %v4997
    %v5309 = vunpack.c.h.b16 %v4997
    %v5310 = vunpack.c.l.b16 %v4998
    %v5311 = vunpack.c.h.b16 %v4998
    %v5312 = vunpack.c.l.b16 %v4999
    %v5313 = vunpack.c.h.b16 %v4999
    %v5314 = vunpack.c.l.b16 %v5000
    %v5315 = vunpack.c.h.b16 %v5000
    %v5316 = vunpack.c.l.b16 %v5001
    %v5317 = vunpack.c.h.b16 %v5001
    %v5318 = vunpack.c.l.b16 %v5002
    %v5319 = vunpack.c.h.b16 %v5002
    %v5320 = vunpack.c.l.b16 %v5003
    %v5321 = vunpack.c.h.b16 %v5003
    %v5322 = vunpack.c.l.b16 %v5004
    %v5323 = vunpack.c.h.b16 %v5004
    %v5324 = vunpack.c.l.b16 %v5005
    %v5325 = vunpack.c.h.b16 %v5005
    %v5326 = vunpack.c.l.b16 %v5006
    %v5327 = vunpack.c.h.b16 %v5006
    %v5328 = vunpack.c.l.b16 %v5007
    %v5329 = vunpack.c.h.b16 %v5007
    %v5330 = vunpack.c.l.b16 %v5008
    %v5331 = vunpack.c.h.b16 %v5008
    %v5332 = vunpack.c.l.b16 %v5009
    %v5333 = vunpack.c.h.b16 %v5009
    %v5334 = vunpack.c.l.b16 %v5010
    %v5335 = vunpack.c.h.b16 %v5010
    %v5336 = vunpack.c.l.b16 %v5011
    %v5337 = vunpack.c.h.b16 %v5011
    %v5338 = vunpack.c.l.b16 %v5012
    %v5339 = vunpack.c.h.b16 %v5012
    %v5340 = vunpack.c.l.b16 %v5013
    %v5341 = vunpack.c.h.b16 %v5013
    %v5342 = vunpack.c.l.b16 %v5014
    %v5343 = vunpack.c.h.b16 %v5014
    %v5344 = vunpack.c.l.b16 %v5015
    %v5345 = vunpack.c.h.b16 %v5015
    %v5346 = vunpack.c.l.b16 %v5016
    %v5347 = vunpack.c.h.b16 %v5016
    %v5348 = vunpack.c.l.b16 %v5017
    %v5349 = vunpack.c.h.b16 %v5017
    %v5350 = vunpack.c.l.b16 %v5018
    %v5351 = vunpack.c.h.b16 %v5018
    %v5352 = vunpack.c.l.b16 %v5019
    %v5353 = vunpack.c.h.b16 %v5019
    %v5354 = vunpack.c.l.b16 %v5020
    %v5355 = vunpack.c.h.b16 %v5020
    %v5356 = vunpack.c.l.b16 %v5021
    %v5357 = vunpack.c.h.b16 %v5021
    %v5358 = vunpack.c.l.b16 %v5022
    %v5359 = vunpack.c.h.b16 %v5022
    %v5360 = vunpack.c.l.b16 %v5023
    %v5361 = vunpack.c.h.b16 %v5023
    %v5362 = vunpack.c.l.b16 %v5024
    %v5363 = vunpack.c.h.b16 %v5024
    %v5364 = vunpack.c.l.b16 %v5025
    %v5365 = vunpack.c.h.b16 %v5025
    %v5366 = vunpack.c.l.b16 %v5026
    %v5367 = vunpack.c.h.b16 %v5026
    %v5368 = vunpack.c.l.b16 %v5027
    %v5369 = vunpack.c.h.b16 %v5027
    %v5370 = vunpack.c.l.b16 %v5028
    %v5371 = vunpack.c.h.b16 %v5028
    %v5372 = vunpack.c.l.b16 %v5029
    %v5373 = vunpack.c.h.b16 %v5029
    %v5374 = vunpack.c.l.b16 %v5030
    %v5375 = vunpack.c.h.b16 %v5030
    %v5376 = vunpack.c.l.b16 %v5031
    %v5377 = vunpack.c.h.b16 %v5031
    %v5378 = vunpack.c.l.b16 %v5032
    %v5379 = vunpack.c.h.b16 %v5032
    %v5380 = vunpack.c.l.b16 %v5033
    %v5381 = vunpack.c.h.b16 %v5033
    %v5382 = vunpack.c.l.b16 %v5034
    %v5383 = vunpack.c.h.b16 %v5034
    %v5384 = vunpack.c.l.b16 %v5035
    %v5385 = vunpack.c.h.b16 %v5035
    %v5386 = vunpack.c.l.b16 %v5036
    %v5387 = vunpack.c.h.b16 %v5036
    %v5388 = vunpack.c.l.b16 %v5037
    %v5389 = vunpack.c.h.b16 %v5037
    %v5390 = vunpack.c.l.b16 %v5038
    %v5391 = vunpack.c.h.b16 %v5038
    %v5392 = vunpack.c.l.b16 %v5039
    %v5393 = vunpack.c.h.b16 %v5039
    %v5394 = vunpack.c.l.b16 %v5040
    %v5395 = vunpack.c.h.b16 %v5040
    %v5396 = vunpack.c.l.b16 %v5041
    %v5397 = vunpack.c.h.b16 %v5041
    %v5398 = vunpack.c.l.b16 %v5042
    %v5399 = vunpack.c.h.b16 %v5042
    %v5400 = vunpack.c.l.b16 %v5043
    %v5401 = vunpack.c.h.b16 %v5043
    %v5402 = vunpack.c.l.b16 %v5044
    %v5403 = vunpack.c.h.b16 %v5044
    %v5404 = vunpack.c.l.b16 %v5045
    %v5405 = vunpack.c.h.b16 %v5045
    %v5406 = vunpack.c.l.b16 %v5046
    %v5407 = vunpack.c.h.b16 %v5046
    %v5408 = vunpack.c.l.b16 %v5047
    %v5409 = vunpack.c.h.b16 %v5047
    %v5410 = vunpack.c.l.b16 %v5048
    %v5411 = vunpack.c.h.b16 %v5048
    %v5412 = vunpack.c.l.b16 %v5049
    %v5413 = vunpack.c.h.b16 %v5049
    %v5414 = vunpack.c.l.b16 %v5050
    %v5415 = vunpack.c.h.b16 %v5050
    %v5416 = vunpack.c.l.b16 %v5051
    %v5417 = vunpack.c.h.b16 %v5051
    %v5418 = vunpack.c.l.b16 %v5052
    %v5419 = vunpack.c.h.b16 %v5052
    %v5420 = vunpack.c.l.b16 %v5053
    %v5421 = vunpack.c.h.b16 %v5053
    %v5422 = vunpack.c.l.b16 %v5054
    %v5423 = vunpack.c.h.b16 %v5054
    %v5424 = vunpack.c.l.b16 %v5055
    %v5425 = vunpack.c.h.b16 %v5055
    %v5426 = vunpack.c.l.b16 %v5056
    %v5427 = vunpack.c.h.b16 %v5056
    %v5428 = vunpack.c.l.b16 %v5057
    %v5429 = vunpack.c.h.b16 %v5057
    %v5430 = vunpack.c.l.b16 %v5058
    %v5431 = vunpack.c.h.b16 %v5058
    %v5432 = vunpack.c.l.b16 %v5059
    %v5433 = vunpack.c.h.b16 %v5059
    %v5434 = vunpack.c.l.b16 %v5060
    %v5435 = vunpack.c.h.b16 %v5060
    %v5436 = vunpack.c.l.b16 %v5061
    %v5437 = vunpack.c.h.b16 %v5061
    %v5438 = vunpack.c.l.b16 %v5062
    %v5439 = vunpack.c.h.b16 %v5062
    %v5440 = vunpack.c.l.b16 %v5063
    %v5441 = vunpack.c.h.b16 %v5063
    %v5442 = vunpack.c.l.b16 %v5064
    %v5443 = vunpack.c.h.b16 %v5064
    %v5444 = vunpack.c.l.b16 %v5065
    %v5445 = vunpack.c.h.b16 %v5065
    %v5446 = vunpack.c.l.b16 %v5066
    %v5447 = vunpack.c.h.b16 %v5066
    %v5448 = vunpack.c.l.b16 %v5067
    %v5449 = vunpack.c.h.b16 %v5067
    %v5450 = vunpack.c.l.b16 %v5068
    %v5451 = vunpack.c.h.b16 %v5068
    %v5452 = vunpack.c.l.b16 %v5069
    %v5453 = vunpack.c.h.b16 %v5069
    %v5454 = vunpack.c.l.b16 %v5070
    %v5455 = vunpack.c.h.b16 %v5070
    %v5456 = vunpack.c.l.b16 %v5071
    %v5457 = vunpack.c.h.b16 %v5071
    %v5458 = vunpack.c.l.b16 %v5072
    %v5459 = vunpack.c.h.b16 %v5072
    %v5460 = vunpack.c.l.b16 %v5073
    %v5461 = vunpack.c.h.b16 %v5073
    %v5462 = vunpack.c.l.b16 %v5074
    %v5463 = vunpack.c.h.b16 %v5074
    %v5464 = vunpack.c.l.b16 %v5075
    %v5465 = vunpack.c.h.b16 %v5075
    %v5466 = vunpack.c.l.b16 %v5076
    %v5467 = vunpack.c.h.b16 %v5076
    %v5468 = vunpack.c.l.b16 %v5077
    %v5469 = vunpack.c.h.b16 %v5077
    %v5470 = vunpack.c.l.b16 %v5078
    %v5471 = vunpack.c.h.b16 %v5078
    %v5472 = vunpack.c.l.b16 %v5079
    %v5473 = vunpack.c.h.b16 %v5079
    %v5474 = vunpack.c.l.b16 %v5080
    %v5475 = vunpack.c.h.b16 %v5080
    %v5476 = vunpack.c.l.b16 %v5081
    %v5477 = vunpack.c.h.b16 %v5081
    %v5478 = vunpack.c.l.b16 %v5082
    %v5479 = vunpack.c.h.b16 %v5082
    %v5480 = vunpack.c.l.b16 %v5083
    %v5481 = vunpack.c.h.b16 %v5083
    %v5482 = vunpack.c.l.b16 %v5084
    %v5483 = vunpack.c.h.b16 %v5084
    %v5484 = vpack.c.b16 %v5232, %v5228
    %v5485 = vpack.c.b16 %v5233, %v5229
    %v5486 = vpack.c.b16 %v5234, %v5230
    %v5487 = vpack.c.b16 %v5235, %v5231
    %v5488 = vpack.c.b16 %v5240, %v5236
    %v5489 = vpack.c.b16 %v5241, %v5237
    %v5490 = vpack.c.b16 %v5242, %v5238
    %v5491 = vpack.c.b16 %v5243, %v5239
    %v5492 = vpack.c.b16 %v5248, %v5244
    %v5493 = vpack.c.b16 %v5249, %v5245
    %v5494 = vpack.c.b16 %v5250, %v5246
    %v5495 = vpack.c.b16 %v5251, %v5247
    %v5496 = vpack.c.b16 %v5256, %v5252
    %v5497 = vpack.c.b16 %v5257, %v5253
    %v5498 = vpack.c.b16 %v5258, %v5254
    %v5499 = vpack.c.b16 %v5259, %v5255
    %v5500 = vpack.c.b16 %v5264, %v5260
    %v5501 = vpack.c.b16 %v5265, %v5261
    %v5502 = vpack.c.b16 %v5266, %v5262
    %v5503 = vpack.c.b16 %v5267, %v5263
    %v5504 = vpack.c.b16 %v5272, %v5268
    %v5505 = vpack.c.b16 %v5273, %v5269
    %v5506 = vpack.c.b16 %v5274, %v5270
    %v5507 = vpack.c.b16 %v5275, %v5271
    %v5508 = vpack.c.b16 %v5280, %v5276
    %v5509 = vpack.c.b16 %v5281, %v5277
    %v5510 = vpack.c.b16 %v5282, %v5278
    %v5511 = vpack.c.b16 %v5283, %v5279
    %v5512 = vpack.c.b16 %v5288, %v5284
    %v5513 = vpack.c.b16 %v5289, %v5285
    %v5514 = vpack.c.b16 %v5290, %v5286
    %v5515 = vpack.c.b16 %v5291, %v5287
    %v5516 = vpack.c.b16 %v5296, %v5292
    %v5517 = vpack.c.b16 %v5297, %v5293
    %v5518 = vpack.c.b16 %v5298, %v5294
    %v5519 = vpack.c.b16 %v5299, %v5295
    %v5520 = vpack.c.b16 %v5304, %v5300
    %v5521 = vpack.c.b16 %v5305, %v5301
    %v5522 = vpack.c.b16 %v5306, %v5302
    %v5523 = vpack.c.b16 %v5307, %v5303
    %v5524 = vpack.c.b16 %v5312, %v5308
    %v5525 = vpack.c.b16 %v5313, %v5309
    %v5526 = vpack.c.b16 %v5314, %v5310
    %v5527 = vpack.c.b16 %v5315, %v5311
    %v5528 = vpack.c.b16 %v5320, %v5316
    %v5529 = vpack.c.b16 %v5321, %v5317
    %v5530 = vpack.c.b16 %v5322, %v5318
    %v5531 = vpack.c.b16 %v5323, %v5319
    %v5532 = vpack.c.b16 %v5328, %v5324
    %v5533 = vpack.c.b16 %v5329, %v5325
    %v5534 = vpack.c.b16 %v5330, %v5326
    %v5535 = vpack.c.b16 %v5331, %v5327
    %v5536 = vpack.c.b16 %v5336, %v5332
    %v5537 = vpack.c.b16 %v5337, %v5333
    %v5538 = vpack.c.b16 %v5338, %v5334
    %v5539 = vpack.c.b16 %v5339, %v5335
    %v5540 = vpack.c.b16 %v5344, %v5340
    %v5541 = vpack.c.b16 %v5345, %v5341
    %v5542 = vpack.c.b16 %v5346, %v5342
    %v5543 = vpack.c.b16 %v5347, %v5343
    %v5544 = vpack.c.b16 %v5352, %v5348
    %v5545 = vpack.c.b16 %v5353, %v5349
    %v5546 = vpack.c.b16 %v5354, %v5350
    %v5547 = vpack.c.b16 %v5355, %v5351
    %v5548 = vpack.c.b16 %v5360, %v5356
    %v5549 = vpack.c.b16 %v5361, %v5357
    %v5550 = vpack.c.b16 %v5362, %v5358
    %v5551 = vpack.c.b16 %v5363, %v5359
    %v5552 = vpack.c.b16 %v5368, %v5364
    %v5553 = vpack.c.b16 %v5369, %v5365
    %v5554 = vpack.c.b16 %v5370, %v5366
    %v5555 = vpack.c.b16 %v5371, %v5367
    %v5556 = vpack.c.b16 %v5376, %v5372
    %v5557 = vpack.c.b16 %v5377, %v5373
    %v5558 = vpack.c.b16 %v5378, %v5374
    %v5559 = vpack.c.b16 %v5379, %v5375
    %v5560 = vpack.c.b16 %v5384, %v5380
    %v5561 = vpack.c.b16 %v5385, %v5381
    %v5562 = vpack.c.b16 %v5386, %v5382
    %v5563 = vpack.c.b16 %v5387, %v5383
    %v5564 = vpack.c.b16 %v5392, %v5388
    %v5565 = vpack.c.b16 %v5393, %v5389
    %v5566 = vpack.c.b16 %v5394, %v5390
    %v5567 = vpack.c.b16 %v5395, %v5391
    %v5568 = vpack.c.b16 %v5400, %v5396
    %v5569 = vpack.c.b16 %v5401, %v5397
    %v5570 = vpack.c.b16 %v5402, %v5398
    %v5571 = vpack.c.b16 %v5403, %v5399
    %v5572 = vpack.c.b16 %v5408, %v5404
    %v5573 = vpack.c.b16 %v5409, %v5405
    %v5574 = vpack.c.b16 %v5410, %v5406
    %v5575 = vpack.c.b16 %v5411, %v5407
    %v5576 = vpack.c.b16 %v5416, %v5412
    %v5577 = vpack.c.b16 %v5417, %v5413
    %v5578 = vpack.c.b16 %v5418, %v5414
    %v5579 = vpack.c.b16 %v5419, %v5415
    %v5580 = vpack.c.b16 %v5424, %v5420
    %v5581 = vpack.c.b16 %v5425, %v5421
    %v5582 = vpack.c.b16 %v5426, %v5422
    %v5583 = vpack.c.b16 %v5427, %v5423
    %v5584 = vpack.c.b16 %v5432, %v5428
    %v5585 = vpack.c.b16 %v5433, %v5429
    %v5586 = vpack.c.b16 %v5434, %v5430
    %v5587 = vpack.c.b16 %v5435, %v5431
    %v5588 = vpack.c.b16 %v5440, %v5436
    %v5589 = vpack.c.b16 %v5441, %v5437
    %v5590 = vpack.c.b16 %v5442, %v5438
    %v5591 = vpack.c.b16 %v5443, %v5439
    %v5592 = vpack.c.b16 %v5448, %v5444
    %v5593 = vpack.c.b16 %v5449, %v5445
    %v5594 = vpack.c.b16 %v5450, %v5446
    %v5595 = vpack.c.b16 %v5451, %v5447
    %v5596 = vpack.c.b16 %v5456, %v5452
    %v5597 = vpack.c.b16 %v5457, %v5453
    %v5598 = vpack.c.b16 %v5458, %v5454
    %v5599 = vpack.c.b16 %v5459, %v5455
    %v5600 = vpack.c.b16 %v5464, %v5460
    %v5601 = vpack.c.b16 %v5465, %v5461
    %v5602 = vpack.c.b16 %v5466, %v5462
    %v5603 = vpack.c.b16 %v5467, %v5463
    %v5604 = vpack.c.b16 %v5472, %v5468
    %v5605 = vpack.c.b16 %v5473, %v5469
    %v5606 = vpack.c.b16 %v5474, %v5470
    %v5607 = vpack.c.b16 %v5475, %v5471
    %v5608 = vpack.c.b16 %v5480, %v5476
    %v5609 = vpack.c.b16 %v5481, %v5477
    %v5610 = vpack.c.b16 %v5482, %v5478
    %v5611 = vpack.c.b16 %v5483, %v5479
    %5740 = vmatpush.bf16.msra.mxu0 %v5512
    %5741 = vmatpush.bf16.msra.mxu0 %v5508
    %5742 = vmatpush.bf16.msra.mxu0 %v5504
    %5743 = vmatpush.bf16.msra.mxu0 %v5500
    %5744 = vmatpush.bf16.msra.mxu0 %v5496
    %5745 = vmatpush.bf16.msra.mxu0 %v5492
    %5746 = vmatpush.bf16.msra.mxu0 %v5488
    %5747 = vmatpush.bf16.msra.mxu0 %v5484
    %5748 = vmatmul.bf16.gmra.mxu0 %v5085
    %v5749 = vpop.f32.mrf.mxu0
    %v5750 = vadd.f32 %v5092, %v5749
    %v5751 = vpop.f32.mrf.mxu0
    %5752 = vdwg.mxu0
    %5753 = vmatpush.bf16.msra.mxu0 %v5544
    %5754 = vmatpush.bf16.msra.mxu0 %v5540
    %5755 = vmatpush.bf16.msra.mxu0 %v5536
    %5756 = vmatpush.bf16.msra.mxu0 %v5532
    %5757 = vmatpush.bf16.msra.mxu0 %v5528
    %5758 = vmatpush.bf16.msra.mxu0 %v5524
    %5759 = vmatpush.bf16.msra.mxu0 %v5520
    %5760 = vmatpush.bf16.msra.mxu0 %v5516
    %5761 = vmatmul.bf16.gmra.mxu0 %v5086
    %v5762 = vpop.f32.mrf.mxu0
    %v5763 = vadd.f32 %v5750, %v5762
    %v5764 = vpop.f32.mrf.mxu0
    %5765 = vdwg.mxu0
    %5766 = vmatpush.bf16.msra.mxu0 %v5576
    %5767 = vmatpush.bf16.msra.mxu0 %v5572
    %5768 = vmatpush.bf16.msra.mxu0 %v5568
    %5769 = vmatpush.bf16.msra.mxu0 %v5564
    %5770 = vmatpush.bf16.msra.mxu0 %v5560
    %5771 = vmatpush.bf16.msra.mxu0 %v5556
    %5772 = vmatpush.bf16.msra.mxu0 %v5552
    %5773 = vmatpush.bf16.msra.mxu0 %v5548
    %5774 = vmatmul.bf16.gmra.mxu0 %v5087
    %v5775 = vpop.f32.mrf.mxu0
    %v5776 = vadd.f32 %v5763, %v5775
    %v5777 = vpop.f32.mrf.mxu0
    %5778 = vdwg.mxu0
    %5779 = vmatpush.bf16.msra.mxu0 %v5608
    %5780 = vmatpush.bf16.msra.mxu0 %v5604
    %5781 = vmatpush.bf16.msra.mxu0 %v5600
    %5782 = vmatpush.bf16.msra.mxu0 %v5596
    %5783 = vmatpush.bf16.msra.mxu0 %v5592
    %5784 = vmatpush.bf16.msra.mxu0 %v5588
    %5785 = vmatpush.bf16.msra.mxu0 %v5584
    %5786 = vmatpush.bf16.msra.mxu0 %v5580
    %5787 = vmatmul.bf16.gmra.mxu0 %v5088
    %v5788 = vpop.f32.mrf.mxu0
    %v5789 = vadd.f32 %v5776, %v5788
    %v5790 = vpop.f32.mrf.mxu0
    %5791 = vdwg.mxu0
    %5792 = vmatpush.bf16.msra.mxu0 %v5513
    %5793 = vmatpush.bf16.msra.mxu0 %v5509
    %5794 = vmatpush.bf16.msra.mxu0 %v5505
    %5795 = vmatpush.bf16.msra.mxu0 %v5501
    %5796 = vmatpush.bf16.msra.mxu0 %v5497
    %5797 = vmatpush.bf16.msra.mxu0 %v5493
    %5798 = vmatpush.bf16.msra.mxu0 %v5489
    %5799 = vmatpush.bf16.msra.mxu0 %v5485
    %5800 = vmatmul.bf16.gmra.mxu0 %v5085
    %v5801 = vpop.f32.mrf.mxu0
    %v5802 = vadd.f32 %v5093, %v5801
    %v5803 = vpop.f32.mrf.mxu0
    %5804 = vdwg.mxu0
    %5805 = vmatpush.bf16.msra.mxu0 %v5545
    %5806 = vmatpush.bf16.msra.mxu0 %v5541
    %5807 = vmatpush.bf16.msra.mxu0 %v5537
    %5808 = vmatpush.bf16.msra.mxu0 %v5533
    %5809 = vmatpush.bf16.msra.mxu0 %v5529
    %5810 = vmatpush.bf16.msra.mxu0 %v5525
    %5811 = vmatpush.bf16.msra.mxu0 %v5521
    %5812 = vmatpush.bf16.msra.mxu0 %v5517
    %5813 = vmatmul.bf16.gmra.mxu0 %v5086
    %v5814 = vpop.f32.mrf.mxu0
    %v5815 = vadd.f32 %v5802, %v5814
    %v5816 = vpop.f32.mrf.mxu0
    %5817 = vdwg.mxu0
    %5818 = vmatpush.bf16.msra.mxu0 %v5577
    %5819 = vmatpush.bf16.msra.mxu0 %v5573
    %5820 = vmatpush.bf16.msra.mxu0 %v5569
    %5821 = vmatpush.bf16.msra.mxu0 %v5565
    %5822 = vmatpush.bf16.msra.mxu0 %v5561
    %5823 = vmatpush.bf16.msra.mxu0 %v5557
    %5824 = vmatpush.bf16.msra.mxu0 %v5553
    %5825 = vmatpush.bf16.msra.mxu0 %v5549
    %5826 = vmatmul.bf16.gmra.mxu0 %v5087
    %v5827 = vpop.f32.mrf.mxu0
    %v5828 = vadd.f32 %v5815, %v5827
    %v5829 = vpop.f32.mrf.mxu0
    %5830 = vdwg.mxu0
    %5831 = vmatpush.bf16.msra.mxu0 %v5609
    %5832 = vmatpush.bf16.msra.mxu0 %v5605
    %5833 = vmatpush.bf16.msra.mxu0 %v5601
    %5834 = vmatpush.bf16.msra.mxu0 %v5597
    %5835 = vmatpush.bf16.msra.mxu0 %v5593
    %5836 = vmatpush.bf16.msra.mxu0 %v5589
    %5837 = vmatpush.bf16.msra.mxu0 %v5585
    %5838 = vmatpush.bf16.msra.mxu0 %v5581
    %5839 = vmatmul.bf16.gmra.mxu0 %v5088
    %v5840 = vpop.f32.mrf.mxu0
    %v5841 = vadd.f32 %v5828, %v5840
    %v5842 = vpop.f32.mrf.mxu0
    %5843 = vdwg.mxu0
    %5844 = vmatpush.bf16.msra.mxu0 %v5514
    %5845 = vmatpush.bf16.msra.mxu0 %v5510
    %5846 = vmatpush.bf16.msra.mxu0 %v5506
    %5847 = vmatpush.bf16.msra.mxu0 %v5502
    %5848 = vmatpush.bf16.msra.mxu0 %v5498
    %5849 = vmatpush.bf16.msra.mxu0 %v5494
    %5850 = vmatpush.bf16.msra.mxu0 %v5490
    %5851 = vmatpush.bf16.msra.mxu0 %v5486
    %5852 = vmatmul.bf16.gmra.mxu0 %v5085
    %v5853 = vpop.f32.mrf.mxu0
    %v5854 = vadd.f32 %v5094, %v5853
    %v5855 = vpop.f32.mrf.mxu0
    %5856 = vdwg.mxu0
    %5857 = vmatpush.bf16.msra.mxu0 %v5546
    %5858 = vmatpush.bf16.msra.mxu0 %v5542
    %5859 = vmatpush.bf16.msra.mxu0 %v5538
    %5860 = vmatpush.bf16.msra.mxu0 %v5534
    %5861 = vmatpush.bf16.msra.mxu0 %v5530
    %5862 = vmatpush.bf16.msra.mxu0 %v5526
    %5863 = vmatpush.bf16.msra.mxu0 %v5522
    %5864 = vmatpush.bf16.msra.mxu0 %v5518
    %5865 = vmatmul.bf16.gmra.mxu0 %v5086
    %v5866 = vpop.f32.mrf.mxu0
    %v5867 = vadd.f32 %v5854, %v5866
    %v5868 = vpop.f32.mrf.mxu0
    %5869 = vdwg.mxu0
    %5870 = vmatpush.bf16.msra.mxu0 %v5578
    %5871 = vmatpush.bf16.msra.mxu0 %v5574
    %5872 = vmatpush.bf16.msra.mxu0 %v5570
    %5873 = vmatpush.bf16.msra.mxu0 %v5566
    %5874 = vmatpush.bf16.msra.mxu0 %v5562
    %5875 = vmatpush.bf16.msra.mxu0 %v5558
    %5876 = vmatpush.bf16.msra.mxu0 %v5554
    %5877 = vmatpush.bf16.msra.mxu0 %v5550
    %5878 = vmatmul.bf16.gmra.mxu0 %v5087
    %v5879 = vpop.f32.mrf.mxu0
    %v5880 = vadd.f32 %v5867, %v5879
    %v5881 = vpop.f32.mrf.mxu0
    %5882 = vdwg.mxu0
    %5883 = vmatpush.bf16.msra.mxu0 %v5610
    %5884 = vmatpush.bf16.msra.mxu0 %v5606
    %5885 = vmatpush.bf16.msra.mxu0 %v5602
    %5886 = vmatpush.bf16.msra.mxu0 %v5598
    %5887 = vmatpush.bf16.msra.mxu0 %v5594
    %5888 = vmatpush.bf16.msra.mxu0 %v5590
    %5889 = vmatpush.bf16.msra.mxu0 %v5586
    %5890 = vmatpush.bf16.msra.mxu0 %v5582
    %5891 = vmatmul.bf16.gmra.mxu0 %v5088
    %v5892 = vpop.f32.mrf.mxu0
    %v5893 = vadd.f32 %v5880, %v5892
    %v5894 = vpop.f32.mrf.mxu0
    %5895 = vdwg.mxu0
    %5896 = vmatpush.bf16.msra.mxu0 %v5515
    %5897 = vmatpush.bf16.msra.mxu0 %v5511
    %5898 = vmatpush.bf16.msra.mxu0 %v5507
    %5899 = vmatpush.bf16.msra.mxu0 %v5503
    %5900 = vmatpush.bf16.msra.mxu0 %v5499
    %5901 = vmatpush.bf16.msra.mxu0 %v5495
    %5902 = vmatpush.bf16.msra.mxu0 %v5491
    %5903 = vmatpush.bf16.msra.mxu0 %v5487
    %5904 = vmatmul.bf16.gmra.mxu0 %v5085
    %v5905 = vpop.f32.mrf.mxu0
    %v5906 = vadd.f32 %v5095, %v5905
    %v5907 = vpop.f32.mrf.mxu0
    %5908 = vdwg.mxu0
    %5909 = vmatpush.bf16.msra.mxu0 %v5547
    %5910 = vmatpush.bf16.msra.mxu0 %v5543
    %5911 = vmatpush.bf16.msra.mxu0 %v5539
    %5912 = vmatpush.bf16.msra.mxu0 %v5535
    %5913 = vmatpush.bf16.msra.mxu0 %v5531
    %5914 = vmatpush.bf16.msra.mxu0 %v5527
    %5915 = vmatpush.bf16.msra.mxu0 %v5523
    %5916 = vmatpush.bf16.msra.mxu0 %v5519
    %5917 = vmatmul.bf16.gmra.mxu0 %v5086
    %v5918 = vpop.f32.mrf.mxu0
    %v5919 = vadd.f32 %v5906, %v5918
    %v5920 = vpop.f32.mrf.mxu0
    %5921 = vdwg.mxu0
    %5922 = vmatpush.bf16.msra.mxu0 %v5579
    %5923 = vmatpush.bf16.msra.mxu0 %v5575
    %5924 = vmatpush.bf16.msra.mxu0 %v5571
    %5925 = vmatpush.bf16.msra.mxu0 %v5567
    %5926 = vmatpush.bf16.msra.mxu0 %v5563
    %5927 = vmatpush.bf16.msra.mxu0 %v5559
    %5928 = vmatpush.bf16.msra.mxu0 %v5555
    %5929 = vmatpush.bf16.msra.mxu0 %v5551
    %5930 = vmatmul.bf16.gmra.mxu0 %v5087
    %v5931 = vpop.f32.mrf.mxu0
    %v5932 = vadd.f32 %v5919, %v5931
    %v5933 = vpop.f32.mrf.mxu0
    %5934 = vdwg.mxu0
    %5935 = vmatpush.bf16.msra.mxu0 %v5611
    %5936 = vmatpush.bf16.msra.mxu0 %v5607
    %5937 = vmatpush.bf16.msra.mxu0 %v5603
    %5938 = vmatpush.bf16.msra.mxu0 %v5599
    %5939 = vmatpush.bf16.msra.mxu0 %v5595
    %5940 = vmatpush.bf16.msra.mxu0 %v5591
    %5941 = vmatpush.bf16.msra.mxu0 %v5587
    %5942 = vmatpush.bf16.msra.mxu0 %v5583
    %5943 = vmatmul.bf16.gmra.mxu0 %v5088
    %v5944 = vpop.f32.mrf.mxu0
    %v5945 = vadd.f32 %v5932, %v5944
    %v5946 = vpop.f32.mrf.mxu0
    %5947 = vdwg.mxu0
    %v5948 = vld [vmem:[#allocation2 + $0x400] sm:$0xff]
    %v5949 = vld [vmem:[#allocation2 + $0x408] sm:$0xff]
    %v5950 = vld [vmem:[#allocation2 + $0x410] sm:$0xff]
    %v5951 = vld [vmem:[#allocation2 + $0x418] sm:$0xff]
    %v5952 = vld [vmem:[#allocation2 + $0x420] sm:$0xff]
    %v5953 = vld [vmem:[#allocation2 + $0x428] sm:$0xff]
    %v5954 = vld [vmem:[#allocation2 + $0x430] sm:$0xff]
    %v5955 = vld [vmem:[#allocation2 + $0x438] sm:$0xff]
    %v5956 = vld [vmem:[#allocation2 + $0x440] sm:$0xff]
    %v5957 = vld [vmem:[#allocation2 + $0x448] sm:$0xff]
    %v5958 = vld [vmem:[#allocation2 + $0x450] sm:$0xff]
    %v5959 = vld [vmem:[#allocation2 + $0x458] sm:$0xff]
    %v5960 = vld [vmem:[#allocation2 + $0x460] sm:$0xff]
    %v5961 = vld [vmem:[#allocation2 + $0x468] sm:$0xff]
    %v5962 = vld [vmem:[#allocation2 + $0x470] sm:$0xff]
    %v5963 = vld [vmem:[#allocation2 + $0x478] sm:$0xff]
    %v5964 = vld [vmem:[#allocation2 + $0x480] sm:$0xff]
    %v5965 = vld [vmem:[#allocation2 + $0x488] sm:$0xff]
    %v5966 = vld [vmem:[#allocation2 + $0x490] sm:$0xff]
    %v5967 = vld [vmem:[#allocation2 + $0x498] sm:$0xff]
    %v5968 = vld [vmem:[#allocation2 + $0x4a0] sm:$0xff]
    %v5969 = vld [vmem:[#allocation2 + $0x4a8] sm:$0xff]
    %v5970 = vld [vmem:[#allocation2 + $0x4b0] sm:$0xff]
    %v5971 = vld [vmem:[#allocation2 + $0x4b8] sm:$0xff]
    %v5972 = vld [vmem:[#allocation2 + $0x4c0] sm:$0xff]
    %v5973 = vld [vmem:[#allocation2 + $0x4c8] sm:$0xff]
    %v5974 = vld [vmem:[#allocation2 + $0x4d0] sm:$0xff]
    %v5975 = vld [vmem:[#allocation2 + $0x4d8] sm:$0xff]
    %v5976 = vld [vmem:[#allocation2 + $0x4e0] sm:$0xff]
    %v5977 = vld [vmem:[#allocation2 + $0x4e8] sm:$0xff]
    %v5978 = vld [vmem:[#allocation2 + $0x4f0] sm:$0xff]
    %v5979 = vld [vmem:[#allocation2 + $0x4f8] sm:$0xff]
    %v5980 = vld [vmem:[#allocation2 + $0x500] sm:$0xff]
    %v5981 = vld [vmem:[#allocation2 + $0x508] sm:$0xff]
    %v5982 = vld [vmem:[#allocation2 + $0x510] sm:$0xff]
    %v5983 = vld [vmem:[#allocation2 + $0x518] sm:$0xff]
    %v5984 = vld [vmem:[#allocation2 + $0x520] sm:$0xff]
    %v5985 = vld [vmem:[#allocation2 + $0x528] sm:$0xff]
    %v5986 = vld [vmem:[#allocation2 + $0x530] sm:$0xff]
    %v5987 = vld [vmem:[#allocation2 + $0x538] sm:$0xff]
    %v5988 = vld [vmem:[#allocation2 + $0x540] sm:$0xff]
    %v5989 = vld [vmem:[#allocation2 + $0x548] sm:$0xff]
    %v5990 = vld [vmem:[#allocation2 + $0x550] sm:$0xff]
    %v5991 = vld [vmem:[#allocation2 + $0x558] sm:$0xff]
    %v5992 = vld [vmem:[#allocation2 + $0x560] sm:$0xff]
    %v5993 = vld [vmem:[#allocation2 + $0x568] sm:$0xff]
    %v5994 = vld [vmem:[#allocation2 + $0x570] sm:$0xff]
    %v5995 = vld [vmem:[#allocation2 + $0x578] sm:$0xff]
    %v5996 = vld [vmem:[#allocation2 + $0x580] sm:$0xff]
    %v5997 = vld [vmem:[#allocation2 + $0x588] sm:$0xff]
    %v5998 = vld [vmem:[#allocation2 + $0x590] sm:$0xff]
    %v5999 = vld [vmem:[#allocation2 + $0x598] sm:$0xff]
    %v6000 = vld [vmem:[#allocation2 + $0x5a0] sm:$0xff]
    %v6001 = vld [vmem:[#allocation2 + $0x5a8] sm:$0xff]
    %v6002 = vld [vmem:[#allocation2 + $0x5b0] sm:$0xff]
    %v6003 = vld [vmem:[#allocation2 + $0x5b8] sm:$0xff]
    %v6004 = vld [vmem:[#allocation2 + $0x5c0] sm:$0xff]
    %v6005 = vld [vmem:[#allocation2 + $0x5c8] sm:$0xff]
    %v6006 = vld [vmem:[#allocation2 + $0x5d0] sm:$0xff]
    %v6007 = vld [vmem:[#allocation2 + $0x5d8] sm:$0xff]
    %v6008 = vld [vmem:[#allocation2 + $0x5e0] sm:$0xff]
    %v6009 = vld [vmem:[#allocation2 + $0x5e8] sm:$0xff]
    %v6010 = vld [vmem:[#allocation2 + $0x5f0] sm:$0xff]
    %v6011 = vld [vmem:[#allocation2 + $0x5f8] sm:$0xff]
    %v6012 = vld [vmem:[#allocation2 + $0x600] sm:$0xff]
    %v6013 = vld [vmem:[#allocation2 + $0x608] sm:$0xff]
    %v6014 = vld [vmem:[#allocation2 + $0x610] sm:$0xff]
    %v6015 = vld [vmem:[#allocation2 + $0x618] sm:$0xff]
    %v6016 = vld [vmem:[#allocation2 + $0x620] sm:$0xff]
    %v6017 = vld [vmem:[#allocation2 + $0x628] sm:$0xff]
    %v6018 = vld [vmem:[#allocation2 + $0x630] sm:$0xff]
    %v6019 = vld [vmem:[#allocation2 + $0x638] sm:$0xff]
    %v6020 = vld [vmem:[#allocation2 + $0x640] sm:$0xff]
    %v6021 = vld [vmem:[#allocation2 + $0x648] sm:$0xff]
    %v6022 = vld [vmem:[#allocation2 + $0x650] sm:$0xff]
    %v6023 = vld [vmem:[#allocation2 + $0x658] sm:$0xff]
    %v6024 = vld [vmem:[#allocation2 + $0x660] sm:$0xff]
    %v6025 = vld [vmem:[#allocation2 + $0x668] sm:$0xff]
    %v6026 = vld [vmem:[#allocation2 + $0x670] sm:$0xff]
    %v6027 = vld [vmem:[#allocation2 + $0x678] sm:$0xff]
    %v6028 = vld [vmem:[#allocation2 + $0x680] sm:$0xff]
    %v6029 = vld [vmem:[#allocation2 + $0x688] sm:$0xff]
    %v6030 = vld [vmem:[#allocation2 + $0x690] sm:$0xff]
    %v6031 = vld [vmem:[#allocation2 + $0x698] sm:$0xff]
    %v6032 = vld [vmem:[#allocation2 + $0x6a0] sm:$0xff]
    %v6033 = vld [vmem:[#allocation2 + $0x6a8] sm:$0xff]
    %v6034 = vld [vmem:[#allocation2 + $0x6b0] sm:$0xff]
    %v6035 = vld [vmem:[#allocation2 + $0x6b8] sm:$0xff]
    %v6036 = vld [vmem:[#allocation2 + $0x6c0] sm:$0xff]
    %v6037 = vld [vmem:[#allocation2 + $0x6c8] sm:$0xff]
    %v6038 = vld [vmem:[#allocation2 + $0x6d0] sm:$0xff]
    %v6039 = vld [vmem:[#allocation2 + $0x6d8] sm:$0xff]
    %v6040 = vld [vmem:[#allocation2 + $0x6e0] sm:$0xff]
    %v6041 = vld [vmem:[#allocation2 + $0x6e8] sm:$0xff]
    %v6042 = vld [vmem:[#allocation2 + $0x6f0] sm:$0xff]
    %v6043 = vld [vmem:[#allocation2 + $0x6f8] sm:$0xff]
    %v6044 = vld [vmem:[#allocation2 + $0x700] sm:$0xff]
    %v6045 = vld [vmem:[#allocation2 + $0x708] sm:$0xff]
    %v6046 = vld [vmem:[#allocation2 + $0x710] sm:$0xff]
    %v6047 = vld [vmem:[#allocation2 + $0x718] sm:$0xff]
    %v6048 = vld [vmem:[#allocation2 + $0x720] sm:$0xff]
    %v6049 = vld [vmem:[#allocation2 + $0x728] sm:$0xff]
    %v6050 = vld [vmem:[#allocation2 + $0x730] sm:$0xff]
    %v6051 = vld [vmem:[#allocation2 + $0x738] sm:$0xff]
    %v6052 = vld [vmem:[#allocation2 + $0x740] sm:$0xff]
    %v6053 = vld [vmem:[#allocation2 + $0x748] sm:$0xff]
    %v6054 = vld [vmem:[#allocation2 + $0x750] sm:$0xff]
    %v6055 = vld [vmem:[#allocation2 + $0x758] sm:$0xff]
    %v6056 = vld [vmem:[#allocation2 + $0x760] sm:$0xff]
    %v6057 = vld [vmem:[#allocation2 + $0x768] sm:$0xff]
    %v6058 = vld [vmem:[#allocation2 + $0x770] sm:$0xff]
    %v6059 = vld [vmem:[#allocation2 + $0x778] sm:$0xff]
    %v6060 = vld [vmem:[#allocation2 + $0x780] sm:$0xff]
    %v6061 = vld [vmem:[#allocation2 + $0x788] sm:$0xff]
    %v6062 = vld [vmem:[#allocation2 + $0x790] sm:$0xff]
    %v6063 = vld [vmem:[#allocation2 + $0x798] sm:$0xff]
    %v6064 = vld [vmem:[#allocation2 + $0x7a0] sm:$0xff]
    %v6065 = vld [vmem:[#allocation2 + $0x7a8] sm:$0xff]
    %v6066 = vld [vmem:[#allocation2 + $0x7b0] sm:$0xff]
    %v6067 = vld [vmem:[#allocation2 + $0x7b8] sm:$0xff]
    %v6068 = vld [vmem:[#allocation2 + $0x7c0] sm:$0xff]
    %v6069 = vld [vmem:[#allocation2 + $0x7c8] sm:$0xff]
    %v6070 = vld [vmem:[#allocation2 + $0x7d0] sm:$0xff]
    %v6071 = vld [vmem:[#allocation2 + $0x7d8] sm:$0xff]
    %v6072 = vld [vmem:[#allocation2 + $0x7e0] sm:$0xff]
    %v6073 = vld [vmem:[#allocation2 + $0x7e8] sm:$0xff]
    %v6074 = vld [vmem:[#allocation2 + $0x7f0] sm:$0xff]
    %v6075 = vld [vmem:[#allocation2 + $0x7f8] sm:$0xff]
    %s6076 = scalar_lea.vmem [#allocation5], 35
    %v6077 = vld [vmem:[%s6076] ss:$8 sm:$0xf]
    %v6079 = vperm.slane %v6077, 0
    %v6080 = vperm.slane %v6077, 1
    %v6081 = vperm.slane %v6077, 2
    %v6082 = vperm.slane %v6077, 3
    %v6215 = vunpack.c.l.b16 %v5948
    %v6216 = vunpack.c.h.b16 %v5948
    %v6217 = vunpack.c.l.b16 %v5949
    %v6218 = vunpack.c.h.b16 %v5949
    %v6219 = vunpack.c.l.b16 %v5950
    %v6220 = vunpack.c.h.b16 %v5950
    %v6221 = vunpack.c.l.b16 %v5951
    %v6222 = vunpack.c.h.b16 %v5951
    %v6223 = vunpack.c.l.b16 %v5952
    %v6224 = vunpack.c.h.b16 %v5952
    %v6225 = vunpack.c.l.b16 %v5953
    %v6226 = vunpack.c.h.b16 %v5953
    %v6227 = vunpack.c.l.b16 %v5954
    %v6228 = vunpack.c.h.b16 %v5954
    %v6229 = vunpack.c.l.b16 %v5955
    %v6230 = vunpack.c.h.b16 %v5955
    %v6231 = vunpack.c.l.b16 %v5956
    %v6232 = vunpack.c.h.b16 %v5956
    %v6233 = vunpack.c.l.b16 %v5957
    %v6234 = vunpack.c.h.b16 %v5957
    %v6235 = vunpack.c.l.b16 %v5958
    %v6236 = vunpack.c.h.b16 %v5958
    %v6237 = vunpack.c.l.b16 %v5959
    %v6238 = vunpack.c.h.b16 %v5959
    %v6239 = vunpack.c.l.b16 %v5960
    %v6240 = vunpack.c.h.b16 %v5960
    %v6241 = vunpack.c.l.b16 %v5961
    %v6242 = vunpack.c.h.b16 %v5961
    %v6243 = vunpack.c.l.b16 %v5962
    %v6244 = vunpack.c.h.b16 %v5962
    %v6245 = vunpack.c.l.b16 %v5963
    %v6246 = vunpack.c.h.b16 %v5963
    %v6247 = vunpack.c.l.b16 %v5964
    %v6248 = vunpack.c.h.b16 %v5964
    %v6249 = vunpack.c.l.b16 %v5965
    %v6250 = vunpack.c.h.b16 %v5965
    %v6251 = vunpack.c.l.b16 %v5966
    %v6252 = vunpack.c.h.b16 %v5966
    %v6253 = vunpack.c.l.b16 %v5967
    %v6254 = vunpack.c.h.b16 %v5967
    %v6255 = vunpack.c.l.b16 %v5968
    %v6256 = vunpack.c.h.b16 %v5968
    %v6257 = vunpack.c.l.b16 %v5969
    %v6258 = vunpack.c.h.b16 %v5969
    %v6259 = vunpack.c.l.b16 %v5970
    %v6260 = vunpack.c.h.b16 %v5970
    %v6261 = vunpack.c.l.b16 %v5971
    %v6262 = vunpack.c.h.b16 %v5971
    %v6263 = vunpack.c.l.b16 %v5972
    %v6264 = vunpack.c.h.b16 %v5972
    %v6265 = vunpack.c.l.b16 %v5973
    %v6266 = vunpack.c.h.b16 %v5973
    %v6267 = vunpack.c.l.b16 %v5974
    %v6268 = vunpack.c.h.b16 %v5974
    %v6269 = vunpack.c.l.b16 %v5975
    %v6270 = vunpack.c.h.b16 %v5975
    %v6271 = vunpack.c.l.b16 %v5976
    %v6272 = vunpack.c.h.b16 %v5976
    %v6273 = vunpack.c.l.b16 %v5977
    %v6274 = vunpack.c.h.b16 %v5977
    %v6275 = vunpack.c.l.b16 %v5978
    %v6276 = vunpack.c.h.b16 %v5978
    %v6277 = vunpack.c.l.b16 %v5979
    %v6278 = vunpack.c.h.b16 %v5979
    %v6279 = vunpack.c.l.b16 %v5980
    %v6280 = vunpack.c.h.b16 %v5980
    %v6281 = vunpack.c.l.b16 %v5981
    %v6282 = vunpack.c.h.b16 %v5981
    %v6283 = vunpack.c.l.b16 %v5982
    %v6284 = vunpack.c.h.b16 %v5982
    %v6285 = vunpack.c.l.b16 %v5983
    %v6286 = vunpack.c.h.b16 %v5983
    %v6287 = vunpack.c.l.b16 %v5984
    %v6288 = vunpack.c.h.b16 %v5984
    %v6289 = vunpack.c.l.b16 %v5985
    %v6290 = vunpack.c.h.b16 %v5985
    %v6291 = vunpack.c.l.b16 %v5986
    %v6292 = vunpack.c.h.b16 %v5986
    %v6293 = vunpack.c.l.b16 %v5987
    %v6294 = vunpack.c.h.b16 %v5987
    %v6295 = vunpack.c.l.b16 %v5988
    %v6296 = vunpack.c.h.b16 %v5988
    %v6297 = vunpack.c.l.b16 %v5989
    %v6298 = vunpack.c.h.b16 %v5989
    %v6299 = vunpack.c.l.b16 %v5990
    %v6300 = vunpack.c.h.b16 %v5990
    %v6301 = vunpack.c.l.b16 %v5991
    %v6302 = vunpack.c.h.b16 %v5991
    %v6303 = vunpack.c.l.b16 %v5992
    %v6304 = vunpack.c.h.b16 %v5992
    %v6305 = vunpack.c.l.b16 %v5993
    %v6306 = vunpack.c.h.b16 %v5993
    %v6307 = vunpack.c.l.b16 %v5994
    %v6308 = vunpack.c.h.b16 %v5994
    %v6309 = vunpack.c.l.b16 %v5995
    %v6310 = vunpack.c.h.b16 %v5995
    %v6311 = vunpack.c.l.b16 %v5996
    %v6312 = vunpack.c.h.b16 %v5996
    %v6313 = vunpack.c.l.b16 %v5997
    %v6314 = vunpack.c.h.b16 %v5997
    %v6315 = vunpack.c.l.b16 %v5998
    %v6316 = vunpack.c.h.b16 %v5998
    %v6317 = vunpack.c.l.b16 %v5999
    %v6318 = vunpack.c.h.b16 %v5999
    %v6319 = vunpack.c.l.b16 %v6000
    %v6320 = vunpack.c.h.b16 %v6000
    %v6321 = vunpack.c.l.b16 %v6001
    %v6322 = vunpack.c.h.b16 %v6001
    %v6323 = vunpack.c.l.b16 %v6002
    %v6324 = vunpack.c.h.b16 %v6002
    %v6325 = vunpack.c.l.b16 %v6003
    %v6326 = vunpack.c.h.b16 %v6003
    %v6327 = vunpack.c.l.b16 %v6004
    %v6328 = vunpack.c.h.b16 %v6004
    %v6329 = vunpack.c.l.b16 %v6005
    %v6330 = vunpack.c.h.b16 %v6005
    %v6331 = vunpack.c.l.b16 %v6006
    %v6332 = vunpack.c.h.b16 %v6006
    %v6333 = vunpack.c.l.b16 %v6007
    %v6334 = vunpack.c.h.b16 %v6007
    %v6335 = vunpack.c.l.b16 %v6008
    %v6336 = vunpack.c.h.b16 %v6008
    %v6337 = vunpack.c.l.b16 %v6009
    %v6338 = vunpack.c.h.b16 %v6009
    %v6339 = vunpack.c.l.b16 %v6010
    %v6340 = vunpack.c.h.b16 %v6010
    %v6341 = vunpack.c.l.b16 %v6011
    %v6342 = vunpack.c.h.b16 %v6011
    %v6343 = vunpack.c.l.b16 %v6012
    %v6344 = vunpack.c.h.b16 %v6012
    %v6345 = vunpack.c.l.b16 %v6013
    %v6346 = vunpack.c.h.b16 %v6013
    %v6347 = vunpack.c.l.b16 %v6014
    %v6348 = vunpack.c.h.b16 %v6014
    %v6349 = vunpack.c.l.b16 %v6015
    %v6350 = vunpack.c.h.b16 %v6015
    %v6351 = vunpack.c.l.b16 %v6016
    %v6352 = vunpack.c.h.b16 %v6016
    %v6353 = vunpack.c.l.b16 %v6017
    %v6354 = vunpack.c.h.b16 %v6017
    %v6355 = vunpack.c.l.b16 %v6018
    %v6356 = vunpack.c.h.b16 %v6018
    %v6357 = vunpack.c.l.b16 %v6019
    %v6358 = vunpack.c.h.b16 %v6019
    %v6359 = vunpack.c.l.b16 %v6020
    %v6360 = vunpack.c.h.b16 %v6020
    %v6361 = vunpack.c.l.b16 %v6021
    %v6362 = vunpack.c.h.b16 %v6021
    %v6363 = vunpack.c.l.b16 %v6022
    %v6364 = vunpack.c.h.b16 %v6022
    %v6365 = vunpack.c.l.b16 %v6023
    %v6366 = vunpack.c.h.b16 %v6023
    %v6367 = vunpack.c.l.b16 %v6024
    %v6368 = vunpack.c.h.b16 %v6024
    %v6369 = vunpack.c.l.b16 %v6025
    %v6370 = vunpack.c.h.b16 %v6025
    %v6371 = vunpack.c.l.b16 %v6026
    %v6372 = vunpack.c.h.b16 %v6026
    %v6373 = vunpack.c.l.b16 %v6027
    %v6374 = vunpack.c.h.b16 %v6027
    %v6375 = vunpack.c.l.b16 %v6028
    %v6376 = vunpack.c.h.b16 %v6028
    %v6377 = vunpack.c.l.b16 %v6029
    %v6378 = vunpack.c.h.b16 %v6029
    %v6379 = vunpack.c.l.b16 %v6030
    %v6380 = vunpack.c.h.b16 %v6030
    %v6381 = vunpack.c.l.b16 %v6031
    %v6382 = vunpack.c.h.b16 %v6031
    %v6383 = vunpack.c.l.b16 %v6032
    %v6384 = vunpack.c.h.b16 %v6032
    %v6385 = vunpack.c.l.b16 %v6033
    %v6386 = vunpack.c.h.b16 %v6033
    %v6387 = vunpack.c.l.b16 %v6034
    %v6388 = vunpack.c.h.b16 %v6034
    %v6389 = vunpack.c.l.b16 %v6035
    %v6390 = vunpack.c.h.b16 %v6035
    %v6391 = vunpack.c.l.b16 %v6036
    %v6392 = vunpack.c.h.b16 %v6036
    %v6393 = vunpack.c.l.b16 %v6037
    %v6394 = vunpack.c.h.b16 %v6037
    %v6395 = vunpack.c.l.b16 %v6038
    %v6396 = vunpack.c.h.b16 %v6038
    %v6397 = vunpack.c.l.b16 %v6039
    %v6398 = vunpack.c.h.b16 %v6039
    %v6399 = vunpack.c.l.b16 %v6040
    %v6400 = vunpack.c.h.b16 %v6040
    %v6401 = vunpack.c.l.b16 %v6041
    %v6402 = vunpack.c.h.b16 %v6041
    %v6403 = vunpack.c.l.b16 %v6042
    %v6404 = vunpack.c.h.b16 %v6042
    %v6405 = vunpack.c.l.b16 %v6043
    %v6406 = vunpack.c.h.b16 %v6043
    %v6407 = vunpack.c.l.b16 %v6044
    %v6408 = vunpack.c.h.b16 %v6044
    %v6409 = vunpack.c.l.b16 %v6045
    %v6410 = vunpack.c.h.b16 %v6045
    %v6411 = vunpack.c.l.b16 %v6046
    %v6412 = vunpack.c.h.b16 %v6046
    %v6413 = vunpack.c.l.b16 %v6047
    %v6414 = vunpack.c.h.b16 %v6047
    %v6415 = vunpack.c.l.b16 %v6048
    %v6416 = vunpack.c.h.b16 %v6048
    %v6417 = vunpack.c.l.b16 %v6049
    %v6418 = vunpack.c.h.b16 %v6049
    %v6419 = vunpack.c.l.b16 %v6050
    %v6420 = vunpack.c.h.b16 %v6050
    %v6421 = vunpack.c.l.b16 %v6051
    %v6422 = vunpack.c.h.b16 %v6051
    %v6423 = vunpack.c.l.b16 %v6052
    %v6424 = vunpack.c.h.b16 %v6052
    %v6425 = vunpack.c.l.b16 %v6053
    %v6426 = vunpack.c.h.b16 %v6053
    %v6427 = vunpack.c.l.b16 %v6054
    %v6428 = vunpack.c.h.b16 %v6054
    %v6429 = vunpack.c.l.b16 %v6055
    %v6430 = vunpack.c.h.b16 %v6055
    %v6431 = vunpack.c.l.b16 %v6056
    %v6432 = vunpack.c.h.b16 %v6056
    %v6433 = vunpack.c.l.b16 %v6057
    %v6434 = vunpack.c.h.b16 %v6057
    %v6435 = vunpack.c.l.b16 %v6058
    %v6436 = vunpack.c.h.b16 %v6058
    %v6437 = vunpack.c.l.b16 %v6059
    %v6438 = vunpack.c.h.b16 %v6059
    %v6439 = vunpack.c.l.b16 %v6060
    %v6440 = vunpack.c.h.b16 %v6060
    %v6441 = vunpack.c.l.b16 %v6061
    %v6442 = vunpack.c.h.b16 %v6061
    %v6443 = vunpack.c.l.b16 %v6062
    %v6444 = vunpack.c.h.b16 %v6062
    %v6445 = vunpack.c.l.b16 %v6063
    %v6446 = vunpack.c.h.b16 %v6063
    %v6447 = vunpack.c.l.b16 %v6064
    %v6448 = vunpack.c.h.b16 %v6064
    %v6449 = vunpack.c.l.b16 %v6065
    %v6450 = vunpack.c.h.b16 %v6065
    %v6451 = vunpack.c.l.b16 %v6066
    %v6452 = vunpack.c.h.b16 %v6066
    %v6453 = vunpack.c.l.b16 %v6067
    %v6454 = vunpack.c.h.b16 %v6067
    %v6455 = vunpack.c.l.b16 %v6068
    %v6456 = vunpack.c.h.b16 %v6068
    %v6457 = vunpack.c.l.b16 %v6069
    %v6458 = vunpack.c.h.b16 %v6069
    %v6459 = vunpack.c.l.b16 %v6070
    %v6460 = vunpack.c.h.b16 %v6070
    %v6461 = vunpack.c.l.b16 %v6071
    %v6462 = vunpack.c.h.b16 %v6071
    %v6463 = vunpack.c.l.b16 %v6072
    %v6464 = vunpack.c.h.b16 %v6072
    %v6465 = vunpack.c.l.b16 %v6073
    %v6466 = vunpack.c.h.b16 %v6073
    %v6467 = vunpack.c.l.b16 %v6074
    %v6468 = vunpack.c.h.b16 %v6074
    %v6469 = vunpack.c.l.b16 %v6075
    %v6470 = vunpack.c.h.b16 %v6075
    %v6471 = vpack.c.b16 %v6219, %v6215
    %v6472 = vpack.c.b16 %v6220, %v6216
    %v6473 = vpack.c.b16 %v6221, %v6217
    %v6474 = vpack.c.b16 %v6222, %v6218
    %v6475 = vpack.c.b16 %v6227, %v6223
    %v6476 = vpack.c.b16 %v6228, %v6224
    %v6477 = vpack.c.b16 %v6229, %v6225
    %v6478 = vpack.c.b16 %v6230, %v6226
    %v6479 = vpack.c.b16 %v6235, %v6231
    %v6480 = vpack.c.b16 %v6236, %v6232
    %v6481 = vpack.c.b16 %v6237, %v6233
    %v6482 = vpack.c.b16 %v6238, %v6234
    %v6483 = vpack.c.b16 %v6243, %v6239
    %v6484 = vpack.c.b16 %v6244, %v6240
    %v6485 = vpack.c.b16 %v6245, %v6241
    %v6486 = vpack.c.b16 %v6246, %v6242
    %v6487 = vpack.c.b16 %v6251, %v6247
    %v6488 = vpack.c.b16 %v6252, %v6248
    %v6489 = vpack.c.b16 %v6253, %v6249
    %v6490 = vpack.c.b16 %v6254, %v6250
    %v6491 = vpack.c.b16 %v6259, %v6255
    %v6492 = vpack.c.b16 %v6260, %v6256
    %v6493 = vpack.c.b16 %v6261, %v6257
    %v6494 = vpack.c.b16 %v6262, %v6258
    %v6495 = vpack.c.b16 %v6267, %v6263
    %v6496 = vpack.c.b16 %v6268, %v6264
    %v6497 = vpack.c.b16 %v6269, %v6265
    %v6498 = vpack.c.b16 %v6270, %v6266
    %v6499 = vpack.c.b16 %v6275, %v6271
    %v6500 = vpack.c.b16 %v6276, %v6272
    %v6501 = vpack.c.b16 %v6277, %v6273
    %v6502 = vpack.c.b16 %v6278, %v6274
    %v6503 = vpack.c.b16 %v6283, %v6279
    %v6504 = vpack.c.b16 %v6284, %v6280
    %v6505 = vpack.c.b16 %v6285, %v6281
    %v6506 = vpack.c.b16 %v6286, %v6282
    %v6507 = vpack.c.b16 %v6291, %v6287
    %v6508 = vpack.c.b16 %v6292, %v6288
    %v6509 = vpack.c.b16 %v6293, %v6289
    %v6510 = vpack.c.b16 %v6294, %v6290
    %v6511 = vpack.c.b16 %v6299, %v6295
    %v6512 = vpack.c.b16 %v6300, %v6296
    %v6513 = vpack.c.b16 %v6301, %v6297
    %v6514 = vpack.c.b16 %v6302, %v6298
    %v6515 = vpack.c.b16 %v6307, %v6303
    %v6516 = vpack.c.b16 %v6308, %v6304
    %v6517 = vpack.c.b16 %v6309, %v6305
    %v6518 = vpack.c.b16 %v6310, %v6306
    %v6519 = vpack.c.b16 %v6315, %v6311
    %v6520 = vpack.c.b16 %v6316, %v6312
    %v6521 = vpack.c.b16 %v6317, %v6313
    %v6522 = vpack.c.b16 %v6318, %v6314
    %v6523 = vpack.c.b16 %v6323, %v6319
    %v6524 = vpack.c.b16 %v6324, %v6320
    %v6525 = vpack.c.b16 %v6325, %v6321
    %v6526 = vpack.c.b16 %v6326, %v6322
    %v6527 = vpack.c.b16 %v6331, %v6327
    %v6528 = vpack.c.b16 %v6332, %v6328
    %v6529 = vpack.c.b16 %v6333, %v6329
    %v6530 = vpack.c.b16 %v6334, %v6330
    %v6531 = vpack.c.b16 %v6339, %v6335
    %v6532 = vpack.c.b16 %v6340, %v6336
    %v6533 = vpack.c.b16 %v6341, %v6337
    %v6534 = vpack.c.b16 %v6342, %v6338
    %v6535 = vpack.c.b16 %v6347, %v6343
    %v6536 = vpack.c.b16 %v6348, %v6344
    %v6537 = vpack.c.b16 %v6349, %v6345
    %v6538 = vpack.c.b16 %v6350, %v6346
    %v6539 = vpack.c.b16 %v6355, %v6351
    %v6540 = vpack.c.b16 %v6356, %v6352
    %v6541 = vpack.c.b16 %v6357, %v6353
    %v6542 = vpack.c.b16 %v6358, %v6354
    %v6543 = vpack.c.b16 %v6363, %v6359
    %v6544 = vpack.c.b16 %v6364, %v6360
    %v6545 = vpack.c.b16 %v6365, %v6361
    %v6546 = vpack.c.b16 %v6366, %v6362
    %v6547 = vpack.c.b16 %v6371, %v6367
    %v6548 = vpack.c.b16 %v6372, %v6368
    %v6549 = vpack.c.b16 %v6373, %v6369
    %v6550 = vpack.c.b16 %v6374, %v6370
    %v6551 = vpack.c.b16 %v6379, %v6375
    %v6552 = vpack.c.b16 %v6380, %v6376
    %v6553 = vpack.c.b16 %v6381, %v6377
    %v6554 = vpack.c.b16 %v6382, %v6378
    %v6555 = vpack.c.b16 %v6387, %v6383
    %v6556 = vpack.c.b16 %v6388, %v6384
    %v6557 = vpack.c.b16 %v6389, %v6385
    %v6558 = vpack.c.b16 %v6390, %v6386
    %v6559 = vpack.c.b16 %v6395, %v6391
    %v6560 = vpack.c.b16 %v6396, %v6392
    %v6561 = vpack.c.b16 %v6397, %v6393
    %v6562 = vpack.c.b16 %v6398, %v6394
    %v6563 = vpack.c.b16 %v6403, %v6399
    %v6564 = vpack.c.b16 %v6404, %v6400
    %v6565 = vpack.c.b16 %v6405, %v6401
    %v6566 = vpack.c.b16 %v6406, %v6402
    %v6567 = vpack.c.b16 %v6411, %v6407
    %v6568 = vpack.c.b16 %v6412, %v6408
    %v6569 = vpack.c.b16 %v6413, %v6409
    %v6570 = vpack.c.b16 %v6414, %v6410
    %v6571 = vpack.c.b16 %v6419, %v6415
    %v6572 = vpack.c.b16 %v6420, %v6416
    %v6573 = vpack.c.b16 %v6421, %v6417
    %v6574 = vpack.c.b16 %v6422, %v6418
    %v6575 = vpack.c.b16 %v6427, %v6423
    %v6576 = vpack.c.b16 %v6428, %v6424
    %v6577 = vpack.c.b16 %v6429, %v6425
    %v6578 = vpack.c.b16 %v6430, %v6426
    %v6579 = vpack.c.b16 %v6435, %v6431
    %v6580 = vpack.c.b16 %v6436, %v6432
    %v6581 = vpack.c.b16 %v6437, %v6433
    %v6582 = vpack.c.b16 %v6438, %v6434
    %v6583 = vpack.c.b16 %v6443, %v6439
    %v6584 = vpack.c.b16 %v6444, %v6440
    %v6585 = vpack.c.b16 %v6445, %v6441
    %v6586 = vpack.c.b16 %v6446, %v6442
    %v6587 = vpack.c.b16 %v6451, %v6447
    %v6588 = vpack.c.b16 %v6452, %v6448
    %v6589 = vpack.c.b16 %v6453, %v6449
    %v6590 = vpack.c.b16 %v6454, %v6450
    %v6591 = vpack.c.b16 %v6459, %v6455
    %v6592 = vpack.c.b16 %v6460, %v6456
    %v6593 = vpack.c.b16 %v6461, %v6457
    %v6594 = vpack.c.b16 %v6462, %v6458
    %v6595 = vpack.c.b16 %v6467, %v6463
    %v6596 = vpack.c.b16 %v6468, %v6464
    %v6597 = vpack.c.b16 %v6469, %v6465
    %v6598 = vpack.c.b16 %v6470, %v6466
    %6727 = vmatpush.bf16.msra.mxu0 %v6499
    %6728 = vmatpush.bf16.msra.mxu0 %v6495
    %6729 = vmatpush.bf16.msra.mxu0 %v6491
    %6730 = vmatpush.bf16.msra.mxu0 %v6487
    %6731 = vmatpush.bf16.msra.mxu0 %v6483
    %6732 = vmatpush.bf16.msra.mxu0 %v6479
    %6733 = vmatpush.bf16.msra.mxu0 %v6475
    %6734 = vmatpush.bf16.msra.mxu0 %v6471
    %6735 = vmatmul.bf16.gmra.mxu0 %v5085
    %v6736 = vpop.f32.mrf.mxu0
    %v6737 = vadd.f32 %v6079, %v6736
    %v6738 = vpop.f32.mrf.mxu0
    %6739 = vdwg.mxu0
    %6740 = vmatpush.bf16.msra.mxu0 %v6531
    %6741 = vmatpush.bf16.msra.mxu0 %v6527
    %6742 = vmatpush.bf16.msra.mxu0 %v6523
    %6743 = vmatpush.bf16.msra.mxu0 %v6519
    %6744 = vmatpush.bf16.msra.mxu0 %v6515
    %6745 = vmatpush.bf16.msra.mxu0 %v6511
    %6746 = vmatpush.bf16.msra.mxu0 %v6507
    %6747 = vmatpush.bf16.msra.mxu0 %v6503
    %6748 = vmatmul.bf16.gmra.mxu0 %v5086
    %v6749 = vpop.f32.mrf.mxu0
    %v6750 = vadd.f32 %v6737, %v6749
    %v6751 = vpop.f32.mrf.mxu0
    %6752 = vdwg.mxu0
    %6753 = vmatpush.bf16.msra.mxu0 %v6563
    %6754 = vmatpush.bf16.msra.mxu0 %v6559
    %6755 = vmatpush.bf16.msra.mxu0 %v6555
    %6756 = vmatpush.bf16.msra.mxu0 %v6551
    %6757 = vmatpush.bf16.msra.mxu0 %v6547
    %6758 = vmatpush.bf16.msra.mxu0 %v6543
    %6759 = vmatpush.bf16.msra.mxu0 %v6539
    %6760 = vmatpush.bf16.msra.mxu0 %v6535
    %6761 = vmatmul.bf16.gmra.mxu0 %v5087
    %v6762 = vpop.f32.mrf.mxu0
    %v6763 = vadd.f32 %v6750, %v6762
    %v6764 = vpop.f32.mrf.mxu0
    %6765 = vdwg.mxu0
    %6766 = vmatpush.bf16.msra.mxu0 %v6595
    %6767 = vmatpush.bf16.msra.mxu0 %v6591
    %6768 = vmatpush.bf16.msra.mxu0 %v6587
    %6769 = vmatpush.bf16.msra.mxu0 %v6583
    %6770 = vmatpush.bf16.msra.mxu0 %v6579
    %6771 = vmatpush.bf16.msra.mxu0 %v6575
    %6772 = vmatpush.bf16.msra.mxu0 %v6571
    %6773 = vmatpush.bf16.msra.mxu0 %v6567
    %6774 = vmatmul.bf16.gmra.mxu0 %v5088
    %v6775 = vpop.f32.mrf.mxu0
    %v6776 = vadd.f32 %v6763, %v6775
    %v6777 = vpop.f32.mrf.mxu0
    %6778 = vdwg.mxu0
    %6779 = vmatpush.bf16.msra.mxu0 %v6500
    %6780 = vmatpush.bf16.msra.mxu0 %v6496
    %6781 = vmatpush.bf16.msra.mxu0 %v6492
    %6782 = vmatpush.bf16.msra.mxu0 %v6488
    %6783 = vmatpush.bf16.msra.mxu0 %v6484
    %6784 = vmatpush.bf16.msra.mxu0 %v6480
    %6785 = vmatpush.bf16.msra.mxu0 %v6476
    %6786 = vmatpush.bf16.msra.mxu0 %v6472
    %6787 = vmatmul.bf16.gmra.mxu0 %v5085
    %v6788 = vpop.f32.mrf.mxu0
    %v6789 = vadd.f32 %v6080, %v6788
    %v6790 = vpop.f32.mrf.mxu0
    %6791 = vdwg.mxu0
    %6792 = vmatpush.bf16.msra.mxu0 %v6532
    %6793 = vmatpush.bf16.msra.mxu0 %v6528
    %6794 = vmatpush.bf16.msra.mxu0 %v6524
    %6795 = vmatpush.bf16.msra.mxu0 %v6520
    %6796 = vmatpush.bf16.msra.mxu0 %v6516
    %6797 = vmatpush.bf16.msra.mxu0 %v6512
    %6798 = vmatpush.bf16.msra.mxu0 %v6508
    %6799 = vmatpush.bf16.msra.mxu0 %v6504
    %6800 = vmatmul.bf16.gmra.mxu0 %v5086
    %v6801 = vpop.f32.mrf.mxu0
    %v6802 = vadd.f32 %v6789, %v6801
    %v6803 = vpop.f32.mrf.mxu0
    %6804 = vdwg.mxu0
    %6805 = vmatpush.bf16.msra.mxu0 %v6564
    %6806 = vmatpush.bf16.msra.mxu0 %v6560
    %6807 = vmatpush.bf16.msra.mxu0 %v6556
    %6808 = vmatpush.bf16.msra.mxu0 %v6552
    %6809 = vmatpush.bf16.msra.mxu0 %v6548
    %6810 = vmatpush.bf16.msra.mxu0 %v6544
    %6811 = vmatpush.bf16.msra.mxu0 %v6540
    %6812 = vmatpush.bf16.msra.mxu0 %v6536
    %6813 = vmatmul.bf16.gmra.mxu0 %v5087
    %v6814 = vpop.f32.mrf.mxu0
    %v6815 = vadd.f32 %v6802, %v6814
    %v6816 = vpop.f32.mrf.mxu0
    %6817 = vdwg.mxu0
    %6818 = vmatpush.bf16.msra.mxu0 %v6596
    %6819 = vmatpush.bf16.msra.mxu0 %v6592
    %6820 = vmatpush.bf16.msra.mxu0 %v6588
    %6821 = vmatpush.bf16.msra.mxu0 %v6584
    %6822 = vmatpush.bf16.msra.mxu0 %v6580
    %6823 = vmatpush.bf16.msra.mxu0 %v6576
    %6824 = vmatpush.bf16.msra.mxu0 %v6572
    %6825 = vmatpush.bf16.msra.mxu0 %v6568
    %6826 = vmatmul.bf16.gmra.mxu0 %v5088
    %v6827 = vpop.f32.mrf.mxu0
    %v6828 = vadd.f32 %v6815, %v6827
    %v6829 = vpop.f32.mrf.mxu0
    %6830 = vdwg.mxu0
    %6831 = vmatpush.bf16.msra.mxu0 %v6501
    %6832 = vmatpush.bf16.msra.mxu0 %v6497
    %6833 = vmatpush.bf16.msra.mxu0 %v6493
    %6834 = vmatpush.bf16.msra.mxu0 %v6489
    %6835 = vmatpush.bf16.msra.mxu0 %v6485
    %6836 = vmatpush.bf16.msra.mxu0 %v6481
    %6837 = vmatpush.bf16.msra.mxu0 %v6477
    %6838 = vmatpush.bf16.msra.mxu0 %v6473
    %6839 = vmatmul.bf16.gmra.mxu0 %v5085
    %v6840 = vpop.f32.mrf.mxu0
    %v6841 = vadd.f32 %v6081, %v6840
    %v6842 = vpop.f32.mrf.mxu0
    %6843 = vdwg.mxu0
    %6844 = vmatpush.bf16.msra.mxu0 %v6533
    %6845 = vmatpush.bf16.msra.mxu0 %v6529
    %6846 = vmatpush.bf16.msra.mxu0 %v6525
    %6847 = vmatpush.bf16.msra.mxu0 %v6521
    %6848 = vmatpush.bf16.msra.mxu0 %v6517
    %6849 = vmatpush.bf16.msra.mxu0 %v6513
    %6850 = vmatpush.bf16.msra.mxu0 %v6509
    %6851 = vmatpush.bf16.msra.mxu0 %v6505
    %6852 = vmatmul.bf16.gmra.mxu0 %v5086
    %v6853 = vpop.f32.mrf.mxu0
    %v6854 = vadd.f32 %v6841, %v6853
    %v6855 = vpop.f32.mrf.mxu0
    %6856 = vdwg.mxu0
    %6857 = vmatpush.bf16.msra.mxu0 %v6565
    %6858 = vmatpush.bf16.msra.mxu0 %v6561
    %6859 = vmatpush.bf16.msra.mxu0 %v6557
    %6860 = vmatpush.bf16.msra.mxu0 %v6553
    %6861 = vmatpush.bf16.msra.mxu0 %v6549
    %6862 = vmatpush.bf16.msra.mxu0 %v6545
    %6863 = vmatpush.bf16.msra.mxu0 %v6541
    %6864 = vmatpush.bf16.msra.mxu0 %v6537
    %6865 = vmatmul.bf16.gmra.mxu0 %v5087
    %v6866 = vpop.f32.mrf.mxu0
    %v6867 = vadd.f32 %v6854, %v6866
    %v6868 = vpop.f32.mrf.mxu0
    %6869 = vdwg.mxu0
    %6870 = vmatpush.bf16.msra.mxu0 %v6597
    %6871 = vmatpush.bf16.msra.mxu0 %v6593
    %6872 = vmatpush.bf16.msra.mxu0 %v6589
    %6873 = vmatpush.bf16.msra.mxu0 %v6585
    %6874 = vmatpush.bf16.msra.mxu0 %v6581
    %6875 = vmatpush.bf16.msra.mxu0 %v6577
    %6876 = vmatpush.bf16.msra.mxu0 %v6573
    %6877 = vmatpush.bf16.msra.mxu0 %v6569
    %6878 = vmatmul.bf16.gmra.mxu0 %v5088
    %v6879 = vpop.f32.mrf.mxu0
    %v6880 = vadd.f32 %v6867, %v6879
    %v6881 = vpop.f32.mrf.mxu0
    %6882 = vdwg.mxu0
    %6883 = vmatpush.bf16.msra.mxu0 %v6502
    %6884 = vmatpush.bf16.msra.mxu0 %v6498
    %6885 = vmatpush.bf16.msra.mxu0 %v6494
    %6886 = vmatpush.bf16.msra.mxu0 %v6490
    %6887 = vmatpush.bf16.msra.mxu0 %v6486
    %6888 = vmatpush.bf16.msra.mxu0 %v6482
    %6889 = vmatpush.bf16.msra.mxu0 %v6478
    %6890 = vmatpush.bf16.msra.mxu0 %v6474
    %6891 = vmatmul.bf16.gmra.mxu0 %v5085
    %v6892 = vpop.f32.mrf.mxu0
    %v6893 = vadd.f32 %v6082, %v6892
    %v6894 = vpop.f32.mrf.mxu0
    %6895 = vdwg.mxu0
    %6896 = vmatpush.bf16.msra.mxu0 %v6534
    %6897 = vmatpush.bf16.msra.mxu0 %v6530
    %6898 = vmatpush.bf16.msra.mxu0 %v6526
    %6899 = vmatpush.bf16.msra.mxu0 %v6522
    %6900 = vmatpush.bf16.msra.mxu0 %v6518
    %6901 = vmatpush.bf16.msra.mxu0 %v6514
    %6902 = vmatpush.bf16.msra.mxu0 %v6510
    %6903 = vmatpush.bf16.msra.mxu0 %v6506
    %6904 = vmatmul.bf16.gmra.mxu0 %v5086
    %v6905 = vpop.f32.mrf.mxu0
    %v6906 = vadd.f32 %v6893, %v6905
    %v6907 = vpop.f32.mrf.mxu0
    %6908 = vdwg.mxu0
    %6909 = vmatpush.bf16.msra.mxu0 %v6566
    %6910 = vmatpush.bf16.msra.mxu0 %v6562
    %6911 = vmatpush.bf16.msra.mxu0 %v6558
    %6912 = vmatpush.bf16.msra.mxu0 %v6554
    %6913 = vmatpush.bf16.msra.mxu0 %v6550
    %6914 = vmatpush.bf16.msra.mxu0 %v6546
    %6915 = vmatpush.bf16.msra.mxu0 %v6542
    %6916 = vmatpush.bf16.msra.mxu0 %v6538
    %6917 = vmatmul.bf16.gmra.mxu0 %v5087
    %v6918 = vpop.f32.mrf.mxu0
    %v6919 = vadd.f32 %v6906, %v6918
    %v6920 = vpop.f32.mrf.mxu0
    %6921 = vdwg.mxu0
    %6922 = vmatpush.bf16.msra.mxu0 %v6598
    %6923 = vmatpush.bf16.msra.mxu0 %v6594
    %6924 = vmatpush.bf16.msra.mxu0 %v6590
    %6925 = vmatpush.bf16.msra.mxu0 %v6586
    %6926 = vmatpush.bf16.msra.mxu0 %v6582
    %6927 = vmatpush.bf16.msra.mxu0 %v6578
    %6928 = vmatpush.bf16.msra.mxu0 %v6574
    %6929 = vmatpush.bf16.msra.mxu0 %v6570
    %6930 = vmatmul.bf16.gmra.mxu0 %v5088
    %v6931 = vpop.f32.mrf.mxu0
    %v6932 = vadd.f32 %v6919, %v6931
    %v6933 = vpop.f32.mrf.mxu0
    %6934 = vdwg.mxu0
    %v6935 = vld [vmem:[#allocation2 + $0x800] sm:$0xff]
    %v6936 = vld [vmem:[#allocation2 + $0x808] sm:$0xff]
    %v6937 = vld [vmem:[#allocation2 + $0x810] sm:$0xff]
    %v6938 = vld [vmem:[#allocation2 + $0x818] sm:$0xff]
    %v6939 = vld [vmem:[#allocation2 + $0x820] sm:$0xff]
    %v6940 = vld [vmem:[#allocation2 + $0x828] sm:$0xff]
    %v6941 = vld [vmem:[#allocation2 + $0x830] sm:$0xff]
    %v6942 = vld [vmem:[#allocation2 + $0x838] sm:$0xff]
    %v6943 = vld [vmem:[#allocation2 + $0x840] sm:$0xff]
    %v6944 = vld [vmem:[#allocation2 + $0x848] sm:$0xff]
    %v6945 = vld [vmem:[#allocation2 + $0x850] sm:$0xff]
    %v6946 = vld [vmem:[#allocation2 + $0x858] sm:$0xff]
    %v6947 = vld [vmem:[#allocation2 + $0x860] sm:$0xff]
    %v6948 = vld [vmem:[#allocation2 + $0x868] sm:$0xff]
    %v6949 = vld [vmem:[#allocation2 + $0x870] sm:$0xff]
    %v6950 = vld [vmem:[#allocation2 + $0x878] sm:$0xff]
    %v6951 = vld [vmem:[#allocation2 + $0x880] sm:$0xff]
    %v6952 = vld [vmem:[#allocation2 + $0x888] sm:$0xff]
    %v6953 = vld [vmem:[#allocation2 + $0x890] sm:$0xff]
    %v6954 = vld [vmem:[#allocation2 + $0x898] sm:$0xff]
    %v6955 = vld [vmem:[#allocation2 + $0x8a0] sm:$0xff]
    %v6956 = vld [vmem:[#allocation2 + $0x8a8] sm:$0xff]
    %v6957 = vld [vmem:[#allocation2 + $0x8b0] sm:$0xff]
    %v6958 = vld [vmem:[#allocation2 + $0x8b8] sm:$0xff]
    %v6959 = vld [vmem:[#allocation2 + $0x8c0] sm:$0xff]
    %v6960 = vld [vmem:[#allocation2 + $0x8c8] sm:$0xff]
    %v6961 = vld [vmem:[#allocation2 + $0x8d0] sm:$0xff]
    %v6962 = vld [vmem:[#allocation2 + $0x8d8] sm:$0xff]
    %v6963 = vld [vmem:[#allocation2 + $0x8e0] sm:$0xff]
    %v6964 = vld [vmem:[#allocation2 + $0x8e8] sm:$0xff]
    %v6965 = vld [vmem:[#allocation2 + $0x8f0] sm:$0xff]
    %v6966 = vld [vmem:[#allocation2 + $0x8f8] sm:$0xff]
    %v6967 = vld [vmem:[#allocation2 + $0x900] sm:$0xff]
    %v6968 = vld [vmem:[#allocation2 + $0x908] sm:$0xff]
    %v6969 = vld [vmem:[#allocation2 + $0x910] sm:$0xff]
    %v6970 = vld [vmem:[#allocation2 + $0x918] sm:$0xff]
    %v6971 = vld [vmem:[#allocation2 + $0x920] sm:$0xff]
    %v6972 = vld [vmem:[#allocation2 + $0x928] sm:$0xff]
    %v6973 = vld [vmem:[#allocation2 + $0x930] sm:$0xff]
    %v6974 = vld [vmem:[#allocation2 + $0x938] sm:$0xff]
    %v6975 = vld [vmem:[#allocation2 + $0x940] sm:$0xff]
    %v6976 = vld [vmem:[#allocation2 + $0x948] sm:$0xff]
    %v6977 = vld [vmem:[#allocation2 + $0x950] sm:$0xff]
    %v6978 = vld [vmem:[#allocation2 + $0x958] sm:$0xff]
    %v6979 = vld [vmem:[#allocation2 + $0x960] sm:$0xff]
    %v6980 = vld [vmem:[#allocation2 + $0x968] sm:$0xff]
    %v6981 = vld [vmem:[#allocation2 + $0x970] sm:$0xff]
    %v6982 = vld [vmem:[#allocation2 + $0x978] sm:$0xff]
    %v6983 = vld [vmem:[#allocation2 + $0x980] sm:$0xff]
    %v6984 = vld [vmem:[#allocation2 + $0x988] sm:$0xff]
    %v6985 = vld [vmem:[#allocation2 + $0x990] sm:$0xff]
    %v6986 = vld [vmem:[#allocation2 + $0x998] sm:$0xff]
    %v6987 = vld [vmem:[#allocation2 + $0x9a0] sm:$0xff]
    %v6988 = vld [vmem:[#allocation2 + $0x9a8] sm:$0xff]
    %v6989 = vld [vmem:[#allocation2 + $0x9b0] sm:$0xff]
    %v6990 = vld [vmem:[#allocation2 + $0x9b8] sm:$0xff]
    %v6991 = vld [vmem:[#allocation2 + $0x9c0] sm:$0xff]
    %v6992 = vld [vmem:[#allocation2 + $0x9c8] sm:$0xff]
    %v6993 = vld [vmem:[#allocation2 + $0x9d0] sm:$0xff]
    %v6994 = vld [vmem:[#allocation2 + $0x9d8] sm:$0xff]
    %v6995 = vld [vmem:[#allocation2 + $0x9e0] sm:$0xff]
    %v6996 = vld [vmem:[#allocation2 + $0x9e8] sm:$0xff]
    %v6997 = vld [vmem:[#allocation2 + $0x9f0] sm:$0xff]
    %v6998 = vld [vmem:[#allocation2 + $0x9f8] sm:$0xff]
    %v6999 = vld [vmem:[#allocation2 + $0xa00] sm:$0xff]
    %v7000 = vld [vmem:[#allocation2 + $0xa08] sm:$0xff]
    %v7001 = vld [vmem:[#allocation2 + $0xa10] sm:$0xff]
    %v7002 = vld [vmem:[#allocation2 + $0xa18] sm:$0xff]
    %v7003 = vld [vmem:[#allocation2 + $0xa20] sm:$0xff]
    %v7004 = vld [vmem:[#allocation2 + $0xa28] sm:$0xff]
    %v7005 = vld [vmem:[#allocation2 + $0xa30] sm:$0xff]
    %v7006 = vld [vmem:[#allocation2 + $0xa38] sm:$0xff]
    %v7007 = vld [vmem:[#allocation2 + $0xa40] sm:$0xff]
    %v7008 = vld [vmem:[#allocation2 + $0xa48] sm:$0xff]
    %v7009 = vld [vmem:[#allocation2 + $0xa50] sm:$0xff]
    %v7010 = vld [vmem:[#allocation2 + $0xa58] sm:$0xff]
    %v7011 = vld [vmem:[#allocation2 + $0xa60] sm:$0xff]
    %v7012 = vld [vmem:[#allocation2 + $0xa68] sm:$0xff]
    %v7013 = vld [vmem:[#allocation2 + $0xa70] sm:$0xff]
    %v7014 = vld [vmem:[#allocation2 + $0xa78] sm:$0xff]
    %v7015 = vld [vmem:[#allocation2 + $0xa80] sm:$0xff]
    %v7016 = vld [vmem:[#allocation2 + $0xa88] sm:$0xff]
    %v7017 = vld [vmem:[#allocation2 + $0xa90] sm:$0xff]
    %v7018 = vld [vmem:[#allocation2 + $0xa98] sm:$0xff]
    %v7019 = vld [vmem:[#allocation2 + $0xaa0] sm:$0xff]
    %v7020 = vld [vmem:[#allocation2 + $0xaa8] sm:$0xff]
    %v7021 = vld [vmem:[#allocation2 + $0xab0] sm:$0xff]
    %v7022 = vld [vmem:[#allocation2 + $0xab8] sm:$0xff]
    %v7023 = vld [vmem:[#allocation2 + $0xac0] sm:$0xff]
    %v7024 = vld [vmem:[#allocation2 + $0xac8] sm:$0xff]
    %v7025 = vld [vmem:[#allocation2 + $0xad0] sm:$0xff]
    %v7026 = vld [vmem:[#allocation2 + $0xad8] sm:$0xff]
    %v7027 = vld [vmem:[#allocation2 + $0xae0] sm:$0xff]
    %v7028 = vld [vmem:[#allocation2 + $0xae8] sm:$0xff]
    %v7029 = vld [vmem:[#allocation2 + $0xaf0] sm:$0xff]
    %v7030 = vld [vmem:[#allocation2 + $0xaf8] sm:$0xff]
    %v7031 = vld [vmem:[#allocation2 + $0xb00] sm:$0xff]
    %v7032 = vld [vmem:[#allocation2 + $0xb08] sm:$0xff]
    %v7033 = vld [vmem:[#allocation2 + $0xb10] sm:$0xff]
    %v7034 = vld [vmem:[#allocation2 + $0xb18] sm:$0xff]
    %v7035 = vld [vmem:[#allocation2 + $0xb20] sm:$0xff]
    %v7036 = vld [vmem:[#allocation2 + $0xb28] sm:$0xff]
    %v7037 = vld [vmem:[#allocation2 + $0xb30] sm:$0xff]
    %v7038 = vld [vmem:[#allocation2 + $0xb38] sm:$0xff]
    %v7039 = vld [vmem:[#allocation2 + $0xb40] sm:$0xff]
    %v7040 = vld [vmem:[#allocation2 + $0xb48] sm:$0xff]
    %v7041 = vld [vmem:[#allocation2 + $0xb50] sm:$0xff]
    %v7042 = vld [vmem:[#allocation2 + $0xb58] sm:$0xff]
    %v7043 = vld [vmem:[#allocation2 + $0xb60] sm:$0xff]
    %v7044 = vld [vmem:[#allocation2 + $0xb68] sm:$0xff]
    %v7045 = vld [vmem:[#allocation2 + $0xb70] sm:$0xff]
    %v7046 = vld [vmem:[#allocation2 + $0xb78] sm:$0xff]
    %v7047 = vld [vmem:[#allocation2 + $0xb80] sm:$0xff]
    %v7048 = vld [vmem:[#allocation2 + $0xb88] sm:$0xff]
    %v7049 = vld [vmem:[#allocation2 + $0xb90] sm:$0xff]
    %v7050 = vld [vmem:[#allocation2 + $0xb98] sm:$0xff]
    %v7051 = vld [vmem:[#allocation2 + $0xba0] sm:$0xff]
    %v7052 = vld [vmem:[#allocation2 + $0xba8] sm:$0xff]
    %v7053 = vld [vmem:[#allocation2 + $0xbb0] sm:$0xff]
    %v7054 = vld [vmem:[#allocation2 + $0xbb8] sm:$0xff]
    %v7055 = vld [vmem:[#allocation2 + $0xbc0] sm:$0xff]
    %v7056 = vld [vmem:[#allocation2 + $0xbc8] sm:$0xff]
    %v7057 = vld [vmem:[#allocation2 + $0xbd0] sm:$0xff]
    %v7058 = vld [vmem:[#allocation2 + $0xbd8] sm:$0xff]
    %v7059 = vld [vmem:[#allocation2 + $0xbe0] sm:$0xff]
    %v7060 = vld [vmem:[#allocation2 + $0xbe8] sm:$0xff]
    %v7061 = vld [vmem:[#allocation2 + $0xbf0] sm:$0xff]
    %v7062 = vld [vmem:[#allocation2 + $0xbf8] sm:$0xff]
    %s7063 = scalar_lea.vmem [#allocation5], 36
    %v7064 = vld [vmem:[%s7063] ss:$8 sm:$0xf]
    %v7066 = vperm.slane %v7064, 0
    %v7067 = vperm.slane %v7064, 1
    %v7068 = vperm.slane %v7064, 2
    %v7069 = vperm.slane %v7064, 3
    %v7202 = vunpack.c.l.b16 %v6935
    %v7203 = vunpack.c.h.b16 %v6935
    %v7204 = vunpack.c.l.b16 %v6936
    %v7205 = vunpack.c.h.b16 %v6936
    %v7206 = vunpack.c.l.b16 %v6937
    %v7207 = vunpack.c.h.b16 %v6937
    %v7208 = vunpack.c.l.b16 %v6938
    %v7209 = vunpack.c.h.b16 %v6938
    %v7210 = vunpack.c.l.b16 %v6939
    %v7211 = vunpack.c.h.b16 %v6939
    %v7212 = vunpack.c.l.b16 %v6940
    %v7213 = vunpack.c.h.b16 %v6940
    %v7214 = vunpack.c.l.b16 %v6941
    %v7215 = vunpack.c.h.b16 %v6941
    %v7216 = vunpack.c.l.b16 %v6942
    %v7217 = vunpack.c.h.b16 %v6942
    %v7218 = vunpack.c.l.b16 %v6943
    %v7219 = vunpack.c.h.b16 %v6943
    %v7220 = vunpack.c.l.b16 %v6944
    %v7221 = vunpack.c.h.b16 %v6944
    %v7222 = vunpack.c.l.b16 %v6945
    %v7223 = vunpack.c.h.b16 %v6945
    %v7224 = vunpack.c.l.b16 %v6946
    %v7225 = vunpack.c.h.b16 %v6946
    %v7226 = vunpack.c.l.b16 %v6947
    %v7227 = vunpack.c.h.b16 %v6947
    %v7228 = vunpack.c.l.b16 %v6948
    %v7229 = vunpack.c.h.b16 %v6948
    %v7230 = vunpack.c.l.b16 %v6949
    %v7231 = vunpack.c.h.b16 %v6949
    %v7232 = vunpack.c.l.b16 %v6950
    %v7233 = vunpack.c.h.b16 %v6950
    %v7234 = vunpack.c.l.b16 %v6951
    %v7235 = vunpack.c.h.b16 %v6951
    %v7236 = vunpack.c.l.b16 %v6952
    %v7237 = vunpack.c.h.b16 %v6952
    %v7238 = vunpack.c.l.b16 %v6953
    %v7239 = vunpack.c.h.b16 %v6953
    %v7240 = vunpack.c.l.b16 %v6954
    %v7241 = vunpack.c.h.b16 %v6954
    %v7242 = vunpack.c.l.b16 %v6955
    %v7243 = vunpack.c.h.b16 %v6955
    %v7244 = vunpack.c.l.b16 %v6956
    %v7245 = vunpack.c.h.b16 %v6956
    %v7246 = vunpack.c.l.b16 %v6957
    %v7247 = vunpack.c.h.b16 %v6957
    %v7248 = vunpack.c.l.b16 %v6958
    %v7249 = vunpack.c.h.b16 %v6958
    %v7250 = vunpack.c.l.b16 %v6959
    %v7251 = vunpack.c.h.b16 %v6959
    %v7252 = vunpack.c.l.b16 %v6960
    %v7253 = vunpack.c.h.b16 %v6960
    %v7254 = vunpack.c.l.b16 %v6961
    %v7255 = vunpack.c.h.b16 %v6961
    %v7256 = vunpack.c.l.b16 %v6962
    %v7257 = vunpack.c.h.b16 %v6962
    %v7258 = vunpack.c.l.b16 %v6963
    %v7259 = vunpack.c.h.b16 %v6963
    %v7260 = vunpack.c.l.b16 %v6964
    %v7261 = vunpack.c.h.b16 %v6964
    %v7262 = vunpack.c.l.b16 %v6965
    %v7263 = vunpack.c.h.b16 %v6965
    %v7264 = vunpack.c.l.b16 %v6966
    %v7265 = vunpack.c.h.b16 %v6966
    %v7266 = vunpack.c.l.b16 %v6967
    %v7267 = vunpack.c.h.b16 %v6967
    %v7268 = vunpack.c.l.b16 %v6968
    %v7269 = vunpack.c.h.b16 %v6968
    %v7270 = vunpack.c.l.b16 %v6969
    %v7271 = vunpack.c.h.b16 %v6969
    %v7272 = vunpack.c.l.b16 %v6970
    %v7273 = vunpack.c.h.b16 %v6970
    %v7274 = vunpack.c.l.b16 %v6971
    %v7275 = vunpack.c.h.b16 %v6971
    %v7276 = vunpack.c.l.b16 %v6972
    %v7277 = vunpack.c.h.b16 %v6972
    %v7278 = vunpack.c.l.b16 %v6973
    %v7279 = vunpack.c.h.b16 %v6973
    %v7280 = vunpack.c.l.b16 %v6974
    %v7281 = vunpack.c.h.b16 %v6974
    %v7282 = vunpack.c.l.b16 %v6975
    %v7283 = vunpack.c.h.b16 %v6975
    %v7284 = vunpack.c.l.b16 %v6976
    %v7285 = vunpack.c.h.b16 %v6976
    %v7286 = vunpack.c.l.b16 %v6977
    %v7287 = vunpack.c.h.b16 %v6977
    %v7288 = vunpack.c.l.b16 %v6978
    %v7289 = vunpack.c.h.b16 %v6978
    %v7290 = vunpack.c.l.b16 %v6979
    %v7291 = vunpack.c.h.b16 %v6979
    %v7292 = vunpack.c.l.b16 %v6980
    %v7293 = vunpack.c.h.b16 %v6980
    %v7294 = vunpack.c.l.b16 %v6981
    %v7295 = vunpack.c.h.b16 %v6981
    %v7296 = vunpack.c.l.b16 %v6982
    %v7297 = vunpack.c.h.b16 %v6982
    %v7298 = vunpack.c.l.b16 %v6983
    %v7299 = vunpack.c.h.b16 %v6983
    %v7300 = vunpack.c.l.b16 %v6984
    %v7301 = vunpack.c.h.b16 %v6984
    %v7302 = vunpack.c.l.b16 %v6985
    %v7303 = vunpack.c.h.b16 %v6985
    %v7304 = vunpack.c.l.b16 %v6986
    %v7305 = vunpack.c.h.b16 %v6986
    %v7306 = vunpack.c.l.b16 %v6987
    %v7307 = vunpack.c.h.b16 %v6987
    %v7308 = vunpack.c.l.b16 %v6988
    %v7309 = vunpack.c.h.b16 %v6988
    %v7310 = vunpack.c.l.b16 %v6989
    %v7311 = vunpack.c.h.b16 %v6989
    %v7312 = vunpack.c.l.b16 %v6990
    %v7313 = vunpack.c.h.b16 %v6990
    %v7314 = vunpack.c.l.b16 %v6991
    %v7315 = vunpack.c.h.b16 %v6991
    %v7316 = vunpack.c.l.b16 %v6992
    %v7317 = vunpack.c.h.b16 %v6992
    %v7318 = vunpack.c.l.b16 %v6993
    %v7319 = vunpack.c.h.b16 %v6993
    %v7320 = vunpack.c.l.b16 %v6994
    %v7321 = vunpack.c.h.b16 %v6994
    %v7322 = vunpack.c.l.b16 %v6995
    %v7323 = vunpack.c.h.b16 %v6995
    %v7324 = vunpack.c.l.b16 %v6996
    %v7325 = vunpack.c.h.b16 %v6996
    %v7326 = vunpack.c.l.b16 %v6997
    %v7327 = vunpack.c.h.b16 %v6997
    %v7328 = vunpack.c.l.b16 %v6998
    %v7329 = vunpack.c.h.b16 %v6998
    %v7330 = vunpack.c.l.b16 %v6999
    %v7331 = vunpack.c.h.b16 %v6999
    %v7332 = vunpack.c.l.b16 %v7000
    %v7333 = vunpack.c.h.b16 %v7000
    %v7334 = vunpack.c.l.b16 %v7001
    %v7335 = vunpack.c.h.b16 %v7001
    %v7336 = vunpack.c.l.b16 %v7002
    %v7337 = vunpack.c.h.b16 %v7002
    %v7338 = vunpack.c.l.b16 %v7003
    %v7339 = vunpack.c.h.b16 %v7003
    %v7340 = vunpack.c.l.b16 %v7004
    %v7341 = vunpack.c.h.b16 %v7004
    %v7342 = vunpack.c.l.b16 %v7005
    %v7343 = vunpack.c.h.b16 %v7005
    %v7344 = vunpack.c.l.b16 %v7006
    %v7345 = vunpack.c.h.b16 %v7006
    %v7346 = vunpack.c.l.b16 %v7007
    %v7347 = vunpack.c.h.b16 %v7007
    %v7348 = vunpack.c.l.b16 %v7008
    %v7349 = vunpack.c.h.b16 %v7008
    %v7350 = vunpack.c.l.b16 %v7009
    %v7351 = vunpack.c.h.b16 %v7009
    %v7352 = vunpack.c.l.b16 %v7010
    %v7353 = vunpack.c.h.b16 %v7010
    %v7354 = vunpack.c.l.b16 %v7011
    %v7355 = vunpack.c.h.b16 %v7011
    %v7356 = vunpack.c.l.b16 %v7012
    %v7357 = vunpack.c.h.b16 %v7012
    %v7358 = vunpack.c.l.b16 %v7013
    %v7359 = vunpack.c.h.b16 %v7013
    %v7360 = vunpack.c.l.b16 %v7014
    %v7361 = vunpack.c.h.b16 %v7014
    %v7362 = vunpack.c.l.b16 %v7015
    %v7363 = vunpack.c.h.b16 %v7015
    %v7364 = vunpack.c.l.b16 %v7016
    %v7365 = vunpack.c.h.b16 %v7016
    %v7366 = vunpack.c.l.b16 %v7017
    %v7367 = vunpack.c.h.b16 %v7017
    %v7368 = vunpack.c.l.b16 %v7018
    %v7369 = vunpack.c.h.b16 %v7018
    %v7370 = vunpack.c.l.b16 %v7019
    %v7371 = vunpack.c.h.b16 %v7019
    %v7372 = vunpack.c.l.b16 %v7020
    %v7373 = vunpack.c.h.b16 %v7020
    %v7374 = vunpack.c.l.b16 %v7021
    %v7375 = vunpack.c.h.b16 %v7021
    %v7376 = vunpack.c.l.b16 %v7022
    %v7377 = vunpack.c.h.b16 %v7022
    %v7378 = vunpack.c.l.b16 %v7023
    %v7379 = vunpack.c.h.b16 %v7023
    %v7380 = vunpack.c.l.b16 %v7024
    %v7381 = vunpack.c.h.b16 %v7024
    %v7382 = vunpack.c.l.b16 %v7025
    %v7383 = vunpack.c.h.b16 %v7025
    %v7384 = vunpack.c.l.b16 %v7026
    %v7385 = vunpack.c.h.b16 %v7026
    %v7386 = vunpack.c.l.b16 %v7027
    %v7387 = vunpack.c.h.b16 %v7027
    %v7388 = vunpack.c.l.b16 %v7028
    %v7389 = vunpack.c.h.b16 %v7028
    %v7390 = vunpack.c.l.b16 %v7029
    %v7391 = vunpack.c.h.b16 %v7029
    %v7392 = vunpack.c.l.b16 %v7030
    %v7393 = vunpack.c.h.b16 %v7030
    %v7394 = vunpack.c.l.b16 %v7031
    %v7395 = vunpack.c.h.b16 %v7031
    %v7396 = vunpack.c.l.b16 %v7032
    %v7397 = vunpack.c.h.b16 %v7032
    %v7398 = vunpack.c.l.b16 %v7033
    %v7399 = vunpack.c.h.b16 %v7033
    %v7400 = vunpack.c.l.b16 %v7034
    %v7401 = vunpack.c.h.b16 %v7034
    %v7402 = vunpack.c.l.b16 %v7035
    %v7403 = vunpack.c.h.b16 %v7035
    %v7404 = vunpack.c.l.b16 %v7036
    %v7405 = vunpack.c.h.b16 %v7036
    %v7406 = vunpack.c.l.b16 %v7037
    %v7407 = vunpack.c.h.b16 %v7037
    %v7408 = vunpack.c.l.b16 %v7038
    %v7409 = vunpack.c.h.b16 %v7038
    %v7410 = vunpack.c.l.b16 %v7039
    %v7411 = vunpack.c.h.b16 %v7039
    %v7412 = vunpack.c.l.b16 %v7040
    %v7413 = vunpack.c.h.b16 %v7040
    %v7414 = vunpack.c.l.b16 %v7041
    %v7415 = vunpack.c.h.b16 %v7041
    %v7416 = vunpack.c.l.b16 %v7042
    %v7417 = vunpack.c.h.b16 %v7042
    %v7418 = vunpack.c.l.b16 %v7043
    %v7419 = vunpack.c.h.b16 %v7043
    %v7420 = vunpack.c.l.b16 %v7044
    %v7421 = vunpack.c.h.b16 %v7044
    %v7422 = vunpack.c.l.b16 %v7045
    %v7423 = vunpack.c.h.b16 %v7045
    %v7424 = vunpack.c.l.b16 %v7046
    %v7425 = vunpack.c.h.b16 %v7046
    %v7426 = vunpack.c.l.b16 %v7047
    %v7427 = vunpack.c.h.b16 %v7047
    %v7428 = vunpack.c.l.b16 %v7048
    %v7429 = vunpack.c.h.b16 %v7048
    %v7430 = vunpack.c.l.b16 %v7049
    %v7431 = vunpack.c.h.b16 %v7049
    %v7432 = vunpack.c.l.b16 %v7050
    %v7433 = vunpack.c.h.b16 %v7050
    %v7434 = vunpack.c.l.b16 %v7051
    %v7435 = vunpack.c.h.b16 %v7051
    %v7436 = vunpack.c.l.b16 %v7052
    %v7437 = vunpack.c.h.b16 %v7052
    %v7438 = vunpack.c.l.b16 %v7053
    %v7439 = vunpack.c.h.b16 %v7053
    %v7440 = vunpack.c.l.b16 %v7054
    %v7441 = vunpack.c.h.b16 %v7054
    %v7442 = vunpack.c.l.b16 %v7055
    %v7443 = vunpack.c.h.b16 %v7055
    %v7444 = vunpack.c.l.b16 %v7056
    %v7445 = vunpack.c.h.b16 %v7056
    %v7446 = vunpack.c.l.b16 %v7057
    %v7447 = vunpack.c.h.b16 %v7057
    %v7448 = vunpack.c.l.b16 %v7058
    %v7449 = vunpack.c.h.b16 %v7058
    %v7450 = vunpack.c.l.b16 %v7059
    %v7451 = vunpack.c.h.b16 %v7059
    %v7452 = vunpack.c.l.b16 %v7060
    %v7453 = vunpack.c.h.b16 %v7060
    %v7454 = vunpack.c.l.b16 %v7061
    %v7455 = vunpack.c.h.b16 %v7061
    %v7456 = vunpack.c.l.b16 %v7062
    %v7457 = vunpack.c.h.b16 %v7062
    %v7458 = vpack.c.b16 %v7206, %v7202
    %v7459 = vpack.c.b16 %v7207, %v7203
    %v7460 = vpack.c.b16 %v7208, %v7204
    %v7461 = vpack.c.b16 %v7209, %v7205
    %v7462 = vpack.c.b16 %v7214, %v7210
    %v7463 = vpack.c.b16 %v7215, %v7211
    %v7464 = vpack.c.b16 %v7216, %v7212
    %v7465 = vpack.c.b16 %v7217, %v7213
    %v7466 = vpack.c.b16 %v7222, %v7218
    %v7467 = vpack.c.b16 %v7223, %v7219
    %v7468 = vpack.c.b16 %v7224, %v7220
    %v7469 = vpack.c.b16 %v7225, %v7221
    %v7470 = vpack.c.b16 %v7230, %v7226
    %v7471 = vpack.c.b16 %v7231, %v7227
    %v7472 = vpack.c.b16 %v7232, %v7228
    %v7473 = vpack.c.b16 %v7233, %v7229
    %v7474 = vpack.c.b16 %v7238, %v7234
    %v7475 = vpack.c.b16 %v7239, %v7235
    %v7476 = vpack.c.b16 %v7240, %v7236
    %v7477 = vpack.c.b16 %v7241, %v7237
    %v7478 = vpack.c.b16 %v7246, %v7242
    %v7479 = vpack.c.b16 %v7247, %v7243
    %v7480 = vpack.c.b16 %v7248, %v7244
    %v7481 = vpack.c.b16 %v7249, %v7245
    %v7482 = vpack.c.b16 %v7254, %v7250
    %v7483 = vpack.c.b16 %v7255, %v7251
    %v7484 = vpack.c.b16 %v7256, %v7252
    %v7485 = vpack.c.b16 %v7257, %v7253
    %v7486 = vpack.c.b16 %v7262, %v7258
    %v7487 = vpack.c.b16 %v7263, %v7259
    %v7488 = vpack.c.b16 %v7264, %v7260
    %v7489 = vpack.c.b16 %v7265, %v7261
    %v7490 = vpack.c.b16 %v7270, %v7266
    %v7491 = vpack.c.b16 %v7271, %v7267
    %v7492 = vpack.c.b16 %v7272, %v7268
    %v7493 = vpack.c.b16 %v7273, %v7269
    %v7494 = vpack.c.b16 %v7278, %v7274
    %v7495 = vpack.c.b16 %v7279, %v7275
    %v7496 = vpack.c.b16 %v7280, %v7276
    %v7497 = vpack.c.b16 %v7281, %v7277
    %v7498 = vpack.c.b16 %v7286, %v7282
    %v7499 = vpack.c.b16 %v7287, %v7283
    %v7500 = vpack.c.b16 %v7288, %v7284
    %v7501 = vpack.c.b16 %v7289, %v7285
    %v7502 = vpack.c.b16 %v7294, %v7290
    %v7503 = vpack.c.b16 %v7295, %v7291
    %v7504 = vpack.c.b16 %v7296, %v7292
    %v7505 = vpack.c.b16 %v7297, %v7293
    %v7506 = vpack.c.b16 %v7302, %v7298
    %v7507 = vpack.c.b16 %v7303, %v7299
    %v7508 = vpack.c.b16 %v7304, %v7300
    %v7509 = vpack.c.b16 %v7305, %v7301
    %v7510 = vpack.c.b16 %v7310, %v7306
    %v7511 = vpack.c.b16 %v7311, %v7307
    %v7512 = vpack.c.b16 %v7312, %v7308
    %v7513 = vpack.c.b16 %v7313, %v7309
    %v7514 = vpack.c.b16 %v7318, %v7314
    %v7515 = vpack.c.b16 %v7319, %v7315
    %v7516 = vpack.c.b16 %v7320, %v7316
    %v7517 = vpack.c.b16 %v7321, %v7317
    %v7518 = vpack.c.b16 %v7326, %v7322
    %v7519 = vpack.c.b16 %v7327, %v7323
    %v7520 = vpack.c.b16 %v7328, %v7324
    %v7521 = vpack.c.b16 %v7329, %v7325
    %v7522 = vpack.c.b16 %v7334, %v7330
    %v7523 = vpack.c.b16 %v7335, %v7331
    %v7524 = vpack.c.b16 %v7336, %v7332
    %v7525 = vpack.c.b16 %v7337, %v7333
    %v7526 = vpack.c.b16 %v7342, %v7338
    %v7527 = vpack.c.b16 %v7343, %v7339
    %v7528 = vpack.c.b16 %v7344, %v7340
    %v7529 = vpack.c.b16 %v7345, %v7341
    %v7530 = vpack.c.b16 %v7350, %v7346
    %v7531 = vpack.c.b16 %v7351, %v7347
    %v7532 = vpack.c.b16 %v7352, %v7348
    %v7533 = vpack.c.b16 %v7353, %v7349
    %v7534 = vpack.c.b16 %v7358, %v7354
    %v7535 = vpack.c.b16 %v7359, %v7355
    %v7536 = vpack.c.b16 %v7360, %v7356
    %v7537 = vpack.c.b16 %v7361, %v7357
    %v7538 = vpack.c.b16 %v7366, %v7362
    %v7539 = vpack.c.b16 %v7367, %v7363
    %v7540 = vpack.c.b16 %v7368, %v7364
    %v7541 = vpack.c.b16 %v7369, %v7365
    %v7542 = vpack.c.b16 %v7374, %v7370
    %v7543 = vpack.c.b16 %v7375, %v7371
    %v7544 = vpack.c.b16 %v7376, %v7372
    %v7545 = vpack.c.b16 %v7377, %v7373
    %v7546 = vpack.c.b16 %v7382, %v7378
    %v7547 = vpack.c.b16 %v7383, %v7379
    %v7548 = vpack.c.b16 %v7384, %v7380
    %v7549 = vpack.c.b16 %v7385, %v7381
    %v7550 = vpack.c.b16 %v7390, %v7386
    %v7551 = vpack.c.b16 %v7391, %v7387
    %v7552 = vpack.c.b16 %v7392, %v7388
    %v7553 = vpack.c.b16 %v7393, %v7389
    %v7554 = vpack.c.b16 %v7398, %v7394
    %v7555 = vpack.c.b16 %v7399, %v7395
    %v7556 = vpack.c.b16 %v7400, %v7396
    %v7557 = vpack.c.b16 %v7401, %v7397
    %v7558 = vpack.c.b16 %v7406, %v7402
    %v7559 = vpack.c.b16 %v7407, %v7403
    %v7560 = vpack.c.b16 %v7408, %v7404
    %v7561 = vpack.c.b16 %v7409, %v7405
    %v7562 = vpack.c.b16 %v7414, %v7410
    %v7563 = vpack.c.b16 %v7415, %v7411
    %v7564 = vpack.c.b16 %v7416, %v7412
    %v7565 = vpack.c.b16 %v7417, %v7413
    %v7566 = vpack.c.b16 %v7422, %v7418
    %v7567 = vpack.c.b16 %v7423, %v7419
    %v7568 = vpack.c.b16 %v7424, %v7420
    %v7569 = vpack.c.b16 %v7425, %v7421
    %v7570 = vpack.c.b16 %v7430, %v7426
    %v7571 = vpack.c.b16 %v7431, %v7427
    %v7572 = vpack.c.b16 %v7432, %v7428
    %v7573 = vpack.c.b16 %v7433, %v7429
    %v7574 = vpack.c.b16 %v7438, %v7434
    %v7575 = vpack.c.b16 %v7439, %v7435
    %v7576 = vpack.c.b16 %v7440, %v7436
    %v7577 = vpack.c.b16 %v7441, %v7437
    %v7578 = vpack.c.b16 %v7446, %v7442
    %v7579 = vpack.c.b16 %v7447, %v7443
    %v7580 = vpack.c.b16 %v7448, %v7444
    %v7581 = vpack.c.b16 %v7449, %v7445
    %v7582 = vpack.c.b16 %v7454, %v7450
    %v7583 = vpack.c.b16 %v7455, %v7451
    %v7584 = vpack.c.b16 %v7456, %v7452
    %v7585 = vpack.c.b16 %v7457, %v7453
    %7714 = vmatpush.bf16.msra.mxu0 %v7486
    %7715 = vmatpush.bf16.msra.mxu0 %v7482
    %7716 = vmatpush.bf16.msra.mxu0 %v7478
    %7717 = vmatpush.bf16.msra.mxu0 %v7474
    %7718 = vmatpush.bf16.msra.mxu0 %v7470
    %7719 = vmatpush.bf16.msra.mxu0 %v7466
    %7720 = vmatpush.bf16.msra.mxu0 %v7462
    %7721 = vmatpush.bf16.msra.mxu0 %v7458
    %7722 = vmatmul.bf16.gmra.mxu0 %v5085
    %v7723 = vpop.f32.mrf.mxu0
    %v7724 = vadd.f32 %v7066, %v7723
    %v7725 = vpop.f32.mrf.mxu0
    %7726 = vdwg.mxu0
    %7727 = vmatpush.bf16.msra.mxu0 %v7518
    %7728 = vmatpush.bf16.msra.mxu0 %v7514
    %7729 = vmatpush.bf16.msra.mxu0 %v7510
    %7730 = vmatpush.bf16.msra.mxu0 %v7506
    %7731 = vmatpush.bf16.msra.mxu0 %v7502
    %7732 = vmatpush.bf16.msra.mxu0 %v7498
    %7733 = vmatpush.bf16.msra.mxu0 %v7494
    %7734 = vmatpush.bf16.msra.mxu0 %v7490
    %7735 = vmatmul.bf16.gmra.mxu0 %v5086
    %v7736 = vpop.f32.mrf.mxu0
    %v7737 = vadd.f32 %v7724, %v7736
    %v7738 = vpop.f32.mrf.mxu0
    %7739 = vdwg.mxu0
    %7740 = vmatpush.bf16.msra.mxu0 %v7550
    %7741 = vmatpush.bf16.msra.mxu0 %v7546
    %7742 = vmatpush.bf16.msra.mxu0 %v7542
    %7743 = vmatpush.bf16.msra.mxu0 %v7538
    %7744 = vmatpush.bf16.msra.mxu0 %v7534
    %7745 = vmatpush.bf16.msra.mxu0 %v7530
    %7746 = vmatpush.bf16.msra.mxu0 %v7526
    %7747 = vmatpush.bf16.msra.mxu0 %v7522
    %7748 = vmatmul.bf16.gmra.mxu0 %v5087
    %v7749 = vpop.f32.mrf.mxu0
    %v7750 = vadd.f32 %v7737, %v7749
    %v7751 = vpop.f32.mrf.mxu0
    %7752 = vdwg.mxu0
    %7753 = vmatpush.bf16.msra.mxu0 %v7582
    %7754 = vmatpush.bf16.msra.mxu0 %v7578
    %7755 = vmatpush.bf16.msra.mxu0 %v7574
    %7756 = vmatpush.bf16.msra.mxu0 %v7570
    %7757 = vmatpush.bf16.msra.mxu0 %v7566
    %7758 = vmatpush.bf16.msra.mxu0 %v7562
    %7759 = vmatpush.bf16.msra.mxu0 %v7558
    %7760 = vmatpush.bf16.msra.mxu0 %v7554
    %7761 = vmatmul.bf16.gmra.mxu0 %v5088
    %v7762 = vpop.f32.mrf.mxu0
    %v7763 = vadd.f32 %v7750, %v7762
    %v7764 = vpop.f32.mrf.mxu0
    %7765 = vdwg.mxu0
    %7766 = vmatpush.bf16.msra.mxu0 %v7487
    %7767 = vmatpush.bf16.msra.mxu0 %v7483
    %7768 = vmatpush.bf16.msra.mxu0 %v7479
    %7769 = vmatpush.bf16.msra.mxu0 %v7475
    %7770 = vmatpush.bf16.msra.mxu0 %v7471
    %7771 = vmatpush.bf16.msra.mxu0 %v7467
    %7772 = vmatpush.bf16.msra.mxu0 %v7463
    %7773 = vmatpush.bf16.msra.mxu0 %v7459
    %7774 = vmatmul.bf16.gmra.mxu0 %v5085
    %v7775 = vpop.f32.mrf.mxu0
    %v7776 = vadd.f32 %v7067, %v7775
    %v7777 = vpop.f32.mrf.mxu0
    %7778 = vdwg.mxu0
    %7779 = vmatpush.bf16.msra.mxu0 %v7519
    %7780 = vmatpush.bf16.msra.mxu0 %v7515
    %7781 = vmatpush.bf16.msra.mxu0 %v7511
    %7782 = vmatpush.bf16.msra.mxu0 %v7507
    %7783 = vmatpush.bf16.msra.mxu0 %v7503
    %7784 = vmatpush.bf16.msra.mxu0 %v7499
    %7785 = vmatpush.bf16.msra.mxu0 %v7495
    %7786 = vmatpush.bf16.msra.mxu0 %v7491
    %7787 = vmatmul.bf16.gmra.mxu0 %v5086
    %v7788 = vpop.f32.mrf.mxu0
    %v7789 = vadd.f32 %v7776, %v7788
    %v7790 = vpop.f32.mrf.mxu0
    %7791 = vdwg.mxu0
    %7792 = vmatpush.bf16.msra.mxu0 %v7551
    %7793 = vmatpush.bf16.msra.mxu0 %v7547
    %7794 = vmatpush.bf16.msra.mxu0 %v7543
    %7795 = vmatpush.bf16.msra.mxu0 %v7539
    %7796 = vmatpush.bf16.msra.mxu0 %v7535
    %7797 = vmatpush.bf16.msra.mxu0 %v7531
    %7798 = vmatpush.bf16.msra.mxu0 %v7527
    %7799 = vmatpush.bf16.msra.mxu0 %v7523
    %7800 = vmatmul.bf16.gmra.mxu0 %v5087
    %v7801 = vpop.f32.mrf.mxu0
    %v7802 = vadd.f32 %v7789, %v7801
    %v7803 = vpop.f32.mrf.mxu0
    %7804 = vdwg.mxu0
    %7805 = vmatpush.bf16.msra.mxu0 %v7583
    %7806 = vmatpush.bf16.msra.mxu0 %v7579
    %7807 = vmatpush.bf16.msra.mxu0 %v7575
    %7808 = vmatpush.bf16.msra.mxu0 %v7571
    %7809 = vmatpush.bf16.msra.mxu0 %v7567
    %7810 = vmatpush.bf16.msra.mxu0 %v7563
    %7811 = vmatpush.bf16.msra.mxu0 %v7559
    %7812 = vmatpush.bf16.msra.mxu0 %v7555
    %7813 = vmatmul.bf16.gmra.mxu0 %v5088
    %v7814 = vpop.f32.mrf.mxu0
    %v7815 = vadd.f32 %v7802, %v7814
    %v7816 = vpop.f32.mrf.mxu0
    %7817 = vdwg.mxu0
    %7818 = vmatpush.bf16.msra.mxu0 %v7488
    %7819 = vmatpush.bf16.msra.mxu0 %v7484
    %7820 = vmatpush.bf16.msra.mxu0 %v7480
    %7821 = vmatpush.bf16.msra.mxu0 %v7476
    %7822 = vmatpush.bf16.msra.mxu0 %v7472
    %7823 = vmatpush.bf16.msra.mxu0 %v7468
    %7824 = vmatpush.bf16.msra.mxu0 %v7464
    %7825 = vmatpush.bf16.msra.mxu0 %v7460
    %7826 = vmatmul.bf16.gmra.mxu0 %v5085
    %v7827 = vpop.f32.mrf.mxu0
    %v7828 = vadd.f32 %v7068, %v7827
    %v7829 = vpop.f32.mrf.mxu0
    %7830 = vdwg.mxu0
    %7831 = vmatpush.bf16.msra.mxu0 %v7520
    %7832 = vmatpush.bf16.msra.mxu0 %v7516
    %7833 = vmatpush.bf16.msra.mxu0 %v7512
    %7834 = vmatpush.bf16.msra.mxu0 %v7508
    %7835 = vmatpush.bf16.msra.mxu0 %v7504
    %7836 = vmatpush.bf16.msra.mxu0 %v7500
    %7837 = vmatpush.bf16.msra.mxu0 %v7496
    %7838 = vmatpush.bf16.msra.mxu0 %v7492
    %7839 = vmatmul.bf16.gmra.mxu0 %v5086
    %v7840 = vpop.f32.mrf.mxu0
    %v7841 = vadd.f32 %v7828, %v7840
    %v7842 = vpop.f32.mrf.mxu0
    %7843 = vdwg.mxu0
    %7844 = vmatpush.bf16.msra.mxu0 %v7552
    %7845 = vmatpush.bf16.msra.mxu0 %v7548
    %7846 = vmatpush.bf16.msra.mxu0 %v7544
    %7847 = vmatpush.bf16.msra.mxu0 %v7540
    %7848 = vmatpush.bf16.msra.mxu0 %v7536
    %7849 = vmatpush.bf16.msra.mxu0 %v7532
    %7850 = vmatpush.bf16.msra.mxu0 %v7528
    %7851 = vmatpush.bf16.msra.mxu0 %v7524
    %7852 = vmatmul.bf16.gmra.mxu0 %v5087
    %v7853 = vpop.f32.mrf.mxu0
    %v7854 = vadd.f32 %v7841, %v7853
    %v7855 = vpop.f32.mrf.mxu0
    %7856 = vdwg.mxu0
    %7857 = vmatpush.bf16.msra.mxu0 %v7584
    %7858 = vmatpush.bf16.msra.mxu0 %v7580
    %7859 = vmatpush.bf16.msra.mxu0 %v7576
    %7860 = vmatpush.bf16.msra.mxu0 %v7572
    %7861 = vmatpush.bf16.msra.mxu0 %v7568
    %7862 = vmatpush.bf16.msra.mxu0 %v7564
    %7863 = vmatpush.bf16.msra.mxu0 %v7560
    %7864 = vmatpush.bf16.msra.mxu0 %v7556
    %7865 = vmatmul.bf16.gmra.mxu0 %v5088
    %v7866 = vpop.f32.mrf.mxu0
    %v7867 = vadd.f32 %v7854, %v7866
    %v7868 = vpop.f32.mrf.mxu0
    %7869 = vdwg.mxu0
    %7870 = vmatpush.bf16.msra.mxu0 %v7489
    %7871 = vmatpush.bf16.msra.mxu0 %v7485
    %7872 = vmatpush.bf16.msra.mxu0 %v7481
    %7873 = vmatpush.bf16.msra.mxu0 %v7477
    %7874 = vmatpush.bf16.msra.mxu0 %v7473
    %7875 = vmatpush.bf16.msra.mxu0 %v7469
    %7876 = vmatpush.bf16.msra.mxu0 %v7465
    %7877 = vmatpush.bf16.msra.mxu0 %v7461
    %7878 = vmatmul.bf16.gmra.mxu0 %v5085
    %v7879 = vpop.f32.mrf.mxu0
    %v7880 = vadd.f32 %v7069, %v7879
    %v7881 = vpop.f32.mrf.mxu0
    %7882 = vdwg.mxu0
    %7883 = vmatpush.bf16.msra.mxu0 %v7521
    %7884 = vmatpush.bf16.msra.mxu0 %v7517
    %7885 = vmatpush.bf16.msra.mxu0 %v7513
    %7886 = vmatpush.bf16.msra.mxu0 %v7509
    %7887 = vmatpush.bf16.msra.mxu0 %v7505
    %7888 = vmatpush.bf16.msra.mxu0 %v7501
    %7889 = vmatpush.bf16.msra.mxu0 %v7497
    %7890 = vmatpush.bf16.msra.mxu0 %v7493
    %7891 = vmatmul.bf16.gmra.mxu0 %v5086
    %v7892 = vpop.f32.mrf.mxu0
    %v7893 = vadd.f32 %v7880, %v7892
    %v7894 = vpop.f32.mrf.mxu0
    %7895 = vdwg.mxu0
    %7896 = vmatpush.bf16.msra.mxu0 %v7553
    %7897 = vmatpush.bf16.msra.mxu0 %v7549
    %7898 = vmatpush.bf16.msra.mxu0 %v7545
    %7899 = vmatpush.bf16.msra.mxu0 %v7541
    %7900 = vmatpush.bf16.msra.mxu0 %v7537
    %7901 = vmatpush.bf16.msra.mxu0 %v7533
    %7902 = vmatpush.bf16.msra.mxu0 %v7529
    %7903 = vmatpush.bf16.msra.mxu0 %v7525
    %7904 = vmatmul.bf16.gmra.mxu0 %v5087
    %v7905 = vpop.f32.mrf.mxu0
    %v7906 = vadd.f32 %v7893, %v7905
    %v7907 = vpop.f32.mrf.mxu0
    %7908 = vdwg.mxu0
    %7909 = vmatpush.bf16.msra.mxu0 %v7585
    %7910 = vmatpush.bf16.msra.mxu0 %v7581
    %7911 = vmatpush.bf16.msra.mxu0 %v7577
    %7912 = vmatpush.bf16.msra.mxu0 %v7573
    %7913 = vmatpush.bf16.msra.mxu0 %v7569
    %7914 = vmatpush.bf16.msra.mxu0 %v7565
    %7915 = vmatpush.bf16.msra.mxu0 %v7561
    %7916 = vmatpush.bf16.msra.mxu0 %v7557
    %7917 = vmatmul.bf16.gmra.mxu0 %v5088
    %v7918 = vpop.f32.mrf.mxu0
    %v7919 = vadd.f32 %v7906, %v7918
    %v7920 = vpop.f32.mrf.mxu0
    %7921 = vdwg.mxu0
    %v7922 = vpack.c.bf16 %v5789, %v5789
    %v7923 = vpack.c.bf16 %v5841, %v5841
    %v7924 = vpack.c.bf16 %v6776, %v6776
    %v7925 = vpack.c.bf16 %v6828, %v6828
    %v7926 = vpack.c.bf16 %v7763, %v7763
    %v7927 = vpack.c.bf16 %v7815, %v7815
    %7928 = vmatpush.bf16.xpose.msra.mxu0 0
    %7929 = vmatpush.bf16.xpose.msra.mxu0 0
    %7930 = vmatpush.bf16.xpose.msra.mxu0 0
    %7931 = vmatpush.bf16.xpose.msra.mxu0 0
    %7932 = vmatpush.bf16.xpose.msra.mxu0 0
    %7933 = vmatpush.bf16.xpose.msra.mxu0 0
    %7934 = vmatpush.bf16.xpose.msra.mxu0 0
    %7935 = vmatpush.bf16.xpose.msra.mxu0 %v7924
    %7936 = vmatmul.bf16.gmra.mxu0 %v7922
    %v7937 = vpop.f32.mrf.mxu0
    %v7938 = vadd.f32 0.0, %v7937
    %v7939 = vpop.f32.mrf.mxu0
    %7940 = vdwg.mxu0
    %7941 = vmatpush.bf16.xpose.msra.mxu0 0
    %7942 = vmatpush.bf16.xpose.msra.mxu0 0
    %7943 = vmatpush.bf16.xpose.msra.mxu0 0
    %7944 = vmatpush.bf16.xpose.msra.mxu0 0
    %7945 = vmatpush.bf16.xpose.msra.mxu0 0
    %7946 = vmatpush.bf16.xpose.msra.mxu0 0
    %7947 = vmatpush.bf16.xpose.msra.mxu0 0
    %7948 = vmatpush.bf16.xpose.msra.mxu0 %v7925
    %7949 = vmatmul.bf16.gmra.mxu0 %v7923
    %v7950 = vpop.f32.mrf.mxu0
    %v7951 = vadd.f32 %v7938, %v7950
    %v7952 = vpop.f32.mrf.mxu0
    %7953 = vdwg.mxu0
    %v7954 = vmul.f32 %v7951, 0.06788442
    %v7955 = vsel %vm3105, %v7954, -inf
    %7956 = vmax.xlane.f32.xlu0 %v7955
    %v7957 = vpop.xlane.xlu0 %7956
    %v7958 = vsub.f32 %v7954, %v7957
    %v7959 = vmul.f32 %v7958, 1.442695
    %v7960 = vpow.pop %v7959
    %v7961 = vsel %vm3105, %v7960, 0.0
    %7962 = vadd.xlane.f32.xlu0 %v7961
    %v7963 = vpop.xlane.xlu0 %7962
    %v7964 = vrcp.pop %v7963
    %v7965 = vmul.f32 %v7960, %v7964
    %v7966 = vpack.c.bf16 %v7965, %v7965
    %v7968 = vsel %vm3105, %v7966, 0
    %v7971 = vsel %vm3121, %v7926, 0
    %v7974 = vsel %vm3121, %v7927, 0
    %7976 = vmatpush.bf16.msra.mxu0 0
    %7977 = vmatpush.bf16.msra.mxu0 0
    %7978 = vmatpush.bf16.msra.mxu0 0
    %7979 = vmatpush.bf16.msra.mxu0 0
    %7980 = vmatpush.bf16.msra.mxu0 0
    %7981 = vmatpush.bf16.msra.mxu0 0
    %7982 = vmatpush.bf16.msra.mxu0 0
    %7983 = vmatpush.bf16.msra.mxu0 %v7971
    %7984 = vmatmul.bf16.gmra.mxu0 %v7968
    %v7985 = vpop.f32.mrf.mxu0
    %v7986 = vadd.f32 0.0, %v7985
    %v7987 = vpop.f32.mrf.mxu0
    %7988 = vdwg.mxu0
    %7989 = vmatpush.bf16.msra.mxu0 0
    %7990 = vmatpush.bf16.msra.mxu0 0
    %7991 = vmatpush.bf16.msra.mxu0 0
    %7992 = vmatpush.bf16.msra.mxu0 0
    %7993 = vmatpush.bf16.msra.mxu0 0
    %7994 = vmatpush.bf16.msra.mxu0 0
    %7995 = vmatpush.bf16.msra.mxu0 0
    %7996 = vmatpush.bf16.msra.mxu0 %v7974
    %7997 = vmatmul.bf16.gmra.mxu0 %v7968
    %v7998 = vpop.f32.mrf.mxu0
    %v7999 = vadd.f32 0.0, %v7998
    %v8000 = vpop.f32.mrf.mxu0
    %8001 = vdwg.mxu0
    %v8002 = vpack.c.bf16 %v5893, %v5893
    %v8003 = vpack.c.bf16 %v5945, %v5945
    %v8004 = vpack.c.bf16 %v6880, %v6880
    %v8005 = vpack.c.bf16 %v6932, %v6932
    %v8006 = vpack.c.bf16 %v7867, %v7867
    %v8007 = vpack.c.bf16 %v7919, %v7919
    %8008 = vmatpush.bf16.xpose.msra.mxu0 0
    %8009 = vmatpush.bf16.xpose.msra.mxu0 0
    %8010 = vmatpush.bf16.xpose.msra.mxu0 0
    %8011 = vmatpush.bf16.xpose.msra.mxu0 0
    %8012 = vmatpush.bf16.xpose.msra.mxu0 0
    %8013 = vmatpush.bf16.xpose.msra.mxu0 0
    %8014 = vmatpush.bf16.xpose.msra.mxu0 0
    %8015 = vmatpush.bf16.xpose.msra.mxu0 %v8004
    %8016 = vmatmul.bf16.gmra.mxu0 %v8002
    %v8017 = vpop.f32.mrf.mxu0
    %v8018 = vadd.f32 0.0, %v8017
    %v8019 = vpop.f32.mrf.mxu0
    %8020 = vdwg.mxu0
    %8021 = vmatpush.bf16.xpose.msra.mxu0 0
    %8022 = vmatpush.bf16.xpose.msra.mxu0 0
    %8023 = vmatpush.bf16.xpose.msra.mxu0 0
    %8024 = vmatpush.bf16.xpose.msra.mxu0 0
    %8025 = vmatpush.bf16.xpose.msra.mxu0 0
    %8026 = vmatpush.bf16.xpose.msra.mxu0 0
    %8027 = vmatpush.bf16.xpose.msra.mxu0 0
    %8028 = vmatpush.bf16.xpose.msra.mxu0 %v8005
    %8029 = vmatmul.bf16.gmra.mxu0 %v8003
    %v8030 = vpop.f32.mrf.mxu0
    %v8031 = vadd.f32 %v8018, %v8030
    %v8032 = vpop.f32.mrf.mxu0
    %8033 = vdwg.mxu0
    %v8034 = vmul.f32 %v8031, 0.06788442
    %v8035 = vsel %vm3105, %v8034, -inf
    %8036 = vmax.xlane.f32.xlu0 %v8035
    %v8037 = vpop.xlane.xlu0 %8036
    %v8038 = vsub.f32 %v8034, %v8037
    %v8039 = vmul.f32 %v8038, 1.442695
    %v8040 = vpow.pop %v8039
    %v8041 = vsel %vm3105, %v8040, 0.0
    %8042 = vadd.xlane.f32.xlu0 %v8041
    %v8043 = vpop.xlane.xlu0 %8042
    %v8044 = vrcp.pop %v8043
    %v8045 = vmul.f32 %v8040, %v8044
    %v8046 = vpack.c.bf16 %v8045, %v8045
    %v8048 = vsel %vm3105, %v8046, 0
    %v8051 = vsel %vm3121, %v8006, 0
    %v8054 = vsel %vm3121, %v8007, 0
    %8056 = vmatpush.bf16.msra.mxu0 0
    %8057 = vmatpush.bf16.msra.mxu0 0
    %8058 = vmatpush.bf16.msra.mxu0 0
    %8059 = vmatpush.bf16.msra.mxu0 0
    %8060 = vmatpush.bf16.msra.mxu0 0
    %8061 = vmatpush.bf16.msra.mxu0 0
    %8062 = vmatpush.bf16.msra.mxu0 0
    %8063 = vmatpush.bf16.msra.mxu0 %v8051
    %8064 = vmatmul.bf16.gmra.mxu0 %v8048
    %v8065 = vpop.f32.mrf.mxu0
    %v8066 = vadd.f32 0.0, %v8065
    %v8067 = vpop.f32.mrf.mxu0
    %8068 = vdwg.mxu0
    %8069 = vmatpush.bf16.msra.mxu0 0
    %8070 = vmatpush.bf16.msra.mxu0 0
    %8071 = vmatpush.bf16.msra.mxu0 0
    %8072 = vmatpush.bf16.msra.mxu0 0
    %8073 = vmatpush.bf16.msra.mxu0 0
    %8074 = vmatpush.bf16.msra.mxu0 0
    %8075 = vmatpush.bf16.msra.mxu0 0
    %8076 = vmatpush.bf16.msra.mxu0 %v8054
    %8077 = vmatmul.bf16.gmra.mxu0 %v8048
    %v8078 = vpop.f32.mrf.mxu0
    %v8079 = vadd.f32 0.0, %v8078
    %v8080 = vpop.f32.mrf.mxu0
    %8081 = vdwg.mxu0
    %v8082 = vld [vmem:[#allocation2 + $0xc00] sm:$0xff]
    %v8083 = vld [vmem:[#allocation2 + $0xc08] sm:$0xff]
    %v8084 = vld [vmem:[#allocation2 + $0xc10] sm:$0xff]
    %v8085 = vld [vmem:[#allocation2 + $0xc18] sm:$0xff]
    %v8086 = vld [vmem:[#allocation2 + $0xc20] sm:$0xff]
    %v8087 = vld [vmem:[#allocation2 + $0xc28] sm:$0xff]
    %v8088 = vld [vmem:[#allocation2 + $0xc30] sm:$0xff]
    %v8089 = vld [vmem:[#allocation2 + $0xc38] sm:$0xff]
    %v8090 = vld [vmem:[#allocation2 + $0xc40] sm:$0xff]
    %v8091 = vld [vmem:[#allocation2 + $0xc48] sm:$0xff]
    %v8092 = vld [vmem:[#allocation2 + $0xc50] sm:$0xff]
    %v8093 = vld [vmem:[#allocation2 + $0xc58] sm:$0xff]
    %v8094 = vld [vmem:[#allocation2 + $0xc60] sm:$0xff]
    %v8095 = vld [vmem:[#allocation2 + $0xc68] sm:$0xff]
    %v8096 = vld [vmem:[#allocation2 + $0xc70] sm:$0xff]
    %v8097 = vld [vmem:[#allocation2 + $0xc78] sm:$0xff]
    %v8098 = vld [vmem:[#allocation2 + $0xc80] sm:$0xff]
    %v8099 = vld [vmem:[#allocation2 + $0xc88] sm:$0xff]
    %v8100 = vld [vmem:[#allocation2 + $0xc90] sm:$0xff]
    %v8101 = vld [vmem:[#allocation2 + $0xc98] sm:$0xff]
    %v8102 = vld [vmem:[#allocation2 + $0xca0] sm:$0xff]
    %v8103 = vld [vmem:[#allocation2 + $0xca8] sm:$0xff]
    %v8104 = vld [vmem:[#allocation2 + $0xcb0] sm:$0xff]
    %v8105 = vld [vmem:[#allocation2 + $0xcb8] sm:$0xff]
    %v8106 = vld [vmem:[#allocation2 + $0xcc0] sm:$0xff]
    %v8107 = vld [vmem:[#allocation2 + $0xcc8] sm:$0xff]
    %v8108 = vld [vmem:[#allocation2 + $0xcd0] sm:$0xff]
    %v8109 = vld [vmem:[#allocation2 + $0xcd8] sm:$0xff]
    %v8110 = vld [vmem:[#allocation2 + $0xce0] sm:$0xff]
    %v8111 = vld [vmem:[#allocation2 + $0xce8] sm:$0xff]
    %v8112 = vld [vmem:[#allocation2 + $0xcf0] sm:$0xff]
    %v8113 = vld [vmem:[#allocation2 + $0xcf8] sm:$0xff]
    %v8114 = vld [vmem:[#allocation2 + $0xd00] sm:$0xff]
    %v8115 = vld [vmem:[#allocation2 + $0xd08] sm:$0xff]
    %v8116 = vld [vmem:[#allocation2 + $0xd10] sm:$0xff]
    %v8117 = vld [vmem:[#allocation2 + $0xd18] sm:$0xff]
    %v8118 = vld [vmem:[#allocation2 + $0xd20] sm:$0xff]
    %v8119 = vld [vmem:[#allocation2 + $0xd28] sm:$0xff]
    %v8120 = vld [vmem:[#allocation2 + $0xd30] sm:$0xff]
    %v8121 = vld [vmem:[#allocation2 + $0xd38] sm:$0xff]
    %v8122 = vld [vmem:[#allocation2 + $0xd40] sm:$0xff]
    %v8123 = vld [vmem:[#allocation2 + $0xd48] sm:$0xff]
    %v8124 = vld [vmem:[#allocation2 + $0xd50] sm:$0xff]
    %v8125 = vld [vmem:[#allocation2 + $0xd58] sm:$0xff]
    %v8126 = vld [vmem:[#allocation2 + $0xd60] sm:$0xff]
    %v8127 = vld [vmem:[#allocation2 + $0xd68] sm:$0xff]
    %v8128 = vld [vmem:[#allocation2 + $0xd70] sm:$0xff]
    %v8129 = vld [vmem:[#allocation2 + $0xd78] sm:$0xff]
    %v8130 = vld [vmem:[#allocation2 + $0xd80] sm:$0xff]
    %v8131 = vld [vmem:[#allocation2 + $0xd88] sm:$0xff]
    %v8132 = vld [vmem:[#allocation2 + $0xd90] sm:$0xff]
    %v8133 = vld [vmem:[#allocation2 + $0xd98] sm:$0xff]
    %v8134 = vld [vmem:[#allocation2 + $0xda0] sm:$0xff]
    %v8135 = vld [vmem:[#allocation2 + $0xda8] sm:$0xff]
    %v8136 = vld [vmem:[#allocation2 + $0xdb0] sm:$0xff]
    %v8137 = vld [vmem:[#allocation2 + $0xdb8] sm:$0xff]
    %v8138 = vld [vmem:[#allocation2 + $0xdc0] sm:$0xff]
    %v8139 = vld [vmem:[#allocation2 + $0xdc8] sm:$0xff]
    %v8140 = vld [vmem:[#allocation2 + $0xdd0] sm:$0xff]
    %v8141 = vld [vmem:[#allocation2 + $0xdd8] sm:$0xff]
    %v8142 = vld [vmem:[#allocation2 + $0xde0] sm:$0xff]
    %v8143 = vld [vmem:[#allocation2 + $0xde8] sm:$0xff]
    %v8144 = vld [vmem:[#allocation2 + $0xdf0] sm:$0xff]
    %v8145 = vld [vmem:[#allocation2 + $0xdf8] sm:$0xff]
    %v8146 = vld [vmem:[#allocation2 + $0xe00] sm:$0xff]
    %v8147 = vld [vmem:[#allocation2 + $0xe08] sm:$0xff]
    %v8148 = vld [vmem:[#allocation2 + $0xe10] sm:$0xff]
    %v8149 = vld [vmem:[#allocation2 + $0xe18] sm:$0xff]
    %v8150 = vld [vmem:[#allocation2 + $0xe20] sm:$0xff]
    %v8151 = vld [vmem:[#allocation2 + $0xe28] sm:$0xff]
    %v8152 = vld [vmem:[#allocation2 + $0xe30] sm:$0xff]
    %v8153 = vld [vmem:[#allocation2 + $0xe38] sm:$0xff]
    %v8154 = vld [vmem:[#allocation2 + $0xe40] sm:$0xff]
    %v8155 = vld [vmem:[#allocation2 + $0xe48] sm:$0xff]
    %v8156 = vld [vmem:[#allocation2 + $0xe50] sm:$0xff]
    %v8157 = vld [vmem:[#allocation2 + $0xe58] sm:$0xff]
    %v8158 = vld [vmem:[#allocation2 + $0xe60] sm:$0xff]
    %v8159 = vld [vmem:[#allocation2 + $0xe68] sm:$0xff]
    %v8160 = vld [vmem:[#allocation2 + $0xe70] sm:$0xff]
    %v8161 = vld [vmem:[#allocation2 + $0xe78] sm:$0xff]
    %v8162 = vld [vmem:[#allocation2 + $0xe80] sm:$0xff]
    %v8163 = vld [vmem:[#allocation2 + $0xe88] sm:$0xff]
    %v8164 = vld [vmem:[#allocation2 + $0xe90] sm:$0xff]
    %v8165 = vld [vmem:[#allocation2 + $0xe98] sm:$0xff]
    %v8166 = vld [vmem:[#allocation2 + $0xea0] sm:$0xff]
    %v8167 = vld [vmem:[#allocation2 + $0xea8] sm:$0xff]
    %v8168 = vld [vmem:[#allocation2 + $0xeb0] sm:$0xff]
    %v8169 = vld [vmem:[#allocation2 + $0xeb8] sm:$0xff]
    %v8170 = vld [vmem:[#allocation2 + $0xec0] sm:$0xff]
    %v8171 = vld [vmem:[#allocation2 + $0xec8] sm:$0xff]
    %v8172 = vld [vmem:[#allocation2 + $0xed0] sm:$0xff]
    %v8173 = vld [vmem:[#allocation2 + $0xed8] sm:$0xff]
    %v8174 = vld [vmem:[#allocation2 + $0xee0] sm:$0xff]
    %v8175 = vld [vmem:[#allocation2 + $0xee8] sm:$0xff]
    %v8176 = vld [vmem:[#allocation2 + $0xef0] sm:$0xff]
    %v8177 = vld [vmem:[#allocation2 + $0xef8] sm:$0xff]
    %v8178 = vld [vmem:[#allocation2 + $0xf00] sm:$0xff]
    %v8179 = vld [vmem:[#allocation2 + $0xf08] sm:$0xff]
    %v8180 = vld [vmem:[#allocation2 + $0xf10] sm:$0xff]
    %v8181 = vld [vmem:[#allocation2 + $0xf18] sm:$0xff]
    %v8182 = vld [vmem:[#allocation2 + $0xf20] sm:$0xff]
    %v8183 = vld [vmem:[#allocation2 + $0xf28] sm:$0xff]
    %v8184 = vld [vmem:[#allocation2 + $0xf30] sm:$0xff]
    %v8185 = vld [vmem:[#allocation2 + $0xf38] sm:$0xff]
    %v8186 = vld [vmem:[#allocation2 + $0xf40] sm:$0xff]
    %v8187 = vld [vmem:[#allocation2 + $0xf48] sm:$0xff]
    %v8188 = vld [vmem:[#allocation2 + $0xf50] sm:$0xff]
    %v8189 = vld [vmem:[#allocation2 + $0xf58] sm:$0xff]
    %v8190 = vld [vmem:[#allocation2 + $0xf60] sm:$0xff]
    %v8191 = vld [vmem:[#allocation2 + $0xf68] sm:$0xff]
    %v8192 = vld [vmem:[#allocation2 + $0xf70] sm:$0xff]
    %v8193 = vld [vmem:[#allocation2 + $0xf78] sm:$0xff]
    %v8194 = vld [vmem:[#allocation2 + $0xf80] sm:$0xff]
    %v8195 = vld [vmem:[#allocation2 + $0xf88] sm:$0xff]
    %v8196 = vld [vmem:[#allocation2 + $0xf90] sm:$0xff]
    %v8197 = vld [vmem:[#allocation2 + $0xf98] sm:$0xff]
    %v8198 = vld [vmem:[#allocation2 + $0xfa0] sm:$0xff]
    %v8199 = vld [vmem:[#allocation2 + $0xfa8] sm:$0xff]
    %v8200 = vld [vmem:[#allocation2 + $0xfb0] sm:$0xff]
    %v8201 = vld [vmem:[#allocation2 + $0xfb8] sm:$0xff]
    %v8202 = vld [vmem:[#allocation2 + $0xfc0] sm:$0xff]
    %v8203 = vld [vmem:[#allocation2 + $0xfc8] sm:$0xff]
    %v8204 = vld [vmem:[#allocation2 + $0xfd0] sm:$0xff]
    %v8205 = vld [vmem:[#allocation2 + $0xfd8] sm:$0xff]
    %v8206 = vld [vmem:[#allocation2 + $0xfe0] sm:$0xff]
    %v8207 = vld [vmem:[#allocation2 + $0xfe8] sm:$0xff]
    %v8208 = vld [vmem:[#allocation2 + $0xff0] sm:$0xff]
    %v8209 = vld [vmem:[#allocation2 + $0xff8] sm:$0xff]
    %v8210 = vpack.c.bf16 %v7986, %v7986
    %v8211 = vpack.c.bf16 %v7999, %v7999
    %v8212 = vpack.c.bf16 %v8066, %v8066
    %v8213 = vpack.c.bf16 %v8079, %v8079
    %s8214 = scalar_lea.vmem [#allocation5], 37
    %v8215 = vld [vmem:[%s8214] ss:$8 sm:$0xf]
    %v8217 = vperm.slane %v8215, 0
    %v8218 = vperm.slane %v8215, 1
    %v8219 = vperm.slane %v8215, 2
    %v8220 = vperm.slane %v8215, 3
    %v8353 = vunpack.c.l.b16 %v8082
    %v8354 = vunpack.c.h.b16 %v8082
    %v8355 = vunpack.c.l.b16 %v8083
    %v8356 = vunpack.c.h.b16 %v8083
    %v8357 = vunpack.c.l.b16 %v8084
    %v8358 = vunpack.c.h.b16 %v8084
    %v8359 = vunpack.c.l.b16 %v8085
    %v8360 = vunpack.c.h.b16 %v8085
    %v8361 = vunpack.c.l.b16 %v8086
    %v8362 = vunpack.c.h.b16 %v8086
    %v8363 = vunpack.c.l.b16 %v8087
    %v8364 = vunpack.c.h.b16 %v8087
    %v8365 = vunpack.c.l.b16 %v8088
    %v8366 = vunpack.c.h.b16 %v8088
    %v8367 = vunpack.c.l.b16 %v8089
    %v8368 = vunpack.c.h.b16 %v8089
    %v8369 = vunpack.c.l.b16 %v8090
    %v8370 = vunpack.c.h.b16 %v8090
    %v8371 = vunpack.c.l.b16 %v8091
    %v8372 = vunpack.c.h.b16 %v8091
    %v8373 = vunpack.c.l.b16 %v8092
    %v8374 = vunpack.c.h.b16 %v8092
    %v8375 = vunpack.c.l.b16 %v8093
    %v8376 = vunpack.c.h.b16 %v8093
    %v8377 = vunpack.c.l.b16 %v8094
    %v8378 = vunpack.c.h.b16 %v8094
    %v8379 = vunpack.c.l.b16 %v8095
    %v8380 = vunpack.c.h.b16 %v8095
    %v8381 = vunpack.c.l.b16 %v8096
    %v8382 = vunpack.c.h.b16 %v8096
    %v8383 = vunpack.c.l.b16 %v8097
    %v8384 = vunpack.c.h.b16 %v8097
    %v8385 = vunpack.c.l.b16 %v8098
    %v8386 = vunpack.c.h.b16 %v8098
    %v8387 = vunpack.c.l.b16 %v8099
    %v8388 = vunpack.c.h.b16 %v8099
    %v8389 = vunpack.c.l.b16 %v8100
    %v8390 = vunpack.c.h.b16 %v8100
    %v8391 = vunpack.c.l.b16 %v8101
    %v8392 = vunpack.c.h.b16 %v8101
    %v8393 = vunpack.c.l.b16 %v8102
    %v8394 = vunpack.c.h.b16 %v8102
    %v8395 = vunpack.c.l.b16 %v8103
    %v8396 = vunpack.c.h.b16 %v8103
    %v8397 = vunpack.c.l.b16 %v8104
    %v8398 = vunpack.c.h.b16 %v8104
    %v8399 = vunpack.c.l.b16 %v8105
    %v8400 = vunpack.c.h.b16 %v8105
    %v8401 = vunpack.c.l.b16 %v8106
    %v8402 = vunpack.c.h.b16 %v8106
    %v8403 = vunpack.c.l.b16 %v8107
    %v8404 = vunpack.c.h.b16 %v8107
    %v8405 = vunpack.c.l.b16 %v8108
    %v8406 = vunpack.c.h.b16 %v8108
    %v8407 = vunpack.c.l.b16 %v8109
    %v8408 = vunpack.c.h.b16 %v8109
    %v8409 = vunpack.c.l.b16 %v8110
    %v8410 = vunpack.c.h.b16 %v8110
    %v8411 = vunpack.c.l.b16 %v8111
    %v8412 = vunpack.c.h.b16 %v8111
    %v8413 = vunpack.c.l.b16 %v8112
    %v8414 = vunpack.c.h.b16 %v8112
    %v8415 = vunpack.c.l.b16 %v8113
    %v8416 = vunpack.c.h.b16 %v8113
    %v8417 = vunpack.c.l.b16 %v8114
    %v8418 = vunpack.c.h.b16 %v8114
    %v8419 = vunpack.c.l.b16 %v8115
    %v8420 = vunpack.c.h.b16 %v8115
    %v8421 = vunpack.c.l.b16 %v8116
    %v8422 = vunpack.c.h.b16 %v8116
    %v8423 = vunpack.c.l.b16 %v8117
    %v8424 = vunpack.c.h.b16 %v8117
    %v8425 = vunpack.c.l.b16 %v8118
    %v8426 = vunpack.c.h.b16 %v8118
    %v8427 = vunpack.c.l.b16 %v8119
    %v8428 = vunpack.c.h.b16 %v8119
    %v8429 = vunpack.c.l.b16 %v8120
    %v8430 = vunpack.c.h.b16 %v8120
    %v8431 = vunpack.c.l.b16 %v8121
    %v8432 = vunpack.c.h.b16 %v8121
    %v8433 = vunpack.c.l.b16 %v8122
    %v8434 = vunpack.c.h.b16 %v8122
    %v8435 = vunpack.c.l.b16 %v8123
    %v8436 = vunpack.c.h.b16 %v8123
    %v8437 = vunpack.c.l.b16 %v8124
    %v8438 = vunpack.c.h.b16 %v8124
    %v8439 = vunpack.c.l.b16 %v8125
    %v8440 = vunpack.c.h.b16 %v8125
    %v8441 = vunpack.c.l.b16 %v8126
    %v8442 = vunpack.c.h.b16 %v8126
    %v8443 = vunpack.c.l.b16 %v8127
    %v8444 = vunpack.c.h.b16 %v8127
    %v8445 = vunpack.c.l.b16 %v8128
    %v8446 = vunpack.c.h.b16 %v8128
    %v8447 = vunpack.c.l.b16 %v8129
    %v8448 = vunpack.c.h.b16 %v8129
    %v8449 = vunpack.c.l.b16 %v8130
    %v8450 = vunpack.c.h.b16 %v8130
    %v8451 = vunpack.c.l.b16 %v8131
    %v8452 = vunpack.c.h.b16 %v8131
    %v8453 = vunpack.c.l.b16 %v8132
    %v8454 = vunpack.c.h.b16 %v8132
    %v8455 = vunpack.c.l.b16 %v8133
    %v8456 = vunpack.c.h.b16 %v8133
    %v8457 = vunpack.c.l.b16 %v8134
    %v8458 = vunpack.c.h.b16 %v8134
    %v8459 = vunpack.c.l.b16 %v8135
    %v8460 = vunpack.c.h.b16 %v8135
    %v8461 = vunpack.c.l.b16 %v8136
    %v8462 = vunpack.c.h.b16 %v8136
    %v8463 = vunpack.c.l.b16 %v8137
    %v8464 = vunpack.c.h.b16 %v8137
    %v8465 = vunpack.c.l.b16 %v8138
    %v8466 = vunpack.c.h.b16 %v8138
    %v8467 = vunpack.c.l.b16 %v8139
    %v8468 = vunpack.c.h.b16 %v8139
    %v8469 = vunpack.c.l.b16 %v8140
    %v8470 = vunpack.c.h.b16 %v8140
    %v8471 = vunpack.c.l.b16 %v8141
    %v8472 = vunpack.c.h.b16 %v8141
    %v8473 = vunpack.c.l.b16 %v8142
    %v8474 = vunpack.c.h.b16 %v8142
    %v8475 = vunpack.c.l.b16 %v8143
    %v8476 = vunpack.c.h.b16 %v8143
    %v8477 = vunpack.c.l.b16 %v8144
    %v8478 = vunpack.c.h.b16 %v8144
    %v8479 = vunpack.c.l.b16 %v8145
    %v8480 = vunpack.c.h.b16 %v8145
    %v8481 = vunpack.c.l.b16 %v8146
    %v8482 = vunpack.c.h.b16 %v8146
    %v8483 = vunpack.c.l.b16 %v8147
    %v8484 = vunpack.c.h.b16 %v8147
    %v8485 = vunpack.c.l.b16 %v8148
    %v8486 = vunpack.c.h.b16 %v8148
    %v8487 = vunpack.c.l.b16 %v8149
    %v8488 = vunpack.c.h.b16 %v8149
    %v8489 = vunpack.c.l.b16 %v8150
    %v8490 = vunpack.c.h.b16 %v8150
    %v8491 = vunpack.c.l.b16 %v8151
    %v8492 = vunpack.c.h.b16 %v8151
    %v8493 = vunpack.c.l.b16 %v8152
    %v8494 = vunpack.c.h.b16 %v8152
    %v8495 = vunpack.c.l.b16 %v8153
    %v8496 = vunpack.c.h.b16 %v8153
    %v8497 = vunpack.c.l.b16 %v8154
    %v8498 = vunpack.c.h.b16 %v8154
    %v8499 = vunpack.c.l.b16 %v8155
    %v8500 = vunpack.c.h.b16 %v8155
    %v8501 = vunpack.c.l.b16 %v8156
    %v8502 = vunpack.c.h.b16 %v8156
    %v8503 = vunpack.c.l.b16 %v8157
    %v8504 = vunpack.c.h.b16 %v8157
    %v8505 = vunpack.c.l.b16 %v8158
    %v8506 = vunpack.c.h.b16 %v8158
    %v8507 = vunpack.c.l.b16 %v8159
    %v8508 = vunpack.c.h.b16 %v8159
    %v8509 = vunpack.c.l.b16 %v8160
    %v8510 = vunpack.c.h.b16 %v8160
    %v8511 = vunpack.c.l.b16 %v8161
    %v8512 = vunpack.c.h.b16 %v8161
    %v8513 = vunpack.c.l.b16 %v8162
    %v8514 = vunpack.c.h.b16 %v8162
    %v8515 = vunpack.c.l.b16 %v8163
    %v8516 = vunpack.c.h.b16 %v8163
    %v8517 = vunpack.c.l.b16 %v8164
    %v8518 = vunpack.c.h.b16 %v8164
    %v8519 = vunpack.c.l.b16 %v8165
    %v8520 = vunpack.c.h.b16 %v8165
    %v8521 = vunpack.c.l.b16 %v8166
    %v8522 = vunpack.c.h.b16 %v8166
    %v8523 = vunpack.c.l.b16 %v8167
    %v8524 = vunpack.c.h.b16 %v8167
    %v8525 = vunpack.c.l.b16 %v8168
    %v8526 = vunpack.c.h.b16 %v8168
    %v8527 = vunpack.c.l.b16 %v8169
    %v8528 = vunpack.c.h.b16 %v8169
    %v8529 = vunpack.c.l.b16 %v8170
    %v8530 = vunpack.c.h.b16 %v8170
    %v8531 = vunpack.c.l.b16 %v8171
    %v8532 = vunpack.c.h.b16 %v8171
    %v8533 = vunpack.c.l.b16 %v8172
    %v8534 = vunpack.c.h.b16 %v8172
    %v8535 = vunpack.c.l.b16 %v8173
    %v8536 = vunpack.c.h.b16 %v8173
    %v8537 = vunpack.c.l.b16 %v8174
    %v8538 = vunpack.c.h.b16 %v8174
    %v8539 = vunpack.c.l.b16 %v8175
    %v8540 = vunpack.c.h.b16 %v8175
    %v8541 = vunpack.c.l.b16 %v8176
    %v8542 = vunpack.c.h.b16 %v8176
    %v8543 = vunpack.c.l.b16 %v8177
    %v8544 = vunpack.c.h.b16 %v8177
    %v8545 = vunpack.c.l.b16 %v8178
    %v8546 = vunpack.c.h.b16 %v8178
    %v8547 = vunpack.c.l.b16 %v8179
    %v8548 = vunpack.c.h.b16 %v8179
    %v8549 = vunpack.c.l.b16 %v8180
    %v8550 = vunpack.c.h.b16 %v8180
    %v8551 = vunpack.c.l.b16 %v8181
    %v8552 = vunpack.c.h.b16 %v8181
    %v8553 = vunpack.c.l.b16 %v8182
    %v8554 = vunpack.c.h.b16 %v8182
    %v8555 = vunpack.c.l.b16 %v8183
    %v8556 = vunpack.c.h.b16 %v8183
    %v8557 = vunpack.c.l.b16 %v8184
    %v8558 = vunpack.c.h.b16 %v8184
    %v8559 = vunpack.c.l.b16 %v8185
    %v8560 = vunpack.c.h.b16 %v8185
    %v8561 = vunpack.c.l.b16 %v8186
    %v8562 = vunpack.c.h.b16 %v8186
    %v8563 = vunpack.c.l.b16 %v8187
    %v8564 = vunpack.c.h.b16 %v8187
    %v8565 = vunpack.c.l.b16 %v8188
    %v8566 = vunpack.c.h.b16 %v8188
    %v8567 = vunpack.c.l.b16 %v8189
    %v8568 = vunpack.c.h.b16 %v8189
    %v8569 = vunpack.c.l.b16 %v8190
    %v8570 = vunpack.c.h.b16 %v8190
    %v8571 = vunpack.c.l.b16 %v8191
    %v8572 = vunpack.c.h.b16 %v8191
    %v8573 = vunpack.c.l.b16 %v8192
    %v8574 = vunpack.c.h.b16 %v8192
    %v8575 = vunpack.c.l.b16 %v8193
    %v8576 = vunpack.c.h.b16 %v8193
    %v8577 = vunpack.c.l.b16 %v8194
    %v8578 = vunpack.c.h.b16 %v8194
    %v8579 = vunpack.c.l.b16 %v8195
    %v8580 = vunpack.c.h.b16 %v8195
    %v8581 = vunpack.c.l.b16 %v8196
    %v8582 = vunpack.c.h.b16 %v8196
    %v8583 = vunpack.c.l.b16 %v8197
    %v8584 = vunpack.c.h.b16 %v8197
    %v8585 = vunpack.c.l.b16 %v8198
    %v8586 = vunpack.c.h.b16 %v8198
    %v8587 = vunpack.c.l.b16 %v8199
    %v8588 = vunpack.c.h.b16 %v8199
    %v8589 = vunpack.c.l.b16 %v8200
    %v8590 = vunpack.c.h.b16 %v8200
    %v8591 = vunpack.c.l.b16 %v8201
    %v8592 = vunpack.c.h.b16 %v8201
    %v8593 = vunpack.c.l.b16 %v8202
    %v8594 = vunpack.c.h.b16 %v8202
    %v8595 = vunpack.c.l.b16 %v8203
    %v8596 = vunpack.c.h.b16 %v8203
    %v8597 = vunpack.c.l.b16 %v8204
    %v8598 = vunpack.c.h.b16 %v8204
    %v8599 = vunpack.c.l.b16 %v8205
    %v8600 = vunpack.c.h.b16 %v8205
    %v8601 = vunpack.c.l.b16 %v8206
    %v8602 = vunpack.c.h.b16 %v8206
    %v8603 = vunpack.c.l.b16 %v8207
    %v8604 = vunpack.c.h.b16 %v8207
    %v8605 = vunpack.c.l.b16 %v8208
    %v8606 = vunpack.c.h.b16 %v8208
    %v8607 = vunpack.c.l.b16 %v8209
    %v8608 = vunpack.c.h.b16 %v8209
    %v8609 = vpack.c.b16 %v8357, %v8353
    %v8610 = vpack.c.b16 %v8358, %v8354
    %v8611 = vpack.c.b16 %v8359, %v8355
    %v8612 = vpack.c.b16 %v8360, %v8356
    %v8613 = vpack.c.b16 %v8365, %v8361
    %v8614 = vpack.c.b16 %v8366, %v8362
    %v8615 = vpack.c.b16 %v8367, %v8363
    %v8616 = vpack.c.b16 %v8368, %v8364
    %v8617 = vpack.c.b16 %v8373, %v8369
    %v8618 = vpack.c.b16 %v8374, %v8370
    %v8619 = vpack.c.b16 %v8375, %v8371
    %v8620 = vpack.c.b16 %v8376, %v8372
    %v8621 = vpack.c.b16 %v8381, %v8377
    %v8622 = vpack.c.b16 %v8382, %v8378
    %v8623 = vpack.c.b16 %v8383, %v8379
    %v8624 = vpack.c.b16 %v8384, %v8380
    %v8625 = vpack.c.b16 %v8389, %v8385
    %v8626 = vpack.c.b16 %v8390, %v8386
    %v8627 = vpack.c.b16 %v8391, %v8387
    %v8628 = vpack.c.b16 %v8392, %v8388
    %v8629 = vpack.c.b16 %v8397, %v8393
    %v8630 = vpack.c.b16 %v8398, %v8394
    %v8631 = vpack.c.b16 %v8399, %v8395
    %v8632 = vpack.c.b16 %v8400, %v8396
    %v8633 = vpack.c.b16 %v8405, %v8401
    %v8634 = vpack.c.b16 %v8406, %v8402
    %v8635 = vpack.c.b16 %v8407, %v8403
    %v8636 = vpack.c.b16 %v8408, %v8404
    %v8637 = vpack.c.b16 %v8413, %v8409
    %v8638 = vpack.c.b16 %v8414, %v8410
    %v8639 = vpack.c.b16 %v8415, %v8411
    %v8640 = vpack.c.b16 %v8416, %v8412
    %v8641 = vpack.c.b16 %v8421, %v8417
    %v8642 = vpack.c.b16 %v8422, %v8418
    %v8643 = vpack.c.b16 %v8423, %v8419
    %v8644 = vpack.c.b16 %v8424, %v8420
    %v8645 = vpack.c.b16 %v8429, %v8425
    %v8646 = vpack.c.b16 %v8430, %v8426
    %v8647 = vpack.c.b16 %v8431, %v8427
    %v8648 = vpack.c.b16 %v8432, %v8428
    %v8649 = vpack.c.b16 %v8437, %v8433
    %v8650 = vpack.c.b16 %v8438, %v8434
    %v8651 = vpack.c.b16 %v8439, %v8435
    %v8652 = vpack.c.b16 %v8440, %v8436
    %v8653 = vpack.c.b16 %v8445, %v8441
    %v8654 = vpack.c.b16 %v8446, %v8442
    %v8655 = vpack.c.b16 %v8447, %v8443
    %v8656 = vpack.c.b16 %v8448, %v8444
    %v8657 = vpack.c.b16 %v8453, %v8449
    %v8658 = vpack.c.b16 %v8454, %v8450
    %v8659 = vpack.c.b16 %v8455, %v8451
    %v8660 = vpack.c.b16 %v8456, %v8452
    %v8661 = vpack.c.b16 %v8461, %v8457
    %v8662 = vpack.c.b16 %v8462, %v8458
    %v8663 = vpack.c.b16 %v8463, %v8459
    %v8664 = vpack.c.b16 %v8464, %v8460
    %v8665 = vpack.c.b16 %v8469, %v8465
    %v8666 = vpack.c.b16 %v8470, %v8466
    %v8667 = vpack.c.b16 %v8471, %v8467
    %v8668 = vpack.c.b16 %v8472, %v8468
    %v8669 = vpack.c.b16 %v8477, %v8473
    %v8670 = vpack.c.b16 %v8478, %v8474
    %v8671 = vpack.c.b16 %v8479, %v8475
    %v8672 = vpack.c.b16 %v8480, %v8476
    %v8673 = vpack.c.b16 %v8485, %v8481
    %v8674 = vpack.c.b16 %v8486, %v8482
    %v8675 = vpack.c.b16 %v8487, %v8483
    %v8676 = vpack.c.b16 %v8488, %v8484
    %v8677 = vpack.c.b16 %v8493, %v8489
    %v8678 = vpack.c.b16 %v8494, %v8490
    %v8679 = vpack.c.b16 %v8495, %v8491
    %v8680 = vpack.c.b16 %v8496, %v8492
    %v8681 = vpack.c.b16 %v8501, %v8497
    %v8682 = vpack.c.b16 %v8502, %v8498
    %v8683 = vpack.c.b16 %v8503, %v8499
    %v8684 = vpack.c.b16 %v8504, %v8500
    %v8685 = vpack.c.b16 %v8509, %v8505
    %v8686 = vpack.c.b16 %v8510, %v8506
    %v8687 = vpack.c.b16 %v8511, %v8507
    %v8688 = vpack.c.b16 %v8512, %v8508
    %v8689 = vpack.c.b16 %v8517, %v8513
    %v8690 = vpack.c.b16 %v8518, %v8514
    %v8691 = vpack.c.b16 %v8519, %v8515
    %v8692 = vpack.c.b16 %v8520, %v8516
    %v8693 = vpack.c.b16 %v8525, %v8521
    %v8694 = vpack.c.b16 %v8526, %v8522
    %v8695 = vpack.c.b16 %v8527, %v8523
    %v8696 = vpack.c.b16 %v8528, %v8524
    %v8697 = vpack.c.b16 %v8533, %v8529
    %v8698 = vpack.c.b16 %v8534, %v8530
    %v8699 = vpack.c.b16 %v8535, %v8531
    %v8700 = vpack.c.b16 %v8536, %v8532
    %v8701 = vpack.c.b16 %v8541, %v8537
    %v8702 = vpack.c.b16 %v8542, %v8538
    %v8703 = vpack.c.b16 %v8543, %v8539
    %v8704 = vpack.c.b16 %v8544, %v8540
    %v8705 = vpack.c.b16 %v8549, %v8545
    %v8706 = vpack.c.b16 %v8550, %v8546
    %v8707 = vpack.c.b16 %v8551, %v8547
    %v8708 = vpack.c.b16 %v8552, %v8548
    %v8709 = vpack.c.b16 %v8557, %v8553
    %v8710 = vpack.c.b16 %v8558, %v8554
    %v8711 = vpack.c.b16 %v8559, %v8555
    %v8712 = vpack.c.b16 %v8560, %v8556
    %v8713 = vpack.c.b16 %v8565, %v8561
    %v8714 = vpack.c.b16 %v8566, %v8562
    %v8715 = vpack.c.b16 %v8567, %v8563
    %v8716 = vpack.c.b16 %v8568, %v8564
    %v8717 = vpack.c.b16 %v8573, %v8569
    %v8718 = vpack.c.b16 %v8574, %v8570
    %v8719 = vpack.c.b16 %v8575, %v8571
    %v8720 = vpack.c.b16 %v8576, %v8572
    %v8721 = vpack.c.b16 %v8581, %v8577
    %v8722 = vpack.c.b16 %v8582, %v8578
    %v8723 = vpack.c.b16 %v8583, %v8579
    %v8724 = vpack.c.b16 %v8584, %v8580
    %v8725 = vpack.c.b16 %v8589, %v8585
    %v8726 = vpack.c.b16 %v8590, %v8586
    %v8727 = vpack.c.b16 %v8591, %v8587
    %v8728 = vpack.c.b16 %v8592, %v8588
    %v8729 = vpack.c.b16 %v8597, %v8593
    %v8730 = vpack.c.b16 %v8598, %v8594
    %v8731 = vpack.c.b16 %v8599, %v8595
    %v8732 = vpack.c.b16 %v8600, %v8596
    %v8733 = vpack.c.b16 %v8605, %v8601
    %v8734 = vpack.c.b16 %v8606, %v8602
    %v8735 = vpack.c.b16 %v8607, %v8603
    %v8736 = vpack.c.b16 %v8608, %v8604
    %8865 = vmatpush.bf16.msra.mxu0 %v8637
    %8866 = vmatpush.bf16.msra.mxu0 %v8633
    %8867 = vmatpush.bf16.msra.mxu0 %v8629
    %8868 = vmatpush.bf16.msra.mxu0 %v8625
    %8869 = vmatpush.bf16.msra.mxu0 %v8621
    %8870 = vmatpush.bf16.msra.mxu0 %v8617
    %8871 = vmatpush.bf16.msra.mxu0 %v8613
    %8872 = vmatpush.bf16.msra.mxu0 %v8609
    %8873 = vmatmul.bf16.gmra.mxu0 %v8210
    %v8874 = vpop.f32.mrf.mxu0
    %v8875 = vadd.f32 %v8217, %v8874
    %v8876 = vpop.f32.mrf.mxu0
    %8877 = vdwg.mxu0
    %8878 = vmatpush.bf16.msra.mxu0 %v8669
    %8879 = vmatpush.bf16.msra.mxu0 %v8665
    %8880 = vmatpush.bf16.msra.mxu0 %v8661
    %8881 = vmatpush.bf16.msra.mxu0 %v8657
    %8882 = vmatpush.bf16.msra.mxu0 %v8653
    %8883 = vmatpush.bf16.msra.mxu0 %v8649
    %8884 = vmatpush.bf16.msra.mxu0 %v8645
    %8885 = vmatpush.bf16.msra.mxu0 %v8641
    %8886 = vmatmul.bf16.gmra.mxu0 %v8211
    %v8887 = vpop.f32.mrf.mxu0
    %v8888 = vadd.f32 %v8875, %v8887
    %v8889 = vpop.f32.mrf.mxu0
    %8890 = vdwg.mxu0
    %8891 = vmatpush.bf16.msra.mxu0 %v8701
    %8892 = vmatpush.bf16.msra.mxu0 %v8697
    %8893 = vmatpush.bf16.msra.mxu0 %v8693
    %8894 = vmatpush.bf16.msra.mxu0 %v8689
    %8895 = vmatpush.bf16.msra.mxu0 %v8685
    %8896 = vmatpush.bf16.msra.mxu0 %v8681
    %8897 = vmatpush.bf16.msra.mxu0 %v8677
    %8898 = vmatpush.bf16.msra.mxu0 %v8673
    %8899 = vmatmul.bf16.gmra.mxu0 %v8212
    %v8900 = vpop.f32.mrf.mxu0
    %v8901 = vadd.f32 %v8888, %v8900
    %v8902 = vpop.f32.mrf.mxu0
    %8903 = vdwg.mxu0
    %8904 = vmatpush.bf16.msra.mxu0 %v8733
    %8905 = vmatpush.bf16.msra.mxu0 %v8729
    %8906 = vmatpush.bf16.msra.mxu0 %v8725
    %8907 = vmatpush.bf16.msra.mxu0 %v8721
    %8908 = vmatpush.bf16.msra.mxu0 %v8717
    %8909 = vmatpush.bf16.msra.mxu0 %v8713
    %8910 = vmatpush.bf16.msra.mxu0 %v8709
    %8911 = vmatpush.bf16.msra.mxu0 %v8705
    %8912 = vmatmul.bf16.gmra.mxu0 %v8213
    %v8913 = vpop.f32.mrf.mxu0
    %v8914 = vadd.f32 %v8901, %v8913
    %v8915 = vpop.f32.mrf.mxu0
    %8916 = vdwg.mxu0
    %8917 = vmatpush.bf16.msra.mxu0 %v8638
    %8918 = vmatpush.bf16.msra.mxu0 %v8634
    %8919 = vmatpush.bf16.msra.mxu0 %v8630
    %8920 = vmatpush.bf16.msra.mxu0 %v8626
    %8921 = vmatpush.bf16.msra.mxu0 %v8622
    %8922 = vmatpush.bf16.msra.mxu0 %v8618
    %8923 = vmatpush.bf16.msra.mxu0 %v8614
    %8924 = vmatpush.bf16.msra.mxu0 %v8610
    %8925 = vmatmul.bf16.gmra.mxu0 %v8210
    %v8926 = vpop.f32.mrf.mxu0
    %v8927 = vadd.f32 %v8218, %v8926
    %v8928 = vpop.f32.mrf.mxu0
    %8929 = vdwg.mxu0
    %8930 = vmatpush.bf16.msra.mxu0 %v8670
    %8931 = vmatpush.bf16.msra.mxu0 %v8666
    %8932 = vmatpush.bf16.msra.mxu0 %v8662
    %8933 = vmatpush.bf16.msra.mxu0 %v8658
    %8934 = vmatpush.bf16.msra.mxu0 %v8654
    %8935 = vmatpush.bf16.msra.mxu0 %v8650
    %8936 = vmatpush.bf16.msra.mxu0 %v8646
    %8937 = vmatpush.bf16.msra.mxu0 %v8642
    %8938 = vmatmul.bf16.gmra.mxu0 %v8211
    %v8939 = vpop.f32.mrf.mxu0
    %v8940 = vadd.f32 %v8927, %v8939
    %v8941 = vpop.f32.mrf.mxu0
    %8942 = vdwg.mxu0
    %8943 = vmatpush.bf16.msra.mxu0 %v8702
    %8944 = vmatpush.bf16.msra.mxu0 %v8698
    %8945 = vmatpush.bf16.msra.mxu0 %v8694
    %8946 = vmatpush.bf16.msra.mxu0 %v8690
    %8947 = vmatpush.bf16.msra.mxu0 %v8686
    %8948 = vmatpush.bf16.msra.mxu0 %v8682
    %8949 = vmatpush.bf16.msra.mxu0 %v8678
    %8950 = vmatpush.bf16.msra.mxu0 %v8674
    %8951 = vmatmul.bf16.gmra.mxu0 %v8212
    %v8952 = vpop.f32.mrf.mxu0
    %v8953 = vadd.f32 %v8940, %v8952
    %v8954 = vpop.f32.mrf.mxu0
    %8955 = vdwg.mxu0
    %8956 = vmatpush.bf16.msra.mxu0 %v8734
    %8957 = vmatpush.bf16.msra.mxu0 %v8730
    %8958 = vmatpush.bf16.msra.mxu0 %v8726
    %8959 = vmatpush.bf16.msra.mxu0 %v8722
    %8960 = vmatpush.bf16.msra.mxu0 %v8718
    %8961 = vmatpush.bf16.msra.mxu0 %v8714
    %8962 = vmatpush.bf16.msra.mxu0 %v8710
    %8963 = vmatpush.bf16.msra.mxu0 %v8706
    %8964 = vmatmul.bf16.gmra.mxu0 %v8213
    %v8965 = vpop.f32.mrf.mxu0
    %v8966 = vadd.f32 %v8953, %v8965
    %v8967 = vpop.f32.mrf.mxu0
    %8968 = vdwg.mxu0
    %8969 = vmatpush.bf16.msra.mxu0 %v8639
    %8970 = vmatpush.bf16.msra.mxu0 %v8635
    %8971 = vmatpush.bf16.msra.mxu0 %v8631
    %8972 = vmatpush.bf16.msra.mxu0 %v8627
    %8973 = vmatpush.bf16.msra.mxu0 %v8623
    %8974 = vmatpush.bf16.msra.mxu0 %v8619
    %8975 = vmatpush.bf16.msra.mxu0 %v8615
    %8976 = vmatpush.bf16.msra.mxu0 %v8611
    %8977 = vmatmul.bf16.gmra.mxu0 %v8210
    %v8978 = vpop.f32.mrf.mxu0
    %v8979 = vadd.f32 %v8219, %v8978
    %v8980 = vpop.f32.mrf.mxu0
    %8981 = vdwg.mxu0
    %8982 = vmatpush.bf16.msra.mxu0 %v8671
    %8983 = vmatpush.bf16.msra.mxu0 %v8667
    %8984 = vmatpush.bf16.msra.mxu0 %v8663
    %8985 = vmatpush.bf16.msra.mxu0 %v8659
    %8986 = vmatpush.bf16.msra.mxu0 %v8655
    %8987 = vmatpush.bf16.msra.mxu0 %v8651
    %8988 = vmatpush.bf16.msra.mxu0 %v8647
    %8989 = vmatpush.bf16.msra.mxu0 %v8643
    %8990 = vmatmul.bf16.gmra.mxu0 %v8211
    %v8991 = vpop.f32.mrf.mxu0
    %v8992 = vadd.f32 %v8979, %v8991
    %v8993 = vpop.f32.mrf.mxu0
    %8994 = vdwg.mxu0
    %8995 = vmatpush.bf16.msra.mxu0 %v8703
    %8996 = vmatpush.bf16.msra.mxu0 %v8699
    %8997 = vmatpush.bf16.msra.mxu0 %v8695
    %8998 = vmatpush.bf16.msra.mxu0 %v8691
    %8999 = vmatpush.bf16.msra.mxu0 %v8687
    %9000 = vmatpush.bf16.msra.mxu0 %v8683
    %9001 = vmatpush.bf16.msra.mxu0 %v8679
    %9002 = vmatpush.bf16.msra.mxu0 %v8675
    %9003 = vmatmul.bf16.gmra.mxu0 %v8212
    %v9004 = vpop.f32.mrf.mxu0
    %v9005 = vadd.f32 %v8992, %v9004
    %v9006 = vpop.f32.mrf.mxu0
    %9007 = vdwg.mxu0
    %9008 = vmatpush.bf16.msra.mxu0 %v8735
    %9009 = vmatpush.bf16.msra.mxu0 %v8731
    %9010 = vmatpush.bf16.msra.mxu0 %v8727
    %9011 = vmatpush.bf16.msra.mxu0 %v8723
    %9012 = vmatpush.bf16.msra.mxu0 %v8719
    %9013 = vmatpush.bf16.msra.mxu0 %v8715
    %9014 = vmatpush.bf16.msra.mxu0 %v8711
    %9015 = vmatpush.bf16.msra.mxu0 %v8707
    %9016 = vmatmul.bf16.gmra.mxu0 %v8213
    %v9017 = vpop.f32.mrf.mxu0
    %v9018 = vadd.f32 %v9005, %v9017
    %v9019 = vpop.f32.mrf.mxu0
    %9020 = vdwg.mxu0
    %9021 = vmatpush.bf16.msra.mxu0 %v8640
    %9022 = vmatpush.bf16.msra.mxu0 %v8636
    %9023 = vmatpush.bf16.msra.mxu0 %v8632
    %9024 = vmatpush.bf16.msra.mxu0 %v8628
    %9025 = vmatpush.bf16.msra.mxu0 %v8624
    %9026 = vmatpush.bf16.msra.mxu0 %v8620
    %9027 = vmatpush.bf16.msra.mxu0 %v8616
    %9028 = vmatpush.bf16.msra.mxu0 %v8612
    %9029 = vmatmul.bf16.gmra.mxu0 %v8210
    %v9030 = vpop.f32.mrf.mxu0
    %v9031 = vadd.f32 %v8220, %v9030
    %v9032 = vpop.f32.mrf.mxu0
    %9033 = vdwg.mxu0
    %9034 = vmatpush.bf16.msra.mxu0 %v8672
    %9035 = vmatpush.bf16.msra.mxu0 %v8668
    %9036 = vmatpush.bf16.msra.mxu0 %v8664
    %9037 = vmatpush.bf16.msra.mxu0 %v8660
    %9038 = vmatpush.bf16.msra.mxu0 %v8656
    %9039 = vmatpush.bf16.msra.mxu0 %v8652
    %9040 = vmatpush.bf16.msra.mxu0 %v8648
    %9041 = vmatpush.bf16.msra.mxu0 %v8644
    %9042 = vmatmul.bf16.gmra.mxu0 %v8211
    %v9043 = vpop.f32.mrf.mxu0
    %v9044 = vadd.f32 %v9031, %v9043
    %v9045 = vpop.f32.mrf.mxu0
    %9046 = vdwg.mxu0
    %9047 = vmatpush.bf16.msra.mxu0 %v8704
    %9048 = vmatpush.bf16.msra.mxu0 %v8700
    %9049 = vmatpush.bf16.msra.mxu0 %v8696
    %9050 = vmatpush.bf16.msra.mxu0 %v8692
    %9051 = vmatpush.bf16.msra.mxu0 %v8688
    %9052 = vmatpush.bf16.msra.mxu0 %v8684
    %9053 = vmatpush.bf16.msra.mxu0 %v8680
    %9054 = vmatpush.bf16.msra.mxu0 %v8676
    %9055 = vmatmul.bf16.gmra.mxu0 %v8212
    %v9056 = vpop.f32.mrf.mxu0
    %v9057 = vadd.f32 %v9044, %v9056
    %v9058 = vpop.f32.mrf.mxu0
    %9059 = vdwg.mxu0
    %9060 = vmatpush.bf16.msra.mxu0 %v8736
    %9061 = vmatpush.bf16.msra.mxu0 %v8732
    %9062 = vmatpush.bf16.msra.mxu0 %v8728
    %9063 = vmatpush.bf16.msra.mxu0 %v8724
    %9064 = vmatpush.bf16.msra.mxu0 %v8720
    %9065 = vmatpush.bf16.msra.mxu0 %v8716
    %9066 = vmatpush.bf16.msra.mxu0 %v8712
    %9067 = vmatpush.bf16.msra.mxu0 %v8708
    %9068 = vmatmul.bf16.gmra.mxu0 %v8213
    %v9069 = vpop.f32.mrf.mxu0
    %v9070 = vadd.f32 %v9057, %v9069
    %v9071 = vpop.f32.mrf.mxu0
    %9072 = vdwg.mxu0
    %v9073 = vadd.f32 %v4945, %v8914
    %v9074 = vadd.f32 %v4946, %v8966
    %v9075 = vadd.f32 %v4947, %v9018
    %v9076 = vadd.f32 %v4948, %v9070
    %v9077 = vadd.f32 %v9073, %v9074
    %v9078 = vadd.f32 %v9077, %v9075
    %v9079 = vadd.f32 %v9078, %v9076
    %9080 = vadd.xlane.f32.xlu0 %v9079
    %v9081 = vpop.xlane.xlu0 %9080
    %v9082 = vmul.f32 %v9081, 0.0023041475
    %v9083 = vsub.f32 %v9073, %v9082
    %v9084 = vsub.f32 %v9074, %v9082
    %v9085 = vsub.f32 %v9075, %v9082
    %v9086 = vsub.f32 %v9076, %v9082
    %v9087 = vsel %vm4243, %v9083, 0.0
    %v9088 = vsel %vm4244, %v9084, 0.0
    %v9089 = vsel %vm4245, %v9085, 0.0
    %v9090 = vsel %vm4246, %v9086, 0.0
    %v9091 = vmul.f32 %v9087, %v9087
    %v9092 = vmul.f32 %v9088, %v9088
    %v9093 = vmul.f32 %v9089, %v9089
    %v9094 = vmul.f32 %v9090, %v9090
    %v9095 = vadd.f32 %v9091, %v9092
    %v9096 = vadd.f32 %v9095, %v9093
    %v9097 = vadd.f32 %v9096, %v9094
    %9098 = vadd.xlane.f32.xlu0 %v9097
    %v9099 = vpop.xlane.xlu0 %9098
    %v9100 = vmul.f32 %v9099, 0.0023041475
    %v9101 = vadd.f32 %v9100, 1e-05
    %v9102 = vrsqrt.pop %v9101
    %v9103 = vmul.f32 %v9102, %v9101
    %v9104 = vmul.f32 %v9103, %v9102
    %v9105 = vmul.f32 0.5, %v9104
    %v9106 = vsub.f32 1.5, %v9105
    %v9107 = vmul.f32 %v9102, %v9106
    %vm9108 = vweird.f32 %v9101
    %vm9109 = vweird.f32 %v9102
    %vm9110 = vmor %vm9108, %vm9109
    %v9111 = vsel %vm9110, %v9102, %v9107
    %v9112 = vmul.f32 %v9083, %v9111
    %v9113 = vmul.f32 %v9084, %v9111
    %v9114 = vmul.f32 %v9085, %v9111
    %v9115 = vmul.f32 %v9086, %v9111
    %s9116 = scalar_lea.vmem [#allocation5], 38
    %v9117 = vld [vmem:[%s9116] ss:$8 sm:$0xf]
    %v9119 = vperm.slane %v9117, 0
    %v9120 = vperm.slane %v9117, 1
    %v9121 = vperm.slane %v9117, 2
    %v9122 = vperm.slane %v9117, 3
    %v9127 = vmul.f32 %v9112, %v9119
    %v9128 = vmul.f32 %v9113, %v9120
    %v9129 = vmul.f32 %v9114, %v9121
    %v9130 = vmul.f32 %v9115, %v9122
    %s9131 = scalar_lea.vmem [#allocation5], 39
    %v9132 = vld [vmem:[%s9131] ss:$8 sm:$0xf]
    %v9134 = vperm.slane %v9132, 0
    %v9135 = vperm.slane %v9132, 1
    %v9136 = vperm.slane %v9132, 2
    %v9137 = vperm.slane %v9132, 3
    %v9142 = vadd.f32 %v9127, %v9134
    %v9143 = vadd.f32 %v9128, %v9135
    %v9144 = vadd.f32 %v9129, %v9136
    %v9145 = vadd.f32 %v9130, %v9137
    %v9146 = vld [vmem:[#allocation3] sm:$0xf]
    %v9147 = vld [vmem:[#allocation3 + $0x4] sm:$0xf]
    %v9148 = vld [vmem:[#allocation3 + $0x8] sm:$0xf]
    %v9149 = vld [vmem:[#allocation3 + $0xc] sm:$0xf]
    %v9150 = vld [vmem:[#allocation3 + $0x10] sm:$0xf]
    %v9151 = vld [vmem:[#allocation3 + $0x14] sm:$0xf]
    %v9152 = vld [vmem:[#allocation3 + $0x18] sm:$0xf]
    %v9153 = vld [vmem:[#allocation3 + $0x1c] sm:$0xf]
    %v9154 = vld [vmem:[#allocation3 + $0x20] sm:$0xf]
    %v9155 = vld [vmem:[#allocation3 + $0x24] sm:$0xf]
    %v9156 = vld [vmem:[#allocation3 + $0x28] sm:$0xf]
    %v9157 = vld [vmem:[#allocation3 + $0x2c] sm:$0xf]
    %v9158 = vld [vmem:[#allocation3 + $0x30] sm:$0xf]
    %v9159 = vld [vmem:[#allocation3 + $0x34] sm:$0xf]
    %v9160 = vld [vmem:[#allocation3 + $0x38] sm:$0xf]
    %v9161 = vld [vmem:[#allocation3 + $0x3c] sm:$0xf]
    %v9162 = vld [vmem:[#allocation3 + $0x40] sm:$0xf]
    %v9163 = vld [vmem:[#allocation3 + $0x44] sm:$0xf]
    %v9164 = vld [vmem:[#allocation3 + $0x48] sm:$0xf]
    %v9165 = vld [vmem:[#allocation3 + $0x4c] sm:$0xf]
    %v9166 = vld [vmem:[#allocation3 + $0x50] sm:$0xf]
    %v9167 = vld [vmem:[#allocation3 + $0x54] sm:$0xf]
    %v9168 = vld [vmem:[#allocation3 + $0x58] sm:$0xf]
    %v9169 = vld [vmem:[#allocation3 + $0x5c] sm:$0xf]
    %v9170 = vld [vmem:[#allocation3 + $0x60] sm:$0xf]
    %v9171 = vld [vmem:[#allocation3 + $0x64] sm:$0xf]
    %v9172 = vld [vmem:[#allocation3 + $0x68] sm:$0xf]
    %v9173 = vld [vmem:[#allocation3 + $0x6c] sm:$0xf]
    %v9174 = vld [vmem:[#allocation3 + $0x70] sm:$0xf]
    %v9175 = vld [vmem:[#allocation3 + $0x74] sm:$0xf]
    %v9176 = vld [vmem:[#allocation3 + $0x78] sm:$0xf]
    %v9177 = vld [vmem:[#allocation3 + $0x7c] sm:$0xf]
    %v9178 = vld [vmem:[#allocation3 + $0x80] sm:$0xf]
    %v9179 = vld [vmem:[#allocation3 + $0x84] sm:$0xf]
    %v9180 = vld [vmem:[#allocation3 + $0x88] sm:$0xf]
    %v9181 = vld [vmem:[#allocation3 + $0x8c] sm:$0xf]
    %v9182 = vld [vmem:[#allocation3 + $0x90] sm:$0xf]
    %v9183 = vld [vmem:[#allocation3 + $0x94] sm:$0xf]
    %v9184 = vld [vmem:[#allocation3 + $0x98] sm:$0xf]
    %v9185 = vld [vmem:[#allocation3 + $0x9c] sm:$0xf]
    %v9186 = vld [vmem:[#allocation3 + $0xa0] sm:$0xf]
    %v9187 = vld [vmem:[#allocation3 + $0xa4] sm:$0xf]
    %v9188 = vld [vmem:[#allocation3 + $0xa8] sm:$0xf]
    %v9189 = vld [vmem:[#allocation3 + $0xac] sm:$0xf]
    %v9190 = vld [vmem:[#allocation3 + $0xb0] sm:$0xf]
    %v9191 = vld [vmem:[#allocation3 + $0xb4] sm:$0xf]
    %v9192 = vld [vmem:[#allocation3 + $0xb8] sm:$0xf]
    %v9193 = vld [vmem:[#allocation3 + $0xbc] sm:$0xf]
    %v9194 = vld [vmem:[#allocation3 + $0xc0] sm:$0xf]
    %v9195 = vld [vmem:[#allocation3 + $0xc4] sm:$0xf]
    %v9196 = vld [vmem:[#allocation3 + $0xc8] sm:$0xf]
    %v9197 = vld [vmem:[#allocation3 + $0xcc] sm:$0xf]
    %v9198 = vld [vmem:[#allocation3 + $0xd0] sm:$0xf]
    %v9199 = vld [vmem:[#allocation3 + $0xd4] sm:$0xf]
    %v9200 = vld [vmem:[#allocation3 + $0xd8] sm:$0xf]
    %v9201 = vld [vmem:[#allocation3 + $0xdc] sm:$0xf]
    %v9202 = vld [vmem:[#allocation3 + $0xe0] sm:$0xf]
    %v9203 = vld [vmem:[#allocation3 + $0xe4] sm:$0xf]
    %v9204 = vld [vmem:[#allocation3 + $0xe8] sm:$0xf]
    %v9205 = vld [vmem:[#allocation3 + $0xec] sm:$0xf]
    %v9206 = vld [vmem:[#allocation3 + $0xf0] sm:$0xf]
    %v9207 = vld [vmem:[#allocation3 + $0xf4] sm:$0xf]
    %v9208 = vld [vmem:[#allocation3 + $0xf8] sm:$0xf]
    %v9209 = vld [vmem:[#allocation3 + $0xfc] sm:$0xf]
    %v9210 = vpack.c.bf16 %v9142, %v9142
    %v9211 = vpack.c.bf16 %v9143, %v9143
    %v9212 = vpack.c.bf16 %v9144, %v9144
    %v9213 = vpack.c.bf16 %v9145, %v9145
    %v9214 = vld [vmem:[#allocation5 + $0x40] ss:$0 sm:$0xff]
    %v9279 = vunpack.c.l.b16 %v9146
    %v9280 = vunpack.c.l.b16 %v9147
    %v9281 = vunpack.c.l.b16 %v9148
    %v9282 = vunpack.c.l.b16 %v9149
    %v9283 = vunpack.c.l.b16 %v9150
    %v9284 = vunpack.c.l.b16 %v9151
    %v9285 = vunpack.c.l.b16 %v9152
    %v9286 = vunpack.c.l.b16 %v9153
    %v9287 = vunpack.c.l.b16 %v9154
    %v9288 = vunpack.c.l.b16 %v9155
    %v9289 = vunpack.c.l.b16 %v9156
    %v9290 = vunpack.c.l.b16 %v9157
    %v9291 = vunpack.c.l.b16 %v9158
    %v9292 = vunpack.c.l.b16 %v9159
    %v9293 = vunpack.c.l.b16 %v9160
    %v9294 = vunpack.c.l.b16 %v9161
    %v9295 = vunpack.c.l.b16 %v9162
    %v9296 = vunpack.c.l.b16 %v9163
    %v9297 = vunpack.c.l.b16 %v9164
    %v9298 = vunpack.c.l.b16 %v9165
    %v9299 = vunpack.c.l.b16 %v9166
    %v9300 = vunpack.c.l.b16 %v9167
    %v9301 = vunpack.c.l.b16 %v9168
    %v9302 = vunpack.c.l.b16 %v9169
    %v9303 = vunpack.c.l.b16 %v9170
    %v9304 = vunpack.c.l.b16 %v9171
    %v9305 = vunpack.c.l.b16 %v9172
    %v9306 = vunpack.c.l.b16 %v9173
    %v9307 = vunpack.c.l.b16 %v9174
    %v9308 = vunpack.c.l.b16 %v9175
    %v9309 = vunpack.c.l.b16 %v9176
    %v9310 = vunpack.c.l.b16 %v9177
    %v9311 = vunpack.c.l.b16 %v9178
    %v9312 = vunpack.c.l.b16 %v9179
    %v9313 = vunpack.c.l.b16 %v9180
    %v9314 = vunpack.c.l.b16 %v9181
    %v9315 = vunpack.c.l.b16 %v9182
    %v9316 = vunpack.c.l.b16 %v9183
    %v9317 = vunpack.c.l.b16 %v9184
    %v9318 = vunpack.c.l.b16 %v9185
    %v9319 = vunpack.c.l.b16 %v9186
    %v9320 = vunpack.c.l.b16 %v9187
    %v9321 = vunpack.c.l.b16 %v9188
    %v9322 = vunpack.c.l.b16 %v9189
    %v9323 = vunpack.c.l.b16 %v9190
    %v9324 = vunpack.c.l.b16 %v9191
    %v9325 = vunpack.c.l.b16 %v9192
    %v9326 = vunpack.c.l.b16 %v9193
    %v9327 = vunpack.c.l.b16 %v9194
    %v9328 = vunpack.c.l.b16 %v9195
    %v9329 = vunpack.c.l.b16 %v9196
    %v9330 = vunpack.c.l.b16 %v9197
    %v9331 = vunpack.c.l.b16 %v9198
    %v9332 = vunpack.c.l.b16 %v9199
    %v9333 = vunpack.c.l.b16 %v9200
    %v9334 = vunpack.c.l.b16 %v9201
    %v9335 = vunpack.c.l.b16 %v9202
    %v9336 = vunpack.c.l.b16 %v9203
    %v9337 = vunpack.c.l.b16 %v9204
    %v9338 = vunpack.c.l.b16 %v9205
    %v9339 = vunpack.c.l.b16 %v9206
    %v9340 = vunpack.c.l.b16 %v9207
    %v9341 = vunpack.c.l.b16 %v9208
    %v9342 = vunpack.c.l.b16 %v9209
    %v9343 = vpack.c.b16 %v9280, %v9279
    %v9344 = vpack.c.b16 %v9282, %v9281
    %v9345 = vpack.c.b16 %v9284, %v9283
    %v9346 = vpack.c.b16 %v9286, %v9285
    %v9347 = vpack.c.b16 %v9288, %v9287
    %v9348 = vpack.c.b16 %v9290, %v9289
    %v9349 = vpack.c.b16 %v9292, %v9291
    %v9350 = vpack.c.b16 %v9294, %v9293
    %v9351 = vpack.c.b16 %v9296, %v9295
    %v9352 = vpack.c.b16 %v9298, %v9297
    %v9353 = vpack.c.b16 %v9300, %v9299
    %v9354 = vpack.c.b16 %v9302, %v9301
    %v9355 = vpack.c.b16 %v9304, %v9303
    %v9356 = vpack.c.b16 %v9306, %v9305
    %v9357 = vpack.c.b16 %v9308, %v9307
    %v9358 = vpack.c.b16 %v9310, %v9309
    %v9359 = vpack.c.b16 %v9312, %v9311
    %v9360 = vpack.c.b16 %v9314, %v9313
    %v9361 = vpack.c.b16 %v9316, %v9315
    %v9362 = vpack.c.b16 %v9318, %v9317
    %v9363 = vpack.c.b16 %v9320, %v9319
    %v9364 = vpack.c.b16 %v9322, %v9321
    %v9365 = vpack.c.b16 %v9324, %v9323
    %v9366 = vpack.c.b16 %v9326, %v9325
    %v9367 = vpack.c.b16 %v9328, %v9327
    %v9368 = vpack.c.b16 %v9330, %v9329
    %v9369 = vpack.c.b16 %v9332, %v9331
    %v9370 = vpack.c.b16 %v9334, %v9333
    %v9371 = vpack.c.b16 %v9336, %v9335
    %v9372 = vpack.c.b16 %v9338, %v9337
    %v9373 = vpack.c.b16 %v9340, %v9339
    %v9374 = vpack.c.b16 %v9342, %v9341
    %9407 = vmatpush.bf16.msra.mxu0 %v9350
    %9408 = vmatpush.bf16.msra.mxu0 %v9349
    %9409 = vmatpush.bf16.msra.mxu0 %v9348
    %9410 = vmatpush.bf16.msra.mxu0 %v9347
    %9411 = vmatpush.bf16.msra.mxu0 %v9346
    %9412 = vmatpush.bf16.msra.mxu0 %v9345
    %9413 = vmatpush.bf16.msra.mxu0 %v9344
    %9414 = vmatpush.bf16.msra.mxu0 %v9343
    %9415 = vmatmul.bf16.gmra.mxu0 %v9210
    %v9416 = vpop.f32.mrf.mxu0
    %v9417 = vadd.f32 %v9214, %v9416
    %v9418 = vpop.f32.mrf.mxu0
    %9419 = vdwg.mxu0
    %9420 = vmatpush.bf16.msra.mxu0 %v9358
    %9421 = vmatpush.bf16.msra.mxu0 %v9357
    %9422 = vmatpush.bf16.msra.mxu0 %v9356
    %9423 = vmatpush.bf16.msra.mxu0 %v9355
    %9424 = vmatpush.bf16.msra.mxu0 %v9354
    %9425 = vmatpush.bf16.msra.mxu0 %v9353
    %9426 = vmatpush.bf16.msra.mxu0 %v9352
    %9427 = vmatpush.bf16.msra.mxu0 %v9351
    %9428 = vmatmul.bf16.gmra.mxu0 %v9211
    %v9429 = vpop.f32.mrf.mxu0
    %v9430 = vadd.f32 %v9417, %v9429
    %v9431 = vpop.f32.mrf.mxu0
    %9432 = vdwg.mxu0
    %9433 = vmatpush.bf16.msra.mxu0 %v9366
    %9434 = vmatpush.bf16.msra.mxu0 %v9365
    %9435 = vmatpush.bf16.msra.mxu0 %v9364
    %9436 = vmatpush.bf16.msra.mxu0 %v9363
    %9437 = vmatpush.bf16.msra.mxu0 %v9362
    %9438 = vmatpush.bf16.msra.mxu0 %v9361
    %9439 = vmatpush.bf16.msra.mxu0 %v9360
    %9440 = vmatpush.bf16.msra.mxu0 %v9359
    %9441 = vmatmul.bf16.gmra.mxu0 %v9212
    %v9442 = vpop.f32.mrf.mxu0
    %v9443 = vadd.f32 %v9430, %v9442
    %v9444 = vpop.f32.mrf.mxu0
    %9445 = vdwg.mxu0
    %9446 = vmatpush.bf16.msra.mxu0 %v9374
    %9447 = vmatpush.bf16.msra.mxu0 %v9373
    %9448 = vmatpush.bf16.msra.mxu0 %v9372
    %9449 = vmatpush.bf16.msra.mxu0 %v9371
    %9450 = vmatpush.bf16.msra.mxu0 %v9370
    %9451 = vmatpush.bf16.msra.mxu0 %v9369
    %9452 = vmatpush.bf16.msra.mxu0 %v9368
    %9453 = vmatpush.bf16.msra.mxu0 %v9367
    %9454 = vmatmul.bf16.gmra.mxu0 %v9213
    %v9455 = vpop.f32.mrf.mxu0
    %v9456 = vadd.f32 %v9443, %v9455
    %v9457 = vpop.f32.mrf.mxu0
    %9458 = vdwg.mxu0
    %v9459 = vmax.f32 %v9456, 0.0
    %v9460 = vld [vmem:[#allocation2 + $0x1000] sm:$0xff]
    %v9461 = vld [vmem:[#allocation2 + $0x1008] sm:$0xff]
    %v9462 = vld [vmem:[#allocation2 + $0x1010] sm:$0xff]
    %v9463 = vld [vmem:[#allocation2 + $0x1018] sm:$0xff]
    %v9464 = vld [vmem:[#allocation2 + $0x1020] sm:$0xff]
    %v9465 = vld [vmem:[#allocation2 + $0x1028] sm:$0xff]
    %v9466 = vld [vmem:[#allocation2 + $0x1030] sm:$0xff]
    %v9467 = vld [vmem:[#allocation2 + $0x1038] sm:$0xff]
    %v9468 = vld [vmem:[#allocation2 + $0x1040] sm:$0xff]
    %v9469 = vld [vmem:[#allocation2 + $0x1048] sm:$0xff]
    %v9470 = vld [vmem:[#allocation2 + $0x1050] sm:$0xff]
    %v9471 = vld [vmem:[#allocation2 + $0x1058] sm:$0xff]
    %v9472 = vld [vmem:[#allocation2 + $0x1060] sm:$0xff]
    %v9473 = vld [vmem:[#allocation2 + $0x1068] sm:$0xff]
    %v9474 = vld [vmem:[#allocation2 + $0x1070] sm:$0xff]
    %v9475 = vld [vmem:[#allocation2 + $0x1078] sm:$0xff]
    %v9476 = vld [vmem:[#allocation2 + $0x1080] sm:$0xff]
    %v9477 = vld [vmem:[#allocation2 + $0x1088] sm:$0xff]
    %v9478 = vld [vmem:[#allocation2 + $0x1090] sm:$0xff]
    %v9479 = vld [vmem:[#allocation2 + $0x1098] sm:$0xff]
    %v9480 = vld [vmem:[#allocation2 + $0x10a0] sm:$0xff]
    %v9481 = vld [vmem:[#allocation2 + $0x10a8] sm:$0xff]
    %v9482 = vld [vmem:[#allocation2 + $0x10b0] sm:$0xff]
    %v9483 = vld [vmem:[#allocation2 + $0x10b8] sm:$0xff]
    %v9484 = vld [vmem:[#allocation2 + $0x10c0] sm:$0xff]
    %v9485 = vld [vmem:[#allocation2 + $0x10c8] sm:$0xff]
    %v9486 = vld [vmem:[#allocation2 + $0x10d0] sm:$0xff]
    %v9487 = vld [vmem:[#allocation2 + $0x10d8] sm:$0xff]
    %v9488 = vld [vmem:[#allocation2 + $0x10e0] sm:$0xff]
    %v9489 = vld [vmem:[#allocation2 + $0x10e8] sm:$0xff]
    %v9490 = vld [vmem:[#allocation2 + $0x10f0] sm:$0xff]
    %v9491 = vld [vmem:[#allocation2 + $0x10f8] sm:$0xff]
    %v9492 = vpack.c.bf16 %v9459, %v9459
    %s9493 = scalar_lea.vmem [#allocation5], 65
    %v9494 = vld [vmem:[%s9493] ss:$8 sm:$0xf]
    %v9496 = vperm.slane %v9494, 0
    %v9497 = vperm.slane %v9494, 1
    %v9498 = vperm.slane %v9494, 2
    %v9499 = vperm.slane %v9494, 3
    %v9536 = vunpack.c.l.b16 %v9460
    %v9537 = vunpack.c.h.b16 %v9460
    %v9538 = vunpack.c.l.b16 %v9461
    %v9539 = vunpack.c.h.b16 %v9461
    %v9540 = vunpack.c.l.b16 %v9462
    %v9541 = vunpack.c.h.b16 %v9462
    %v9542 = vunpack.c.l.b16 %v9463
    %v9543 = vunpack.c.h.b16 %v9463
    %v9544 = vunpack.c.l.b16 %v9464
    %v9545 = vunpack.c.h.b16 %v9464
    %v9546 = vunpack.c.l.b16 %v9465
    %v9547 = vunpack.c.h.b16 %v9465
    %v9548 = vunpack.c.l.b16 %v9466
    %v9549 = vunpack.c.h.b16 %v9466
    %v9550 = vunpack.c.l.b16 %v9467
    %v9551 = vunpack.c.h.b16 %v9467
    %v9552 = vunpack.c.l.b16 %v9468
    %v9553 = vunpack.c.h.b16 %v9468
    %v9554 = vunpack.c.l.b16 %v9469
    %v9555 = vunpack.c.h.b16 %v9469
    %v9556 = vunpack.c.l.b16 %v9470
    %v9557 = vunpack.c.h.b16 %v9470
    %v9558 = vunpack.c.l.b16 %v9471
    %v9559 = vunpack.c.h.b16 %v9471
    %v9560 = vunpack.c.l.b16 %v9472
    %v9561 = vunpack.c.h.b16 %v9472
    %v9562 = vunpack.c.l.b16 %v9473
    %v9563 = vunpack.c.h.b16 %v9473
    %v9564 = vunpack.c.l.b16 %v9474
    %v9565 = vunpack.c.h.b16 %v9474
    %v9566 = vunpack.c.l.b16 %v9475
    %v9567 = vunpack.c.h.b16 %v9475
    %v9568 = vunpack.c.l.b16 %v9476
    %v9569 = vunpack.c.h.b16 %v9476
    %v9570 = vunpack.c.l.b16 %v9477
    %v9571 = vunpack.c.h.b16 %v9477
    %v9572 = vunpack.c.l.b16 %v9478
    %v9573 = vunpack.c.h.b16 %v9478
    %v9574 = vunpack.c.l.b16 %v9479
    %v9575 = vunpack.c.h.b16 %v9479
    %v9576 = vunpack.c.l.b16 %v9480
    %v9577 = vunpack.c.h.b16 %v9480
    %v9578 = vunpack.c.l.b16 %v9481
    %v9579 = vunpack.c.h.b16 %v9481
    %v9580 = vunpack.c.l.b16 %v9482
    %v9581 = vunpack.c.h.b16 %v9482
    %v9582 = vunpack.c.l.b16 %v9483
    %v9583 = vunpack.c.h.b16 %v9483
    %v9584 = vunpack.c.l.b16 %v9484
    %v9585 = vunpack.c.h.b16 %v9484
    %v9586 = vunpack.c.l.b16 %v9485
    %v9587 = vunpack.c.h.b16 %v9485
    %v9588 = vunpack.c.l.b16 %v9486
    %v9589 = vunpack.c.h.b16 %v9486
    %v9590 = vunpack.c.l.b16 %v9487
    %v9591 = vunpack.c.h.b16 %v9487
    %v9592 = vunpack.c.l.b16 %v9488
    %v9593 = vunpack.c.h.b16 %v9488
    %v9594 = vunpack.c.l.b16 %v9489
    %v9595 = vunpack.c.h.b16 %v9489
    %v9596 = vunpack.c.l.b16 %v9490
    %v9597 = vunpack.c.h.b16 %v9490
    %v9598 = vunpack.c.l.b16 %v9491
    %v9599 = vunpack.c.h.b16 %v9491
    %v9600 = vpack.c.b16 %v9540, %v9536
    %v9601 = vpack.c.b16 %v9541, %v9537
    %v9602 = vpack.c.b16 %v9542, %v9538
    %v9603 = vpack.c.b16 %v9543, %v9539
    %v9604 = vpack.c.b16 %v9548, %v9544
    %v9605 = vpack.c.b16 %v9549, %v9545
    %v9606 = vpack.c.b16 %v9550, %v9546
    %v9607 = vpack.c.b16 %v9551, %v9547
    %v9608 = vpack.c.b16 %v9556, %v9552
    %v9609 = vpack.c.b16 %v9557, %v9553
    %v9610 = vpack.c.b16 %v9558, %v9554
    %v9611 = vpack.c.b16 %v9559, %v9555
    %v9612 = vpack.c.b16 %v9564, %v9560
    %v9613 = vpack.c.b16 %v9565, %v9561
    %v9614 = vpack.c.b16 %v9566, %v9562
    %v9615 = vpack.c.b16 %v9567, %v9563
    %v9616 = vpack.c.b16 %v9572, %v9568
    %v9617 = vpack.c.b16 %v9573, %v9569
    %v9618 = vpack.c.b16 %v9574, %v9570
    %v9619 = vpack.c.b16 %v9575, %v9571
    %v9620 = vpack.c.b16 %v9580, %v9576
    %v9621 = vpack.c.b16 %v9581, %v9577
    %v9622 = vpack.c.b16 %v9582, %v9578
    %v9623 = vpack.c.b16 %v9583, %v9579
    %v9624 = vpack.c.b16 %v9588, %v9584
    %v9625 = vpack.c.b16 %v9589, %v9585
    %v9626 = vpack.c.b16 %v9590, %v9586
    %v9627 = vpack.c.b16 %v9591, %v9587
    %v9628 = vpack.c.b16 %v9596, %v9592
    %v9629 = vpack.c.b16 %v9597, %v9593
    %v9630 = vpack.c.b16 %v9598, %v9594
    %v9631 = vpack.c.b16 %v9599, %v9595
    %9664 = vmatpush.bf16.msra.mxu0 %v9628
    %9665 = vmatpush.bf16.msra.mxu0 %v9624
    %9666 = vmatpush.bf16.msra.mxu0 %v9620
    %9667 = vmatpush.bf16.msra.mxu0 %v9616
    %9668 = vmatpush.bf16.msra.mxu0 %v9612
    %9669 = vmatpush.bf16.msra.mxu0 %v9608
    %9670 = vmatpush.bf16.msra.mxu0 %v9604
    %9671 = vmatpush.bf16.msra.mxu0 %v9600
    %9672 = vmatmul.bf16.gmra.mxu0 %v9492
    %v9673 = vpop.f32.mrf.mxu0
    %v9674 = vadd.f32 %v9496, %v9673
    %v9675 = vpop.f32.mrf.mxu0
    %9676 = vdwg.mxu0
    %9677 = vmatpush.bf16.msra.mxu0 %v9629
    %9678 = vmatpush.bf16.msra.mxu0 %v9625
    %9679 = vmatpush.bf16.msra.mxu0 %v9621
    %9680 = vmatpush.bf16.msra.mxu0 %v9617
    %9681 = vmatpush.bf16.msra.mxu0 %v9613
    %9682 = vmatpush.bf16.msra.mxu0 %v9609
    %9683 = vmatpush.bf16.msra.mxu0 %v9605
    %9684 = vmatpush.bf16.msra.mxu0 %v9601
    %9685 = vmatmul.bf16.gmra.mxu0 %v9492
    %v9686 = vpop.f32.mrf.mxu0
    %v9687 = vadd.f32 %v9497, %v9686
    %v9688 = vpop.f32.mrf.mxu0
    %9689 = vdwg.mxu0
    %9690 = vmatpush.bf16.msra.mxu0 %v9630
    %9691 = vmatpush.bf16.msra.mxu0 %v9626
    %9692 = vmatpush.bf16.msra.mxu0 %v9622
    %9693 = vmatpush.bf16.msra.mxu0 %v9618
    %9694 = vmatpush.bf16.msra.mxu0 %v9614
    %9695 = vmatpush.bf16.msra.mxu0 %v9610
    %9696 = vmatpush.bf16.msra.mxu0 %v9606
    %9697 = vmatpush.bf16.msra.mxu0 %v9602
    %9698 = vmatmul.bf16.gmra.mxu0 %v9492
    %v9699 = vpop.f32.mrf.mxu0
    %v9700 = vadd.f32 %v9498, %v9699
    %v9701 = vpop.f32.mrf.mxu0
    %9702 = vdwg.mxu0
    %9703 = vmatpush.bf16.msra.mxu0 %v9631
    %9704 = vmatpush.bf16.msra.mxu0 %v9627
    %9705 = vmatpush.bf16.msra.mxu0 %v9623
    %9706 = vmatpush.bf16.msra.mxu0 %v9619
    %9707 = vmatpush.bf16.msra.mxu0 %v9615
    %9708 = vmatpush.bf16.msra.mxu0 %v9611
    %9709 = vmatpush.bf16.msra.mxu0 %v9607
    %9710 = vmatpush.bf16.msra.mxu0 %v9603
    %9711 = vmatmul.bf16.gmra.mxu0 %v9492
    %v9712 = vpop.f32.mrf.mxu0
    %v9713 = vadd.f32 %v9499, %v9712
    %v9714 = vpop.f32.mrf.mxu0
    %9715 = vdwg.mxu0
    %v9716 = vadd.f32 %v9142, %v9674
    %v9717 = vadd.f32 %v9143, %v9687
    %v9718 = vadd.f32 %v9144, %v9700
    %v9719 = vadd.f32 %v9145, %v9713
    %v9720 = vadd.f32 %v9716, %v9717
    %v9721 = vadd.f32 %v9720, %v9718
    %v9722 = vadd.f32 %v9721, %v9719
    %9723 = vadd.xlane.f32.xlu0 %v9722
    %v9724 = vpop.xlane.xlu0 %9723
    %v9725 = vmul.f32 %v9724, 0.0023041475
    %v9726 = vsub.f32 %v9716, %v9725
    %v9727 = vsub.f32 %v9717, %v9725
    %v9728 = vsub.f32 %v9718, %v9725
    %v9729 = vsub.f32 %v9719, %v9725
    %v9730 = vsel %vm4243, %v9726, 0.0
    %v9731 = vsel %vm4244, %v9727, 0.0
    %v9732 = vsel %vm4245, %v9728, 0.0
    %v9733 = vsel %vm4246, %v9729, 0.0
    %v9734 = vmul.f32 %v9730, %v9730
    %v9735 = vmul.f32 %v9731, %v9731
    %v9736 = vmul.f32 %v9732, %v9732
    %v9737 = vmul.f32 %v9733, %v9733
    %v9738 = vadd.f32 %v9734, %v9735
    %v9739 = vadd.f32 %v9738, %v9736
    %v9740 = vadd.f32 %v9739, %v9737
    %9741 = vadd.xlane.f32.xlu0 %v9740
    %v9742 = vpop.xlane.xlu0 %9741
    %v9743 = vmul.f32 %v9742, 0.0023041475
    %v9744 = vadd.f32 %v9743, 1e-05
    %v9745 = vrsqrt.pop %v9744
    %v9746 = vmul.f32 %v9745, %v9744
    %v9747 = vmul.f32 %v9746, %v9745
    %v9748 = vmul.f32 0.5, %v9747
    %v9749 = vsub.f32 1.5, %v9748
    %v9750 = vmul.f32 %v9745, %v9749
    %vm9751 = vweird.f32 %v9744
    %vm9752 = vweird.f32 %v9745
    %vm9753 = vmor %vm9751, %vm9752
    %v9754 = vsel %vm9753, %v9745, %v9750
    %v9755 = vmul.f32 %v9726, %v9754
    %v9756 = vmul.f32 %v9727, %v9754
    %v9757 = vmul.f32 %v9728, %v9754
    %v9758 = vmul.f32 %v9729, %v9754
    %s9759 = scalar_lea.vmem [#allocation5], 66
    %v9760 = vld [vmem:[%s9759] ss:$8 sm:$0xf]
    %v9762 = vperm.slane %v9760, 0
    %v9763 = vperm.slane %v9760, 1
    %v9764 = vperm.slane %v9760, 2
    %v9765 = vperm.slane %v9760, 3
    %v9770 = vmul.f32 %v9755, %v9762
    %v9771 = vmul.f32 %v9756, %v9763
    %v9772 = vmul.f32 %v9757, %v9764
    %v9773 = vmul.f32 %v9758, %v9765
    %s9774 = scalar_lea.vmem [#allocation5], 67
    %v9775 = vld [vmem:[%s9774] ss:$8 sm:$0xf]
    %v9777 = vperm.slane %v9775, 0
    %v9778 = vperm.slane %v9775, 1
    %v9779 = vperm.slane %v9775, 2
    %v9780 = vperm.slane %v9775, 3
    %v9785 = vadd.f32 %v9770, %v9777
    %v9786 = vadd.f32 %v9771, %v9778
    %v9787 = vadd.f32 %v9772, %v9779
    %v9788 = vadd.f32 %v9773, %v9780
    %v9789 = vld [vmem:[%s0 + $0x20] sm:$0xff]
    %v9790 = vld [vmem:[%s0 + $0x28] sm:$0xff]
    %v9791 = vld [vmem:[%s0 + $0x30] sm:$0xff]
    %v9792 = vld [vmem:[%s0 + $0x38] sm:$0xff]
    %v9793 = vadd.f32 %v9785, %v9789
    %v9794 = vadd.f32 %v9786, %v9790
    %v9795 = vadd.f32 %v9787, %v9791
    %v9796 = vadd.f32 %v9788, %v9792
    %v9797 = vld [vmem:[#allocation3 + $0x100] sm:$0xf]
    %v9798 = vld [vmem:[#allocation3 + $0x104] sm:$0xf]
    %v9799 = vld [vmem:[#allocation3 + $0x108] sm:$0xf]
    %v9800 = vld [vmem:[#allocation3 + $0x10c] sm:$0xf]
    %v9801 = vld [vmem:[#allocation3 + $0x110] sm:$0xf]
    %v9802 = vld [vmem:[#allocation3 + $0x114] sm:$0xf]
    %v9803 = vld [vmem:[#allocation3 + $0x118] sm:$0xf]
    %v9804 = vld [vmem:[#allocation3 + $0x11c] sm:$0xf]
    %v9805 = vld [vmem:[#allocation3 + $0x120] sm:$0xf]
    %v9806 = vld [vmem:[#allocation3 + $0x124] sm:$0xf]
    %v9807 = vld [vmem:[#allocation3 + $0x128] sm:$0xf]
    %v9808 = vld [vmem:[#allocation3 + $0x12c] sm:$0xf]
    %v9809 = vld [vmem:[#allocation3 + $0x130] sm:$0xf]
    %v9810 = vld [vmem:[#allocation3 + $0x134] sm:$0xf]
    %v9811 = vld [vmem:[#allocation3 + $0x138] sm:$0xf]
    %v9812 = vld [vmem:[#allocation3 + $0x13c] sm:$0xf]
    %v9813 = vld [vmem:[#allocation3 + $0x140] sm:$0xf]
    %v9814 = vld [vmem:[#allocation3 + $0x144] sm:$0xf]
    %v9815 = vld [vmem:[#allocation3 + $0x148] sm:$0xf]
    %v9816 = vld [vmem:[#allocation3 + $0x14c] sm:$0xf]
    %v9817 = vld [vmem:[#allocation3 + $0x150] sm:$0xf]
    %v9818 = vld [vmem:[#allocation3 + $0x154] sm:$0xf]
    %v9819 = vld [vmem:[#allocation3 + $0x158] sm:$0xf]
    %v9820 = vld [vmem:[#allocation3 + $0x15c] sm:$0xf]
    %v9821 = vld [vmem:[#allocation3 + $0x160] sm:$0xf]
    %v9822 = vld [vmem:[#allocation3 + $0x164] sm:$0xf]
    %v9823 = vld [vmem:[#allocation3 + $0x168] sm:$0xf]
    %v9824 = vld [vmem:[#allocation3 + $0x16c] sm:$0xf]
    %v9825 = vld [vmem:[#allocation3 + $0x170] sm:$0xf]
    %v9826 = vld [vmem:[#allocation3 + $0x174] sm:$0xf]
    %v9827 = vld [vmem:[#allocation3 + $0x178] sm:$0xf]
    %v9828 = vld [vmem:[#allocation3 + $0x17c] sm:$0xf]
    %v9829 = vld [vmem:[#allocation3 + $0x180] sm:$0xf]
    %v9830 = vld [vmem:[#allocation3 + $0x184] sm:$0xf]
    %v9831 = vld [vmem:[#allocation3 + $0x188] sm:$0xf]
    %v9832 = vld [vmem:[#allocation3 + $0x18c] sm:$0xf]
    %v9833 = vld [vmem:[#allocation3 + $0x190] sm:$0xf]
    %v9834 = vld [vmem:[#allocation3 + $0x194] sm:$0xf]
    %v9835 = vld [vmem:[#allocation3 + $0x198] sm:$0xf]
    %v9836 = vld [vmem:[#allocation3 + $0x19c] sm:$0xf]
    %v9837 = vld [vmem:[#allocation3 + $0x1a0] sm:$0xf]
    %v9838 = vld [vmem:[#allocation3 + $0x1a4] sm:$0xf]
    %v9839 = vld [vmem:[#allocation3 + $0x1a8] sm:$0xf]
    %v9840 = vld [vmem:[#allocation3 + $0x1ac] sm:$0xf]
    %v9841 = vld [vmem:[#allocation3 + $0x1b0] sm:$0xf]
    %v9842 = vld [vmem:[#allocation3 + $0x1b4] sm:$0xf]
    %v9843 = vld [vmem:[#allocation3 + $0x1b8] sm:$0xf]
    %v9844 = vld [vmem:[#allocation3 + $0x1bc] sm:$0xf]
    %v9845 = vld [vmem:[#allocation3 + $0x1c0] sm:$0xf]
    %v9846 = vld [vmem:[#allocation3 + $0x1c4] sm:$0xf]
    %v9847 = vld [vmem:[#allocation3 + $0x1c8] sm:$0xf]
    %v9848 = vld [vmem:[#allocation3 + $0x1cc] sm:$0xf]
    %v9849 = vld [vmem:[#allocation3 + $0x1d0] sm:$0xf]
    %v9850 = vld [vmem:[#allocation3 + $0x1d4] sm:$0xf]
    %v9851 = vld [vmem:[#allocation3 + $0x1d8] sm:$0xf]
    %v9852 = vld [vmem:[#allocation3 + $0x1dc] sm:$0xf]
    %v9853 = vld [vmem:[#allocation3 + $0x1e0] sm:$0xf]
    %v9854 = vld [vmem:[#allocation3 + $0x1e4] sm:$0xf]
    %v9855 = vld [vmem:[#allocation3 + $0x1e8] sm:$0xf]
    %v9856 = vld [vmem:[#allocation3 + $0x1ec] sm:$0xf]
    %v9857 = vld [vmem:[#allocation3 + $0x1f0] sm:$0xf]
    %v9858 = vld [vmem:[#allocation3 + $0x1f4] sm:$0xf]
    %v9859 = vld [vmem:[#allocation3 + $0x1f8] sm:$0xf]
    %v9860 = vld [vmem:[#allocation3 + $0x1fc] sm:$0xf]
    %v9861 = vpack.c.bf16 %v9793, %v9793
    %v9862 = vpack.c.bf16 %v9794, %v9794
    %v9863 = vpack.c.bf16 %v9795, %v9795
    %v9864 = vpack.c.bf16 %v9796, %v9796
    %v9865 = vld [vmem:[#allocation5 + $0x44] ss:$0 sm:$0xff]
    %v9930 = vunpack.c.l.b16 %v9797
    %v9931 = vunpack.c.l.b16 %v9798
    %v9932 = vunpack.c.l.b16 %v9799
    %v9933 = vunpack.c.l.b16 %v9800
    %v9934 = vunpack.c.l.b16 %v9801
    %v9935 = vunpack.c.l.b16 %v9802
    %v9936 = vunpack.c.l.b16 %v9803
    %v9937 = vunpack.c.l.b16 %v9804
    %v9938 = vunpack.c.l.b16 %v9805
    %v9939 = vunpack.c.l.b16 %v9806
    %v9940 = vunpack.c.l.b16 %v9807
    %v9941 = vunpack.c.l.b16 %v9808
    %v9942 = vunpack.c.l.b16 %v9809
    %v9943 = vunpack.c.l.b16 %v9810
    %v9944 = vunpack.c.l.b16 %v9811
    %v9945 = vunpack.c.l.b16 %v9812
    %v9946 = vunpack.c.l.b16 %v9813
    %v9947 = vunpack.c.l.b16 %v9814
    %v9948 = vunpack.c.l.b16 %v9815
    %v9949 = vunpack.c.l.b16 %v9816
    %v9950 = vunpack.c.l.b16 %v9817
    %v9951 = vunpack.c.l.b16 %v9818
    %v9952 = vunpack.c.l.b16 %v9819
    %v9953 = vunpack.c.l.b16 %v9820
    %v9954 = vunpack.c.l.b16 %v9821
    %v9955 = vunpack.c.l.b16 %v9822
    %v9956 = vunpack.c.l.b16 %v9823
    %v9957 = vunpack.c.l.b16 %v9824
    %v9958 = vunpack.c.l.b16 %v9825
    %v9959 = vunpack.c.l.b16 %v9826
    %v9960 = vunpack.c.l.b16 %v9827
    %v9961 = vunpack.c.l.b16 %v9828
    %v9962 = vunpack.c.l.b16 %v9829
    %v9963 = vunpack.c.l.b16 %v9830
    %v9964 = vunpack.c.l.b16 %v9831
    %v9965 = vunpack.c.l.b16 %v9832
    %v9966 = vunpack.c.l.b16 %v9833
    %v9967 = vunpack.c.l.b16 %v9834
    %v9968 = vunpack.c.l.b16 %v9835
    %v9969 = vunpack.c.l.b16 %v9836
    %v9970 = vunpack.c.l.b16 %v9837
    %v9971 = vunpack.c.l.b16 %v9838
    %v9972 = vunpack.c.l.b16 %v9839
    %v9973 = vunpack.c.l.b16 %v9840
    %v9974 = vunpack.c.l.b16 %v9841
    %v9975 = vunpack.c.l.b16 %v9842
    %v9976 = vunpack.c.l.b16 %v9843
    %v9977 = vunpack.c.l.b16 %v9844
    %v9978 = vunpack.c.l.b16 %v9845
    %v9979 = vunpack.c.l.b16 %v9846
    %v9980 = vunpack.c.l.b16 %v9847
    %v9981 = vunpack.c.l.b16 %v9848
    %v9982 = vunpack.c.l.b16 %v9849
    %v9983 = vunpack.c.l.b16 %v9850
    %v9984 = vunpack.c.l.b16 %v9851
    %v9985 = vunpack.c.l.b16 %v9852
    %v9986 = vunpack.c.l.b16 %v9853
    %v9987 = vunpack.c.l.b16 %v9854
    %v9988 = vunpack.c.l.b16 %v9855
    %v9989 = vunpack.c.l.b16 %v9856
    %v9990 = vunpack.c.l.b16 %v9857
    %v9991 = vunpack.c.l.b16 %v9858
    %v9992 = vunpack.c.l.b16 %v9859
    %v9993 = vunpack.c.l.b16 %v9860
    %v9994 = vpack.c.b16 %v9931, %v9930
    %v9995 = vpack.c.b16 %v9933, %v9932
    %v9996 = vpack.c.b16 %v9935, %v9934
    %v9997 = vpack.c.b16 %v9937, %v9936
    %v9998 = vpack.c.b16 %v9939, %v9938
    %v9999 = vpack.c.b16 %v9941, %v9940
    %v10000 = vpack.c.b16 %v9943, %v9942
    %v10001 = vpack.c.b16 %v9945, %v9944
    %v10002 = vpack.c.b16 %v9947, %v9946
    %v10003 = vpack.c.b16 %v9949, %v9948
    %v10004 = vpack.c.b16 %v9951, %v9950
    %v10005 = vpack.c.b16 %v9953, %v9952
    %v10006 = vpack.c.b16 %v9955, %v9954
    %v10007 = vpack.c.b16 %v9957, %v9956
    %v10008 = vpack.c.b16 %v9959, %v9958
    %v10009 = vpack.c.b16 %v9961, %v9960
    %v10010 = vpack.c.b16 %v9963, %v9962
    %v10011 = vpack.c.b16 %v9965, %v9964
    %v10012 = vpack.c.b16 %v9967, %v9966
    %v10013 = vpack.c.b16 %v9969, %v9968
    %v10014 = vpack.c.b16 %v9971, %v9970
    %v10015 = vpack.c.b16 %v9973, %v9972
    %v10016 = vpack.c.b16 %v9975, %v9974
    %v10017 = vpack.c.b16 %v9977, %v9976
    %v10018 = vpack.c.b16 %v9979, %v9978
    %v10019 = vpack.c.b16 %v9981, %v9980
    %v10020 = vpack.c.b16 %v9983, %v9982
    %v10021 = vpack.c.b16 %v9985, %v9984
    %v10022 = vpack.c.b16 %v9987, %v9986
    %v10023 = vpack.c.b16 %v9989, %v9988
    %v10024 = vpack.c.b16 %v9991, %v9990
    %v10025 = vpack.c.b16 %v9993, %v9992
    %10058 = vmatpush.bf16.msra.mxu0 %v10001
    %10059 = vmatpush.bf16.msra.mxu0 %v10000
    %10060 = vmatpush.bf16.msra.mxu0 %v9999
    %10061 = vmatpush.bf16.msra.mxu0 %v9998
    %10062 = vmatpush.bf16.msra.mxu0 %v9997
    %10063 = vmatpush.bf16.msra.mxu0 %v9996
    %10064 = vmatpush.bf16.msra.mxu0 %v9995
    %10065 = vmatpush.bf16.msra.mxu0 %v9994
    %10066 = vmatmul.bf16.gmra.mxu0 %v9861
    %v10067 = vpop.f32.mrf.mxu0
    %v10068 = vadd.f32 %v9865, %v10067
    %v10069 = vpop.f32.mrf.mxu0
    %10070 = vdwg.mxu0
    %10071 = vmatpush.bf16.msra.mxu0 %v10009
    %10072 = vmatpush.bf16.msra.mxu0 %v10008
    %10073 = vmatpush.bf16.msra.mxu0 %v10007
    %10074 = vmatpush.bf16.msra.mxu0 %v10006
    %10075 = vmatpush.bf16.msra.mxu0 %v10005
    %10076 = vmatpush.bf16.msra.mxu0 %v10004
    %10077 = vmatpush.bf16.msra.mxu0 %v10003
    %10078 = vmatpush.bf16.msra.mxu0 %v10002
    %10079 = vmatmul.bf16.gmra.mxu0 %v9862
    %v10080 = vpop.f32.mrf.mxu0
    %v10081 = vadd.f32 %v10068, %v10080
    %v10082 = vpop.f32.mrf.mxu0
    %10083 = vdwg.mxu0
    %10084 = vmatpush.bf16.msra.mxu0 %v10017
    %10085 = vmatpush.bf16.msra.mxu0 %v10016
    %10086 = vmatpush.bf16.msra.mxu0 %v10015
    %10087 = vmatpush.bf16.msra.mxu0 %v10014
    %10088 = vmatpush.bf16.msra.mxu0 %v10013
    %10089 = vmatpush.bf16.msra.mxu0 %v10012
    %10090 = vmatpush.bf16.msra.mxu0 %v10011
    %10091 = vmatpush.bf16.msra.mxu0 %v10010
    %10092 = vmatmul.bf16.gmra.mxu0 %v9863
    %v10093 = vpop.f32.mrf.mxu0
    %v10094 = vadd.f32 %v10081, %v10093
    %v10095 = vpop.f32.mrf.mxu0
    %10096 = vdwg.mxu0
    %10097 = vmatpush.bf16.msra.mxu0 %v10025
    %10098 = vmatpush.bf16.msra.mxu0 %v10024
    %10099 = vmatpush.bf16.msra.mxu0 %v10023
    %10100 = vmatpush.bf16.msra.mxu0 %v10022
    %10101 = vmatpush.bf16.msra.mxu0 %v10021
    %10102 = vmatpush.bf16.msra.mxu0 %v10020
    %10103 = vmatpush.bf16.msra.mxu0 %v10019
    %10104 = vmatpush.bf16.msra.mxu0 %v10018
    %10105 = vmatmul.bf16.gmra.mxu0 %v9864
    %v10106 = vpop.f32.mrf.mxu0
    %v10107 = vadd.f32 %v10094, %v10106
    %v10108 = vpop.f32.mrf.mxu0
    %10109 = vdwg.mxu0
    %v10110 = vmax.f32 %v10107, 0.0
    %v10111 = vld [vmem:[#allocation3 + $0x200] sm:$0xf]
    %v10112 = vld [vmem:[#allocation3 + $0x204] sm:$0xf]
    %v10113 = vld [vmem:[#allocation3 + $0x208] sm:$0xf]
    %v10114 = vld [vmem:[#allocation3 + $0x20c] sm:$0xf]
    %v10115 = vld [vmem:[#allocation3 + $0x210] sm:$0xf]
    %v10116 = vld [vmem:[#allocation3 + $0x214] sm:$0xf]
    %v10117 = vld [vmem:[#allocation3 + $0x218] sm:$0xf]
    %v10118 = vld [vmem:[#allocation3 + $0x21c] sm:$0xf]
    %v10119 = vld [vmem:[#allocation3 + $0x220] sm:$0xf]
    %v10120 = vld [vmem:[#allocation3 + $0x224] sm:$0xf]
    %v10121 = vld [vmem:[#allocation3 + $0x228] sm:$0xf]
    %v10122 = vld [vmem:[#allocation3 + $0x22c] sm:$0xf]
    %v10123 = vld [vmem:[#allocation3 + $0x230] sm:$0xf]
    %v10124 = vld [vmem:[#allocation3 + $0x234] sm:$0xf]
    %v10125 = vld [vmem:[#allocation3 + $0x238] sm:$0xf]
    %v10126 = vld [vmem:[#allocation3 + $0x23c] sm:$0xf]
    %v10127 = vpack.c.bf16 %v10110, %v10110
    %v10128 = vld [vmem:[#allocation5 + $0x45] ss:$0 sm:$0xff]
    %v10145 = vunpack.c.l.b16 %v10111
    %v10146 = vunpack.c.l.b16 %v10112
    %v10147 = vunpack.c.l.b16 %v10113
    %v10148 = vunpack.c.l.b16 %v10114
    %v10149 = vunpack.c.l.b16 %v10115
    %v10150 = vunpack.c.l.b16 %v10116
    %v10151 = vunpack.c.l.b16 %v10117
    %v10152 = vunpack.c.l.b16 %v10118
    %v10153 = vunpack.c.l.b16 %v10119
    %v10154 = vunpack.c.l.b16 %v10120
    %v10155 = vunpack.c.l.b16 %v10121
    %v10156 = vunpack.c.l.b16 %v10122
    %v10157 = vunpack.c.l.b16 %v10123
    %v10158 = vunpack.c.l.b16 %v10124
    %v10159 = vunpack.c.l.b16 %v10125
    %v10160 = vunpack.c.l.b16 %v10126
    %v10161 = vpack.c.b16 %v10146, %v10145
    %v10162 = vpack.c.b16 %v10148, %v10147
    %v10163 = vpack.c.b16 %v10150, %v10149
    %v10164 = vpack.c.b16 %v10152, %v10151
    %v10165 = vpack.c.b16 %v10154, %v10153
    %v10166 = vpack.c.b16 %v10156, %v10155
    %v10167 = vpack.c.b16 %v10158, %v10157
    %v10168 = vpack.c.b16 %v10160, %v10159
    %10177 = vmatpush.bf16.msra.mxu0 %v10168
    %10178 = vmatpush.bf16.msra.mxu0 %v10167
    %10179 = vmatpush.bf16.msra.mxu0 %v10166
    %10180 = vmatpush.bf16.msra.mxu0 %v10165
    %10181 = vmatpush.bf16.msra.mxu0 %v10164
    %10182 = vmatpush.bf16.msra.mxu0 %v10163
    %10183 = vmatpush.bf16.msra.mxu0 %v10162
    %10184 = vmatpush.bf16.msra.mxu0 %v10161
    %10185 = vmatmul.bf16.gmra.mxu0 %v10127
    %v10186 = vpop.f32.mrf.mxu0
    %v10187 = vadd.f32 %v10128, %v10186
    %v10188 = vpop.f32.mrf.mxu0
    %10189 = vdwg.mxu0
    %v10190 = vmax.f32 %v10187, 0.0
    %v10191 = vld [vmem:[#allocation3 + $0x240] sm:$0xf]
    %v10192 = vld [vmem:[#allocation3 + $0x244] sm:$0xf]
    %v10193 = vld [vmem:[#allocation3 + $0x248] sm:$0xf]
    %v10194 = vld [vmem:[#allocation3 + $0x24c] sm:$0xf]
    %v10195 = vld [vmem:[#allocation3 + $0x250] sm:$0xf]
    %v10196 = vld [vmem:[#allocation3 + $0x254] sm:$0xf]
    %v10197 = vld [vmem:[#allocation3 + $0x258] sm:$0xf]
    %v10198 = vld [vmem:[#allocation3 + $0x25c] sm:$0xf]
    %v10199 = vld [vmem:[#allocation3 + $0x260] sm:$0xf]
    %v10200 = vld [vmem:[#allocation3 + $0x264] sm:$0xf]
    %v10201 = vld [vmem:[#allocation3 + $0x268] sm:$0xf]
    %v10202 = vld [vmem:[#allocation3 + $0x26c] sm:$0xf]
    %v10203 = vld [vmem:[#allocation3 + $0x270] sm:$0xf]
    %v10204 = vld [vmem:[#allocation3 + $0x274] sm:$0xf]
    %v10205 = vld [vmem:[#allocation3 + $0x278] sm:$0xf]
    %v10206 = vld [vmem:[#allocation3 + $0x27c] sm:$0xf]
    %v10207 = vpack.c.bf16 %v10190, %v10190
    %v10208 = vld [vmem:[#allocation5 + $0x46] ss:$0 sm:$0xff]
    %v10225 = vunpack.c.l.b16 %v10191
    %v10226 = vunpack.c.l.b16 %v10192
    %v10227 = vunpack.c.l.b16 %v10193
    %v10228 = vunpack.c.l.b16 %v10194
    %v10229 = vunpack.c.l.b16 %v10195
    %v10230 = vunpack.c.l.b16 %v10196
    %v10231 = vunpack.c.l.b16 %v10197
    %v10232 = vunpack.c.l.b16 %v10198
    %v10233 = vunpack.c.l.b16 %v10199
    %v10234 = vunpack.c.l.b16 %v10200
    %v10235 = vunpack.c.l.b16 %v10201
    %v10236 = vunpack.c.l.b16 %v10202
    %v10237 = vunpack.c.l.b16 %v10203
    %v10238 = vunpack.c.l.b16 %v10204
    %v10239 = vunpack.c.l.b16 %v10205
    %v10240 = vunpack.c.l.b16 %v10206
    %v10241 = vpack.c.b16 %v10226, %v10225
    %v10242 = vpack.c.b16 %v10228, %v10227
    %v10243 = vpack.c.b16 %v10230, %v10229
    %v10244 = vpack.c.b16 %v10232, %v10231
    %v10245 = vpack.c.b16 %v10234, %v10233
    %v10246 = vpack.c.b16 %v10236, %v10235
    %v10247 = vpack.c.b16 %v10238, %v10237
    %v10248 = vpack.c.b16 %v10240, %v10239
    %10257 = vmatpush.bf16.msra.mxu0 %v10248
    %10258 = vmatpush.bf16.msra.mxu0 %v10247
    %10259 = vmatpush.bf16.msra.mxu0 %v10246
    %10260 = vmatpush.bf16.msra.mxu0 %v10245
    %10261 = vmatpush.bf16.msra.mxu0 %v10244
    %10262 = vmatpush.bf16.msra.mxu0 %v10243
    %10263 = vmatpush.bf16.msra.mxu0 %v10242
    %10264 = vmatpush.bf16.msra.mxu0 %v10241
    %10265 = vmatmul.bf16.gmra.mxu0 %v10207
    %v10266 = vpop.f32.mrf.mxu0
    %v10267 = vadd.f32 %v10208, %v10266
    %v10268 = vpop.f32.mrf.mxu0
    %10269 = vdwg.mxu0
    %10270 = vst [vmem:[#allocation11] sm:$0xff] %v10267
    // Predicated region
    $region38: #{multimodal_transformer.1} parent=1 // pred_check
      _
    $region39: #{multimodal_transformer.1} parent=1 // pred_check_branch
      %10272 = sbr.rel (0) target = $region41
    $region40: #{multimodal_transformer.1} parent=1 // pred_region
      %10274 = vsyncadd [#allocation7], 0
      %s10276 = sshll.u32 [#allocation11], 4
      %s10277 = int_to_ptr.vmem [resolvable:$true] %s10276
      %s10278 = sshll.u32 %s6, 4
      %s10279 = int_to_ptr.hbm [resolvable:$true] %s10278
      %10281 = dma.vmem_to_hbm [thread:$0]  %s10277, 128, %s10279, [#allocation7]
    $region41: #{multimodal_transformer.1} parent=1 // pred_fallthru
      _
    // Predicated region
    $region42: #{multimodal_transformer.1} parent=1 // pred_check
      _
    $region43: #{multimodal_transformer.1} parent=1 // pred_check_branch
      %10283 = sbr.rel (0) target = $region45
    $region44: #{multimodal_transformer.1} parent=1 // pred_region
      %10285 = dma.done [#allocation7], 128
    $region45: #{multimodal_transformer.1} parent=1 // pred_fallthru
      _
    %10286 = vsyncpa [#allocation6], 1
    %10287 = vsyncpa [#allocation9], 1
    %10288 = vsyncpa [#allocation7], 1
  %10289 = vsyncmov [#allocation4]
  %s10290 = vpop.sfrf %10289
  %p10291 = scmp.eq.s32.totalorder %s10290, 0
  %p10292 = pneg %p10291
  %10294 = shalt.err (%p10292)
  %s10295 = scalar_lea.sflag [#allocation4], 1
  %10296 = vsyncmov %s10295
  %s10297 = vpop.sfrf %10296
  %p10298 = scmp.eq.s32.totalorder %s10297, 0
  %p10299 = pneg %p10298
  %10301 = shalt.err (%p10299)

</llo_original>
